<compile_context>
chip_gen: v6e
topology: v6e:2x2x1
jax: 0.10.0
libtpu: 0.0.40
codegen_flags: <defaults>
</compile_context>

<pallas_src>
import functools

import jax
import jax.numpy as jnp
from jax import lax
from jax.experimental import pallas as pl
from jax.experimental.pallas import tpu as pltpu

TAU = 2.0
V_TH = 1.0
BN_EPS = 1e-5


def _round_up(x, m):
  return (x + m - 1) // m * m


# ---------------------------------------------------------------------------
# Kernel
# ---------------------------------------------------------------------------
def _sn_kernel(N, H, W, C, Mp, halo, has_prev, *args):
  if has_prev:
    (x_ref, prev_ref, mask_ref,
     w1_ref, g1_ref, b1_ref, w2_ref, g2_ref, b2_ref, w3_ref, g3_ref, b3_ref,
     out_ref, state_ref, buf_ref, y_ref) = args
  else:
    (x_ref, mask_ref,
     w1_ref, g1_ref, b1_ref, w2_ref, g2_ref, b2_ref, w3_ref, g3_ref, b3_ref,
     out_ref, state_ref, buf_ref, y_ref) = args
    prev_ref = None

  Wp = W + 2
  M = N * H * W                      # number of real (valid) pixels
  inv_m = 1.0 / M
  mask = mask_ref[...]               # (1, Mp); 1.0 at real pixels, 0 elsewhere

  # Zero the halo strips once.  The [halo, halo+Mp) window is rewritten with
  # each conv's input; padding / tail positions inside it stay 0 via masking.
  zeros_h = jnp.zeros((C, halo), jnp.float32)
  buf_ref[:, :halo] = zeros_h
  buf_ref[:, halo + Mp:] = zeros_h

  def conv3x3(w_ref):
    """3x3 same-pad conv: 9 accumulating (C,C)x(C,Mp) matmuls over shifted
    windows of the zero-padded buffer.  No im2col patch, no border masks."""
    acc = None
    for k in range(9):
      dh, dw = k // 3 - 1, k % 3 - 1
      d = dh * Wp + dw
      tap = buf_ref[:, halo + d:halo + d + Mp]       # static lane offset
      part = jnp.dot(w_ref[k], tap, preferred_element_type=jnp.float32)
      acc = part if acc is None else acc + part
    return acc

  def bn_affine(y, g_ref, b_ref):
    """Training-mode BatchNorm folded into a per-channel affine.

    Statistics are taken over the M real pixels only (mask kills padding and
    alignment-tail columns).  Single-pass biased variance; see review note on
    catastrophic cancellation if bit-level parity with PyTorch is required.
    """
    ym = y * mask
    s1 = jnp.sum(ym, axis=1, keepdims=True)
    s2 = jnp.sum(ym * ym, axis=1, keepdims=True)
    mean = s1 * inv_m
    var = s2 * inv_m - mean * mean
    scale = g_ref[...] * lax.rsqrt(var + BN_EPS)     # rsqrt -> EUP slot
    shift = b_ref[...] - mean * scale
    return y * scale + shift

  def lif(store_fn):
    """Multi-step LIF over channels (channels act as time after the module's
    permute).  Rows are streamed straight from y_ref; v is a (1, Mp) row."""
    def step(c, v):
      yc = y_ref[pl.ds(c, 1), :]
      v = v + (yc - v) * (1.0 / TAU)        # charge (decay_input, v_reset=0)
      s = (v >= V_TH).astype(jnp.float32)   # fire (Heaviside forward)
      v = v * (1.0 - s)                     # hard reset to 0
      store_fn(c, yc, s, v)
      return v

    v = jnp.zeros((1, Mp), jnp.float32)
    if C <= 32:                             # small C: full static unroll
      for c in range(C):
        v = step(c, v)
    else:                                   # realistic C: bound live ranges
      lax.fori_loop(0, C, step, v, unroll=8)

  # --- stage 1: mix = bn1(conv1(x + pre_volt[-1])); spikes = sn1(mix) -------
  if has_prev:
    buf_ref[:, halo:halo + Mp] = x_ref[...] + prev_ref[...]
  else:
    buf_ref[:, halo:halo + Mp] = x_ref[...]
  y_ref[...] = bn_affine(conv3x3(w1_ref), g1_ref, b1_ref)

  def store1(c, yc, s, v):
    # conv2 input = spikes + x; mask keeps padding columns at exactly 0.
    buf_ref[pl.ds(c, 1), pl.ds(halo, Mp)] = s * mask + x_ref[pl.ds(c, 1), :]
  lif(store1)

  # --- stage 2: y = bn2(conv2(spikes + x)); out = y + sn2(y); keep v_seq ----
  y_ref[...] = bn_affine(conv3x3(w2_ref), g2_ref, b2_ref)

  def store2(c, yc, s, v):
    out_ref[pl.ds(c, 1), :] = yc + s                      # cur_output
    buf_ref[pl.ds(c, 1), pl.ds(halo, Mp)] = v * mask      # v_seq (conv3 input)
  lif(store2)

  # --- stage 3: shifts = lif(bn3(conv3(v_seq))); state = v_seq + shifts -----
  y_ref[...] = bn_affine(conv3x3(w3_ref), g3_ref, b3_ref)

  def store3(c, yc, s, v):
    state_ref[pl.ds(c, 1), :] = buf_ref[pl.ds(c, 1), pl.ds(halo, Mp)] + s
  lif(store3)


# ---------------------------------------------------------------------------
# Host-side wrapper (layout plumbing, weight packing)
# ---------------------------------------------------------------------------
def _fs(shape):
  nd = len(shape)
  return pl.BlockSpec(shape, lambda i, _nd=nd: (0,) * _nd)


def _pack_w_taps(w_pt):
  """torch [Cout, Cin, 3, 3] -> (9, Cout, Cin); tap index k = kh*3 + kw."""
  c = w_pt.shape[0]
  return jnp.transpose(w_pt, (2, 3, 0, 1)).reshape(9, c, c).astype(jnp.float32)


def _to_padded(a_nchw, Mp):
  """(N,C,H,W) -> lane-dense (C, Mp) with real zeros at h/w borders + tail."""
  N, C, H, W = a_nchw.shape
  a = jnp.transpose(a_nchw, (1, 0, 2, 3)).astype(jnp.float32)
  a = jnp.pad(a, ((0, 0), (0, 0), (1, 1), (1, 1)))
  a = a.reshape(C, N * (H + 2) * (W + 2))
  return jnp.pad(a, ((0, 0), (0, Mp - a.shape[1])))


def _from_padded(a_cm, N, C, H, W):
  a = a_cm[:, :N * (H + 2) * (W + 2)].reshape(C, N, H + 2, W + 2)
  return jnp.transpose(a[:, :, 1:H + 1, 1:W + 1], (1, 0, 2, 3))


def sn_for_memory(x_nchw, params, pre_volt=None):
  """Forward pass of SNForMemory. x_nchw: (N, C, H, W) float32."""
  N, C, H, W = x_nchw.shape
  Mp = _round_up(N * (H + 2) * (W + 2), 128)       # lane-aligned padded width
  halo = _round_up(W + 3, 128)                     # covers the largest tap shift

  x_cm = _to_padded(x_nchw, Mp)

  has_prev = pre_volt is not None
  inputs = [x_cm]
  in_specs = [_fs((C, Mp))]
  if has_prev:
    # TODO(synk): assumes pre_volt[-1] broadcasts to (N, C, H, W) like the
    # PyTorch module's SnnState indexing.
    prev_nchw = jnp.broadcast_to(pre_volt[-1], x_nchw.shape)
    inputs.append(_to_padded(prev_nchw, Mp))
    in_specs.append(_fs((C, Mp)))

  mask = _to_padded(jnp.ones((N, 1, H, W), jnp.float32), Mp)   # (1, Mp)
  w1, w2, w3 = (_pack_w_taps(params["conv1_w"]), _pack_w_taps(params["conv2_w"]),
                _pack_w_taps(params["vshift_w"]))
  g1 = params["bn1_g"].reshape(C, 1).astype(jnp.float32)
  b1 = params["bn1_b"].reshape(C, 1).astype(jnp.float32)
  g2 = params["bn2_g"].reshape(C, 1).astype(jnp.float32)
  b2 = params["bn2_b"].reshape(C, 1).astype(jnp.float32)
  g3 = params["vbn_g"].reshape(C, 1).astype(jnp.float32)
  b3 = params["vbn_b"].reshape(C, 1).astype(jnp.float32)

  inputs += [mask, w1, g1, b1, w2, g2, b2, w3, g3, b3]
  in_specs += [_fs((1, Mp)),
               _fs((9, C, C)), _fs((C, 1)), _fs((C, 1)),
               _fs((9, C, C)), _fs((C, 1)), _fs((C, 1)),
               _fs((9, C, C)), _fs((C, 1)), _fs((C, 1))]

  kernel = functools.partial(_sn_kernel, N, H, W, C, Mp, halo, has_prev)

  out_cm, state_cm = pl.pallas_call(
      kernel,
      out_shape=(jax.ShapeDtypeStruct((C, Mp), jnp.float32),
                 jax.ShapeDtypeStruct((C, Mp), jnp.float32)),
      grid=(1,),
      in_specs=in_specs,
      out_specs=(_fs((C, Mp)), _fs((C, Mp))),
      scratch_shapes=[
          pltpu.VMEM((C, Mp + 2 * halo), jnp.float32),  # zero-padded conv input
          pltpu.VMEM((C, Mp), jnp.float32),             # BN'd conv output / LIF input
      ],
      compiler_params=pltpu.CompilerParams(
          dimension_semantics=("arbitrary",),
          vmem_limit_bytes=32 * 1024 * 1024),
  )(*inputs)

  cur_output = _from_padded(out_cm, N, C, H, W)
  cur_state = _from_padded(state_cm, N, C, H, W)
  return cur_output, cur_state


def init_params(key, dim):
  """Deterministic parameter init (shapes match the PyTorch module)."""
  k1, k2, k3 = jax.random.split(key, 3)
  bound = 1.0 / (dim * 9) ** 0.5  # kaiming-uniform-like bound

  def conv_w(k):
    return jax.random.uniform(k, (dim, dim, 3, 3), jnp.float32, -bound, bound)

  return {
      "conv1_w": conv_w(k1),
      "conv2_w": conv_w(k2),
      "vshift_w": conv_w(k3),
      "bn1_g": jnp.ones((dim,), jnp.float32),
      "bn1_b": jnp.zeros((dim,), jnp.float32),
      "bn2_g": jnp.ones((dim,), jnp.float32),
      "bn2_b": jnp.zeros((dim,), jnp.float32),
      "vbn_g": jnp.ones((dim,), jnp.float32),
      "vbn_b": jnp.zeros((dim,), jnp.float32),
  }


if __name__ == "__main__":
  key = jax.random.PRNGKey(0)
  kx, kp = jax.random.split(key)

  N, C, H, W = 2, 8, 16, 16          # dim = C = 8
  x = jax.random.normal(kx, (N, C, H, W), jnp.float32)
  params = init_params(kp, C)

  # Stateless call (pre_volt=None path: prev input skipped entirely).
  cur_output, cur_state = sn_for_memory(x, params, pre_volt=None)
  cur_output, cur_state = jax.block_until_ready((cur_output, cur_state))
  assert cur_output.shape == (N, C, H, W)
  assert cur_state.shape == (N, C, H, W)
  assert bool(jnp.isfinite(cur_output).all())
  assert bool(jnp.isfinite(cur_state).all())

  # Stateful call (pre_volt[-1] path).
  out2, state2 = sn_for_memory(x, params, pre_volt=cur_state[None])
  out2, state2 = jax.block_until_ready((out2, state2))
  assert out2.shape == (N, C, H, W)
  assert state2.shape == (N, C, H, W)
  assert bool(jnp.isfinite(out2).all())
  assert bool(jnp.isfinite(state2).all())

  print("KERNEL_OK")
</pallas_src>

<mosaic_0001>
module attributes {stable_mosaic.version = 11 : i64} {
  func.func @_sn_kernel(%arg0: i32, %arg1: memref<8x768xf32, #tpu.memory_space<vmem>>, %arg2: memref<1x768xf32, #tpu.memory_space<vmem>>, %arg3: memref<9x8x8xf32, #tpu.memory_space<vmem>>, %arg4: memref<8x1xf32, #tpu.memory_space<vmem>>, %arg5: memref<8x1xf32, #tpu.memory_space<vmem>>, %arg6: memref<9x8x8xf32, #tpu.memory_space<vmem>>, %arg7: memref<8x1xf32, #tpu.memory_space<vmem>>, %arg8: memref<8x1xf32, #tpu.memory_space<vmem>>, %arg9: memref<9x8x8xf32, #tpu.memory_space<vmem>>, %arg10: memref<8x1xf32, #tpu.memory_space<vmem>>, %arg11: memref<8x1xf32, #tpu.memory_space<vmem>>, %arg12: memref<8x768xf32, #tpu.memory_space<vmem>>, %arg13: memref<8x768xf32, #tpu.memory_space<vmem>>, %arg14: memref<8x1024xf32, #tpu.memory_space<vmem>>, %arg15: memref<8x768xf32, #tpu.memory_space<vmem>>) attributes {dimension_semantics = [#tpu.dimension_semantics<arbitrary>], iteration_bounds = array<i64: 1>, scalar_prefetch = 0 : i64, scratch_operands = 2 : i64, tpu.core_type = #tpu.core_type<tc>, window_params = [{pipeline_mode = #tpu.pipeline_mode<synchronous>, transform_indices = @transform_0, window_bounds = array<i64: 8, 768>}, {pipeline_mode = #tpu.pipeline_mode<synchronous>, transform_indices = @transform_1, window_bounds = array<i64: 1, 768>}, {pipeline_mode = #tpu.pipeline_mode<synchronous>, transform_indices = @transform_2, window_bounds = array<i64: 9, 8, 8>}, {pipeline_mode = #tpu.pipeline_mode<synchronous>, transform_indices = @transform_3, window_bounds = array<i64: 8, 1>}, {pipeline_mode = #tpu.pipeline_mode<synchronous>, transform_indices = @transform_4, window_bounds = array<i64: 8, 1>}, {pipeline_mode = #tpu.pipeline_mode<synchronous>, transform_indices = @transform_5, window_bounds = array<i64: 9, 8, 8>}, {pipeline_mode = #tpu.pipeline_mode<synchronous>, transform_indices = @transform_6, window_bounds = array<i64: 8, 1>}, {pipeline_mode = #tpu.pipeline_mode<synchronous>, transform_indices = @transform_7, window_bounds = array<i64: 8, 1>}, {pipeline_mode = #tpu.pipeline_mode<synchronous>, transform_indices = @transform_8, window_bounds = array<i64: 9, 8, 8>}, {pipeline_mode = #tpu.pipeline_mode<synchronous>, transform_indices = @transform_9, window_bounds = array<i64: 8, 1>}, {pipeline_mode = #tpu.pipeline_mode<synchronous>, transform_indices = @transform_10, window_bounds = array<i64: 8, 1>}, {pipeline_mode = #tpu.pipeline_mode<synchronous>, transform_indices = @transform_11, window_bounds = array<i64: 8, 768>}, {pipeline_mode = #tpu.pipeline_mode<synchronous>, transform_indices = @transform_12, window_bounds = array<i64: 8, 768>}]} {
    %c0 = arith.constant 0 : index
    %c0_0 = arith.constant 0 : index
    %0 = vector.load %arg2[%c0, %c0_0] : memref<1x768xf32, #tpu.memory_space<vmem>>, vector<1x768xf32>
    %cst = arith.constant 0.000000e+00 : f32
    %1 = vector.broadcast %cst : f32 to vector<8x128xf32>
    %c0_1 = arith.constant 0 : index
    %c0_2 = arith.constant 0 : index
    %2 = vector.load %arg14[%c0_1, %c0_2] : memref<8x1024xf32, #tpu.memory_space<vmem>>, vector<8x128xf32>
    tpu.vector_store %arg14[%c0_1, %c0_2], %1 {strides = array<i32>} : memref<8x1024xf32, #tpu.memory_space<vmem>>, vector<8x128xf32>,
    %c0_3 = arith.constant 0 : index
    %c896 = arith.constant 896 : index
    %3 = vector.load %arg14[%c0_3, %c896] : memref<8x1024xf32, #tpu.memory_space<vmem>>, vector<8x128xf32>
    tpu.vector_store %arg14[%c0_3, %c896], %1 {strides = array<i32>} : memref<8x1024xf32, #tpu.memory_space<vmem>>, vector<8x128xf32>,
    %c0_4 = arith.constant 0 : index
    %c0_5 = arith.constant 0 : index
    %4 = vector.load %arg1[%c0_4, %c0_5] : memref<8x768xf32, #tpu.memory_space<vmem>>, vector<8x768xf32>
    %c0_6 = arith.constant 0 : index
    %c128 = arith.constant 128 : index
    %5 = vector.load %arg14[%c0_6, %c128] : memref<8x1024xf32, #tpu.memory_space<vmem>>, vector<8x768xf32>
    tpu.vector_store %arg14[%c0_6, %c128], %4 {strides = array<i32>} : memref<8x1024xf32, #tpu.memory_space<vmem>>, vector<8x768xf32>,
    %c0_7 = arith.constant 0 : index
    %c109 = arith.constant 109 : index
    %6 = vector.load %arg14[%c0_7, %c109] : memref<8x1024xf32, #tpu.memory_space<vmem>>, vector<8x768xf32>
    %c0_8 = arith.constant 0 : index
    %c0_9 = arith.constant 0 : index
    %c0_10 = arith.constant 0 : index
    %7 = vector.load %arg3[%c0_8, %c0_9, %c0_10] : memref<9x8x8xf32, #tpu.memory_space<vmem>>, vector<1x8x8xf32>
    %8 = vector.shape_cast %7 : vector<1x8x8xf32> to vector<8x8xf32>
    %cst_11 = arith.constant dense<0.000000e+00> : vector<8x768xf32>
    %9 = tpu.matmul %8, %6, %cst_11 {dimension_numbers = #tpu.dot_dimension_numbers<[1], [0], [0], [1], [0, 0, 1, 1], [], []>} : vector<8x8xf32>, vector<8x768xf32>, vector<8x768xf32> -> vector<8x768xf32>
    %c0_12 = arith.constant 0 : index
    %c110 = arith.constant 110 : index
    %10 = vector.load %arg14[%c0_12, %c110] : memref<8x1024xf32, #tpu.memory_space<vmem>>, vector<8x768xf32>
    %c1 = arith.constant 1 : index
    %c0_13 = arith.constant 0 : index
    %c0_14 = arith.constant 0 : index
    %11 = vector.load %arg3[%c1, %c0_13, %c0_14] : memref<9x8x8xf32, #tpu.memory_space<vmem>>, vector<1x8x8xf32>
    %12 = vector.shape_cast %11 : vector<1x8x8xf32> to vector<8x8xf32>
    %cst_15 = arith.constant dense<0.000000e+00> : vector<8x768xf32>
    %13 = tpu.matmul %12, %10, %cst_15 {dimension_numbers = #tpu.dot_dimension_numbers<[1], [0], [0], [1], [0, 0, 1, 1], [], []>} : vector<8x8xf32>, vector<8x768xf32>, vector<8x768xf32> -> vector<8x768xf32>
    %14 = arith.addf %9, %13 : vector<8x768xf32>
    %c0_16 = arith.constant 0 : index
    %c111 = arith.constant 111 : index
    %15 = vector.load %arg14[%c0_16, %c111] : memref<8x1024xf32, #tpu.memory_space<vmem>>, vector<8x768xf32>
    %c2 = arith.constant 2 : index
    %c0_17 = arith.constant 0 : index
    %c0_18 = arith.constant 0 : index
    %16 = vector.load %arg3[%c2, %c0_17, %c0_18] : memref<9x8x8xf32, #tpu.memory_space<vmem>>, vector<1x8x8xf32>
    %17 = vector.shape_cast %16 : vector<1x8x8xf32> to vector<8x8xf32>
    %cst_19 = arith.constant dense<0.000000e+00> : vector<8x768xf32>
    %18 = tpu.matmul %17, %15, %cst_19 {dimension_numbers = #tpu.dot_dimension_numbers<[1], [0], [0], [1], [0, 0, 1, 1], [], []>} : vector<8x8xf32>, vector<8x768xf32>, vector<8x768xf32> -> vector<8x768xf32>
    %19 = arith.addf %14, %18 : vector<8x768xf32>
    %c0_20 = arith.constant 0 : index
    %c127 = arith.constant 127 : index
    %20 = vector.load %arg14[%c0_20, %c127] : memref<8x1024xf32, #tpu.memory_space<vmem>>, vector<8x768xf32>
    %c3 = arith.constant 3 : index
    %c0_21 = arith.constant 0 : index
    %c0_22 = arith.constant 0 : index
    %21 = vector.load %arg3[%c3, %c0_21, %c0_22] : memref<9x8x8xf32, #tpu.memory_space<vmem>>, vector<1x8x8xf32>
    %22 = vector.shape_cast %21 : vector<1x8x8xf32> to vector<8x8xf32>
    %cst_23 = arith.constant dense<0.000000e+00> : vector<8x768xf32>
    %23 = tpu.matmul %22, %20, %cst_23 {dimension_numbers = #tpu.dot_dimension_numbers<[1], [0], [0], [1], [0, 0, 1, 1], [], []>} : vector<8x8xf32>, vector<8x768xf32>, vector<8x768xf32> -> vector<8x768xf32>
    %24 = arith.addf %19, %23 : vector<8x768xf32>
    %c0_24 = arith.constant 0 : index
    %c128_25 = arith.constant 128 : index
    %25 = vector.load %arg14[%c0_24, %c128_25] : memref<8x1024xf32, #tpu.memory_space<vmem>>, vector<8x768xf32>
    %c4 = arith.constant 4 : index
    %c0_26 = arith.constant 0 : index
    %c0_27 = arith.constant 0 : index
    %26 = vector.load %arg3[%c4, %c0_26, %c0_27] : memref<9x8x8xf32, #tpu.memory_space<vmem>>, vector<1x8x8xf32>
    %27 = vector.shape_cast %26 : vector<1x8x8xf32> to vector<8x8xf32>
    %cst_28 = arith.constant dense<0.000000e+00> : vector<8x768xf32>
    %28 = tpu.matmul %27, %25, %cst_28 {dimension_numbers = #tpu.dot_dimension_numbers<[1], [0], [0], [1], [0, 0, 1, 1], [], []>} : vector<8x8xf32>, vector<8x768xf32>, vector<8x768xf32> -> vector<8x768xf32>
    %29 = arith.addf %24, %28 : vector<8x768xf32>
    %c0_29 = arith.constant 0 : index
    %c129 = arith.constant 129 : index
    %30 = vector.load %arg14[%c0_29, %c129] : memref<8x1024xf32, #tpu.memory_space<vmem>>, vector<8x768xf32>
    %c5 = arith.constant 5 : index
    %c0_30 = arith.constant 0 : index
    %c0_31 = arith.constant 0 : index
    %31 = vector.load %arg3[%c5, %c0_30, %c0_31] : memref<9x8x8xf32, #tpu.memory_space<vmem>>, vector<1x8x8xf32>
    %32 = vector.shape_cast %31 : vector<1x8x8xf32> to vector<8x8xf32>
    %cst_32 = arith.constant dense<0.000000e+00> : vector<8x768xf32>
    %33 = tpu.matmul %32, %30, %cst_32 {dimension_numbers = #tpu.dot_dimension_numbers<[1], [0], [0], [1], [0, 0, 1, 1], [], []>} : vector<8x8xf32>, vector<8x768xf32>, vector<8x768xf32> -> vector<8x768xf32>
    %34 = arith.addf %29, %33 : vector<8x768xf32>
    %c0_33 = arith.constant 0 : index
    %c145 = arith.constant 145 : index
    %35 = vector.load %arg14[%c0_33, %c145] : memref<8x1024xf32, #tpu.memory_space<vmem>>, vector<8x768xf32>
    %c6 = arith.constant 6 : index
    %c0_34 = arith.constant 0 : index
    %c0_35 = arith.constant 0 : index
    %36 = vector.load %arg3[%c6, %c0_34, %c0_35] : memref<9x8x8xf32, #tpu.memory_space<vmem>>, vector<1x8x8xf32>
    %37 = vector.shape_cast %36 : vector<1x8x8xf32> to vector<8x8xf32>
    %cst_36 = arith.constant dense<0.000000e+00> : vector<8x768xf32>
    %38 = tpu.matmul %37, %35, %cst_36 {dimension_numbers = #tpu.dot_dimension_numbers<[1], [0], [0], [1], [0, 0, 1, 1], [], []>} : vector<8x8xf32>, vector<8x768xf32>, vector<8x768xf32> -> vector<8x768xf32>
    %39 = arith.addf %34, %38 : vector<8x768xf32>
    %c0_37 = arith.constant 0 : index
    %c146 = arith.constant 146 : index
    %40 = vector.load %arg14[%c0_37, %c146] : memref<8x1024xf32, #tpu.memory_space<vmem>>, vector<8x768xf32>
    %c7 = arith.constant 7 : index
    %c0_38 = arith.constant 0 : index
    %c0_39 = arith.constant 0 : index
    %41 = vector.load %arg3[%c7, %c0_38, %c0_39] : memref<9x8x8xf32, #tpu.memory_space<vmem>>, vector<1x8x8xf32>
    %42 = vector.shape_cast %41 : vector<1x8x8xf32> to vector<8x8xf32>
    %cst_40 = arith.constant dense<0.000000e+00> : vector<8x768xf32>
    %43 = tpu.matmul %42, %40, %cst_40 {dimension_numbers = #tpu.dot_dimension_numbers<[1], [0], [0], [1], [0, 0, 1, 1], [], []>} : vector<8x8xf32>, vector<8x768xf32>, vector<8x768xf32> -> vector<8x768xf32>
    %44 = arith.addf %39, %43 : vector<8x768xf32>
    %c0_41 = arith.constant 0 : index
    %c147 = arith.constant 147 : index
    %45 = vector.load %arg14[%c0_41, %c147] : memref<8x1024xf32, #tpu.memory_space<vmem>>, vector<8x768xf32>
    %c8 = arith.constant 8 : index
    %c0_42 = arith.constant 0 : index
    %c0_43 = arith.constant 0 : index
    %46 = vector.load %arg3[%c8, %c0_42, %c0_43] : memref<9x8x8xf32, #tpu.memory_space<vmem>>, vector<1x8x8xf32>
    %47 = vector.shape_cast %46 : vector<1x8x8xf32> to vector<8x8xf32>
    %cst_44 = arith.constant dense<0.000000e+00> : vector<8x768xf32>
    %48 = tpu.matmul %47, %45, %cst_44 {dimension_numbers = #tpu.dot_dimension_numbers<[1], [0], [0], [1], [0, 0, 1, 1], [], []>} : vector<8x8xf32>, vector<8x768xf32>, vector<8x768xf32> -> vector<8x768xf32>
    %49 = arith.addf %44, %48 : vector<8x768xf32>
    %50 = vector.broadcast %0 : vector<1x768xf32> to vector<8x768xf32>
    %51 = arith.mulf %49, %50 : vector<8x768xf32>
    %cst_45 = arith.constant dense<0.000000e+00> : vector<8xf32>
    %52 = vector.multi_reduction <add>, %51, %cst_45 [1] : vector<8x768xf32> to vector<8xf32>
    %53 = vector.shape_cast %52 : vector<8xf32> to vector<8x1xf32>
    %54 = arith.mulf %51, %51 : vector<8x768xf32>
    %cst_46 = arith.constant dense<0.000000e+00> : vector<8xf32>
    %55 = vector.multi_reduction <add>, %54, %cst_46 [1] : vector<8x768xf32> to vector<8xf32>
    %56 = vector.shape_cast %55 : vector<8xf32> to vector<8x1xf32>
    %cst_47 = arith.constant 0.001953125 : f32
    %57 = vector.broadcast %cst_47 : f32 to vector<8x1xf32>
    %58 = arith.mulf %53, %57 : vector<8x1xf32>
    %cst_48 = arith.constant 0.001953125 : f32
    %59 = vector.broadcast %cst_48 : f32 to vector<8x1xf32>
    %60 = arith.mulf %56, %59 : vector<8x1xf32>
    %61 = arith.mulf %58, %58 : vector<8x1xf32>
    %62 = arith.subf %60, %61 : vector<8x1xf32>
    %c0_49 = arith.constant 0 : index
    %c0_50 = arith.constant 0 : index
    %63 = vector.load %arg4[%c0_49, %c0_50] : memref<8x1xf32, #tpu.memory_space<vmem>>, vector<8x1xf32>
    %cst_51 = arith.constant 9.99999974E-6 : f32
    %64 = vector.broadcast %cst_51 : f32 to vector<8x1xf32>
    %65 = arith.addf %62, %64 : vector<8x1xf32>
    %66 = math.rsqrt %65 : vector<8x1xf32>
    %67 = arith.mulf %63, %66 : vector<8x1xf32>
    %c0_52 = arith.constant 0 : index
    %c0_53 = arith.constant 0 : index
    %68 = vector.load %arg5[%c0_52, %c0_53] : memref<8x1xf32, #tpu.memory_space<vmem>>, vector<8x1xf32>
    %69 = arith.mulf %58, %67 : vector<8x1xf32>
    %70 = arith.subf %68, %69 : vector<8x1xf32>
    %71 = vector.broadcast %67 : vector<8x1xf32> to vector<8x768xf32>
    %72 = arith.mulf %49, %71 : vector<8x768xf32>
    %73 = vector.broadcast %70 : vector<8x1xf32> to vector<8x768xf32>
    %74 = arith.addf %72, %73 : vector<8x768xf32>
    %c0_54 = arith.constant 0 : index
    %c0_55 = arith.constant 0 : index
    %75 = vector.load %arg15[%c0_54, %c0_55] : memref<8x768xf32, #tpu.memory_space<vmem>>, vector<8x768xf32>
    tpu.vector_store %arg15[%c0_54, %c0_55], %74 {strides = array<i32>} : memref<8x768xf32, #tpu.memory_space<vmem>>, vector<8x768xf32>,
    %cst_56 = arith.constant 0.000000e+00 : f32
    %76 = vector.broadcast %cst_56 : f32 to vector<1x768xf32>
    %c0_57 = arith.constant 0 : index
    %c0_58 = arith.constant 0 : index
    %77 = vector.load %arg15[%c0_57, %c0_58] : memref<8x768xf32, #tpu.memory_space<vmem>>, vector<1x768xf32>
    %78 = arith.subf %77, %76 : vector<1x768xf32>
    %cst_59 = arith.constant 5.000000e-01 : f32
    %79 = vector.broadcast %cst_59 : f32 to vector<1x768xf32>
    %80 = arith.mulf %78, %79 : vector<1x768xf32>
    %81 = arith.addf %76, %80 : vector<1x768xf32>
    %cst_60 = arith.constant 1.000000e+00 : f32
    %82 = vector.broadcast %cst_60 : f32 to vector<1x768xf32>
    %83 = arith.cmpf oge, %81, %82 : vector<1x768xf32>
    %84 = arith.extui %83 : vector<1x768xi1> to vector<1x768xi32>
    %85 = arith.sitofp %84 : vector<1x768xi32> to vector<1x768xf32>
    %cst_61 = arith.constant 1.000000e+00 : f32
    %86 = vector.broadcast %cst_61 : f32 to vector<1x768xf32>
    %87 = arith.subf %86, %85 : vector<1x768xf32>
    %88 = arith.mulf %81, %87 : vector<1x768xf32>
    %89 = arith.mulf %85, %0 : vector<1x768xf32>
    %c0_62 = arith.constant 0 : index
    %c0_63 = arith.constant 0 : index
    %90 = vector.load %arg1[%c0_62, %c0_63] : memref<8x768xf32, #tpu.memory_space<vmem>>, vector<1x768xf32>
    %91 = arith.addf %89, %90 : vector<1x768xf32>
    %c0_64 = arith.constant 0 : index
    %c128_65 = arith.constant 128 : index
    %92 = vector.load %arg14[%c0_64, %c128_65] : memref<8x1024xf32, #tpu.memory_space<vmem>>, vector<1x768xf32>
    tpu.vector_store %arg14[%c0_64, %c128_65], %91 {strides = array<i32>} : memref<8x1024xf32, #tpu.memory_space<vmem>>, vector<1x768xf32>,
    %c1_66 = arith.constant 1 : index
    %c0_67 = arith.constant 0 : index
    %93 = vector.load %arg15[%c1_66, %c0_67] : memref<8x768xf32, #tpu.memory_space<vmem>>, vector<1x768xf32>
    %94 = arith.subf %93, %88 : vector<1x768xf32>
    %cst_68 = arith.constant 5.000000e-01 : f32
    %95 = vector.broadcast %cst_68 : f32 to vector<1x768xf32>
    %96 = arith.mulf %94, %95 : vector<1x768xf32>
    %97 = arith.addf %88, %96 : vector<1x768xf32>
    %cst_69 = arith.constant 1.000000e+00 : f32
    %98 = vector.broadcast %cst_69 : f32 to vector<1x768xf32>
    %99 = arith.cmpf oge, %97, %98 : vector<1x768xf32>
    %100 = arith.extui %99 : vector<1x768xi1> to vector<1x768xi32>
    %101 = arith.sitofp %100 : vector<1x768xi32> to vector<1x768xf32>
    %cst_70 = arith.constant 1.000000e+00 : f32
    %102 = vector.broadcast %cst_70 : f32 to vector<1x768xf32>
    %103 = arith.subf %102, %101 : vector<1x768xf32>
    %104 = arith.mulf %97, %103 : vector<1x768xf32>
    %105 = arith.mulf %101, %0 : vector<1x768xf32>
    %c1_71 = arith.constant 1 : index
    %c0_72 = arith.constant 0 : index
    %106 = vector.load %arg1[%c1_71, %c0_72] : memref<8x768xf32, #tpu.memory_space<vmem>>, vector<1x768xf32>
    %107 = arith.addf %105, %106 : vector<1x768xf32>
    %c1_73 = arith.constant 1 : index
    %c128_74 = arith.constant 128 : index
    %108 = vector.load %arg14[%c1_73, %c128_74] : memref<8x1024xf32, #tpu.memory_space<vmem>>, vector<1x768xf32>
    tpu.vector_store %arg14[%c1_73, %c128_74], %107 {strides = array<i32>} : memref<8x1024xf32, #tpu.memory_space<vmem>>, vector<1x768xf32>,
    %c2_75 = arith.constant 2 : index
    %c0_76 = arith.constant 0 : index
    %109 = vector.load %arg15[%c2_75, %c0_76] : memref<8x768xf32, #tpu.memory_space<vmem>>, vector<1x768xf32>
    %110 = arith.subf %109, %104 : vector<1x768xf32>
    %cst_77 = arith.constant 5.000000e-01 : f32
    %111 = vector.broadcast %cst_77 : f32 to vector<1x768xf32>
    %112 = arith.mulf %110, %111 : vector<1x768xf32>
    %113 = arith.addf %104, %112 : vector<1x768xf32>
    %cst_78 = arith.constant 1.000000e+00 : f32
    %114 = vector.broadcast %cst_78 : f32 to vector<1x768xf32>
    %115 = arith.cmpf oge, %113, %114 : vector<1x768xf32>
    %116 = arith.extui %115 : vector<1x768xi1> to vector<1x768xi32>
    %117 = arith.sitofp %116 : vector<1x768xi32> to vector<1x768xf32>
    %cst_79 = arith.constant 1.000000e+00 : f32
    %118 = vector.broadcast %cst_79 : f32 to vector<1x768xf32>
    %119 = arith.subf %118, %117 : vector<1x768xf32>
    %120 = arith.mulf %113, %119 : vector<1x768xf32>
    %121 = arith.mulf %117, %0 : vector<1x768xf32>
    %c2_80 = arith.constant 2 : index
    %c0_81 = arith.constant 0 : index
    %122 = vector.load %arg1[%c2_80, %c0_81] : memref<8x768xf32, #tpu.memory_space<vmem>>, vector<1x768xf32>
    %123 = arith.addf %121, %122 : vector<1x768xf32>
    %c2_82 = arith.constant 2 : index
    %c128_83 = arith.constant 128 : index
    %124 = vector.load %arg14[%c2_82, %c128_83] : memref<8x1024xf32, #tpu.memory_space<vmem>>, vector<1x768xf32>
    tpu.vector_store %arg14[%c2_82, %c128_83], %123 {strides = array<i32>} : memref<8x1024xf32, #tpu.memory_space<vmem>>, vector<1x768xf32>,
    %c3_84 = arith.constant 3 : index
    %c0_85 = arith.constant 0 : index
    %125 = vector.load %arg15[%c3_84, %c0_85] : memref<8x768xf32, #tpu.memory_space<vmem>>, vector<1x768xf32>
    %126 = arith.subf %125, %120 : vector<1x768xf32>
    %cst_86 = arith.constant 5.000000e-01 : f32
    %127 = vector.broadcast %cst_86 : f32 to vector<1x768xf32>
    %128 = arith.mulf %126, %127 : vector<1x768xf32>
    %129 = arith.addf %120, %128 : vector<1x768xf32>
    %cst_87 = arith.constant 1.000000e+00 : f32
    %130 = vector.broadcast %cst_87 : f32 to vector<1x768xf32>
    %131 = arith.cmpf oge, %129, %130 : vector<1x768xf32>
    %132 = arith.extui %131 : vector<1x768xi1> to vector<1x768xi32>
    %133 = arith.sitofp %132 : vector<1x768xi32> to vector<1x768xf32>
    %cst_88 = arith.constant 1.000000e+00 : f32
    %134 = vector.broadcast %cst_88 : f32 to vector<1x768xf32>
    %135 = arith.subf %134, %133 : vector<1x768xf32>
    %136 = arith.mulf %129, %135 : vector<1x768xf32>
    %137 = arith.mulf %133, %0 : vector<1x768xf32>
    %c3_89 = arith.constant 3 : index
    %c0_90 = arith.constant 0 : index
    %138 = vector.load %arg1[%c3_89, %c0_90] : memref<8x768xf32, #tpu.memory_space<vmem>>, vector<1x768xf32>
    %139 = arith.addf %137, %138 : vector<1x768xf32>
    %c3_91 = arith.constant 3 : index
    %c128_92 = arith.constant 128 : index
    %140 = vector.load %arg14[%c3_91, %c128_92] : memref<8x1024xf32, #tpu.memory_space<vmem>>, vector<1x768xf32>
    tpu.vector_store %arg14[%c3_91, %c128_92], %139 {strides = array<i32>} : memref<8x1024xf32, #tpu.memory_space<vmem>>, vector<1x768xf32>,
    %c4_93 = arith.constant 4 : index
    %c0_94 = arith.constant 0 : index
    %141 = vector.load %arg15[%c4_93, %c0_94] : memref<8x768xf32, #tpu.memory_space<vmem>>, vector<1x768xf32>
    %142 = arith.subf %141, %136 : vector<1x768xf32>
    %cst_95 = arith.constant 5.000000e-01 : f32
    %143 = vector.broadcast %cst_95 : f32 to vector<1x768xf32>
    %144 = arith.mulf %142, %143 : vector<1x768xf32>
    %145 = arith.addf %136, %144 : vector<1x768xf32>
    %cst_96 = arith.constant 1.000000e+00 : f32
    %146 = vector.broadcast %cst_96 : f32 to vector<1x768xf32>
    %147 = arith.cmpf oge, %145, %146 : vector<1x768xf32>
    %148 = arith.extui %147 : vector<1x768xi1> to vector<1x768xi32>
    %149 = arith.sitofp %148 : vector<1x768xi32> to vector<1x768xf32>
    %cst_97 = arith.constant 1.000000e+00 : f32
    %150 = vector.broadcast %cst_97 : f32 to vector<1x768xf32>
    %151 = arith.subf %150, %149 : vector<1x768xf32>
    %152 = arith.mulf %145, %151 : vector<1x768xf32>
    %153 = arith.mulf %149, %0 : vector<1x768xf32>
    %c4_98 = arith.constant 4 : index
    %c0_99 = arith.constant 0 : index
    %154 = vector.load %arg1[%c4_98, %c0_99] : memref<8x768xf32, #tpu.memory_space<vmem>>, vector<1x768xf32>
    %155 = arith.addf %153, %154 : vector<1x768xf32>
    %c4_100 = arith.constant 4 : index
    %c128_101 = arith.constant 128 : index
    %156 = vector.load %arg14[%c4_100, %c128_101] : memref<8x1024xf32, #tpu.memory_space<vmem>>, vector<1x768xf32>
    tpu.vector_store %arg14[%c4_100, %c128_101], %155 {strides = array<i32>} : memref<8x1024xf32, #tpu.memory_space<vmem>>, vector<1x768xf32>,
    %c5_102 = arith.constant 5 : index
    %c0_103 = arith.constant 0 : index
    %157 = vector.load %arg15[%c5_102, %c0_103] : memref<8x768xf32, #tpu.memory_space<vmem>>, vector<1x768xf32>
    %158 = arith.subf %157, %152 : vector<1x768xf32>
    %cst_104 = arith.constant 5.000000e-01 : f32
    %159 = vector.broadcast %cst_104 : f32 to vector<1x768xf32>
    %160 = arith.mulf %158, %159 : vector<1x768xf32>
    %161 = arith.addf %152, %160 : vector<1x768xf32>
    %cst_105 = arith.constant 1.000000e+00 : f32
    %162 = vector.broadcast %cst_105 : f32 to vector<1x768xf32>
    %163 = arith.cmpf oge, %161, %162 : vector<1x768xf32>
    %164 = arith.extui %163 : vector<1x768xi1> to vector<1x768xi32>
    %165 = arith.sitofp %164 : vector<1x768xi32> to vector<1x768xf32>
    %cst_106 = arith.constant 1.000000e+00 : f32
    %166 = vector.broadcast %cst_106 : f32 to vector<1x768xf32>
    %167 = arith.subf %166, %165 : vector<1x768xf32>
    %168 = arith.mulf %161, %167 : vector<1x768xf32>
    %169 = arith.mulf %165, %0 : vector<1x768xf32>
    %c5_107 = arith.constant 5 : index
    %c0_108 = arith.constant 0 : index
    %170 = vector.load %arg1[%c5_107, %c0_108] : memref<8x768xf32, #tpu.memory_space<vmem>>, vector<1x768xf32>
    %171 = arith.addf %169, %170 : vector<1x768xf32>
    %c5_109 = arith.constant 5 : index
    %c128_110 = arith.constant 128 : index
    %172 = vector.load %arg14[%c5_109, %c128_110] : memref<8x1024xf32, #tpu.memory_space<vmem>>, vector<1x768xf32>
    tpu.vector_store %arg14[%c5_109, %c128_110], %171 {strides = array<i32>} : memref<8x1024xf32, #tpu.memory_space<vmem>>, vector<1x768xf32>,
    %c6_111 = arith.constant 6 : index
    %c0_112 = arith.constant 0 : index
    %173 = vector.load %arg15[%c6_111, %c0_112] : memref<8x768xf32, #tpu.memory_space<vmem>>, vector<1x768xf32>
    %174 = arith.subf %173, %168 : vector<1x768xf32>
    %cst_113 = arith.constant 5.000000e-01 : f32
    %175 = vector.broadcast %cst_113 : f32 to vector<1x768xf32>
    %176 = arith.mulf %174, %175 : vector<1x768xf32>
    %177 = arith.addf %168, %176 : vector<1x768xf32>
    %cst_114 = arith.constant 1.000000e+00 : f32
    %178 = vector.broadcast %cst_114 : f32 to vector<1x768xf32>
    %179 = arith.cmpf oge, %177, %178 : vector<1x768xf32>
    %180 = arith.extui %179 : vector<1x768xi1> to vector<1x768xi32>
    %181 = arith.sitofp %180 : vector<1x768xi32> to vector<1x768xf32>
    %cst_115 = arith.constant 1.000000e+00 : f32
    %182 = vector.broadcast %cst_115 : f32 to vector<1x768xf32>
    %183 = arith.subf %182, %181 : vector<1x768xf32>
    %184 = arith.mulf %177, %183 : vector<1x768xf32>
    %185 = arith.mulf %181, %0 : vector<1x768xf32>
    %c6_116 = arith.constant 6 : index
    %c0_117 = arith.constant 0 : index
    %186 = vector.load %arg1[%c6_116, %c0_117] : memref<8x768xf32, #tpu.memory_space<vmem>>, vector<1x768xf32>
    %187 = arith.addf %185, %186 : vector<1x768xf32>
    %c6_118 = arith.constant 6 : index
    %c128_119 = arith.constant 128 : index
    %188 = vector.load %arg14[%c6_118, %c128_119] : memref<8x1024xf32, #tpu.memory_space<vmem>>, vector<1x768xf32>
    tpu.vector_store %arg14[%c6_118, %c128_119], %187 {strides = array<i32>} : memref<8x1024xf32, #tpu.memory_space<vmem>>, vector<1x768xf32>,
    %c7_120 = arith.constant 7 : index
    %c0_121 = arith.constant 0 : index
    %189 = vector.load %arg15[%c7_120, %c0_121] : memref<8x768xf32, #tpu.memory_space<vmem>>, vector<1x768xf32>
    %190 = arith.subf %189, %184 : vector<1x768xf32>
    %cst_122 = arith.constant 5.000000e-01 : f32
    %191 = vector.broadcast %cst_122 : f32 to vector<1x768xf32>
    %192 = arith.mulf %190, %191 : vector<1x768xf32>
    %193 = arith.addf %184, %192 : vector<1x768xf32>
    %cst_123 = arith.constant 1.000000e+00 : f32
    %194 = vector.broadcast %cst_123 : f32 to vector<1x768xf32>
    %195 = arith.cmpf oge, %193, %194 : vector<1x768xf32>
    %196 = arith.extui %195 : vector<1x768xi1> to vector<1x768xi32>
    %197 = arith.sitofp %196 : vector<1x768xi32> to vector<1x768xf32>
    %198 = arith.mulf %197, %0 : vector<1x768xf32>
    %c7_124 = arith.constant 7 : index
    %c0_125 = arith.constant 0 : index
    %199 = vector.load %arg1[%c7_124, %c0_125] : memref<8x768xf32, #tpu.memory_space<vmem>>, vector<1x768xf32>
    %200 = arith.addf %198, %199 : vector<1x768xf32>
    %c7_126 = arith.constant 7 : index
    %c128_127 = arith.constant 128 : index
    %201 = vector.load %arg14[%c7_126, %c128_127] : memref<8x1024xf32, #tpu.memory_space<vmem>>, vector<1x768xf32>
    tpu.vector_store %arg14[%c7_126, %c128_127], %200 {strides = array<i32>} : memref<8x1024xf32, #tpu.memory_space<vmem>>, vector<1x768xf32>,
    %c0_128 = arith.constant 0 : index
    %c109_129 = arith.constant 109 : index
    %202 = vector.load %arg14[%c0_128, %c109_129] : memref<8x1024xf32, #tpu.memory_space<vmem>>, vector<8x768xf32>
    %c0_130 = arith.constant 0 : index
    %c0_131 = arith.constant 0 : index
    %c0_132 = arith.constant 0 : index
    %203 = vector.load %arg6[%c0_130, %c0_131, %c0_132] : memref<9x8x8xf32, #tpu.memory_space<vmem>>, vector<1x8x8xf32>
    %204 = vector.shape_cast %203 : vector<1x8x8xf32> to vector<8x8xf32>
    %cst_133 = arith.constant dense<0.000000e+00> : vector<8x768xf32>
    %205 = tpu.matmul %204, %202, %cst_133 {dimension_numbers = #tpu.dot_dimension_numbers<[1], [0], [0], [1], [0, 0, 1, 1], [], []>} : vector<8x8xf32>, vector<8x768xf32>, vector<8x768xf32> -> vector<8x768xf32>
    %c0_134 = arith.constant 0 : index
    %c110_135 = arith.constant 110 : index
    %206 = vector.load %arg14[%c0_134, %c110_135] : memref<8x1024xf32, #tpu.memory_space<vmem>>, vector<8x768xf32>
    %c1_136 = arith.constant 1 : index
    %c0_137 = arith.constant 0 : index
    %c0_138 = arith.constant 0 : index
    %207 = vector.load %arg6[%c1_136, %c0_137, %c0_138] : memref<9x8x8xf32, #tpu.memory_space<vmem>>, vector<1x8x8xf32>
    %208 = vector.shape_cast %207 : vector<1x8x8xf32> to vector<8x8xf32>
    %cst_139 = arith.constant dense<0.000000e+00> : vector<8x768xf32>
    %209 = tpu.matmul %208, %206, %cst_139 {dimension_numbers = #tpu.dot_dimension_numbers<[1], [0], [0], [1], [0, 0, 1, 1], [], []>} : vector<8x8xf32>, vector<8x768xf32>, vector<8x768xf32> -> vector<8x768xf32>
    %210 = arith.addf %205, %209 : vector<8x768xf32>
    %c0_140 = arith.constant 0 : index
    %c111_141 = arith.constant 111 : index
    %211 = vector.load %arg14[%c0_140, %c111_141] : memref<8x1024xf32, #tpu.memory_space<vmem>>, vector<8x768xf32>
    %c2_142 = arith.constant 2 : index
    %c0_143 = arith.constant 0 : index
    %c0_144 = arith.constant 0 : index
    %212 = vector.load %arg6[%c2_142, %c0_143, %c0_144] : memref<9x8x8xf32, #tpu.memory_space<vmem>>, vector<1x8x8xf32>
    %213 = vector.shape_cast %212 : vector<1x8x8xf32> to vector<8x8xf32>
    %cst_145 = arith.constant dense<0.000000e+00> : vector<8x768xf32>
    %214 = tpu.matmul %213, %211, %cst_145 {dimension_numbers = #tpu.dot_dimension_numbers<[1], [0], [0], [1], [0, 0, 1, 1], [], []>} : vector<8x8xf32>, vector<8x768xf32>, vector<8x768xf32> -> vector<8x768xf32>
    %215 = arith.addf %210, %214 : vector<8x768xf32>
    %c0_146 = arith.constant 0 : index
    %c127_147 = arith.constant 127 : index
    %216 = vector.load %arg14[%c0_146, %c127_147] : memref<8x1024xf32, #tpu.memory_space<vmem>>, vector<8x768xf32>
    %c3_148 = arith.constant 3 : index
    %c0_149 = arith.constant 0 : index
    %c0_150 = arith.constant 0 : index
    %217 = vector.load %arg6[%c3_148, %c0_149, %c0_150] : memref<9x8x8xf32, #tpu.memory_space<vmem>>, vector<1x8x8xf32>
    %218 = vector.shape_cast %217 : vector<1x8x8xf32> to vector<8x8xf32>
    %cst_151 = arith.constant dense<0.000000e+00> : vector<8x768xf32>
    %219 = tpu.matmul %218, %216, %cst_151 {dimension_numbers = #tpu.dot_dimension_numbers<[1], [0], [0], [1], [0, 0, 1, 1], [], []>} : vector<8x8xf32>, vector<8x768xf32>, vector<8x768xf32> -> vector<8x768xf32>
    %220 = arith.addf %215, %219 : vector<8x768xf32>
    %c0_152 = arith.constant 0 : index
    %c128_153 = arith.constant 128 : index
    %221 = vector.load %arg14[%c0_152, %c128_153] : memref<8x1024xf32, #tpu.memory_space<vmem>>, vector<8x768xf32>
    %c4_154 = arith.constant 4 : index
    %c0_155 = arith.constant 0 : index
    %c0_156 = arith.constant 0 : index
    %222 = vector.load %arg6[%c4_154, %c0_155, %c0_156] : memref<9x8x8xf32, #tpu.memory_space<vmem>>, vector<1x8x8xf32>
    %223 = vector.shape_cast %222 : vector<1x8x8xf32> to vector<8x8xf32>
    %cst_157 = arith.constant dense<0.000000e+00> : vector<8x768xf32>
    %224 = tpu.matmul %223, %221, %cst_157 {dimension_numbers = #tpu.dot_dimension_numbers<[1], [0], [0], [1], [0, 0, 1, 1], [], []>} : vector<8x8xf32>, vector<8x768xf32>, vector<8x768xf32> -> vector<8x768xf32>
    %225 = arith.addf %220, %224 : vector<8x768xf32>
    %c0_158 = arith.constant 0 : index
    %c129_159 = arith.constant 129 : index
    %226 = vector.load %arg14[%c0_158, %c129_159] : memref<8x1024xf32, #tpu.memory_space<vmem>>, vector<8x768xf32>
    %c5_160 = arith.constant 5 : index
    %c0_161 = arith.constant 0 : index
    %c0_162 = arith.constant 0 : index
    %227 = vector.load %arg6[%c5_160, %c0_161, %c0_162] : memref<9x8x8xf32, #tpu.memory_space<vmem>>, vector<1x8x8xf32>
    %228 = vector.shape_cast %227 : vector<1x8x8xf32> to vector<8x8xf32>
    %cst_163 = arith.constant dense<0.000000e+00> : vector<8x768xf32>
    %229 = tpu.matmul %228, %226, %cst_163 {dimension_numbers = #tpu.dot_dimension_numbers<[1], [0], [0], [1], [0, 0, 1, 1], [], []>} : vector<8x8xf32>, vector<8x768xf32>, vector<8x768xf32> -> vector<8x768xf32>
    %230 = arith.addf %225, %229 : vector<8x768xf32>
    %c0_164 = arith.constant 0 : index
    %c145_165 = arith.constant 145 : index
    %231 = vector.load %arg14[%c0_164, %c145_165] : memref<8x1024xf32, #tpu.memory_space<vmem>>, vector<8x768xf32>
    %c6_166 = arith.constant 6 : index
    %c0_167 = arith.constant 0 : index
    %c0_168 = arith.constant 0 : index
    %232 = vector.load %arg6[%c6_166, %c0_167, %c0_168] : memref<9x8x8xf32, #tpu.memory_space<vmem>>, vector<1x8x8xf32>
    %233 = vector.shape_cast %232 : vector<1x8x8xf32> to vector<8x8xf32>
    %cst_169 = arith.constant dense<0.000000e+00> : vector<8x768xf32>
    %234 = tpu.matmul %233, %231, %cst_169 {dimension_numbers = #tpu.dot_dimension_numbers<[1], [0], [0], [1], [0, 0, 1, 1], [], []>} : vector<8x8xf32>, vector<8x768xf32>, vector<8x768xf32> -> vector<8x768xf32>
    %235 = arith.addf %230, %234 : vector<8x768xf32>
    %c0_170 = arith.constant 0 : index
    %c146_171 = arith.constant 146 : index
    %236 = vector.load %arg14[%c0_170, %c146_171] : memref<8x1024xf32, #tpu.memory_space<vmem>>, vector<8x768xf32>
    %c7_172 = arith.constant 7 : index
    %c0_173 = arith.constant 0 : index
    %c0_174 = arith.constant 0 : index
    %237 = vector.load %arg6[%c7_172, %c0_173, %c0_174] : memref<9x8x8xf32, #tpu.memory_space<vmem>>, vector<1x8x8xf32>
    %238 = vector.shape_cast %237 : vector<1x8x8xf32> to vector<8x8xf32>
    %cst_175 = arith.constant dense<0.000000e+00> : vector<8x768xf32>
    %239 = tpu.matmul %238, %236, %cst_175 {dimension_numbers = #tpu.dot_dimension_numbers<[1], [0], [0], [1], [0, 0, 1, 1], [], []>} : vector<8x8xf32>, vector<8x768xf32>, vector<8x768xf32> -> vector<8x768xf32>
    %240 = arith.addf %235, %239 : vector<8x768xf32>
    %c0_176 = arith.constant 0 : index
    %c147_177 = arith.constant 147 : index
    %241 = vector.load %arg14[%c0_176, %c147_177] : memref<8x1024xf32, #tpu.memory_space<vmem>>, vector<8x768xf32>
    %c8_178 = arith.constant 8 : index
    %c0_179 = arith.constant 0 : index
    %c0_180 = arith.constant 0 : index
    %242 = vector.load %arg6[%c8_178, %c0_179, %c0_180] : memref<9x8x8xf32, #tpu.memory_space<vmem>>, vector<1x8x8xf32>
    %243 = vector.shape_cast %242 : vector<1x8x8xf32> to vector<8x8xf32>
    %cst_181 = arith.constant dense<0.000000e+00> : vector<8x768xf32>
    %244 = tpu.matmul %243, %241, %cst_181 {dimension_numbers = #tpu.dot_dimension_numbers<[1], [0], [0], [1], [0, 0, 1, 1], [], []>} : vector<8x8xf32>, vector<8x768xf32>, vector<8x768xf32> -> vector<8x768xf32>
    %245 = arith.addf %240, %244 : vector<8x768xf32>
    %246 = vector.broadcast %0 : vector<1x768xf32> to vector<8x768xf32>
    %247 = arith.mulf %245, %246 : vector<8x768xf32>
    %cst_182 = arith.constant dense<0.000000e+00> : vector<8xf32>
    %248 = vector.multi_reduction <add>, %247, %cst_182 [1] : vector<8x768xf32> to vector<8xf32>
    %249 = vector.shape_cast %248 : vector<8xf32> to vector<8x1xf32>
    %250 = arith.mulf %247, %247 : vector<8x768xf32>
    %cst_183 = arith.constant dense<0.000000e+00> : vector<8xf32>
    %251 = vector.multi_reduction <add>, %250, %cst_183 [1] : vector<8x768xf32> to vector<8xf32>
    %252 = vector.shape_cast %251 : vector<8xf32> to vector<8x1xf32>
    %cst_184 = arith.constant 0.001953125 : f32
    %253 = vector.broadcast %cst_184 : f32 to vector<8x1xf32>
    %254 = arith.mulf %249, %253 : vector<8x1xf32>
    %cst_185 = arith.constant 0.001953125 : f32
    %255 = vector.broadcast %cst_185 : f32 to vector<8x1xf32>
    %256 = arith.mulf %252, %255 : vector<8x1xf32>
    %257 = arith.mulf %254, %254 : vector<8x1xf32>
    %258 = arith.subf %256, %257 : vector<8x1xf32>
    %c0_186 = arith.constant 0 : index
    %c0_187 = arith.constant 0 : index
    %259 = vector.load %arg7[%c0_186, %c0_187] : memref<8x1xf32, #tpu.memory_space<vmem>>, vector<8x1xf32>
    %cst_188 = arith.constant 9.99999974E-6 : f32
    %260 = vector.broadcast %cst_188 : f32 to vector<8x1xf32>
    %261 = arith.addf %258, %260 : vector<8x1xf32>
    %262 = math.rsqrt %261 : vector<8x1xf32>
    %263 = arith.mulf %259, %262 : vector<8x1xf32>
    %c0_189 = arith.constant 0 : index
    %c0_190 = arith.constant 0 : index
    %264 = vector.load %arg8[%c0_189, %c0_190] : memref<8x1xf32, #tpu.memory_space<vmem>>, vector<8x1xf32>
    %265 = arith.mulf %254, %263 : vector<8x1xf32>
    %266 = arith.subf %264, %265 : vector<8x1xf32>
    %267 = vector.broadcast %263 : vector<8x1xf32> to vector<8x768xf32>
    %268 = arith.mulf %245, %267 : vector<8x768xf32>
    %269 = vector.broadcast %266 : vector<8x1xf32> to vector<8x768xf32>
    %270 = arith.addf %268, %269 : vector<8x768xf32>
    %c0_191 = arith.constant 0 : index
    %c0_192 = arith.constant 0 : index
    %271 = vector.load %arg15[%c0_191, %c0_192] : memref<8x768xf32, #tpu.memory_space<vmem>>, vector<8x768xf32>
    tpu.vector_store %arg15[%c0_191, %c0_192], %270 {strides = array<i32>} : memref<8x768xf32, #tpu.memory_space<vmem>>, vector<8x768xf32>,
    %cst_193 = arith.constant 0.000000e+00 : f32
    %272 = vector.broadcast %cst_193 : f32 to vector<1x768xf32>
    %c0_194 = arith.constant 0 : index
    %c0_195 = arith.constant 0 : index
    %273 = vector.load %arg15[%c0_194, %c0_195] : memref<8x768xf32, #tpu.memory_space<vmem>>, vector<1x768xf32>
    %274 = arith.subf %273, %272 : vector<1x768xf32>
    %cst_196 = arith.constant 5.000000e-01 : f32
    %275 = vector.broadcast %cst_196 : f32 to vector<1x768xf32>
    %276 = arith.mulf %274, %275 : vector<1x768xf32>
    %277 = arith.addf %272, %276 : vector<1x768xf32>
    %cst_197 = arith.constant 1.000000e+00 : f32
    %278 = vector.broadcast %cst_197 : f32 to vector<1x768xf32>
    %279 = arith.cmpf oge, %277, %278 : vector<1x768xf32>
    %280 = arith.extui %279 : vector<1x768xi1> to vector<1x768xi32>
    %281 = arith.sitofp %280 : vector<1x768xi32> to vector<1x768xf32>
    %cst_198 = arith.constant 1.000000e+00 : f32
    %282 = vector.broadcast %cst_198 : f32 to vector<1x768xf32>
    %283 = arith.subf %282, %281 : vector<1x768xf32>
    %284 = arith.mulf %277, %283 : vector<1x768xf32>
    %285 = arith.addf %273, %281 : vector<1x768xf32>
    %c0_199 = arith.constant 0 : index
    %c0_200 = arith.constant 0 : index
    %286 = vector.load %arg12[%c0_199, %c0_200] : memref<8x768xf32, #tpu.memory_space<vmem>>, vector<1x768xf32>
    tpu.vector_store %arg12[%c0_199, %c0_200], %285 {strides = array<i32>} : memref<8x768xf32, #tpu.memory_space<vmem>>, vector<1x768xf32>,
    %287 = arith.mulf %284, %0 : vector<1x768xf32>
    %c0_201 = arith.constant 0 : index
    %c128_202 = arith.constant 128 : index
    %288 = vector.load %arg14[%c0_201, %c128_202] : memref<8x1024xf32, #tpu.memory_space<vmem>>, vector<1x768xf32>
    tpu.vector_store %arg14[%c0_201, %c128_202], %287 {strides = array<i32>} : memref<8x1024xf32, #tpu.memory_space<vmem>>, vector<1x768xf32>,
    %c1_203 = arith.constant 1 : index
    %c0_204 = arith.constant 0 : index
    %289 = vector.load %arg15[%c1_203, %c0_204] : memref<8x768xf32, #tpu.memory_space<vmem>>, vector<1x768xf32>
    %290 = arith.subf %289, %284 : vector<1x768xf32>
    %cst_205 = arith.constant 5.000000e-01 : f32
    %291 = vector.broadcast %cst_205 : f32 to vector<1x768xf32>
    %292 = arith.mulf %290, %291 : vector<1x768xf32>
    %293 = arith.addf %284, %292 : vector<1x768xf32>
    %cst_206 = arith.constant 1.000000e+00 : f32
    %294 = vector.broadcast %cst_206 : f32 to vector<1x768xf32>
    %295 = arith.cmpf oge, %293, %294 : vector<1x768xf32>
    %296 = arith.extui %295 : vector<1x768xi1> to vector<1x768xi32>
    %297 = arith.sitofp %296 : vector<1x768xi32> to vector<1x768xf32>
    %cst_207 = arith.constant 1.000000e+00 : f32
    %298 = vector.broadcast %cst_207 : f32 to vector<1x768xf32>
    %299 = arith.subf %298, %297 : vector<1x768xf32>
    %300 = arith.mulf %293, %299 : vector<1x768xf32>
    %301 = arith.addf %289, %297 : vector<1x768xf32>
    %c1_208 = arith.constant 1 : index
    %c0_209 = arith.constant 0 : index
    %302 = vector.load %arg12[%c1_208, %c0_209] : memref<8x768xf32, #tpu.memory_space<vmem>>, vector<1x768xf32>
    tpu.vector_store %arg12[%c1_208, %c0_209], %301 {strides = array<i32>} : memref<8x768xf32, #tpu.memory_space<vmem>>, vector<1x768xf32>,
    %303 = arith.mulf %300, %0 : vector<1x768xf32>
    %c1_210 = arith.constant 1 : index
    %c128_211 = arith.constant 128 : index
    %304 = vector.load %arg14[%c1_210, %c128_211] : memref<8x1024xf32, #tpu.memory_space<vmem>>, vector<1x768xf32>
    tpu.vector_store %arg14[%c1_210, %c128_211], %303 {strides = array<i32>} : memref<8x1024xf32, #tpu.memory_space<vmem>>, vector<1x768xf32>,
    %c2_212 = arith.constant 2 : index
    %c0_213 = arith.constant 0 : index
    %305 = vector.load %arg15[%c2_212, %c0_213] : memref<8x768xf32, #tpu.memory_space<vmem>>, vector<1x768xf32>
    %306 = arith.subf %305, %300 : vector<1x768xf32>
    %cst_214 = arith.constant 5.000000e-01 : f32
    %307 = vector.broadcast %cst_214 : f32 to vector<1x768xf32>
    %308 = arith.mulf %306, %307 : vector<1x768xf32>
    %309 = arith.addf %300, %308 : vector<1x768xf32>
    %cst_215 = arith.constant 1.000000e+00 : f32
    %310 = vector.broadcast %cst_215 : f32 to vector<1x768xf32>
    %311 = arith.cmpf oge, %309, %310 : vector<1x768xf32>
    %312 = arith.extui %311 : vector<1x768xi1> to vector<1x768xi32>
    %313 = arith.sitofp %312 : vector<1x768xi32> to vector<1x768xf32>
    %cst_216 = arith.constant 1.000000e+00 : f32
    %314 = vector.broadcast %cst_216 : f32 to vector<1x768xf32>
    %315 = arith.subf %314, %313 : vector<1x768xf32>
    %316 = arith.mulf %309, %315 : vector<1x768xf32>
    %317 = arith.addf %305, %313 : vector<1x768xf32>
    %c2_217 = arith.constant 2 : index
    %c0_218 = arith.constant 0 : index
    %318 = vector.load %arg12[%c2_217, %c0_218] : memref<8x768xf32, #tpu.memory_space<vmem>>, vector<1x768xf32>
    tpu.vector_store %arg12[%c2_217, %c0_218], %317 {strides = array<i32>} : memref<8x768xf32, #tpu.memory_space<vmem>>, vector<1x768xf32>,
    %319 = arith.mulf %316, %0 : vector<1x768xf32>
    %c2_219 = arith.constant 2 : index
    %c128_220 = arith.constant 128 : index
    %320 = vector.load %arg14[%c2_219, %c128_220] : memref<8x1024xf32, #tpu.memory_space<vmem>>, vector<1x768xf32>
    tpu.vector_store %arg14[%c2_219, %c128_220], %319 {strides = array<i32>} : memref<8x1024xf32, #tpu.memory_space<vmem>>, vector<1x768xf32>,
    %c3_221 = arith.constant 3 : index
    %c0_222 = arith.constant 0 : index
    %321 = vector.load %arg15[%c3_221, %c0_222] : memref<8x768xf32, #tpu.memory_space<vmem>>, vector<1x768xf32>
    %322 = arith.subf %321, %316 : vector<1x768xf32>
    %cst_223 = arith.constant 5.000000e-01 : f32
    %323 = vector.broadcast %cst_223 : f32 to vector<1x768xf32>
    %324 = arith.mulf %322, %323 : vector<1x768xf32>
    %325 = arith.addf %316, %324 : vector<1x768xf32>
    %cst_224 = arith.constant 1.000000e+00 : f32
    %326 = vector.broadcast %cst_224 : f32 to vector<1x768xf32>
    %327 = arith.cmpf oge, %325, %326 : vector<1x768xf32>
    %328 = arith.extui %327 : vector<1x768xi1> to vector<1x768xi32>
    %329 = arith.sitofp %328 : vector<1x768xi32> to vector<1x768xf32>
    %cst_225 = arith.constant 1.000000e+00 : f32
    %330 = vector.broadcast %cst_225 : f32 to vector<1x768xf32>
    %331 = arith.subf %330, %329 : vector<1x768xf32>
    %332 = arith.mulf %325, %331 : vector<1x768xf32>
    %333 = arith.addf %321, %329 : vector<1x768xf32>
    %c3_226 = arith.constant 3 : index
    %c0_227 = arith.constant 0 : index
    %334 = vector.load %arg12[%c3_226, %c0_227] : memref<8x768xf32, #tpu.memory_space<vmem>>, vector<1x768xf32>
    tpu.vector_store %arg12[%c3_226, %c0_227], %333 {strides = array<i32>} : memref<8x768xf32, #tpu.memory_space<vmem>>, vector<1x768xf32>,
    %335 = arith.mulf %332, %0 : vector<1x768xf32>
    %c3_228 = arith.constant 3 : index
    %c128_229 = arith.constant 128 : index
    %336 = vector.load %arg14[%c3_228, %c128_229] : memref<8x1024xf32, #tpu.memory_space<vmem>>, vector<1x768xf32>
    tpu.vector_store %arg14[%c3_228, %c128_229], %335 {strides = array<i32>} : memref<8x1024xf32, #tpu.memory_space<vmem>>, vector<1x768xf32>,
    %c4_230 = arith.constant 4 : index
    %c0_231 = arith.constant 0 : index
    %337 = vector.load %arg15[%c4_230, %c0_231] : memref<8x768xf32, #tpu.memory_space<vmem>>, vector<1x768xf32>
    %338 = arith.subf %337, %332 : vector<1x768xf32>
    %cst_232 = arith.constant 5.000000e-01 : f32
    %339 = vector.broadcast %cst_232 : f32 to vector<1x768xf32>
    %340 = arith.mulf %338, %339 : vector<1x768xf32>
    %341 = arith.addf %332, %340 : vector<1x768xf32>
    %cst_233 = arith.constant 1.000000e+00 : f32
    %342 = vector.broadcast %cst_233 : f32 to vector<1x768xf32>
    %343 = arith.cmpf oge, %341, %342 : vector<1x768xf32>
    %344 = arith.extui %343 : vector<1x768xi1> to vector<1x768xi32>
    %345 = arith.sitofp %344 : vector<1x768xi32> to vector<1x768xf32>
    %cst_234 = arith.constant 1.000000e+00 : f32
    %346 = vector.broadcast %cst_234 : f32 to vector<1x768xf32>
    %347 = arith.subf %346, %345 : vector<1x768xf32>
    %348 = arith.mulf %341, %347 : vector<1x768xf32>
    %349 = arith.addf %337, %345 : vector<1x768xf32>
    %c4_235 = arith.constant 4 : index
    %c0_236 = arith.constant 0 : index
    %350 = vector.load %arg12[%c4_235, %c0_236] : memref<8x768xf32, #tpu.memory_space<vmem>>, vector<1x768xf32>
    tpu.vector_store %arg12[%c4_235, %c0_236], %349 {strides = array<i32>} : memref<8x768xf32, #tpu.memory_space<vmem>>, vector<1x768xf32>,
    %351 = arith.mulf %348, %0 : vector<1x768xf32>
    %c4_237 = arith.constant 4 : index
    %c128_238 = arith.constant 128 : index
    %352 = vector.load %arg14[%c4_237, %c128_238] : memref<8x1024xf32, #tpu.memory_space<vmem>>, vector<1x768xf32>
    tpu.vector_store %arg14[%c4_237, %c128_238], %351 {strides = array<i32>} : memref<8x1024xf32, #tpu.memory_space<vmem>>, vector<1x768xf32>,
    %c5_239 = arith.constant 5 : index
    %c0_240 = arith.constant 0 : index
    %353 = vector.load %arg15[%c5_239, %c0_240] : memref<8x768xf32, #tpu.memory_space<vmem>>, vector<1x768xf32>
    %354 = arith.subf %353, %348 : vector<1x768xf32>
    %cst_241 = arith.constant 5.000000e-01 : f32
    %355 = vector.broadcast %cst_241 : f32 to vector<1x768xf32>
    %356 = arith.mulf %354, %355 : vector<1x768xf32>
    %357 = arith.addf %348, %356 : vector<1x768xf32>
    %cst_242 = arith.constant 1.000000e+00 : f32
    %358 = vector.broadcast %cst_242 : f32 to vector<1x768xf32>
    %359 = arith.cmpf oge, %357, %358 : vector<1x768xf32>
    %360 = arith.extui %359 : vector<1x768xi1> to vector<1x768xi32>
    %361 = arith.sitofp %360 : vector<1x768xi32> to vector<1x768xf32>
    %cst_243 = arith.constant 1.000000e+00 : f32
    %362 = vector.broadcast %cst_243 : f32 to vector<1x768xf32>
    %363 = arith.subf %362, %361 : vector<1x768xf32>
    %364 = arith.mulf %357, %363 : vector<1x768xf32>
    %365 = arith.addf %353, %361 : vector<1x768xf32>
    %c5_244 = arith.constant 5 : index
    %c0_245 = arith.constant 0 : index
    %366 = vector.load %arg12[%c5_244, %c0_245] : memref<8x768xf32, #tpu.memory_space<vmem>>, vector<1x768xf32>
    tpu.vector_store %arg12[%c5_244, %c0_245], %365 {strides = array<i32>} : memref<8x768xf32, #tpu.memory_space<vmem>>, vector<1x768xf32>,
    %367 = arith.mulf %364, %0 : vector<1x768xf32>
    %c5_246 = arith.constant 5 : index
    %c128_247 = arith.constant 128 : index
    %368 = vector.load %arg14[%c5_246, %c128_247] : memref<8x1024xf32, #tpu.memory_space<vmem>>, vector<1x768xf32>
    tpu.vector_store %arg14[%c5_246, %c128_247], %367 {strides = array<i32>} : memref<8x1024xf32, #tpu.memory_space<vmem>>, vector<1x768xf32>,
    %c6_248 = arith.constant 6 : index
    %c0_249 = arith.constant 0 : index
    %369 = vector.load %arg15[%c6_248, %c0_249] : memref<8x768xf32, #tpu.memory_space<vmem>>, vector<1x768xf32>
    %370 = arith.subf %369, %364 : vector<1x768xf32>
    %cst_250 = arith.constant 5.000000e-01 : f32
    %371 = vector.broadcast %cst_250 : f32 to vector<1x768xf32>
    %372 = arith.mulf %370, %371 : vector<1x768xf32>
    %373 = arith.addf %364, %372 : vector<1x768xf32>
    %cst_251 = arith.constant 1.000000e+00 : f32
    %374 = vector.broadcast %cst_251 : f32 to vector<1x768xf32>
    %375 = arith.cmpf oge, %373, %374 : vector<1x768xf32>
    %376 = arith.extui %375 : vector<1x768xi1> to vector<1x768xi32>
    %377 = arith.sitofp %376 : vector<1x768xi32> to vector<1x768xf32>
    %cst_252 = arith.constant 1.000000e+00 : f32
    %378 = vector.broadcast %cst_252 : f32 to vector<1x768xf32>
    %379 = arith.subf %378, %377 : vector<1x768xf32>
    %380 = arith.mulf %373, %379 : vector<1x768xf32>
    %381 = arith.addf %369, %377 : vector<1x768xf32>
    %c6_253 = arith.constant 6 : index
    %c0_254 = arith.constant 0 : index
    %382 = vector.load %arg12[%c6_253, %c0_254] : memref<8x768xf32, #tpu.memory_space<vmem>>, vector<1x768xf32>
    tpu.vector_store %arg12[%c6_253, %c0_254], %381 {strides = array<i32>} : memref<8x768xf32, #tpu.memory_space<vmem>>, vector<1x768xf32>,
    %383 = arith.mulf %380, %0 : vector<1x768xf32>
    %c6_255 = arith.constant 6 : index
    %c128_256 = arith.constant 128 : index
    %384 = vector.load %arg14[%c6_255, %c128_256] : memref<8x1024xf32, #tpu.memory_space<vmem>>, vector<1x768xf32>
    tpu.vector_store %arg14[%c6_255, %c128_256], %383 {strides = array<i32>} : memref<8x1024xf32, #tpu.memory_space<vmem>>, vector<1x768xf32>,
    %c7_257 = arith.constant 7 : index
    %c0_258 = arith.constant 0 : index
    %385 = vector.load %arg15[%c7_257, %c0_258] : memref<8x768xf32, #tpu.memory_space<vmem>>, vector<1x768xf32>
    %386 = arith.subf %385, %380 : vector<1x768xf32>
    %cst_259 = arith.constant 5.000000e-01 : f32
    %387 = vector.broadcast %cst_259 : f32 to vector<1x768xf32>
    %388 = arith.mulf %386, %387 : vector<1x768xf32>
    %389 = arith.addf %380, %388 : vector<1x768xf32>
    %cst_260 = arith.constant 1.000000e+00 : f32
    %390 = vector.broadcast %cst_260 : f32 to vector<1x768xf32>
    %391 = arith.cmpf oge, %389, %390 : vector<1x768xf32>
    %392 = arith.extui %391 : vector<1x768xi1> to vector<1x768xi32>
    %393 = arith.sitofp %392 : vector<1x768xi32> to vector<1x768xf32>
    %cst_261 = arith.constant 1.000000e+00 : f32
    %394 = vector.broadcast %cst_261 : f32 to vector<1x768xf32>
    %395 = arith.subf %394, %393 : vector<1x768xf32>
    %396 = arith.mulf %389, %395 : vector<1x768xf32>
    %397 = arith.addf %385, %393 : vector<1x768xf32>
    %c7_262 = arith.constant 7 : index
    %c0_263 = arith.constant 0 : index
    %398 = vector.load %arg12[%c7_262, %c0_263] : memref<8x768xf32, #tpu.memory_space<vmem>>, vector<1x768xf32>
    tpu.vector_store %arg12[%c7_262, %c0_263], %397 {strides = array<i32>} : memref<8x768xf32, #tpu.memory_space<vmem>>, vector<1x768xf32>,
    %399 = arith.mulf %396, %0 : vector<1x768xf32>
    %c7_264 = arith.constant 7 : index
    %c128_265 = arith.constant 128 : index
    %400 = vector.load %arg14[%c7_264, %c128_265] : memref<8x1024xf32, #tpu.memory_space<vmem>>, vector<1x768xf32>
    tpu.vector_store %arg14[%c7_264, %c128_265], %399 {strides = array<i32>} : memref<8x1024xf32, #tpu.memory_space<vmem>>, vector<1x768xf32>,
    %c0_266 = arith.constant 0 : index
    %c109_267 = arith.constant 109 : index
    %401 = vector.load %arg14[%c0_266, %c109_267] : memref<8x1024xf32, #tpu.memory_space<vmem>>, vector<8x768xf32>
    %c0_268 = arith.constant 0 : index
    %c0_269 = arith.constant 0 : index
    %c0_270 = arith.constant 0 : index
    %402 = vector.load %arg9[%c0_268, %c0_269, %c0_270] : memref<9x8x8xf32, #tpu.memory_space<vmem>>, vector<1x8x8xf32>
    %403 = vector.shape_cast %402 : vector<1x8x8xf32> to vector<8x8xf32>
    %cst_271 = arith.constant dense<0.000000e+00> : vector<8x768xf32>
    %404 = tpu.matmul %403, %401, %cst_271 {dimension_numbers = #tpu.dot_dimension_numbers<[1], [0], [0], [1], [0, 0, 1, 1], [], []>} : vector<8x8xf32>, vector<8x768xf32>, vector<8x768xf32> -> vector<8x768xf32>
    %c0_272 = arith.constant 0 : index
    %c110_273 = arith.constant 110 : index
    %405 = vector.load %arg14[%c0_272, %c110_273] : memref<8x1024xf32, #tpu.memory_space<vmem>>, vector<8x768xf32>
    %c1_274 = arith.constant 1 : index
    %c0_275 = arith.constant 0 : index
    %c0_276 = arith.constant 0 : index
    %406 = vector.load %arg9[%c1_274, %c0_275, %c0_276] : memref<9x8x8xf32, #tpu.memory_space<vmem>>, vector<1x8x8xf32>
    %407 = vector.shape_cast %406 : vector<1x8x8xf32> to vector<8x8xf32>
    %cst_277 = arith.constant dense<0.000000e+00> : vector<8x768xf32>
    %408 = tpu.matmul %407, %405, %cst_277 {dimension_numbers = #tpu.dot_dimension_numbers<[1], [0], [0], [1], [0, 0, 1, 1], [], []>} : vector<8x8xf32>, vector<8x768xf32>, vector<8x768xf32> -> vector<8x768xf32>
    %409 = arith.addf %404, %408 : vector<8x768xf32>
    %c0_278 = arith.constant 0 : index
    %c111_279 = arith.constant 111 : index
    %410 = vector.load %arg14[%c0_278, %c111_279] : memref<8x1024xf32, #tpu.memory_space<vmem>>, vector<8x768xf32>
    %c2_280 = arith.constant 2 : index
    %c0_281 = arith.constant 0 : index
    %c0_282 = arith.constant 0 : index
    %411 = vector.load %arg9[%c2_280, %c0_281, %c0_282] : memref<9x8x8xf32, #tpu.memory_space<vmem>>, vector<1x8x8xf32>
    %412 = vector.shape_cast %411 : vector<1x8x8xf32> to vector<8x8xf32>
    %cst_283 = arith.constant dense<0.000000e+00> : vector<8x768xf32>
    %413 = tpu.matmul %412, %410, %cst_283 {dimension_numbers = #tpu.dot_dimension_numbers<[1], [0], [0], [1], [0, 0, 1, 1], [], []>} : vector<8x8xf32>, vector<8x768xf32>, vector<8x768xf32> -> vector<8x768xf32>
    %414 = arith.addf %409, %413 : vector<8x768xf32>
    %c0_284 = arith.constant 0 : index
    %c127_285 = arith.constant 127 : index
    %415 = vector.load %arg14[%c0_284, %c127_285] : memref<8x1024xf32, #tpu.memory_space<vmem>>, vector<8x768xf32>
    %c3_286 = arith.constant 3 : index
    %c0_287 = arith.constant 0 : index
    %c0_288 = arith.constant 0 : index
    %416 = vector.load %arg9[%c3_286, %c0_287, %c0_288] : memref<9x8x8xf32, #tpu.memory_space<vmem>>, vector<1x8x8xf32>
    %417 = vector.shape_cast %416 : vector<1x8x8xf32> to vector<8x8xf32>
    %cst_289 = arith.constant dense<0.000000e+00> : vector<8x768xf32>
    %418 = tpu.matmul %417, %415, %cst_289 {dimension_numbers = #tpu.dot_dimension_numbers<[1], [0], [0], [1], [0, 0, 1, 1], [], []>} : vector<8x8xf32>, vector<8x768xf32>, vector<8x768xf32> -> vector<8x768xf32>
    %419 = arith.addf %414, %418 : vector<8x768xf32>
    %c0_290 = arith.constant 0 : index
    %c128_291 = arith.constant 128 : index
    %420 = vector.load %arg14[%c0_290, %c128_291] : memref<8x1024xf32, #tpu.memory_space<vmem>>, vector<8x768xf32>
    %c4_292 = arith.constant 4 : index
    %c0_293 = arith.constant 0 : index
    %c0_294 = arith.constant 0 : index
    %421 = vector.load %arg9[%c4_292, %c0_293, %c0_294] : memref<9x8x8xf32, #tpu.memory_space<vmem>>, vector<1x8x8xf32>
    %422 = vector.shape_cast %421 : vector<1x8x8xf32> to vector<8x8xf32>
    %cst_295 = arith.constant dense<0.000000e+00> : vector<8x768xf32>
    %423 = tpu.matmul %422, %420, %cst_295 {dimension_numbers = #tpu.dot_dimension_numbers<[1], [0], [0], [1], [0, 0, 1, 1], [], []>} : vector<8x8xf32>, vector<8x768xf32>, vector<8x768xf32> -> vector<8x768xf32>
    %424 = arith.addf %419, %423 : vector<8x768xf32>
    %c0_296 = arith.constant 0 : index
    %c129_297 = arith.constant 129 : index
    %425 = vector.load %arg14[%c0_296, %c129_297] : memref<8x1024xf32, #tpu.memory_space<vmem>>, vector<8x768xf32>
    %c5_298 = arith.constant 5 : index
    %c0_299 = arith.constant 0 : index
    %c0_300 = arith.constant 0 : index
    %426 = vector.load %arg9[%c5_298, %c0_299, %c0_300] : memref<9x8x8xf32, #tpu.memory_space<vmem>>, vector<1x8x8xf32>
    %427 = vector.shape_cast %426 : vector<1x8x8xf32> to vector<8x8xf32>
    %cst_301 = arith.constant dense<0.000000e+00> : vector<8x768xf32>
    %428 = tpu.matmul %427, %425, %cst_301 {dimension_numbers = #tpu.dot_dimension_numbers<[1], [0], [0], [1], [0, 0, 1, 1], [], []>} : vector<8x8xf32>, vector<8x768xf32>, vector<8x768xf32> -> vector<8x768xf32>
    %429 = arith.addf %424, %428 : vector<8x768xf32>
    %c0_302 = arith.constant 0 : index
    %c145_303 = arith.constant 145 : index
    %430 = vector.load %arg14[%c0_302, %c145_303] : memref<8x1024xf32, #tpu.memory_space<vmem>>, vector<8x768xf32>
    %c6_304 = arith.constant 6 : index
    %c0_305 = arith.constant 0 : index
    %c0_306 = arith.constant 0 : index
    %431 = vector.load %arg9[%c6_304, %c0_305, %c0_306] : memref<9x8x8xf32, #tpu.memory_space<vmem>>, vector<1x8x8xf32>
    %432 = vector.shape_cast %431 : vector<1x8x8xf32> to vector<8x8xf32>
    %cst_307 = arith.constant dense<0.000000e+00> : vector<8x768xf32>
    %433 = tpu.matmul %432, %430, %cst_307 {dimension_numbers = #tpu.dot_dimension_numbers<[1], [0], [0], [1], [0, 0, 1, 1], [], []>} : vector<8x8xf32>, vector<8x768xf32>, vector<8x768xf32> -> vector<8x768xf32>
    %434 = arith.addf %429, %433 : vector<8x768xf32>
    %c0_308 = arith.constant 0 : index
    %c146_309 = arith.constant 146 : index
    %435 = vector.load %arg14[%c0_308, %c146_309] : memref<8x1024xf32, #tpu.memory_space<vmem>>, vector<8x768xf32>
    %c7_310 = arith.constant 7 : index
    %c0_311 = arith.constant 0 : index
    %c0_312 = arith.constant 0 : index
    %436 = vector.load %arg9[%c7_310, %c0_311, %c0_312] : memref<9x8x8xf32, #tpu.memory_space<vmem>>, vector<1x8x8xf32>
    %437 = vector.shape_cast %436 : vector<1x8x8xf32> to vector<8x8xf32>
    %cst_313 = arith.constant dense<0.000000e+00> : vector<8x768xf32>
    %438 = tpu.matmul %437, %435, %cst_313 {dimension_numbers = #tpu.dot_dimension_numbers<[1], [0], [0], [1], [0, 0, 1, 1], [], []>} : vector<8x8xf32>, vector<8x768xf32>, vector<8x768xf32> -> vector<8x768xf32>
    %439 = arith.addf %434, %438 : vector<8x768xf32>
    %c0_314 = arith.constant 0 : index
    %c147_315 = arith.constant 147 : index
    %440 = vector.load %arg14[%c0_314, %c147_315] : memref<8x1024xf32, #tpu.memory_space<vmem>>, vector<8x768xf32>
    %c8_316 = arith.constant 8 : index
    %c0_317 = arith.constant 0 : index
    %c0_318 = arith.constant 0 : index
    %441 = vector.load %arg9[%c8_316, %c0_317, %c0_318] : memref<9x8x8xf32, #tpu.memory_space<vmem>>, vector<1x8x8xf32>
    %442 = vector.shape_cast %441 : vector<1x8x8xf32> to vector<8x8xf32>
    %cst_319 = arith.constant dense<0.000000e+00> : vector<8x768xf32>
    %443 = tpu.matmul %442, %440, %cst_319 {dimension_numbers = #tpu.dot_dimension_numbers<[1], [0], [0], [1], [0, 0, 1, 1], [], []>} : vector<8x8xf32>, vector<8x768xf32>, vector<8x768xf32> -> vector<8x768xf32>
    %444 = arith.addf %439, %443 : vector<8x768xf32>
    %445 = vector.broadcast %0 : vector<1x768xf32> to vector<8x768xf32>
    %446 = arith.mulf %444, %445 : vector<8x768xf32>
    %cst_320 = arith.constant dense<0.000000e+00> : vector<8xf32>
    %447 = vector.multi_reduction <add>, %446, %cst_320 [1] : vector<8x768xf32> to vector<8xf32>
    %448 = vector.shape_cast %447 : vector<8xf32> to vector<8x1xf32>
    %449 = arith.mulf %446, %446 : vector<8x768xf32>
    %cst_321 = arith.constant dense<0.000000e+00> : vector<8xf32>
    %450 = vector.multi_reduction <add>, %449, %cst_321 [1] : vector<8x768xf32> to vector<8xf32>
    %451 = vector.shape_cast %450 : vector<8xf32> to vector<8x1xf32>
    %cst_322 = arith.constant 0.001953125 : f32
    %452 = vector.broadcast %cst_322 : f32 to vector<8x1xf32>
    %453 = arith.mulf %448, %452 : vector<8x1xf32>
    %cst_323 = arith.constant 0.001953125 : f32
    %454 = vector.broadcast %cst_323 : f32 to vector<8x1xf32>
    %455 = arith.mulf %451, %454 : vector<8x1xf32>
    %456 = arith.mulf %453, %453 : vector<8x1xf32>
    %457 = arith.subf %455, %456 : vector<8x1xf32>
    %c0_324 = arith.constant 0 : index
    %c0_325 = arith.constant 0 : index
    %458 = vector.load %arg10[%c0_324, %c0_325] : memref<8x1xf32, #tpu.memory_space<vmem>>, vector<8x1xf32>
    %cst_326 = arith.constant 9.99999974E-6 : f32
    %459 = vector.broadcast %cst_326 : f32 to vector<8x1xf32>
    %460 = arith.addf %457, %459 : vector<8x1xf32>
    %461 = math.rsqrt %460 : vector<8x1xf32>
    %462 = arith.mulf %458, %461 : vector<8x1xf32>
    %c0_327 = arith.constant 0 : index
    %c0_328 = arith.constant 0 : index
    %463 = vector.load %arg11[%c0_327, %c0_328] : memref<8x1xf32, #tpu.memory_space<vmem>>, vector<8x1xf32>
    %464 = arith.mulf %453, %462 : vector<8x1xf32>
    %465 = arith.subf %463, %464 : vector<8x1xf32>
    %466 = vector.broadcast %462 : vector<8x1xf32> to vector<8x768xf32>
    %467 = arith.mulf %444, %466 : vector<8x768xf32>
    %468 = vector.broadcast %465 : vector<8x1xf32> to vector<8x768xf32>
    %469 = arith.addf %467, %468 : vector<8x768xf32>
    %c0_329 = arith.constant 0 : index
    %c0_330 = arith.constant 0 : index
    %470 = vector.load %arg15[%c0_329, %c0_330] : memref<8x768xf32, #tpu.memory_space<vmem>>, vector<8x768xf32>
    tpu.vector_store %arg15[%c0_329, %c0_330], %469 {strides = array<i32>} : memref<8x768xf32, #tpu.memory_space<vmem>>, vector<8x768xf32>,
    %cst_331 = arith.constant 0.000000e+00 : f32
    %471 = vector.broadcast %cst_331 : f32 to vector<1x768xf32>
    %c0_332 = arith.constant 0 : index
    %c0_333 = arith.constant 0 : index
    %472 = vector.load %arg15[%c0_332, %c0_333] : memref<8x768xf32, #tpu.memory_space<vmem>>, vector<1x768xf32>
    %473 = arith.subf %472, %471 : vector<1x768xf32>
    %cst_334 = arith.constant 5.000000e-01 : f32
    %474 = vector.broadcast %cst_334 : f32 to vector<1x768xf32>
    %475 = arith.mulf %473, %474 : vector<1x768xf32>
    %476 = arith.addf %471, %475 : vector<1x768xf32>
    %cst_335 = arith.constant 1.000000e+00 : f32
    %477 = vector.broadcast %cst_335 : f32 to vector<1x768xf32>
    %478 = arith.cmpf oge, %476, %477 : vector<1x768xf32>
    %479 = arith.extui %478 : vector<1x768xi1> to vector<1x768xi32>
    %480 = arith.sitofp %479 : vector<1x768xi32> to vector<1x768xf32>
    %cst_336 = arith.constant 1.000000e+00 : f32
    %481 = vector.broadcast %cst_336 : f32 to vector<1x768xf32>
    %482 = arith.subf %481, %480 : vector<1x768xf32>
    %483 = arith.mulf %476, %482 : vector<1x768xf32>
    %c0_337 = arith.constant 0 : index
    %c128_338 = arith.constant 128 : index
    %484 = vector.load %arg14[%c0_337, %c128_338] : memref<8x1024xf32, #tpu.memory_space<vmem>>, vector<1x768xf32>
    %485 = arith.addf %484, %480 : vector<1x768xf32>
    %c0_339 = arith.constant 0 : index
    %c0_340 = arith.constant 0 : index
    %486 = vector.load %arg13[%c0_339, %c0_340] : memref<8x768xf32, #tpu.memory_space<vmem>>, vector<1x768xf32>
    tpu.vector_store %arg13[%c0_339, %c0_340], %485 {strides = array<i32>} : memref<8x768xf32, #tpu.memory_space<vmem>>, vector<1x768xf32>,
    %c1_341 = arith.constant 1 : index
    %c0_342 = arith.constant 0 : index
    %487 = vector.load %arg15[%c1_341, %c0_342] : memref<8x768xf32, #tpu.memory_space<vmem>>, vector<1x768xf32>
    %488 = arith.subf %487, %483 : vector<1x768xf32>
    %cst_343 = arith.constant 5.000000e-01 : f32
    %489 = vector.broadcast %cst_343 : f32 to vector<1x768xf32>
    %490 = arith.mulf %488, %489 : vector<1x768xf32>
    %491 = arith.addf %483, %490 : vector<1x768xf32>
    %cst_344 = arith.constant 1.000000e+00 : f32
    %492 = vector.broadcast %cst_344 : f32 to vector<1x768xf32>
    %493 = arith.cmpf oge, %491, %492 : vector<1x768xf32>
    %494 = arith.extui %493 : vector<1x768xi1> to vector<1x768xi32>
    %495 = arith.sitofp %494 : vector<1x768xi32> to vector<1x768xf32>
    %cst_345 = arith.constant 1.000000e+00 : f32
    %496 = vector.broadcast %cst_345 : f32 to vector<1x768xf32>
    %497 = arith.subf %496, %495 : vector<1x768xf32>
    %498 = arith.mulf %491, %497 : vector<1x768xf32>
    %c1_346 = arith.constant 1 : index
    %c128_347 = arith.constant 128 : index
    %499 = vector.load %arg14[%c1_346, %c128_347] : memref<8x1024xf32, #tpu.memory_space<vmem>>, vector<1x768xf32>
    %500 = arith.addf %499, %495 : vector<1x768xf32>
    %c1_348 = arith.constant 1 : index
    %c0_349 = arith.constant 0 : index
    %501 = vector.load %arg13[%c1_348, %c0_349] : memref<8x768xf32, #tpu.memory_space<vmem>>, vector<1x768xf32>
    tpu.vector_store %arg13[%c1_348, %c0_349], %500 {strides = array<i32>} : memref<8x768xf32, #tpu.memory_space<vmem>>, vector<1x768xf32>,
    %c2_350 = arith.constant 2 : index
    %c0_351 = arith.constant 0 : index
    %502 = vector.load %arg15[%c2_350, %c0_351] : memref<8x768xf32, #tpu.memory_space<vmem>>, vector<1x768xf32>
    %503 = arith.subf %502, %498 : vector<1x768xf32>
    %cst_352 = arith.constant 5.000000e-01 : f32
    %504 = vector.broadcast %cst_352 : f32 to vector<1x768xf32>
    %505 = arith.mulf %503, %504 : vector<1x768xf32>
    %506 = arith.addf %498, %505 : vector<1x768xf32>
    %cst_353 = arith.constant 1.000000e+00 : f32
    %507 = vector.broadcast %cst_353 : f32 to vector<1x768xf32>
    %508 = arith.cmpf oge, %506, %507 : vector<1x768xf32>
    %509 = arith.extui %508 : vector<1x768xi1> to vector<1x768xi32>
    %510 = arith.sitofp %509 : vector<1x768xi32> to vector<1x768xf32>
    %cst_354 = arith.constant 1.000000e+00 : f32
    %511 = vector.broadcast %cst_354 : f32 to vector<1x768xf32>
    %512 = arith.subf %511, %510 : vector<1x768xf32>
    %513 = arith.mulf %506, %512 : vector<1x768xf32>
    %c2_355 = arith.constant 2 : index
    %c128_356 = arith.constant 128 : index
    %514 = vector.load %arg14[%c2_355, %c128_356] : memref<8x1024xf32, #tpu.memory_space<vmem>>, vector<1x768xf32>
    %515 = arith.addf %514, %510 : vector<1x768xf32>
    %c2_357 = arith.constant 2 : index
    %c0_358 = arith.constant 0 : index
    %516 = vector.load %arg13[%c2_357, %c0_358] : memref<8x768xf32, #tpu.memory_space<vmem>>, vector<1x768xf32>
    tpu.vector_store %arg13[%c2_357, %c0_358], %515 {strides = array<i32>} : memref<8x768xf32, #tpu.memory_space<vmem>>, vector<1x768xf32>,
    %c3_359 = arith.constant 3 : index
    %c0_360 = arith.constant 0 : index
    %517 = vector.load %arg15[%c3_359, %c0_360] : memref<8x768xf32, #tpu.memory_space<vmem>>, vector<1x768xf32>
    %518 = arith.subf %517, %513 : vector<1x768xf32>
    %cst_361 = arith.constant 5.000000e-01 : f32
    %519 = vector.broadcast %cst_361 : f32 to vector<1x768xf32>
    %520 = arith.mulf %518, %519 : vector<1x768xf32>
    %521 = arith.addf %513, %520 : vector<1x768xf32>
    %cst_362 = arith.constant 1.000000e+00 : f32
    %522 = vector.broadcast %cst_362 : f32 to vector<1x768xf32>
    %523 = arith.cmpf oge, %521, %522 : vector<1x768xf32>
    %524 = arith.extui %523 : vector<1x768xi1> to vector<1x768xi32>
    %525 = arith.sitofp %524 : vector<1x768xi32> to vector<1x768xf32>
    %cst_363 = arith.constant 1.000000e+00 : f32
    %526 = vector.broadcast %cst_363 : f32 to vector<1x768xf32>
    %527 = arith.subf %526, %525 : vector<1x768xf32>
    %528 = arith.mulf %521, %527 : vector<1x768xf32>
    %c3_364 = arith.constant 3 : index
    %c128_365 = arith.constant 128 : index
    %529 = vector.load %arg14[%c3_364, %c128_365] : memref<8x1024xf32, #tpu.memory_space<vmem>>, vector<1x768xf32>
    %530 = arith.addf %529, %525 : vector<1x768xf32>
    %c3_366 = arith.constant 3 : index
    %c0_367 = arith.constant 0 : index
    %531 = vector.load %arg13[%c3_366, %c0_367] : memref<8x768xf32, #tpu.memory_space<vmem>>, vector<1x768xf32>
    tpu.vector_store %arg13[%c3_366, %c0_367], %530 {strides = array<i32>} : memref<8x768xf32, #tpu.memory_space<vmem>>, vector<1x768xf32>,
    %c4_368 = arith.constant 4 : index
    %c0_369 = arith.constant 0 : index
    %532 = vector.load %arg15[%c4_368, %c0_369] : memref<8x768xf32, #tpu.memory_space<vmem>>, vector<1x768xf32>
    %533 = arith.subf %532, %528 : vector<1x768xf32>
    %cst_370 = arith.constant 5.000000e-01 : f32
    %534 = vector.broadcast %cst_370 : f32 to vector<1x768xf32>
    %535 = arith.mulf %533, %534 : vector<1x768xf32>
    %536 = arith.addf %528, %535 : vector<1x768xf32>
    %cst_371 = arith.constant 1.000000e+00 : f32
    %537 = vector.broadcast %cst_371 : f32 to vector<1x768xf32>
    %538 = arith.cmpf oge, %536, %537 : vector<1x768xf32>
    %539 = arith.extui %538 : vector<1x768xi1> to vector<1x768xi32>
    %540 = arith.sitofp %539 : vector<1x768xi32> to vector<1x768xf32>
    %cst_372 = arith.constant 1.000000e+00 : f32
    %541 = vector.broadcast %cst_372 : f32 to vector<1x768xf32>
    %542 = arith.subf %541, %540 : vector<1x768xf32>
    %543 = arith.mulf %536, %542 : vector<1x768xf32>
    %c4_373 = arith.constant 4 : index
    %c128_374 = arith.constant 128 : index
    %544 = vector.load %arg14[%c4_373, %c128_374] : memref<8x1024xf32, #tpu.memory_space<vmem>>, vector<1x768xf32>
    %545 = arith.addf %544, %540 : vector<1x768xf32>
    %c4_375 = arith.constant 4 : index
    %c0_376 = arith.constant 0 : index
    %546 = vector.load %arg13[%c4_375, %c0_376] : memref<8x768xf32, #tpu.memory_space<vmem>>, vector<1x768xf32>
    tpu.vector_store %arg13[%c4_375, %c0_376], %545 {strides = array<i32>} : memref<8x768xf32, #tpu.memory_space<vmem>>, vector<1x768xf32>,
    %c5_377 = arith.constant 5 : index
    %c0_378 = arith.constant 0 : index
    %547 = vector.load %arg15[%c5_377, %c0_378] : memref<8x768xf32, #tpu.memory_space<vmem>>, vector<1x768xf32>
    %548 = arith.subf %547, %543 : vector<1x768xf32>
    %cst_379 = arith.constant 5.000000e-01 : f32
    %549 = vector.broadcast %cst_379 : f32 to vector<1x768xf32>
    %550 = arith.mulf %548, %549 : vector<1x768xf32>
    %551 = arith.addf %543, %550 : vector<1x768xf32>
    %cst_380 = arith.constant 1.000000e+00 : f32
    %552 = vector.broadcast %cst_380 : f32 to vector<1x768xf32>
    %553 = arith.cmpf oge, %551, %552 : vector<1x768xf32>
    %554 = arith.extui %553 : vector<1x768xi1> to vector<1x768xi32>
    %555 = arith.sitofp %554 : vector<1x768xi32> to vector<1x768xf32>
    %cst_381 = arith.constant 1.000000e+00 : f32
    %556 = vector.broadcast %cst_381 : f32 to vector<1x768xf32>
    %557 = arith.subf %556, %555 : vector<1x768xf32>
    %558 = arith.mulf %551, %557 : vector<1x768xf32>
    %c5_382 = arith.constant 5 : index
    %c128_383 = arith.constant 128 : index
    %559 = vector.load %arg14[%c5_382, %c128_383] : memref<8x1024xf32, #tpu.memory_space<vmem>>, vector<1x768xf32>
    %560 = arith.addf %559, %555 : vector<1x768xf32>
    %c5_384 = arith.constant 5 : index
    %c0_385 = arith.constant 0 : index
    %561 = vector.load %arg13[%c5_384, %c0_385] : memref<8x768xf32, #tpu.memory_space<vmem>>, vector<1x768xf32>
    tpu.vector_store %arg13[%c5_384, %c0_385], %560 {strides = array<i32>} : memref<8x768xf32, #tpu.memory_space<vmem>>, vector<1x768xf32>,
    %c6_386 = arith.constant 6 : index
    %c0_387 = arith.constant 0 : index
    %562 = vector.load %arg15[%c6_386, %c0_387] : memref<8x768xf32, #tpu.memory_space<vmem>>, vector<1x768xf32>
    %563 = arith.subf %562, %558 : vector<1x768xf32>
    %cst_388 = arith.constant 5.000000e-01 : f32
    %564 = vector.broadcast %cst_388 : f32 to vector<1x768xf32>
    %565 = arith.mulf %563, %564 : vector<1x768xf32>
    %566 = arith.addf %558, %565 : vector<1x768xf32>
    %cst_389 = arith.constant 1.000000e+00 : f32
    %567 = vector.broadcast %cst_389 : f32 to vector<1x768xf32>
    %568 = arith.cmpf oge, %566, %567 : vector<1x768xf32>
    %569 = arith.extui %568 : vector<1x768xi1> to vector<1x768xi32>
    %570 = arith.sitofp %569 : vector<1x768xi32> to vector<1x768xf32>
    %cst_390 = arith.constant 1.000000e+00 : f32
    %571 = vector.broadcast %cst_390 : f32 to vector<1x768xf32>
    %572 = arith.subf %571, %570 : vector<1x768xf32>
    %573 = arith.mulf %566, %572 : vector<1x768xf32>
    %c6_391 = arith.constant 6 : index
    %c128_392 = arith.constant 128 : index
    %574 = vector.load %arg14[%c6_391, %c128_392] : memref<8x1024xf32, #tpu.memory_space<vmem>>, vector<1x768xf32>
    %575 = arith.addf %574, %570 : vector<1x768xf32>
    %c6_393 = arith.constant 6 : index
    %c0_394 = arith.constant 0 : index
    %576 = vector.load %arg13[%c6_393, %c0_394] : memref<8x768xf32, #tpu.memory_space<vmem>>, vector<1x768xf32>
    tpu.vector_store %arg13[%c6_393, %c0_394], %575 {strides = array<i32>} : memref<8x768xf32, #tpu.memory_space<vmem>>, vector<1x768xf32>,
    %c7_395 = arith.constant 7 : index
    %c0_396 = arith.constant 0 : index
    %577 = vector.load %arg15[%c7_395, %c0_396] : memref<8x768xf32, #tpu.memory_space<vmem>>, vector<1x768xf32>
    %578 = arith.subf %577, %573 : vector<1x768xf32>
    %cst_397 = arith.constant 5.000000e-01 : f32
    %579 = vector.broadcast %cst_397 : f32 to vector<1x768xf32>
    %580 = arith.mulf %578, %579 : vector<1x768xf32>
    %581 = arith.addf %573, %580 : vector<1x768xf32>
    %cst_398 = arith.constant 1.000000e+00 : f32
    %582 = vector.broadcast %cst_398 : f32 to vector<1x768xf32>
    %583 = arith.cmpf oge, %581, %582 : vector<1x768xf32>
    %584 = arith.extui %583 : vector<1x768xi1> to vector<1x768xi32>
    %585 = arith.sitofp %584 : vector<1x768xi32> to vector<1x768xf32>
    %c7_399 = arith.constant 7 : index
    %c128_400 = arith.constant 128 : index
    %586 = vector.load %arg14[%c7_399, %c128_400] : memref<8x1024xf32, #tpu.memory_space<vmem>>, vector<1x768xf32>
    %587 = arith.addf %586, %585 : vector<1x768xf32>
    %c7_401 = arith.constant 7 : index
    %c0_402 = arith.constant 0 : index
    %588 = vector.load %arg13[%c7_401, %c0_402] : memref<8x768xf32, #tpu.memory_space<vmem>>, vector<1x768xf32>
    tpu.vector_store %arg13[%c7_401, %c0_402], %587 {strides = array<i32>} : memref<8x768xf32, #tpu.memory_space<vmem>>, vector<1x768xf32>,
    return
  }
  func.func @transform_0(%arg0: i32) -> (i32, i32) {
    %c0_i32 = arith.constant 0 : i32
    %c0_i32_0 = arith.constant 0 : i32
    %c0_i32_1 = arith.constant 0 : i32
    return %c0_i32, %c0_i32_0 : i32, i32
  }
  func.func @transform_1(%arg0: i32) -> (i32, i32) {
    %c0_i32 = arith.constant 0 : i32
    %c0_i32_0 = arith.constant 0 : i32
    %c0_i32_1 = arith.constant 0 : i32
    return %c0_i32, %c0_i32_0 : i32, i32
  }
  func.func @transform_2(%arg0: i32) -> (i32, i32, i32) {
    %c0_i32 = arith.constant 0 : i32
    %c0_i32_0 = arith.constant 0 : i32
    %c0_i32_1 = arith.constant 0 : i32
    %c0_i32_2 = arith.constant 0 : i32
    return %c0_i32, %c0_i32_0, %c0_i32_1 : i32, i32, i32
  }
  func.func @transform_3(%arg0: i32) -> (i32, i32) {
    %c0_i32 = arith.constant 0 : i32
    %c0_i32_0 = arith.constant 0 : i32
    %c0_i32_1 = arith.constant 0 : i32
    return %c0_i32, %c0_i32_0 : i32, i32
  }
  func.func @transform_4(%arg0: i32) -> (i32, i32) {
    %c0_i32 = arith.constant 0 : i32
    %c0_i32_0 = arith.constant 0 : i32
    %c0_i32_1 = arith.constant 0 : i32
    return %c0_i32, %c0_i32_0 : i32, i32
  }
  func.func @transform_5(%arg0: i32) -> (i32, i32, i32) {
    %c0_i32 = arith.constant 0 : i32
    %c0_i32_0 = arith.constant 0 : i32
    %c0_i32_1 = arith.constant 0 : i32
    %c0_i32_2 = arith.constant 0 : i32
    return %c0_i32, %c0_i32_0, %c0_i32_1 : i32, i32, i32
  }
  func.func @transform_6(%arg0: i32) -> (i32, i32) {
    %c0_i32 = arith.constant 0 : i32
    %c0_i32_0 = arith.constant 0 : i32
    %c0_i32_1 = arith.constant 0 : i32
    return %c0_i32, %c0_i32_0 : i32, i32
  }
  func.func @transform_7(%arg0: i32) -> (i32, i32) {
    %c0_i32 = arith.constant 0 : i32
    %c0_i32_0 = arith.constant 0 : i32
    %c0_i32_1 = arith.constant 0 : i32
    return %c0_i32, %c0_i32_0 : i32, i32
  }
  func.func @transform_8(%arg0: i32) -> (i32, i32, i32) {
    %c0_i32 = arith.constant 0 : i32
    %c0_i32_0 = arith.constant 0 : i32
    %c0_i32_1 = arith.constant 0 : i32
    %c0_i32_2 = arith.constant 0 : i32
    return %c0_i32, %c0_i32_0, %c0_i32_1 : i32, i32, i32
  }
  func.func @transform_9(%arg0: i32) -> (i32, i32) {
    %c0_i32 = arith.constant 0 : i32
    %c0_i32_0 = arith.constant 0 : i32
    %c0_i32_1 = arith.constant 0 : i32
    return %c0_i32, %c0_i32_0 : i32, i32
  }
  func.func @transform_10(%arg0: i32) -> (i32, i32) {
    %c0_i32 = arith.constant 0 : i32
    %c0_i32_0 = arith.constant 0 : i32
    %c0_i32_1 = arith.constant 0 : i32
    return %c0_i32, %c0_i32_0 : i32, i32
  }
  func.func @transform_11(%arg0: i32) -> (i32, i32) {
    %c0_i32 = arith.constant 0 : i32
    %c0_i32_0 = arith.constant 0 : i32
    %c0_i32_1 = arith.constant 0 : i32
    return %c0_i32, %c0_i32_0 : i32, i32
  }
  func.func @transform_12(%arg0: i32) -> (i32, i32) {
    %c0_i32 = arith.constant 0 : i32
    %c0_i32_0 = arith.constant 0 : i32
    %c0_i32_1 = arith.constant 0 : i32
    return %c0_i32, %c0_i32_0 : i32, i32
  }
}

</mosaic_0001>

<llo_original>
// kernel: tpu_custom_call.1
$region0: #{tpu_custom_call.1}
  #allocation0 [shape = 'u32[]', space=smem, size = 0x4, offset = 0x4, fixed_abs, tag = 'smem constant byte address 0x4 - core index']
  #allocation1 [shape = 'u32[144,128]{1,0:T(1,128)}', space=vmem, size = 0x12000, scoped, tag = 'internal scratch']
  #allocation2 [shape = 'f32[8,1024]{1,0:T(8,128)}', space=vmem, size = 0x8000, scoped, tag = 'scratch operand']
  #allocation3 [shape = 'f32[8,768]{1,0:T(8,128)}', space=vmem, size = 0x6000, scoped, tag = 'scratch operand']
  %s0 = inlined_call_operand.vmem [shape: f32[8,768], index: 0, kind: input, shape index: {}]
  %s1 = inlined_call_operand.vmem [shape: f32[1,768], index: 1, kind: input, shape index: {}]
  %s2 = inlined_call_operand.vmem [shape: f32[9,8,8], index: 2, kind: input, shape index: {}]
  %s3 = inlined_call_operand.vmem [shape: f32[8,1], index: 3, kind: input, shape index: {}]
  %s4 = inlined_call_operand.vmem [shape: f32[8,1], index: 4, kind: input, shape index: {}]
  %s5 = inlined_call_operand.vmem [shape: f32[9,8,8], index: 5, kind: input, shape index: {}]
  %s6 = inlined_call_operand.vmem [shape: f32[8,1], index: 6, kind: input, shape index: {}]
  %s7 = inlined_call_operand.vmem [shape: f32[8,1], index: 7, kind: input, shape index: {}]
  %s8 = inlined_call_operand.vmem [shape: f32[9,8,8], index: 8, kind: input, shape index: {}]
  %s9 = inlined_call_operand.vmem [shape: f32[8,1], index: 9, kind: input, shape index: {}]
  %s10 = inlined_call_operand.vmem [shape: f32[8,1], index: 10, kind: input, shape index: {}]
  %s11 = inlined_call_operand.hbm [shape: f32[8,768], index: 11, kind: output, shape index: {0}]
  %s12 = inlined_call_operand.hbm [shape: f32[8,768], index: 12, kind: output, shape index: {1}]
  %13 = xla_tuple %s11, %s12
  %s14 = sld [smem:[#allocation0]]
  $region62: #{tpu_custom_call.1} parent=0
    _
  %s16 = ssub.s32 1, %s14
  %s17 = scalar_select 0, %s16, %s14
  $region1: #{tpu_custom_call.1} parent=0
    #allocation4 [shape = 'u8[24576]{0}', space=vmem, size = 0x6000, scoped, tag = 'output window, operand 0, single buffered']
    #allocation5 [shape = 's32[1]{0}', space=sflag, size = 0x4, scoped, tag = 'scoped memory for tpu_custom_call.1']
    #allocation6 [shape = 'u8[24576]{0}', space=vmem, size = 0x6000, scoped, tag = 'output window, operand 1, single buffered']
    #allocation7 [shape = 's32[1]{0}', space=sflag, size = 0x4, scoped, tag = 'scoped memory for tpu_custom_call.1']
    %18 = vsyncpa [#allocation5], 0
    %19 = vsyncpa [#allocation7], 0
    // Predicated region
    $region2: #{tpu_custom_call.1} parent=1 // pred_check
      _
    $region3: #{tpu_custom_call.1} parent=1 // pred_check_branch
      %21 = sbr.rel (0) target = $region5
    $region4: #{tpu_custom_call.1} parent=1 // pred_region
      _
    $region5: #{tpu_custom_call.1} parent=1 // pred_fallthru
      _
    // Predicated region
    $region6: #{tpu_custom_call.1} parent=1 // pred_check
      _
    $region7: #{tpu_custom_call.1} parent=1 // pred_check_branch
      %23 = sbr.rel (0) target = $region9
    $region8: #{tpu_custom_call.1} parent=1 // pred_region
      _
    $region9: #{tpu_custom_call.1} parent=1 // pred_fallthru
      _
    // Predicated region
    $region10: #{tpu_custom_call.1} parent=1 // pred_check
      _
    $region11: #{tpu_custom_call.1} parent=1 // pred_check_branch
      %25 = sbr.rel (0) target = $region13
    $region12: #{tpu_custom_call.1} parent=1 // pred_region
      _
    $region13: #{tpu_custom_call.1} parent=1 // pred_fallthru
      _
    // Predicated region
    $region14: #{tpu_custom_call.1} parent=1 // pred_check
      _
    $region15: #{tpu_custom_call.1} parent=1 // pred_check_branch
      %27 = sbr.rel (0) target = $region17
    $region16: #{tpu_custom_call.1} parent=1 // pred_region
      _
    $region17: #{tpu_custom_call.1} parent=1 // pred_fallthru
      _
    // Predicated region
    $region18: #{tpu_custom_call.1} parent=1 // pred_check
      _
    $region19: #{tpu_custom_call.1} parent=1 // pred_check_branch
      %29 = sbr.rel (0) target = $region21
    $region20: #{tpu_custom_call.1} parent=1 // pred_region
      _
    $region21: #{tpu_custom_call.1} parent=1 // pred_fallthru
      _
    // Predicated region
    $region22: #{tpu_custom_call.1} parent=1 // pred_check
      _
    $region23: #{tpu_custom_call.1} parent=1 // pred_check_branch
      %31 = sbr.rel (0) target = $region25
    $region24: #{tpu_custom_call.1} parent=1 // pred_region
      _
    $region25: #{tpu_custom_call.1} parent=1 // pred_fallthru
      _
    // Predicated region
    $region26: #{tpu_custom_call.1} parent=1 // pred_check
      _
    $region27: #{tpu_custom_call.1} parent=1 // pred_check_branch
      %33 = sbr.rel (0) target = $region29
    $region28: #{tpu_custom_call.1} parent=1 // pred_region
      _
    $region29: #{tpu_custom_call.1} parent=1 // pred_fallthru
      _
    // Predicated region
    $region30: #{tpu_custom_call.1} parent=1 // pred_check
      _
    $region31: #{tpu_custom_call.1} parent=1 // pred_check_branch
      %35 = sbr.rel (0) target = $region33
    $region32: #{tpu_custom_call.1} parent=1 // pred_region
      _
    $region33: #{tpu_custom_call.1} parent=1 // pred_fallthru
      _
    // Predicated region
    $region34: #{tpu_custom_call.1} parent=1 // pred_check
      _
    $region35: #{tpu_custom_call.1} parent=1 // pred_check_branch
      %37 = sbr.rel (0) target = $region37
    $region36: #{tpu_custom_call.1} parent=1 // pred_region
      _
    $region37: #{tpu_custom_call.1} parent=1 // pred_fallthru
      _
    // Predicated region
    $region38: #{tpu_custom_call.1} parent=1 // pred_check
      _
    $region39: #{tpu_custom_call.1} parent=1 // pred_check_branch
      %39 = sbr.rel (0) target = $region41
    $region40: #{tpu_custom_call.1} parent=1 // pred_region
      _
    $region41: #{tpu_custom_call.1} parent=1 // pred_fallthru
      _
    // Predicated region
    $region42: #{tpu_custom_call.1} parent=1 // pred_check
      _
    $region43: #{tpu_custom_call.1} parent=1 // pred_check_branch
      %41 = sbr.rel (0) target = $region45
    $region44: #{tpu_custom_call.1} parent=1 // pred_region
      _
    $region45: #{tpu_custom_call.1} parent=1 // pred_fallthru
      _
    %v42 = vld [vmem:[%s1] sm:$0x3f]
    %43 = vst [vmem:[#allocation2] sm:$0xff] 0.0
    %44 = vst [vmem:[#allocation2 + $0x38] sm:$0xff] 0.0
    %v45 = vld [vmem:[%s0] sm:$0xff]
    %v46 = vld [vmem:[%s0 + $0x8] sm:$0xff]
    %v47 = vld [vmem:[%s0 + $0x10] sm:$0xff]
    %v48 = vld [vmem:[%s0 + $0x18] sm:$0xff]
    %v49 = vld [vmem:[%s0 + $0x20] sm:$0xff]
    %v50 = vld [vmem:[%s0 + $0x28] sm:$0xff]
    %51 = vst [vmem:[#allocation2 + $0x8] sm:$0xff] %v45
    %52 = vst [vmem:[#allocation2 + $0x10] sm:$0xff] %v46
    %53 = vst [vmem:[#allocation2 + $0x18] sm:$0xff] %v47
    %54 = vst [vmem:[#allocation2 + $0x20] sm:$0xff] %v48
    %55 = vst [vmem:[#allocation2 + $0x28] sm:$0xff] %v49
    %56 = vst [vmem:[#allocation2 + $0x30] sm:$0xff] %v50
    %v57 = vld [vmem:[#allocation2] sm:$0xff]
    %v58 = vld [vmem:[#allocation2 + $0x8] sm:$0xff]
    %v59 = vld [vmem:[#allocation2 + $0x10] sm:$0xff]
    %v60 = vld [vmem:[#allocation2 + $0x18] sm:$0xff]
    %v61 = vld [vmem:[#allocation2 + $0x20] sm:$0xff]
    %v62 = vld [vmem:[#allocation2 + $0x28] sm:$0xff]
    %v63 = vld [vmem:[#allocation2 + $0x30] sm:$0xff]
    %v64 = vld [vmem:[%s2] sm:$0xff]
    %s65 = scalar_lea.vmem %s2, 8
    %v66 = vld [vmem:[%s65] sm:$0xff]
    %74 = vrot.lane.b32.xlu0 %v57, 18
    %v75 = vpop.permute.xlu0 %74
    %76 = vrot.lane.b32.xlu0 %v58, 18
    %v77 = vpop.permute.xlu0 %76
    %78 = vrot.lane.b32.xlu0 %v59, 18
    %v79 = vpop.permute.xlu0 %78
    %80 = vrot.lane.b32.xlu0 %v60, 18
    %v81 = vpop.permute.xlu0 %80
    %82 = vrot.lane.b32.xlu0 %v61, 18
    %v83 = vpop.permute.xlu0 %82
    %84 = vrot.lane.b32.xlu0 %v62, 18
    %v85 = vpop.permute.xlu0 %84
    %86 = vrot.lane.b32.xlu0 %v63, 18
    %v87 = vpop.permute.xlu0 %86
    %vm88 = vcmask 146432
    %v89 = vsel %vm88, %v75, %v77
    %v90 = vsel %vm88, %v77, %v79
    %v91 = vsel %vm88, %v79, %v81
    %v92 = vsel %vm88, %v81, %v83
    %v93 = vsel %vm88, %v83, %v85
    %v94 = vsel %vm88, %v85, %v87
    %vm101 = vcmask 64512
    %v103 = vsel %vm101, %v66, 0
    %105 = vmatprep.subr.mxu0 0.0
    %106 = vmatpush1.msra.mxu0 0.0
    %107 = vmatprep.subr.mxu0 0.0
    %108 = vmatpush1.msra.mxu0 0.0
    %109 = vmatprep.subr.mxu0 0.0
    %110 = vmatpush1.msra.mxu0 0.0
    %111 = vmatprep.subr.mxu0 0.0
    %112 = vmatpush1.msra.mxu0 0.0
    %113 = vmatprep.subr.mxu0 0.0
    %114 = vmatpush1.msra.mxu0 0.0
    %115 = vmatprep.subr.mxu0 0.0
    %116 = vmatpush1.msra.mxu0 0.0
    %117 = vmatprep.subr.mxu0 0.0
    %118 = vmatpush1.msra.mxu0 0.0
    %119 = vmatprep.subr.mxu0 0.0
    %120 = vmatpush1.msra.mxu0 0.0
    %121 = vmatprep.subr.mxu0 0.0
    %122 = vmatpush1.msra.mxu0 0.0
    %123 = vmatprep.subr.mxu0 0.0
    %124 = vmatpush1.msra.mxu0 0.0
    %125 = vmatprep.subr.mxu0 0.0
    %126 = vmatpush1.msra.mxu0 0.0
    %127 = vmatprep.subr.mxu0 0.0
    %128 = vmatpush1.msra.mxu0 0.0
    %129 = vmatprep.subr.mxu0 0.0
    %130 = vmatpush1.msra.mxu0 0.0
    %131 = vmatprep.subr.mxu0 0.0
    %132 = vmatpush1.msra.mxu0 0.0
    %133 = vmatprep.subr.mxu0 0.0
    %134 = vmatpush1.msra.mxu0 0.0
    %135 = vmatprep.subr.mxu0 %v90
    %136 = vmatpush1.msra.mxu0 %v89
    %137 = vmatprep.subr.mxu0 0.0
    %138 = vmatpush2.msra.mxu0 0.0
    %139 = vmatprep.subr.mxu0 0.0
    %140 = vmatpush2.msra.mxu0 0.0
    %141 = vmatprep.subr.mxu0 0.0
    %142 = vmatpush2.msra.mxu0 0.0
    %143 = vmatprep.subr.mxu0 0.0
    %144 = vmatpush2.msra.mxu0 0.0
    %145 = vmatprep.subr.mxu0 0.0
    %146 = vmatpush2.msra.mxu0 0.0
    %147 = vmatprep.subr.mxu0 0.0
    %148 = vmatpush2.msra.mxu0 0.0
    %149 = vmatprep.subr.mxu0 0.0
    %150 = vmatpush2.msra.mxu0 0.0
    %151 = vmatprep.subr.mxu0 0.0
    %152 = vmatpush2.msra.mxu0 0.0
    %153 = vmatprep.subr.mxu0 0.0
    %154 = vmatpush2.msra.mxu0 0.0
    %155 = vmatprep.subr.mxu0 0.0
    %156 = vmatpush2.msra.mxu0 0.0
    %157 = vmatprep.subr.mxu0 0.0
    %158 = vmatpush2.msra.mxu0 0.0
    %159 = vmatprep.subr.mxu0 0.0
    %160 = vmatpush2.msra.mxu0 0.0
    %161 = vmatprep.subr.mxu0 0.0
    %162 = vmatpush2.msra.mxu0 0.0
    %163 = vmatprep.subr.mxu0 0.0
    %164 = vmatpush2.msra.mxu0 0.0
    %165 = vmatprep.subr.mxu0 0.0
    %166 = vmatpush2.msra.mxu0 0.0
    %167 = vmatprep.subr.mxu0 0.0
    %168 = vmatpush2.msra.mxu0 0.0
    %169 = vmatprep.mubr.f32.mxu0 0.0
    %170 = vmatmul.mubr.f32.gmra.mxu0 %v103
    %v171 = vpop.f32.mrf.mxu0
    %v172 = vadd.f32 0.0, %v171
    %v173 = vpop.f32.mrf.mxu0
    %v174 = vadd.f32 0.0, %v173
    %175 = vdwg.mxu0
    %176 = vmatprep.subr.mxu0 0.0
    %177 = vmatpush1.msra.mxu0 0.0
    %178 = vmatprep.subr.mxu0 0.0
    %179 = vmatpush1.msra.mxu0 0.0
    %180 = vmatprep.subr.mxu0 0.0
    %181 = vmatpush1.msra.mxu0 0.0
    %182 = vmatprep.subr.mxu0 0.0
    %183 = vmatpush1.msra.mxu0 0.0
    %184 = vmatprep.subr.mxu0 0.0
    %185 = vmatpush1.msra.mxu0 0.0
    %186 = vmatprep.subr.mxu0 0.0
    %187 = vmatpush1.msra.mxu0 0.0
    %188 = vmatprep.subr.mxu0 0.0
    %189 = vmatpush1.msra.mxu0 0.0
    %190 = vmatprep.subr.mxu0 0.0
    %191 = vmatpush1.msra.mxu0 0.0
    %192 = vmatprep.subr.mxu0 0.0
    %193 = vmatpush1.msra.mxu0 0.0
    %194 = vmatprep.subr.mxu0 0.0
    %195 = vmatpush1.msra.mxu0 0.0
    %196 = vmatprep.subr.mxu0 0.0
    %197 = vmatpush1.msra.mxu0 0.0
    %198 = vmatprep.subr.mxu0 0.0
    %199 = vmatpush1.msra.mxu0 0.0
    %200 = vmatprep.subr.mxu0 0.0
    %201 = vmatpush1.msra.mxu0 0.0
    %202 = vmatprep.subr.mxu0 0.0
    %203 = vmatpush1.msra.mxu0 0.0
    %204 = vmatprep.subr.mxu0 0.0
    %205 = vmatpush1.msra.mxu0 0.0
    %206 = vmatprep.subr.mxu0 %v92
    %207 = vmatpush1.msra.mxu0 %v91
    %208 = vmatprep.subr.mxu0 0.0
    %209 = vmatpush2.msra.mxu0 0.0
    %210 = vmatprep.subr.mxu0 0.0
    %211 = vmatpush2.msra.mxu0 0.0
    %212 = vmatprep.subr.mxu0 0.0
    %213 = vmatpush2.msra.mxu0 0.0
    %214 = vmatprep.subr.mxu0 0.0
    %215 = vmatpush2.msra.mxu0 0.0
    %216 = vmatprep.subr.mxu0 0.0
    %217 = vmatpush2.msra.mxu0 0.0
    %218 = vmatprep.subr.mxu0 0.0
    %219 = vmatpush2.msra.mxu0 0.0
    %220 = vmatprep.subr.mxu0 0.0
    %221 = vmatpush2.msra.mxu0 0.0
    %222 = vmatprep.subr.mxu0 0.0
    %223 = vmatpush2.msra.mxu0 0.0
    %224 = vmatprep.subr.mxu0 0.0
    %225 = vmatpush2.msra.mxu0 0.0
    %226 = vmatprep.subr.mxu0 0.0
    %227 = vmatpush2.msra.mxu0 0.0
    %228 = vmatprep.subr.mxu0 0.0
    %229 = vmatpush2.msra.mxu0 0.0
    %230 = vmatprep.subr.mxu0 0.0
    %231 = vmatpush2.msra.mxu0 0.0
    %232 = vmatprep.subr.mxu0 0.0
    %233 = vmatpush2.msra.mxu0 0.0
    %234 = vmatprep.subr.mxu0 0.0
    %235 = vmatpush2.msra.mxu0 0.0
    %236 = vmatprep.subr.mxu0 0.0
    %237 = vmatpush2.msra.mxu0 0.0
    %238 = vmatprep.subr.mxu0 0.0
    %239 = vmatpush2.msra.mxu0 0.0
    %240 = vmatprep.mubr.f32.mxu0 0.0
    %241 = vmatmul.mubr.f32.gmra.mxu0 %v103
    %v242 = vpop.f32.mrf.mxu0
    %v243 = vadd.f32 0.0, %v242
    %v244 = vpop.f32.mrf.mxu0
    %v245 = vadd.f32 0.0, %v244
    %246 = vdwg.mxu0
    %247 = vmatprep.subr.mxu0 0.0
    %248 = vmatpush1.msra.mxu0 0.0
    %249 = vmatprep.subr.mxu0 0.0
    %250 = vmatpush1.msra.mxu0 0.0
    %251 = vmatprep.subr.mxu0 0.0
    %252 = vmatpush1.msra.mxu0 0.0
    %253 = vmatprep.subr.mxu0 0.0
    %254 = vmatpush1.msra.mxu0 0.0
    %255 = vmatprep.subr.mxu0 0.0
    %256 = vmatpush1.msra.mxu0 0.0
    %257 = vmatprep.subr.mxu0 0.0
    %258 = vmatpush1.msra.mxu0 0.0
    %259 = vmatprep.subr.mxu0 0.0
    %260 = vmatpush1.msra.mxu0 0.0
    %261 = vmatprep.subr.mxu0 0.0
    %262 = vmatpush1.msra.mxu0 0.0
    %263 = vmatprep.subr.mxu0 0.0
    %264 = vmatpush1.msra.mxu0 0.0
    %265 = vmatprep.subr.mxu0 0.0
    %266 = vmatpush1.msra.mxu0 0.0
    %267 = vmatprep.subr.mxu0 0.0
    %268 = vmatpush1.msra.mxu0 0.0
    %269 = vmatprep.subr.mxu0 0.0
    %270 = vmatpush1.msra.mxu0 0.0
    %271 = vmatprep.subr.mxu0 0.0
    %272 = vmatpush1.msra.mxu0 0.0
    %273 = vmatprep.subr.mxu0 0.0
    %274 = vmatpush1.msra.mxu0 0.0
    %275 = vmatprep.subr.mxu0 0.0
    %276 = vmatpush1.msra.mxu0 0.0
    %277 = vmatprep.subr.mxu0 %v94
    %278 = vmatpush1.msra.mxu0 %v93
    %279 = vmatprep.subr.mxu0 0.0
    %280 = vmatpush2.msra.mxu0 0.0
    %281 = vmatprep.subr.mxu0 0.0
    %282 = vmatpush2.msra.mxu0 0.0
    %283 = vmatprep.subr.mxu0 0.0
    %284 = vmatpush2.msra.mxu0 0.0
    %285 = vmatprep.subr.mxu0 0.0
    %286 = vmatpush2.msra.mxu0 0.0
    %287 = vmatprep.subr.mxu0 0.0
    %288 = vmatpush2.msra.mxu0 0.0
    %289 = vmatprep.subr.mxu0 0.0
    %290 = vmatpush2.msra.mxu0 0.0
    %291 = vmatprep.subr.mxu0 0.0
    %292 = vmatpush2.msra.mxu0 0.0
    %293 = vmatprep.subr.mxu0 0.0
    %294 = vmatpush2.msra.mxu0 0.0
    %295 = vmatprep.subr.mxu0 0.0
    %296 = vmatpush2.msra.mxu0 0.0
    %297 = vmatprep.subr.mxu0 0.0
    %298 = vmatpush2.msra.mxu0 0.0
    %299 = vmatprep.subr.mxu0 0.0
    %300 = vmatpush2.msra.mxu0 0.0
    %301 = vmatprep.subr.mxu0 0.0
    %302 = vmatpush2.msra.mxu0 0.0
    %303 = vmatprep.subr.mxu0 0.0
    %304 = vmatpush2.msra.mxu0 0.0
    %305 = vmatprep.subr.mxu0 0.0
    %306 = vmatpush2.msra.mxu0 0.0
    %307 = vmatprep.subr.mxu0 0.0
    %308 = vmatpush2.msra.mxu0 0.0
    %309 = vmatprep.subr.mxu0 0.0
    %310 = vmatpush2.msra.mxu0 0.0
    %311 = vmatprep.mubr.f32.mxu0 0.0
    %312 = vmatmul.mubr.f32.gmra.mxu0 %v103
    %v313 = vpop.f32.mrf.mxu0
    %v314 = vadd.f32 0.0, %v313
    %v315 = vpop.f32.mrf.mxu0
    %v316 = vadd.f32 0.0, %v315
    %317 = vdwg.mxu0
    %318 = vrot.lane.b32.xlu0 %v57, 19
    %v319 = vpop.permute.xlu0 %318
    %320 = vrot.lane.b32.xlu0 %v58, 19
    %v321 = vpop.permute.xlu0 %320
    %322 = vrot.lane.b32.xlu0 %v59, 19
    %v323 = vpop.permute.xlu0 %322
    %324 = vrot.lane.b32.xlu0 %v60, 19
    %v325 = vpop.permute.xlu0 %324
    %326 = vrot.lane.b32.xlu0 %v61, 19
    %v327 = vpop.permute.xlu0 %326
    %328 = vrot.lane.b32.xlu0 %v62, 19
    %v329 = vpop.permute.xlu0 %328
    %330 = vrot.lane.b32.xlu0 %v63, 19
    %v331 = vpop.permute.xlu0 %330
    %vm332 = vcmask 154624
    %v333 = vsel %vm332, %v319, %v321
    %v334 = vsel %vm332, %v321, %v323
    %v335 = vsel %vm332, %v323, %v325
    %v336 = vsel %vm332, %v325, %v327
    %v337 = vsel %vm332, %v327, %v329
    %v338 = vsel %vm332, %v329, %v331
    %v346 = vsel %vm101, %v64, 0
    %348 = vmatprep.subr.mxu0 0.0
    %349 = vmatpush1.msra.mxu0 0.0
    %350 = vmatprep.subr.mxu0 0.0
    %351 = vmatpush1.msra.mxu0 0.0
    %352 = vmatprep.subr.mxu0 0.0
    %353 = vmatpush1.msra.mxu0 0.0
    %354 = vmatprep.subr.mxu0 0.0
    %355 = vmatpush1.msra.mxu0 0.0
    %356 = vmatprep.subr.mxu0 0.0
    %357 = vmatpush1.msra.mxu0 0.0
    %358 = vmatprep.subr.mxu0 0.0
    %359 = vmatpush1.msra.mxu0 0.0
    %360 = vmatprep.subr.mxu0 0.0
    %361 = vmatpush1.msra.mxu0 0.0
    %362 = vmatprep.subr.mxu0 0.0
    %363 = vmatpush1.msra.mxu0 0.0
    %364 = vmatprep.subr.mxu0 0.0
    %365 = vmatpush1.msra.mxu0 0.0
    %366 = vmatprep.subr.mxu0 0.0
    %367 = vmatpush1.msra.mxu0 0.0
    %368 = vmatprep.subr.mxu0 0.0
    %369 = vmatpush1.msra.mxu0 0.0
    %370 = vmatprep.subr.mxu0 0.0
    %371 = vmatpush1.msra.mxu0 0.0
    %372 = vmatprep.subr.mxu0 0.0
    %373 = vmatpush1.msra.mxu0 0.0
    %374 = vmatprep.subr.mxu0 0.0
    %375 = vmatpush1.msra.mxu0 0.0
    %376 = vmatprep.subr.mxu0 0.0
    %377 = vmatpush1.msra.mxu0 0.0
    %378 = vmatprep.subr.mxu0 %v334
    %379 = vmatpush1.msra.mxu0 %v333
    %380 = vmatprep.subr.mxu0 0.0
    %381 = vmatpush2.msra.mxu0 0.0
    %382 = vmatprep.subr.mxu0 0.0
    %383 = vmatpush2.msra.mxu0 0.0
    %384 = vmatprep.subr.mxu0 0.0
    %385 = vmatpush2.msra.mxu0 0.0
    %386 = vmatprep.subr.mxu0 0.0
    %387 = vmatpush2.msra.mxu0 0.0
    %388 = vmatprep.subr.mxu0 0.0
    %389 = vmatpush2.msra.mxu0 0.0
    %390 = vmatprep.subr.mxu0 0.0
    %391 = vmatpush2.msra.mxu0 0.0
    %392 = vmatprep.subr.mxu0 0.0
    %393 = vmatpush2.msra.mxu0 0.0
    %394 = vmatprep.subr.mxu0 0.0
    %395 = vmatpush2.msra.mxu0 0.0
    %396 = vmatprep.subr.mxu0 0.0
    %397 = vmatpush2.msra.mxu0 0.0
    %398 = vmatprep.subr.mxu0 0.0
    %399 = vmatpush2.msra.mxu0 0.0
    %400 = vmatprep.subr.mxu0 0.0
    %401 = vmatpush2.msra.mxu0 0.0
    %402 = vmatprep.subr.mxu0 0.0
    %403 = vmatpush2.msra.mxu0 0.0
    %404 = vmatprep.subr.mxu0 0.0
    %405 = vmatpush2.msra.mxu0 0.0
    %406 = vmatprep.subr.mxu0 0.0
    %407 = vmatpush2.msra.mxu0 0.0
    %408 = vmatprep.subr.mxu0 0.0
    %409 = vmatpush2.msra.mxu0 0.0
    %410 = vmatprep.subr.mxu0 0.0
    %411 = vmatpush2.msra.mxu0 0.0
    %412 = vmatprep.mubr.f32.mxu0 0.0
    %413 = vmatmul.mubr.f32.gmra.mxu0 %v346
    %v414 = vpop.f32.mrf.mxu0
    %v415 = vadd.f32 %v172, %v414
    %v416 = vpop.f32.mrf.mxu0
    %v417 = vadd.f32 %v174, %v416
    %418 = vdwg.mxu0
    %419 = vmatprep.subr.mxu0 0.0
    %420 = vmatpush1.msra.mxu0 0.0
    %421 = vmatprep.subr.mxu0 0.0
    %422 = vmatpush1.msra.mxu0 0.0
    %423 = vmatprep.subr.mxu0 0.0
    %424 = vmatpush1.msra.mxu0 0.0
    %425 = vmatprep.subr.mxu0 0.0
    %426 = vmatpush1.msra.mxu0 0.0
    %427 = vmatprep.subr.mxu0 0.0
    %428 = vmatpush1.msra.mxu0 0.0
    %429 = vmatprep.subr.mxu0 0.0
    %430 = vmatpush1.msra.mxu0 0.0
    %431 = vmatprep.subr.mxu0 0.0
    %432 = vmatpush1.msra.mxu0 0.0
    %433 = vmatprep.subr.mxu0 0.0
    %434 = vmatpush1.msra.mxu0 0.0
    %435 = vmatprep.subr.mxu0 0.0
    %436 = vmatpush1.msra.mxu0 0.0
    %437 = vmatprep.subr.mxu0 0.0
    %438 = vmatpush1.msra.mxu0 0.0
    %439 = vmatprep.subr.mxu0 0.0
    %440 = vmatpush1.msra.mxu0 0.0
    %441 = vmatprep.subr.mxu0 0.0
    %442 = vmatpush1.msra.mxu0 0.0
    %443 = vmatprep.subr.mxu0 0.0
    %444 = vmatpush1.msra.mxu0 0.0
    %445 = vmatprep.subr.mxu0 0.0
    %446 = vmatpush1.msra.mxu0 0.0
    %447 = vmatprep.subr.mxu0 0.0
    %448 = vmatpush1.msra.mxu0 0.0
    %449 = vmatprep.subr.mxu0 %v336
    %450 = vmatpush1.msra.mxu0 %v335
    %451 = vmatprep.subr.mxu0 0.0
    %452 = vmatpush2.msra.mxu0 0.0
    %453 = vmatprep.subr.mxu0 0.0
    %454 = vmatpush2.msra.mxu0 0.0
    %455 = vmatprep.subr.mxu0 0.0
    %456 = vmatpush2.msra.mxu0 0.0
    %457 = vmatprep.subr.mxu0 0.0
    %458 = vmatpush2.msra.mxu0 0.0
    %459 = vmatprep.subr.mxu0 0.0
    %460 = vmatpush2.msra.mxu0 0.0
    %461 = vmatprep.subr.mxu0 0.0
    %462 = vmatpush2.msra.mxu0 0.0
    %463 = vmatprep.subr.mxu0 0.0
    %464 = vmatpush2.msra.mxu0 0.0
    %465 = vmatprep.subr.mxu0 0.0
    %466 = vmatpush2.msra.mxu0 0.0
    %467 = vmatprep.subr.mxu0 0.0
    %468 = vmatpush2.msra.mxu0 0.0
    %469 = vmatprep.subr.mxu0 0.0
    %470 = vmatpush2.msra.mxu0 0.0
    %471 = vmatprep.subr.mxu0 0.0
    %472 = vmatpush2.msra.mxu0 0.0
    %473 = vmatprep.subr.mxu0 0.0
    %474 = vmatpush2.msra.mxu0 0.0
    %475 = vmatprep.subr.mxu0 0.0
    %476 = vmatpush2.msra.mxu0 0.0
    %477 = vmatprep.subr.mxu0 0.0
    %478 = vmatpush2.msra.mxu0 0.0
    %479 = vmatprep.subr.mxu0 0.0
    %480 = vmatpush2.msra.mxu0 0.0
    %481 = vmatprep.subr.mxu0 0.0
    %482 = vmatpush2.msra.mxu0 0.0
    %483 = vmatprep.mubr.f32.mxu0 0.0
    %484 = vmatmul.mubr.f32.gmra.mxu0 %v346
    %v485 = vpop.f32.mrf.mxu0
    %v486 = vadd.f32 %v243, %v485
    %v487 = vpop.f32.mrf.mxu0
    %v488 = vadd.f32 %v245, %v487
    %489 = vdwg.mxu0
    %490 = vmatprep.subr.mxu0 0.0
    %491 = vmatpush1.msra.mxu0 0.0
    %492 = vmatprep.subr.mxu0 0.0
    %493 = vmatpush1.msra.mxu0 0.0
    %494 = vmatprep.subr.mxu0 0.0
    %495 = vmatpush1.msra.mxu0 0.0
    %496 = vmatprep.subr.mxu0 0.0
    %497 = vmatpush1.msra.mxu0 0.0
    %498 = vmatprep.subr.mxu0 0.0
    %499 = vmatpush1.msra.mxu0 0.0
    %500 = vmatprep.subr.mxu0 0.0
    %501 = vmatpush1.msra.mxu0 0.0
    %502 = vmatprep.subr.mxu0 0.0
    %503 = vmatpush1.msra.mxu0 0.0
    %504 = vmatprep.subr.mxu0 0.0
    %505 = vmatpush1.msra.mxu0 0.0
    %506 = vmatprep.subr.mxu0 0.0
    %507 = vmatpush1.msra.mxu0 0.0
    %508 = vmatprep.subr.mxu0 0.0
    %509 = vmatpush1.msra.mxu0 0.0
    %510 = vmatprep.subr.mxu0 0.0
    %511 = vmatpush1.msra.mxu0 0.0
    %512 = vmatprep.subr.mxu0 0.0
    %513 = vmatpush1.msra.mxu0 0.0
    %514 = vmatprep.subr.mxu0 0.0
    %515 = vmatpush1.msra.mxu0 0.0
    %516 = vmatprep.subr.mxu0 0.0
    %517 = vmatpush1.msra.mxu0 0.0
    %518 = vmatprep.subr.mxu0 0.0
    %519 = vmatpush1.msra.mxu0 0.0
    %520 = vmatprep.subr.mxu0 %v338
    %521 = vmatpush1.msra.mxu0 %v337
    %522 = vmatprep.subr.mxu0 0.0
    %523 = vmatpush2.msra.mxu0 0.0
    %524 = vmatprep.subr.mxu0 0.0
    %525 = vmatpush2.msra.mxu0 0.0
    %526 = vmatprep.subr.mxu0 0.0
    %527 = vmatpush2.msra.mxu0 0.0
    %528 = vmatprep.subr.mxu0 0.0
    %529 = vmatpush2.msra.mxu0 0.0
    %530 = vmatprep.subr.mxu0 0.0
    %531 = vmatpush2.msra.mxu0 0.0
    %532 = vmatprep.subr.mxu0 0.0
    %533 = vmatpush2.msra.mxu0 0.0
    %534 = vmatprep.subr.mxu0 0.0
    %535 = vmatpush2.msra.mxu0 0.0
    %536 = vmatprep.subr.mxu0 0.0
    %537 = vmatpush2.msra.mxu0 0.0
    %538 = vmatprep.subr.mxu0 0.0
    %539 = vmatpush2.msra.mxu0 0.0
    %540 = vmatprep.subr.mxu0 0.0
    %541 = vmatpush2.msra.mxu0 0.0
    %542 = vmatprep.subr.mxu0 0.0
    %543 = vmatpush2.msra.mxu0 0.0
    %544 = vmatprep.subr.mxu0 0.0
    %545 = vmatpush2.msra.mxu0 0.0
    %546 = vmatprep.subr.mxu0 0.0
    %547 = vmatpush2.msra.mxu0 0.0
    %548 = vmatprep.subr.mxu0 0.0
    %549 = vmatpush2.msra.mxu0 0.0
    %550 = vmatprep.subr.mxu0 0.0
    %551 = vmatpush2.msra.mxu0 0.0
    %552 = vmatprep.subr.mxu0 0.0
    %553 = vmatpush2.msra.mxu0 0.0
    %554 = vmatprep.mubr.f32.mxu0 0.0
    %555 = vmatmul.mubr.f32.gmra.mxu0 %v346
    %v556 = vpop.f32.mrf.mxu0
    %v557 = vadd.f32 %v314, %v556
    %v558 = vpop.f32.mrf.mxu0
    %v559 = vadd.f32 %v316, %v558
    %560 = vdwg.mxu0
    %s561 = scalar_lea.vmem %s2, 16
    %v562 = vld [vmem:[%s561] sm:$0xff]
    %563 = vrot.lane.b32.xlu0 %v57, 17
    %v564 = vpop.permute.xlu0 %563
    %565 = vrot.lane.b32.xlu0 %v58, 17
    %v566 = vpop.permute.xlu0 %565
    %567 = vrot.lane.b32.xlu0 %v59, 17
    %v568 = vpop.permute.xlu0 %567
    %569 = vrot.lane.b32.xlu0 %v60, 17
    %v570 = vpop.permute.xlu0 %569
    %571 = vrot.lane.b32.xlu0 %v61, 17
    %v572 = vpop.permute.xlu0 %571
    %573 = vrot.lane.b32.xlu0 %v62, 17
    %v574 = vpop.permute.xlu0 %573
    %575 = vrot.lane.b32.xlu0 %v63, 17
    %v576 = vpop.permute.xlu0 %575
    %vm577 = vcmask 138240
    %v578 = vsel %vm577, %v564, %v566
    %v579 = vsel %vm577, %v566, %v568
    %v580 = vsel %vm577, %v568, %v570
    %v581 = vsel %vm577, %v570, %v572
    %v582 = vsel %vm577, %v572, %v574
    %v583 = vsel %vm577, %v574, %v576
    %v591 = vsel %vm101, %v562, 0
    %593 = vmatprep.subr.mxu0 0.0
    %594 = vmatpush1.msra.mxu0 0.0
    %595 = vmatprep.subr.mxu0 0.0
    %596 = vmatpush1.msra.mxu0 0.0
    %597 = vmatprep.subr.mxu0 0.0
    %598 = vmatpush1.msra.mxu0 0.0
    %599 = vmatprep.subr.mxu0 0.0
    %600 = vmatpush1.msra.mxu0 0.0
    %601 = vmatprep.subr.mxu0 0.0
    %602 = vmatpush1.msra.mxu0 0.0
    %603 = vmatprep.subr.mxu0 0.0
    %604 = vmatpush1.msra.mxu0 0.0
    %605 = vmatprep.subr.mxu0 0.0
    %606 = vmatpush1.msra.mxu0 0.0
    %607 = vmatprep.subr.mxu0 0.0
    %608 = vmatpush1.msra.mxu0 0.0
    %609 = vmatprep.subr.mxu0 0.0
    %610 = vmatpush1.msra.mxu0 0.0
    %611 = vmatprep.subr.mxu0 0.0
    %612 = vmatpush1.msra.mxu0 0.0
    %613 = vmatprep.subr.mxu0 0.0
    %614 = vmatpush1.msra.mxu0 0.0
    %615 = vmatprep.subr.mxu0 0.0
    %616 = vmatpush1.msra.mxu0 0.0
    %617 = vmatprep.subr.mxu0 0.0
    %618 = vmatpush1.msra.mxu0 0.0
    %619 = vmatprep.subr.mxu0 0.0
    %620 = vmatpush1.msra.mxu0 0.0
    %621 = vmatprep.subr.mxu0 0.0
    %622 = vmatpush1.msra.mxu0 0.0
    %623 = vmatprep.subr.mxu0 %v579
    %624 = vmatpush1.msra.mxu0 %v578
    %625 = vmatprep.subr.mxu0 0.0
    %626 = vmatpush2.msra.mxu0 0.0
    %627 = vmatprep.subr.mxu0 0.0
    %628 = vmatpush2.msra.mxu0 0.0
    %629 = vmatprep.subr.mxu0 0.0
    %630 = vmatpush2.msra.mxu0 0.0
    %631 = vmatprep.subr.mxu0 0.0
    %632 = vmatpush2.msra.mxu0 0.0
    %633 = vmatprep.subr.mxu0 0.0
    %634 = vmatpush2.msra.mxu0 0.0
    %635 = vmatprep.subr.mxu0 0.0
    %636 = vmatpush2.msra.mxu0 0.0
    %637 = vmatprep.subr.mxu0 0.0
    %638 = vmatpush2.msra.mxu0 0.0
    %639 = vmatprep.subr.mxu0 0.0
    %640 = vmatpush2.msra.mxu0 0.0
    %641 = vmatprep.subr.mxu0 0.0
    %642 = vmatpush2.msra.mxu0 0.0
    %643 = vmatprep.subr.mxu0 0.0
    %644 = vmatpush2.msra.mxu0 0.0
    %645 = vmatprep.subr.mxu0 0.0
    %646 = vmatpush2.msra.mxu0 0.0
    %647 = vmatprep.subr.mxu0 0.0
    %648 = vmatpush2.msra.mxu0 0.0
    %649 = vmatprep.subr.mxu0 0.0
    %650 = vmatpush2.msra.mxu0 0.0
    %651 = vmatprep.subr.mxu0 0.0
    %652 = vmatpush2.msra.mxu0 0.0
    %653 = vmatprep.subr.mxu0 0.0
    %654 = vmatpush2.msra.mxu0 0.0
    %655 = vmatprep.subr.mxu0 0.0
    %656 = vmatpush2.msra.mxu0 0.0
    %657 = vmatprep.mubr.f32.mxu0 0.0
    %658 = vmatmul.mubr.f32.gmra.mxu0 %v591
    %v659 = vpop.f32.mrf.mxu0
    %v660 = vadd.f32 0.0, %v659
    %v661 = vpop.f32.mrf.mxu0
    %v662 = vadd.f32 0.0, %v661
    %663 = vdwg.mxu0
    %664 = vmatprep.subr.mxu0 0.0
    %665 = vmatpush1.msra.mxu0 0.0
    %666 = vmatprep.subr.mxu0 0.0
    %667 = vmatpush1.msra.mxu0 0.0
    %668 = vmatprep.subr.mxu0 0.0
    %669 = vmatpush1.msra.mxu0 0.0
    %670 = vmatprep.subr.mxu0 0.0
    %671 = vmatpush1.msra.mxu0 0.0
    %672 = vmatprep.subr.mxu0 0.0
    %673 = vmatpush1.msra.mxu0 0.0
    %674 = vmatprep.subr.mxu0 0.0
    %675 = vmatpush1.msra.mxu0 0.0
    %676 = vmatprep.subr.mxu0 0.0
    %677 = vmatpush1.msra.mxu0 0.0
    %678 = vmatprep.subr.mxu0 0.0
    %679 = vmatpush1.msra.mxu0 0.0
    %680 = vmatprep.subr.mxu0 0.0
    %681 = vmatpush1.msra.mxu0 0.0
    %682 = vmatprep.subr.mxu0 0.0
    %683 = vmatpush1.msra.mxu0 0.0
    %684 = vmatprep.subr.mxu0 0.0
    %685 = vmatpush1.msra.mxu0 0.0
    %686 = vmatprep.subr.mxu0 0.0
    %687 = vmatpush1.msra.mxu0 0.0
    %688 = vmatprep.subr.mxu0 0.0
    %689 = vmatpush1.msra.mxu0 0.0
    %690 = vmatprep.subr.mxu0 0.0
    %691 = vmatpush1.msra.mxu0 0.0
    %692 = vmatprep.subr.mxu0 0.0
    %693 = vmatpush1.msra.mxu0 0.0
    %694 = vmatprep.subr.mxu0 %v581
    %695 = vmatpush1.msra.mxu0 %v580
    %696 = vmatprep.subr.mxu0 0.0
    %697 = vmatpush2.msra.mxu0 0.0
    %698 = vmatprep.subr.mxu0 0.0
    %699 = vmatpush2.msra.mxu0 0.0
    %700 = vmatprep.subr.mxu0 0.0
    %701 = vmatpush2.msra.mxu0 0.0
    %702 = vmatprep.subr.mxu0 0.0
    %703 = vmatpush2.msra.mxu0 0.0
    %704 = vmatprep.subr.mxu0 0.0
    %705 = vmatpush2.msra.mxu0 0.0
    %706 = vmatprep.subr.mxu0 0.0
    %707 = vmatpush2.msra.mxu0 0.0
    %708 = vmatprep.subr.mxu0 0.0
    %709 = vmatpush2.msra.mxu0 0.0
    %710 = vmatprep.subr.mxu0 0.0
    %711 = vmatpush2.msra.mxu0 0.0
    %712 = vmatprep.subr.mxu0 0.0
    %713 = vmatpush2.msra.mxu0 0.0
    %714 = vmatprep.subr.mxu0 0.0
    %715 = vmatpush2.msra.mxu0 0.0
    %716 = vmatprep.subr.mxu0 0.0
    %717 = vmatpush2.msra.mxu0 0.0
    %718 = vmatprep.subr.mxu0 0.0
    %719 = vmatpush2.msra.mxu0 0.0
    %720 = vmatprep.subr.mxu0 0.0
    %721 = vmatpush2.msra.mxu0 0.0
    %722 = vmatprep.subr.mxu0 0.0
    %723 = vmatpush2.msra.mxu0 0.0
    %724 = vmatprep.subr.mxu0 0.0
    %725 = vmatpush2.msra.mxu0 0.0
    %726 = vmatprep.subr.mxu0 0.0
    %727 = vmatpush2.msra.mxu0 0.0
    %728 = vmatprep.mubr.f32.mxu0 0.0
    %729 = vmatmul.mubr.f32.gmra.mxu0 %v591
    %v730 = vpop.f32.mrf.mxu0
    %v731 = vadd.f32 0.0, %v730
    %v732 = vpop.f32.mrf.mxu0
    %v733 = vadd.f32 0.0, %v732
    %734 = vdwg.mxu0
    %735 = vmatprep.subr.mxu0 0.0
    %736 = vmatpush1.msra.mxu0 0.0
    %737 = vmatprep.subr.mxu0 0.0
    %738 = vmatpush1.msra.mxu0 0.0
    %739 = vmatprep.subr.mxu0 0.0
    %740 = vmatpush1.msra.mxu0 0.0
    %741 = vmatprep.subr.mxu0 0.0
    %742 = vmatpush1.msra.mxu0 0.0
    %743 = vmatprep.subr.mxu0 0.0
    %744 = vmatpush1.msra.mxu0 0.0
    %745 = vmatprep.subr.mxu0 0.0
    %746 = vmatpush1.msra.mxu0 0.0
    %747 = vmatprep.subr.mxu0 0.0
    %748 = vmatpush1.msra.mxu0 0.0
    %749 = vmatprep.subr.mxu0 0.0
    %750 = vmatpush1.msra.mxu0 0.0
    %751 = vmatprep.subr.mxu0 0.0
    %752 = vmatpush1.msra.mxu0 0.0
    %753 = vmatprep.subr.mxu0 0.0
    %754 = vmatpush1.msra.mxu0 0.0
    %755 = vmatprep.subr.mxu0 0.0
    %756 = vmatpush1.msra.mxu0 0.0
    %757 = vmatprep.subr.mxu0 0.0
    %758 = vmatpush1.msra.mxu0 0.0
    %759 = vmatprep.subr.mxu0 0.0
    %760 = vmatpush1.msra.mxu0 0.0
    %761 = vmatprep.subr.mxu0 0.0
    %762 = vmatpush1.msra.mxu0 0.0
    %763 = vmatprep.subr.mxu0 0.0
    %764 = vmatpush1.msra.mxu0 0.0
    %765 = vmatprep.subr.mxu0 %v583
    %766 = vmatpush1.msra.mxu0 %v582
    %767 = vmatprep.subr.mxu0 0.0
    %768 = vmatpush2.msra.mxu0 0.0
    %769 = vmatprep.subr.mxu0 0.0
    %770 = vmatpush2.msra.mxu0 0.0
    %771 = vmatprep.subr.mxu0 0.0
    %772 = vmatpush2.msra.mxu0 0.0
    %773 = vmatprep.subr.mxu0 0.0
    %774 = vmatpush2.msra.mxu0 0.0
    %775 = vmatprep.subr.mxu0 0.0
    %776 = vmatpush2.msra.mxu0 0.0
    %777 = vmatprep.subr.mxu0 0.0
    %778 = vmatpush2.msra.mxu0 0.0
    %779 = vmatprep.subr.mxu0 0.0
    %780 = vmatpush2.msra.mxu0 0.0
    %781 = vmatprep.subr.mxu0 0.0
    %782 = vmatpush2.msra.mxu0 0.0
    %783 = vmatprep.subr.mxu0 0.0
    %784 = vmatpush2.msra.mxu0 0.0
    %785 = vmatprep.subr.mxu0 0.0
    %786 = vmatpush2.msra.mxu0 0.0
    %787 = vmatprep.subr.mxu0 0.0
    %788 = vmatpush2.msra.mxu0 0.0
    %789 = vmatprep.subr.mxu0 0.0
    %790 = vmatpush2.msra.mxu0 0.0
    %791 = vmatprep.subr.mxu0 0.0
    %792 = vmatpush2.msra.mxu0 0.0
    %793 = vmatprep.subr.mxu0 0.0
    %794 = vmatpush2.msra.mxu0 0.0
    %795 = vmatprep.subr.mxu0 0.0
    %796 = vmatpush2.msra.mxu0 0.0
    %797 = vmatprep.subr.mxu0 0.0
    %798 = vmatpush2.msra.mxu0 0.0
    %799 = vmatprep.mubr.f32.mxu0 0.0
    %800 = vmatmul.mubr.f32.gmra.mxu0 %v591
    %v801 = vpop.f32.mrf.mxu0
    %v802 = vadd.f32 0.0, %v801
    %v803 = vpop.f32.mrf.mxu0
    %v804 = vadd.f32 0.0, %v803
    %805 = vdwg.mxu0
    %v806 = vadd.f32 %v415, %v660
    %v807 = vadd.f32 %v417, %v662
    %v808 = vadd.f32 %v486, %v731
    %v809 = vadd.f32 %v488, %v733
    %v810 = vadd.f32 %v557, %v802
    %v811 = vadd.f32 %v559, %v804
    %s812 = scalar_lea.vmem %s2, 24
    %v813 = vld [vmem:[%s812] sm:$0xff]
    %814 = vrot.lane.b32.xlu0 %v57, 1
    %v815 = vpop.permute.xlu0 %814
    %816 = vrot.lane.b32.xlu0 %v58, 1
    %v817 = vpop.permute.xlu0 %816
    %818 = vrot.lane.b32.xlu0 %v59, 1
    %v819 = vpop.permute.xlu0 %818
    %820 = vrot.lane.b32.xlu0 %v60, 1
    %v821 = vpop.permute.xlu0 %820
    %822 = vrot.lane.b32.xlu0 %v61, 1
    %v823 = vpop.permute.xlu0 %822
    %824 = vrot.lane.b32.xlu0 %v62, 1
    %v825 = vpop.permute.xlu0 %824
    %826 = vrot.lane.b32.xlu0 %v63, 1
    %v827 = vpop.permute.xlu0 %826
    %vm828 = vcmask 7168
    %v829 = vsel %vm828, %v815, %v817
    %v830 = vsel %vm828, %v817, %v819
    %v831 = vsel %vm828, %v819, %v821
    %v832 = vsel %vm828, %v821, %v823
    %v833 = vsel %vm828, %v823, %v825
    %v834 = vsel %vm828, %v825, %v827
    %v842 = vsel %vm101, %v813, 0
    %844 = vmatprep.subr.mxu0 0.0
    %845 = vmatpush1.msra.mxu0 0.0
    %846 = vmatprep.subr.mxu0 0.0
    %847 = vmatpush1.msra.mxu0 0.0
    %848 = vmatprep.subr.mxu0 0.0
    %849 = vmatpush1.msra.mxu0 0.0
    %850 = vmatprep.subr.mxu0 0.0
    %851 = vmatpush1.msra.mxu0 0.0
    %852 = vmatprep.subr.mxu0 0.0
    %853 = vmatpush1.msra.mxu0 0.0
    %854 = vmatprep.subr.mxu0 0.0
    %855 = vmatpush1.msra.mxu0 0.0
    %856 = vmatprep.subr.mxu0 0.0
    %857 = vmatpush1.msra.mxu0 0.0
    %858 = vmatprep.subr.mxu0 0.0
    %859 = vmatpush1.msra.mxu0 0.0
    %860 = vmatprep.subr.mxu0 0.0
    %861 = vmatpush1.msra.mxu0 0.0
    %862 = vmatprep.subr.mxu0 0.0
    %863 = vmatpush1.msra.mxu0 0.0
    %864 = vmatprep.subr.mxu0 0.0
    %865 = vmatpush1.msra.mxu0 0.0
    %866 = vmatprep.subr.mxu0 0.0
    %867 = vmatpush1.msra.mxu0 0.0
    %868 = vmatprep.subr.mxu0 0.0
    %869 = vmatpush1.msra.mxu0 0.0
    %870 = vmatprep.subr.mxu0 0.0
    %871 = vmatpush1.msra.mxu0 0.0
    %872 = vmatprep.subr.mxu0 0.0
    %873 = vmatpush1.msra.mxu0 0.0
    %874 = vmatprep.subr.mxu0 %v830
    %875 = vmatpush1.msra.mxu0 %v829
    %876 = vmatprep.subr.mxu0 0.0
    %877 = vmatpush2.msra.mxu0 0.0
    %878 = vmatprep.subr.mxu0 0.0
    %879 = vmatpush2.msra.mxu0 0.0
    %880 = vmatprep.subr.mxu0 0.0
    %881 = vmatpush2.msra.mxu0 0.0
    %882 = vmatprep.subr.mxu0 0.0
    %883 = vmatpush2.msra.mxu0 0.0
    %884 = vmatprep.subr.mxu0 0.0
    %885 = vmatpush2.msra.mxu0 0.0
    %886 = vmatprep.subr.mxu0 0.0
    %887 = vmatpush2.msra.mxu0 0.0
    %888 = vmatprep.subr.mxu0 0.0
    %889 = vmatpush2.msra.mxu0 0.0
    %890 = vmatprep.subr.mxu0 0.0
    %891 = vmatpush2.msra.mxu0 0.0
    %892 = vmatprep.subr.mxu0 0.0
    %893 = vmatpush2.msra.mxu0 0.0
    %894 = vmatprep.subr.mxu0 0.0
    %895 = vmatpush2.msra.mxu0 0.0
    %896 = vmatprep.subr.mxu0 0.0
    %897 = vmatpush2.msra.mxu0 0.0
    %898 = vmatprep.subr.mxu0 0.0
    %899 = vmatpush2.msra.mxu0 0.0
    %900 = vmatprep.subr.mxu0 0.0
    %901 = vmatpush2.msra.mxu0 0.0
    %902 = vmatprep.subr.mxu0 0.0
    %903 = vmatpush2.msra.mxu0 0.0
    %904 = vmatprep.subr.mxu0 0.0
    %905 = vmatpush2.msra.mxu0 0.0
    %906 = vmatprep.subr.mxu0 0.0
    %907 = vmatpush2.msra.mxu0 0.0
    %908 = vmatprep.mubr.f32.mxu0 0.0
    %909 = vmatmul.mubr.f32.gmra.mxu0 %v842
    %v910 = vpop.f32.mrf.mxu0
    %v911 = vadd.f32 0.0, %v910
    %v912 = vpop.f32.mrf.mxu0
    %v913 = vadd.f32 0.0, %v912
    %914 = vdwg.mxu0
    %915 = vmatprep.subr.mxu0 0.0
    %916 = vmatpush1.msra.mxu0 0.0
    %917 = vmatprep.subr.mxu0 0.0
    %918 = vmatpush1.msra.mxu0 0.0
    %919 = vmatprep.subr.mxu0 0.0
    %920 = vmatpush1.msra.mxu0 0.0
    %921 = vmatprep.subr.mxu0 0.0
    %922 = vmatpush1.msra.mxu0 0.0
    %923 = vmatprep.subr.mxu0 0.0
    %924 = vmatpush1.msra.mxu0 0.0
    %925 = vmatprep.subr.mxu0 0.0
    %926 = vmatpush1.msra.mxu0 0.0
    %927 = vmatprep.subr.mxu0 0.0
    %928 = vmatpush1.msra.mxu0 0.0
    %929 = vmatprep.subr.mxu0 0.0
    %930 = vmatpush1.msra.mxu0 0.0
    %931 = vmatprep.subr.mxu0 0.0
    %932 = vmatpush1.msra.mxu0 0.0
    %933 = vmatprep.subr.mxu0 0.0
    %934 = vmatpush1.msra.mxu0 0.0
    %935 = vmatprep.subr.mxu0 0.0
    %936 = vmatpush1.msra.mxu0 0.0
    %937 = vmatprep.subr.mxu0 0.0
    %938 = vmatpush1.msra.mxu0 0.0
    %939 = vmatprep.subr.mxu0 0.0
    %940 = vmatpush1.msra.mxu0 0.0
    %941 = vmatprep.subr.mxu0 0.0
    %942 = vmatpush1.msra.mxu0 0.0
    %943 = vmatprep.subr.mxu0 0.0
    %944 = vmatpush1.msra.mxu0 0.0
    %945 = vmatprep.subr.mxu0 %v832
    %946 = vmatpush1.msra.mxu0 %v831
    %947 = vmatprep.subr.mxu0 0.0
    %948 = vmatpush2.msra.mxu0 0.0
    %949 = vmatprep.subr.mxu0 0.0
    %950 = vmatpush2.msra.mxu0 0.0
    %951 = vmatprep.subr.mxu0 0.0
    %952 = vmatpush2.msra.mxu0 0.0
    %953 = vmatprep.subr.mxu0 0.0
    %954 = vmatpush2.msra.mxu0 0.0
    %955 = vmatprep.subr.mxu0 0.0
    %956 = vmatpush2.msra.mxu0 0.0
    %957 = vmatprep.subr.mxu0 0.0
    %958 = vmatpush2.msra.mxu0 0.0
    %959 = vmatprep.subr.mxu0 0.0
    %960 = vmatpush2.msra.mxu0 0.0
    %961 = vmatprep.subr.mxu0 0.0
    %962 = vmatpush2.msra.mxu0 0.0
    %963 = vmatprep.subr.mxu0 0.0
    %964 = vmatpush2.msra.mxu0 0.0
    %965 = vmatprep.subr.mxu0 0.0
    %966 = vmatpush2.msra.mxu0 0.0
    %967 = vmatprep.subr.mxu0 0.0
    %968 = vmatpush2.msra.mxu0 0.0
    %969 = vmatprep.subr.mxu0 0.0
    %970 = vmatpush2.msra.mxu0 0.0
    %971 = vmatprep.subr.mxu0 0.0
    %972 = vmatpush2.msra.mxu0 0.0
    %973 = vmatprep.subr.mxu0 0.0
    %974 = vmatpush2.msra.mxu0 0.0
    %975 = vmatprep.subr.mxu0 0.0
    %976 = vmatpush2.msra.mxu0 0.0
    %977 = vmatprep.subr.mxu0 0.0
    %978 = vmatpush2.msra.mxu0 0.0
    %979 = vmatprep.mubr.f32.mxu0 0.0
    %980 = vmatmul.mubr.f32.gmra.mxu0 %v842
    %v981 = vpop.f32.mrf.mxu0
    %v982 = vadd.f32 0.0, %v981
    %v983 = vpop.f32.mrf.mxu0
    %v984 = vadd.f32 0.0, %v983
    %985 = vdwg.mxu0
    %986 = vmatprep.subr.mxu0 0.0
    %987 = vmatpush1.msra.mxu0 0.0
    %988 = vmatprep.subr.mxu0 0.0
    %989 = vmatpush1.msra.mxu0 0.0
    %990 = vmatprep.subr.mxu0 0.0
    %991 = vmatpush1.msra.mxu0 0.0
    %992 = vmatprep.subr.mxu0 0.0
    %993 = vmatpush1.msra.mxu0 0.0
    %994 = vmatprep.subr.mxu0 0.0
    %995 = vmatpush1.msra.mxu0 0.0
    %996 = vmatprep.subr.mxu0 0.0
    %997 = vmatpush1.msra.mxu0 0.0
    %998 = vmatprep.subr.mxu0 0.0
    %999 = vmatpush1.msra.mxu0 0.0
    %1000 = vmatprep.subr.mxu0 0.0
    %1001 = vmatpush1.msra.mxu0 0.0
    %1002 = vmatprep.subr.mxu0 0.0
    %1003 = vmatpush1.msra.mxu0 0.0
    %1004 = vmatprep.subr.mxu0 0.0
    %1005 = vmatpush1.msra.mxu0 0.0
    %1006 = vmatprep.subr.mxu0 0.0
    %1007 = vmatpush1.msra.mxu0 0.0
    %1008 = vmatprep.subr.mxu0 0.0
    %1009 = vmatpush1.msra.mxu0 0.0
    %1010 = vmatprep.subr.mxu0 0.0
    %1011 = vmatpush1.msra.mxu0 0.0
    %1012 = vmatprep.subr.mxu0 0.0
    %1013 = vmatpush1.msra.mxu0 0.0
    %1014 = vmatprep.subr.mxu0 0.0
    %1015 = vmatpush1.msra.mxu0 0.0
    %1016 = vmatprep.subr.mxu0 %v834
    %1017 = vmatpush1.msra.mxu0 %v833
    %1018 = vmatprep.subr.mxu0 0.0
    %1019 = vmatpush2.msra.mxu0 0.0
    %1020 = vmatprep.subr.mxu0 0.0
    %1021 = vmatpush2.msra.mxu0 0.0
    %1022 = vmatprep.subr.mxu0 0.0
    %1023 = vmatpush2.msra.mxu0 0.0
    %1024 = vmatprep.subr.mxu0 0.0
    %1025 = vmatpush2.msra.mxu0 0.0
    %1026 = vmatprep.subr.mxu0 0.0
    %1027 = vmatpush2.msra.mxu0 0.0
    %1028 = vmatprep.subr.mxu0 0.0
    %1029 = vmatpush2.msra.mxu0 0.0
    %1030 = vmatprep.subr.mxu0 0.0
    %1031 = vmatpush2.msra.mxu0 0.0
    %1032 = vmatprep.subr.mxu0 0.0
    %1033 = vmatpush2.msra.mxu0 0.0
    %1034 = vmatprep.subr.mxu0 0.0
    %1035 = vmatpush2.msra.mxu0 0.0
    %1036 = vmatprep.subr.mxu0 0.0
    %1037 = vmatpush2.msra.mxu0 0.0
    %1038 = vmatprep.subr.mxu0 0.0
    %1039 = vmatpush2.msra.mxu0 0.0
    %1040 = vmatprep.subr.mxu0 0.0
    %1041 = vmatpush2.msra.mxu0 0.0
    %1042 = vmatprep.subr.mxu0 0.0
    %1043 = vmatpush2.msra.mxu0 0.0
    %1044 = vmatprep.subr.mxu0 0.0
    %1045 = vmatpush2.msra.mxu0 0.0
    %1046 = vmatprep.subr.mxu0 0.0
    %1047 = vmatpush2.msra.mxu0 0.0
    %1048 = vmatprep.subr.mxu0 0.0
    %1049 = vmatpush2.msra.mxu0 0.0
    %1050 = vmatprep.mubr.f32.mxu0 0.0
    %1051 = vmatmul.mubr.f32.gmra.mxu0 %v842
    %v1052 = vpop.f32.mrf.mxu0
    %v1053 = vadd.f32 0.0, %v1052
    %v1054 = vpop.f32.mrf.mxu0
    %v1055 = vadd.f32 0.0, %v1054
    %1056 = vdwg.mxu0
    %v1057 = vadd.f32 %v806, %v911
    %v1058 = vadd.f32 %v807, %v913
    %v1059 = vadd.f32 %v808, %v982
    %v1060 = vadd.f32 %v809, %v984
    %v1061 = vadd.f32 %v810, %v1053
    %v1062 = vadd.f32 %v811, %v1055
    %s1063 = scalar_lea.vmem %s2, 32
    %v1064 = vld [vmem:[%s1063] sm:$0xff]
    %v1066 = vsel %vm101, %v1064, 0
    %1068 = vmatprep.subr.mxu0 0.0
    %1069 = vmatpush1.msra.mxu0 0.0
    %1070 = vmatprep.subr.mxu0 0.0
    %1071 = vmatpush1.msra.mxu0 0.0
    %1072 = vmatprep.subr.mxu0 0.0
    %1073 = vmatpush1.msra.mxu0 0.0
    %1074 = vmatprep.subr.mxu0 0.0
    %1075 = vmatpush1.msra.mxu0 0.0
    %1076 = vmatprep.subr.mxu0 0.0
    %1077 = vmatpush1.msra.mxu0 0.0
    %1078 = vmatprep.subr.mxu0 0.0
    %1079 = vmatpush1.msra.mxu0 0.0
    %1080 = vmatprep.subr.mxu0 0.0
    %1081 = vmatpush1.msra.mxu0 0.0
    %1082 = vmatprep.subr.mxu0 0.0
    %1083 = vmatpush1.msra.mxu0 0.0
    %1084 = vmatprep.subr.mxu0 0.0
    %1085 = vmatpush1.msra.mxu0 0.0
    %1086 = vmatprep.subr.mxu0 0.0
    %1087 = vmatpush1.msra.mxu0 0.0
    %1088 = vmatprep.subr.mxu0 0.0
    %1089 = vmatpush1.msra.mxu0 0.0
    %1090 = vmatprep.subr.mxu0 0.0
    %1091 = vmatpush1.msra.mxu0 0.0
    %1092 = vmatprep.subr.mxu0 0.0
    %1093 = vmatpush1.msra.mxu0 0.0
    %1094 = vmatprep.subr.mxu0 0.0
    %1095 = vmatpush1.msra.mxu0 0.0
    %1096 = vmatprep.subr.mxu0 0.0
    %1097 = vmatpush1.msra.mxu0 0.0
    %1098 = vmatprep.subr.mxu0 %v59
    %1099 = vmatpush1.msra.mxu0 %v58
    %1100 = vmatprep.subr.mxu0 0.0
    %1101 = vmatpush2.msra.mxu0 0.0
    %1102 = vmatprep.subr.mxu0 0.0
    %1103 = vmatpush2.msra.mxu0 0.0
    %1104 = vmatprep.subr.mxu0 0.0
    %1105 = vmatpush2.msra.mxu0 0.0
    %1106 = vmatprep.subr.mxu0 0.0
    %1107 = vmatpush2.msra.mxu0 0.0
    %1108 = vmatprep.subr.mxu0 0.0
    %1109 = vmatpush2.msra.mxu0 0.0
    %1110 = vmatprep.subr.mxu0 0.0
    %1111 = vmatpush2.msra.mxu0 0.0
    %1112 = vmatprep.subr.mxu0 0.0
    %1113 = vmatpush2.msra.mxu0 0.0
    %1114 = vmatprep.subr.mxu0 0.0
    %1115 = vmatpush2.msra.mxu0 0.0
    %1116 = vmatprep.subr.mxu0 0.0
    %1117 = vmatpush2.msra.mxu0 0.0
    %1118 = vmatprep.subr.mxu0 0.0
    %1119 = vmatpush2.msra.mxu0 0.0
    %1120 = vmatprep.subr.mxu0 0.0
    %1121 = vmatpush2.msra.mxu0 0.0
    %1122 = vmatprep.subr.mxu0 0.0
    %1123 = vmatpush2.msra.mxu0 0.0
    %1124 = vmatprep.subr.mxu0 0.0
    %1125 = vmatpush2.msra.mxu0 0.0
    %1126 = vmatprep.subr.mxu0 0.0
    %1127 = vmatpush2.msra.mxu0 0.0
    %1128 = vmatprep.subr.mxu0 0.0
    %1129 = vmatpush2.msra.mxu0 0.0
    %1130 = vmatprep.subr.mxu0 0.0
    %1131 = vmatpush2.msra.mxu0 0.0
    %1132 = vmatprep.mubr.f32.mxu0 0.0
    %1133 = vmatmul.mubr.f32.gmra.mxu0 %v1066
    %v1134 = vpop.f32.mrf.mxu0
    %v1135 = vadd.f32 0.0, %v1134
    %v1136 = vpop.f32.mrf.mxu0
    %v1137 = vadd.f32 0.0, %v1136
    %1138 = vdwg.mxu0
    %1139 = vmatprep.subr.mxu0 0.0
    %1140 = vmatpush1.msra.mxu0 0.0
    %1141 = vmatprep.subr.mxu0 0.0
    %1142 = vmatpush1.msra.mxu0 0.0
    %1143 = vmatprep.subr.mxu0 0.0
    %1144 = vmatpush1.msra.mxu0 0.0
    %1145 = vmatprep.subr.mxu0 0.0
    %1146 = vmatpush1.msra.mxu0 0.0
    %1147 = vmatprep.subr.mxu0 0.0
    %1148 = vmatpush1.msra.mxu0 0.0
    %1149 = vmatprep.subr.mxu0 0.0
    %1150 = vmatpush1.msra.mxu0 0.0
    %1151 = vmatprep.subr.mxu0 0.0
    %1152 = vmatpush1.msra.mxu0 0.0
    %1153 = vmatprep.subr.mxu0 0.0
    %1154 = vmatpush1.msra.mxu0 0.0
    %1155 = vmatprep.subr.mxu0 0.0
    %1156 = vmatpush1.msra.mxu0 0.0
    %1157 = vmatprep.subr.mxu0 0.0
    %1158 = vmatpush1.msra.mxu0 0.0
    %1159 = vmatprep.subr.mxu0 0.0
    %1160 = vmatpush1.msra.mxu0 0.0
    %1161 = vmatprep.subr.mxu0 0.0
    %1162 = vmatpush1.msra.mxu0 0.0
    %1163 = vmatprep.subr.mxu0 0.0
    %1164 = vmatpush1.msra.mxu0 0.0
    %1165 = vmatprep.subr.mxu0 0.0
    %1166 = vmatpush1.msra.mxu0 0.0
    %1167 = vmatprep.subr.mxu0 0.0
    %1168 = vmatpush1.msra.mxu0 0.0
    %1169 = vmatprep.subr.mxu0 %v61
    %1170 = vmatpush1.msra.mxu0 %v60
    %1171 = vmatprep.subr.mxu0 0.0
    %1172 = vmatpush2.msra.mxu0 0.0
    %1173 = vmatprep.subr.mxu0 0.0
    %1174 = vmatpush2.msra.mxu0 0.0
    %1175 = vmatprep.subr.mxu0 0.0
    %1176 = vmatpush2.msra.mxu0 0.0
    %1177 = vmatprep.subr.mxu0 0.0
    %1178 = vmatpush2.msra.mxu0 0.0
    %1179 = vmatprep.subr.mxu0 0.0
    %1180 = vmatpush2.msra.mxu0 0.0
    %1181 = vmatprep.subr.mxu0 0.0
    %1182 = vmatpush2.msra.mxu0 0.0
    %1183 = vmatprep.subr.mxu0 0.0
    %1184 = vmatpush2.msra.mxu0 0.0
    %1185 = vmatprep.subr.mxu0 0.0
    %1186 = vmatpush2.msra.mxu0 0.0
    %1187 = vmatprep.subr.mxu0 0.0
    %1188 = vmatpush2.msra.mxu0 0.0
    %1189 = vmatprep.subr.mxu0 0.0
    %1190 = vmatpush2.msra.mxu0 0.0
    %1191 = vmatprep.subr.mxu0 0.0
    %1192 = vmatpush2.msra.mxu0 0.0
    %1193 = vmatprep.subr.mxu0 0.0
    %1194 = vmatpush2.msra.mxu0 0.0
    %1195 = vmatprep.subr.mxu0 0.0
    %1196 = vmatpush2.msra.mxu0 0.0
    %1197 = vmatprep.subr.mxu0 0.0
    %1198 = vmatpush2.msra.mxu0 0.0
    %1199 = vmatprep.subr.mxu0 0.0
    %1200 = vmatpush2.msra.mxu0 0.0
    %1201 = vmatprep.subr.mxu0 0.0
    %1202 = vmatpush2.msra.mxu0 0.0
    %1203 = vmatprep.mubr.f32.mxu0 0.0
    %1204 = vmatmul.mubr.f32.gmra.mxu0 %v1066
    %v1205 = vpop.f32.mrf.mxu0
    %v1206 = vadd.f32 0.0, %v1205
    %v1207 = vpop.f32.mrf.mxu0
    %v1208 = vadd.f32 0.0, %v1207
    %1209 = vdwg.mxu0
    %1210 = vmatprep.subr.mxu0 0.0
    %1211 = vmatpush1.msra.mxu0 0.0
    %1212 = vmatprep.subr.mxu0 0.0
    %1213 = vmatpush1.msra.mxu0 0.0
    %1214 = vmatprep.subr.mxu0 0.0
    %1215 = vmatpush1.msra.mxu0 0.0
    %1216 = vmatprep.subr.mxu0 0.0
    %1217 = vmatpush1.msra.mxu0 0.0
    %1218 = vmatprep.subr.mxu0 0.0
    %1219 = vmatpush1.msra.mxu0 0.0
    %1220 = vmatprep.subr.mxu0 0.0
    %1221 = vmatpush1.msra.mxu0 0.0
    %1222 = vmatprep.subr.mxu0 0.0
    %1223 = vmatpush1.msra.mxu0 0.0
    %1224 = vmatprep.subr.mxu0 0.0
    %1225 = vmatpush1.msra.mxu0 0.0
    %1226 = vmatprep.subr.mxu0 0.0
    %1227 = vmatpush1.msra.mxu0 0.0
    %1228 = vmatprep.subr.mxu0 0.0
    %1229 = vmatpush1.msra.mxu0 0.0
    %1230 = vmatprep.subr.mxu0 0.0
    %1231 = vmatpush1.msra.mxu0 0.0
    %1232 = vmatprep.subr.mxu0 0.0
    %1233 = vmatpush1.msra.mxu0 0.0
    %1234 = vmatprep.subr.mxu0 0.0
    %1235 = vmatpush1.msra.mxu0 0.0
    %1236 = vmatprep.subr.mxu0 0.0
    %1237 = vmatpush1.msra.mxu0 0.0
    %1238 = vmatprep.subr.mxu0 0.0
    %1239 = vmatpush1.msra.mxu0 0.0
    %1240 = vmatprep.subr.mxu0 %v63
    %1241 = vmatpush1.msra.mxu0 %v62
    %1242 = vmatprep.subr.mxu0 0.0
    %1243 = vmatpush2.msra.mxu0 0.0
    %1244 = vmatprep.subr.mxu0 0.0
    %1245 = vmatpush2.msra.mxu0 0.0
    %1246 = vmatprep.subr.mxu0 0.0
    %1247 = vmatpush2.msra.mxu0 0.0
    %1248 = vmatprep.subr.mxu0 0.0
    %1249 = vmatpush2.msra.mxu0 0.0
    %1250 = vmatprep.subr.mxu0 0.0
    %1251 = vmatpush2.msra.mxu0 0.0
    %1252 = vmatprep.subr.mxu0 0.0
    %1253 = vmatpush2.msra.mxu0 0.0
    %1254 = vmatprep.subr.mxu0 0.0
    %1255 = vmatpush2.msra.mxu0 0.0
    %1256 = vmatprep.subr.mxu0 0.0
    %1257 = vmatpush2.msra.mxu0 0.0
    %1258 = vmatprep.subr.mxu0 0.0
    %1259 = vmatpush2.msra.mxu0 0.0
    %1260 = vmatprep.subr.mxu0 0.0
    %1261 = vmatpush2.msra.mxu0 0.0
    %1262 = vmatprep.subr.mxu0 0.0
    %1263 = vmatpush2.msra.mxu0 0.0
    %1264 = vmatprep.subr.mxu0 0.0
    %1265 = vmatpush2.msra.mxu0 0.0
    %1266 = vmatprep.subr.mxu0 0.0
    %1267 = vmatpush2.msra.mxu0 0.0
    %1268 = vmatprep.subr.mxu0 0.0
    %1269 = vmatpush2.msra.mxu0 0.0
    %1270 = vmatprep.subr.mxu0 0.0
    %1271 = vmatpush2.msra.mxu0 0.0
    %1272 = vmatprep.subr.mxu0 0.0
    %1273 = vmatpush2.msra.mxu0 0.0
    %1274 = vmatprep.mubr.f32.mxu0 0.0
    %1275 = vmatmul.mubr.f32.gmra.mxu0 %v1066
    %v1276 = vpop.f32.mrf.mxu0
    %v1277 = vadd.f32 0.0, %v1276
    %v1278 = vpop.f32.mrf.mxu0
    %v1279 = vadd.f32 0.0, %v1278
    %1280 = vdwg.mxu0
    %v1281 = vadd.f32 %v1057, %v1135
    %v1282 = vadd.f32 %v1058, %v1137
    %v1283 = vadd.f32 %v1059, %v1206
    %v1284 = vadd.f32 %v1060, %v1208
    %v1285 = vadd.f32 %v1061, %v1277
    %v1286 = vadd.f32 %v1062, %v1279
    %v1287 = vld [vmem:[#allocation2 + $0x8] sm:$0xff]
    %v1288 = vld [vmem:[#allocation2 + $0x10] sm:$0xff]
    %v1289 = vld [vmem:[#allocation2 + $0x18] sm:$0xff]
    %v1290 = vld [vmem:[#allocation2 + $0x20] sm:$0xff]
    %v1291 = vld [vmem:[#allocation2 + $0x28] sm:$0xff]
    %v1292 = vld [vmem:[#allocation2 + $0x30] sm:$0xff]
    %v1293 = vld [vmem:[#allocation2 + $0x38] sm:$0xff]
    %s1294 = scalar_lea.vmem %s2, 40
    %v1295 = vld [vmem:[%s1294] sm:$0xff]
    %1303 = vrot.lane.b32.xlu0 %v1287, 127
    %v1304 = vpop.permute.xlu0 %1303
    %1305 = vrot.lane.b32.xlu0 %v1288, 127
    %v1306 = vpop.permute.xlu0 %1305
    %1307 = vrot.lane.b32.xlu0 %v1289, 127
    %v1308 = vpop.permute.xlu0 %1307
    %1309 = vrot.lane.b32.xlu0 %v1290, 127
    %v1310 = vpop.permute.xlu0 %1309
    %1311 = vrot.lane.b32.xlu0 %v1291, 127
    %v1312 = vpop.permute.xlu0 %1311
    %1313 = vrot.lane.b32.xlu0 %v1292, 127
    %v1314 = vpop.permute.xlu0 %1313
    %1315 = vrot.lane.b32.xlu0 %v1293, 127
    %v1316 = vpop.permute.xlu0 %1315
    %vm1317 = vcmask 1039360
    %v1318 = vsel %vm1317, %v1304, %v1306
    %v1319 = vsel %vm1317, %v1306, %v1308
    %v1320 = vsel %vm1317, %v1308, %v1310
    %v1321 = vsel %vm1317, %v1310, %v1312
    %v1322 = vsel %vm1317, %v1312, %v1314
    %v1323 = vsel %vm1317, %v1314, %v1316
    %v1331 = vsel %vm101, %v1295, 0
    %1333 = vmatprep.subr.mxu0 0.0
    %1334 = vmatpush1.msra.mxu0 0.0
    %1335 = vmatprep.subr.mxu0 0.0
    %1336 = vmatpush1.msra.mxu0 0.0
    %1337 = vmatprep.subr.mxu0 0.0
    %1338 = vmatpush1.msra.mxu0 0.0
    %1339 = vmatprep.subr.mxu0 0.0
    %1340 = vmatpush1.msra.mxu0 0.0
    %1341 = vmatprep.subr.mxu0 0.0
    %1342 = vmatpush1.msra.mxu0 0.0
    %1343 = vmatprep.subr.mxu0 0.0
    %1344 = vmatpush1.msra.mxu0 0.0
    %1345 = vmatprep.subr.mxu0 0.0
    %1346 = vmatpush1.msra.mxu0 0.0
    %1347 = vmatprep.subr.mxu0 0.0
    %1348 = vmatpush1.msra.mxu0 0.0
    %1349 = vmatprep.subr.mxu0 0.0
    %1350 = vmatpush1.msra.mxu0 0.0
    %1351 = vmatprep.subr.mxu0 0.0
    %1352 = vmatpush1.msra.mxu0 0.0
    %1353 = vmatprep.subr.mxu0 0.0
    %1354 = vmatpush1.msra.mxu0 0.0
    %1355 = vmatprep.subr.mxu0 0.0
    %1356 = vmatpush1.msra.mxu0 0.0
    %1357 = vmatprep.subr.mxu0 0.0
    %1358 = vmatpush1.msra.mxu0 0.0
    %1359 = vmatprep.subr.mxu0 0.0
    %1360 = vmatpush1.msra.mxu0 0.0
    %1361 = vmatprep.subr.mxu0 0.0
    %1362 = vmatpush1.msra.mxu0 0.0
    %1363 = vmatprep.subr.mxu0 %v1319
    %1364 = vmatpush1.msra.mxu0 %v1318
    %1365 = vmatprep.subr.mxu0 0.0
    %1366 = vmatpush2.msra.mxu0 0.0
    %1367 = vmatprep.subr.mxu0 0.0
    %1368 = vmatpush2.msra.mxu0 0.0
    %1369 = vmatprep.subr.mxu0 0.0
    %1370 = vmatpush2.msra.mxu0 0.0
    %1371 = vmatprep.subr.mxu0 0.0
    %1372 = vmatpush2.msra.mxu0 0.0
    %1373 = vmatprep.subr.mxu0 0.0
    %1374 = vmatpush2.msra.mxu0 0.0
    %1375 = vmatprep.subr.mxu0 0.0
    %1376 = vmatpush2.msra.mxu0 0.0
    %1377 = vmatprep.subr.mxu0 0.0
    %1378 = vmatpush2.msra.mxu0 0.0
    %1379 = vmatprep.subr.mxu0 0.0
    %1380 = vmatpush2.msra.mxu0 0.0
    %1381 = vmatprep.subr.mxu0 0.0
    %1382 = vmatpush2.msra.mxu0 0.0
    %1383 = vmatprep.subr.mxu0 0.0
    %1384 = vmatpush2.msra.mxu0 0.0
    %1385 = vmatprep.subr.mxu0 0.0
    %1386 = vmatpush2.msra.mxu0 0.0
    %1387 = vmatprep.subr.mxu0 0.0
    %1388 = vmatpush2.msra.mxu0 0.0
    %1389 = vmatprep.subr.mxu0 0.0
    %1390 = vmatpush2.msra.mxu0 0.0
    %1391 = vmatprep.subr.mxu0 0.0
    %1392 = vmatpush2.msra.mxu0 0.0
    %1393 = vmatprep.subr.mxu0 0.0
    %1394 = vmatpush2.msra.mxu0 0.0
    %1395 = vmatprep.subr.mxu0 0.0
    %1396 = vmatpush2.msra.mxu0 0.0
    %1397 = vmatprep.mubr.f32.mxu0 0.0
    %1398 = vmatmul.mubr.f32.gmra.mxu0 %v1331
    %v1399 = vpop.f32.mrf.mxu0
    %v1400 = vadd.f32 0.0, %v1399
    %v1401 = vpop.f32.mrf.mxu0
    %v1402 = vadd.f32 0.0, %v1401
    %1403 = vdwg.mxu0
    %1404 = vmatprep.subr.mxu0 0.0
    %1405 = vmatpush1.msra.mxu0 0.0
    %1406 = vmatprep.subr.mxu0 0.0
    %1407 = vmatpush1.msra.mxu0 0.0
    %1408 = vmatprep.subr.mxu0 0.0
    %1409 = vmatpush1.msra.mxu0 0.0
    %1410 = vmatprep.subr.mxu0 0.0
    %1411 = vmatpush1.msra.mxu0 0.0
    %1412 = vmatprep.subr.mxu0 0.0
    %1413 = vmatpush1.msra.mxu0 0.0
    %1414 = vmatprep.subr.mxu0 0.0
    %1415 = vmatpush1.msra.mxu0 0.0
    %1416 = vmatprep.subr.mxu0 0.0
    %1417 = vmatpush1.msra.mxu0 0.0
    %1418 = vmatprep.subr.mxu0 0.0
    %1419 = vmatpush1.msra.mxu0 0.0
    %1420 = vmatprep.subr.mxu0 0.0
    %1421 = vmatpush1.msra.mxu0 0.0
    %1422 = vmatprep.subr.mxu0 0.0
    %1423 = vmatpush1.msra.mxu0 0.0
    %1424 = vmatprep.subr.mxu0 0.0
    %1425 = vmatpush1.msra.mxu0 0.0
    %1426 = vmatprep.subr.mxu0 0.0
    %1427 = vmatpush1.msra.mxu0 0.0
    %1428 = vmatprep.subr.mxu0 0.0
    %1429 = vmatpush1.msra.mxu0 0.0
    %1430 = vmatprep.subr.mxu0 0.0
    %1431 = vmatpush1.msra.mxu0 0.0
    %1432 = vmatprep.subr.mxu0 0.0
    %1433 = vmatpush1.msra.mxu0 0.0
    %1434 = vmatprep.subr.mxu0 %v1321
    %1435 = vmatpush1.msra.mxu0 %v1320
    %1436 = vmatprep.subr.mxu0 0.0
    %1437 = vmatpush2.msra.mxu0 0.0
    %1438 = vmatprep.subr.mxu0 0.0
    %1439 = vmatpush2.msra.mxu0 0.0
    %1440 = vmatprep.subr.mxu0 0.0
    %1441 = vmatpush2.msra.mxu0 0.0
    %1442 = vmatprep.subr.mxu0 0.0
    %1443 = vmatpush2.msra.mxu0 0.0
    %1444 = vmatprep.subr.mxu0 0.0
    %1445 = vmatpush2.msra.mxu0 0.0
    %1446 = vmatprep.subr.mxu0 0.0
    %1447 = vmatpush2.msra.mxu0 0.0
    %1448 = vmatprep.subr.mxu0 0.0
    %1449 = vmatpush2.msra.mxu0 0.0
    %1450 = vmatprep.subr.mxu0 0.0
    %1451 = vmatpush2.msra.mxu0 0.0
    %1452 = vmatprep.subr.mxu0 0.0
    %1453 = vmatpush2.msra.mxu0 0.0
    %1454 = vmatprep.subr.mxu0 0.0
    %1455 = vmatpush2.msra.mxu0 0.0
    %1456 = vmatprep.subr.mxu0 0.0
    %1457 = vmatpush2.msra.mxu0 0.0
    %1458 = vmatprep.subr.mxu0 0.0
    %1459 = vmatpush2.msra.mxu0 0.0
    %1460 = vmatprep.subr.mxu0 0.0
    %1461 = vmatpush2.msra.mxu0 0.0
    %1462 = vmatprep.subr.mxu0 0.0
    %1463 = vmatpush2.msra.mxu0 0.0
    %1464 = vmatprep.subr.mxu0 0.0
    %1465 = vmatpush2.msra.mxu0 0.0
    %1466 = vmatprep.subr.mxu0 0.0
    %1467 = vmatpush2.msra.mxu0 0.0
    %1468 = vmatprep.mubr.f32.mxu0 0.0
    %1469 = vmatmul.mubr.f32.gmra.mxu0 %v1331
    %v1470 = vpop.f32.mrf.mxu0
    %v1471 = vadd.f32 0.0, %v1470
    %v1472 = vpop.f32.mrf.mxu0
    %v1473 = vadd.f32 0.0, %v1472
    %1474 = vdwg.mxu0
    %1475 = vmatprep.subr.mxu0 0.0
    %1476 = vmatpush1.msra.mxu0 0.0
    %1477 = vmatprep.subr.mxu0 0.0
    %1478 = vmatpush1.msra.mxu0 0.0
    %1479 = vmatprep.subr.mxu0 0.0
    %1480 = vmatpush1.msra.mxu0 0.0
    %1481 = vmatprep.subr.mxu0 0.0
    %1482 = vmatpush1.msra.mxu0 0.0
    %1483 = vmatprep.subr.mxu0 0.0
    %1484 = vmatpush1.msra.mxu0 0.0
    %1485 = vmatprep.subr.mxu0 0.0
    %1486 = vmatpush1.msra.mxu0 0.0
    %1487 = vmatprep.subr.mxu0 0.0
    %1488 = vmatpush1.msra.mxu0 0.0
    %1489 = vmatprep.subr.mxu0 0.0
    %1490 = vmatpush1.msra.mxu0 0.0
    %1491 = vmatprep.subr.mxu0 0.0
    %1492 = vmatpush1.msra.mxu0 0.0
    %1493 = vmatprep.subr.mxu0 0.0
    %1494 = vmatpush1.msra.mxu0 0.0
    %1495 = vmatprep.subr.mxu0 0.0
    %1496 = vmatpush1.msra.mxu0 0.0
    %1497 = vmatprep.subr.mxu0 0.0
    %1498 = vmatpush1.msra.mxu0 0.0
    %1499 = vmatprep.subr.mxu0 0.0
    %1500 = vmatpush1.msra.mxu0 0.0
    %1501 = vmatprep.subr.mxu0 0.0
    %1502 = vmatpush1.msra.mxu0 0.0
    %1503 = vmatprep.subr.mxu0 0.0
    %1504 = vmatpush1.msra.mxu0 0.0
    %1505 = vmatprep.subr.mxu0 %v1323
    %1506 = vmatpush1.msra.mxu0 %v1322
    %1507 = vmatprep.subr.mxu0 0.0
    %1508 = vmatpush2.msra.mxu0 0.0
    %1509 = vmatprep.subr.mxu0 0.0
    %1510 = vmatpush2.msra.mxu0 0.0
    %1511 = vmatprep.subr.mxu0 0.0
    %1512 = vmatpush2.msra.mxu0 0.0
    %1513 = vmatprep.subr.mxu0 0.0
    %1514 = vmatpush2.msra.mxu0 0.0
    %1515 = vmatprep.subr.mxu0 0.0
    %1516 = vmatpush2.msra.mxu0 0.0
    %1517 = vmatprep.subr.mxu0 0.0
    %1518 = vmatpush2.msra.mxu0 0.0
    %1519 = vmatprep.subr.mxu0 0.0
    %1520 = vmatpush2.msra.mxu0 0.0
    %1521 = vmatprep.subr.mxu0 0.0
    %1522 = vmatpush2.msra.mxu0 0.0
    %1523 = vmatprep.subr.mxu0 0.0
    %1524 = vmatpush2.msra.mxu0 0.0
    %1525 = vmatprep.subr.mxu0 0.0
    %1526 = vmatpush2.msra.mxu0 0.0
    %1527 = vmatprep.subr.mxu0 0.0
    %1528 = vmatpush2.msra.mxu0 0.0
    %1529 = vmatprep.subr.mxu0 0.0
    %1530 = vmatpush2.msra.mxu0 0.0
    %1531 = vmatprep.subr.mxu0 0.0
    %1532 = vmatpush2.msra.mxu0 0.0
    %1533 = vmatprep.subr.mxu0 0.0
    %1534 = vmatpush2.msra.mxu0 0.0
    %1535 = vmatprep.subr.mxu0 0.0
    %1536 = vmatpush2.msra.mxu0 0.0
    %1537 = vmatprep.subr.mxu0 0.0
    %1538 = vmatpush2.msra.mxu0 0.0
    %1539 = vmatprep.mubr.f32.mxu0 0.0
    %1540 = vmatmul.mubr.f32.gmra.mxu0 %v1331
    %v1541 = vpop.f32.mrf.mxu0
    %v1542 = vadd.f32 0.0, %v1541
    %v1543 = vpop.f32.mrf.mxu0
    %v1544 = vadd.f32 0.0, %v1543
    %1545 = vdwg.mxu0
    %v1546 = vadd.f32 %v1281, %v1400
    %v1547 = vadd.f32 %v1282, %v1402
    %v1548 = vadd.f32 %v1283, %v1471
    %v1549 = vadd.f32 %v1284, %v1473
    %v1550 = vadd.f32 %v1285, %v1542
    %v1551 = vadd.f32 %v1286, %v1544
    %s1552 = scalar_lea.vmem %s2, 48
    %v1553 = vld [vmem:[%s1552] sm:$0xff]
    %1554 = vrot.lane.b32.xlu0 %v1287, 111
    %v1555 = vpop.permute.xlu0 %1554
    %1556 = vrot.lane.b32.xlu0 %v1288, 111
    %v1557 = vpop.permute.xlu0 %1556
    %1558 = vrot.lane.b32.xlu0 %v1289, 111
    %v1559 = vpop.permute.xlu0 %1558
    %1560 = vrot.lane.b32.xlu0 %v1290, 111
    %v1561 = vpop.permute.xlu0 %1560
    %1562 = vrot.lane.b32.xlu0 %v1291, 111
    %v1563 = vpop.permute.xlu0 %1562
    %1564 = vrot.lane.b32.xlu0 %v1292, 111
    %v1565 = vpop.permute.xlu0 %1564
    %1566 = vrot.lane.b32.xlu0 %v1293, 111
    %v1567 = vpop.permute.xlu0 %1566
    %vm1568 = vcmask 908288
    %v1569 = vsel %vm1568, %v1555, %v1557
    %v1570 = vsel %vm1568, %v1557, %v1559
    %v1571 = vsel %vm1568, %v1559, %v1561
    %v1572 = vsel %vm1568, %v1561, %v1563
    %v1573 = vsel %vm1568, %v1563, %v1565
    %v1574 = vsel %vm1568, %v1565, %v1567
    %v1582 = vsel %vm101, %v1553, 0
    %1584 = vmatprep.subr.mxu0 0.0
    %1585 = vmatpush1.msra.mxu0 0.0
    %1586 = vmatprep.subr.mxu0 0.0
    %1587 = vmatpush1.msra.mxu0 0.0
    %1588 = vmatprep.subr.mxu0 0.0
    %1589 = vmatpush1.msra.mxu0 0.0
    %1590 = vmatprep.subr.mxu0 0.0
    %1591 = vmatpush1.msra.mxu0 0.0
    %1592 = vmatprep.subr.mxu0 0.0
    %1593 = vmatpush1.msra.mxu0 0.0
    %1594 = vmatprep.subr.mxu0 0.0
    %1595 = vmatpush1.msra.mxu0 0.0
    %1596 = vmatprep.subr.mxu0 0.0
    %1597 = vmatpush1.msra.mxu0 0.0
    %1598 = vmatprep.subr.mxu0 0.0
    %1599 = vmatpush1.msra.mxu0 0.0
    %1600 = vmatprep.subr.mxu0 0.0
    %1601 = vmatpush1.msra.mxu0 0.0
    %1602 = vmatprep.subr.mxu0 0.0
    %1603 = vmatpush1.msra.mxu0 0.0
    %1604 = vmatprep.subr.mxu0 0.0
    %1605 = vmatpush1.msra.mxu0 0.0
    %1606 = vmatprep.subr.mxu0 0.0
    %1607 = vmatpush1.msra.mxu0 0.0
    %1608 = vmatprep.subr.mxu0 0.0
    %1609 = vmatpush1.msra.mxu0 0.0
    %1610 = vmatprep.subr.mxu0 0.0
    %1611 = vmatpush1.msra.mxu0 0.0
    %1612 = vmatprep.subr.mxu0 0.0
    %1613 = vmatpush1.msra.mxu0 0.0
    %1614 = vmatprep.subr.mxu0 %v1570
    %1615 = vmatpush1.msra.mxu0 %v1569
    %1616 = vmatprep.subr.mxu0 0.0
    %1617 = vmatpush2.msra.mxu0 0.0
    %1618 = vmatprep.subr.mxu0 0.0
    %1619 = vmatpush2.msra.mxu0 0.0
    %1620 = vmatprep.subr.mxu0 0.0
    %1621 = vmatpush2.msra.mxu0 0.0
    %1622 = vmatprep.subr.mxu0 0.0
    %1623 = vmatpush2.msra.mxu0 0.0
    %1624 = vmatprep.subr.mxu0 0.0
    %1625 = vmatpush2.msra.mxu0 0.0
    %1626 = vmatprep.subr.mxu0 0.0
    %1627 = vmatpush2.msra.mxu0 0.0
    %1628 = vmatprep.subr.mxu0 0.0
    %1629 = vmatpush2.msra.mxu0 0.0
    %1630 = vmatprep.subr.mxu0 0.0
    %1631 = vmatpush2.msra.mxu0 0.0
    %1632 = vmatprep.subr.mxu0 0.0
    %1633 = vmatpush2.msra.mxu0 0.0
    %1634 = vmatprep.subr.mxu0 0.0
    %1635 = vmatpush2.msra.mxu0 0.0
    %1636 = vmatprep.subr.mxu0 0.0
    %1637 = vmatpush2.msra.mxu0 0.0
    %1638 = vmatprep.subr.mxu0 0.0
    %1639 = vmatpush2.msra.mxu0 0.0
    %1640 = vmatprep.subr.mxu0 0.0
    %1641 = vmatpush2.msra.mxu0 0.0
    %1642 = vmatprep.subr.mxu0 0.0
    %1643 = vmatpush2.msra.mxu0 0.0
    %1644 = vmatprep.subr.mxu0 0.0
    %1645 = vmatpush2.msra.mxu0 0.0
    %1646 = vmatprep.subr.mxu0 0.0
    %1647 = vmatpush2.msra.mxu0 0.0
    %1648 = vmatprep.mubr.f32.mxu0 0.0
    %1649 = vmatmul.mubr.f32.gmra.mxu0 %v1582
    %v1650 = vpop.f32.mrf.mxu0
    %v1651 = vadd.f32 0.0, %v1650
    %v1652 = vpop.f32.mrf.mxu0
    %v1653 = vadd.f32 0.0, %v1652
    %1654 = vdwg.mxu0
    %1655 = vmatprep.subr.mxu0 0.0
    %1656 = vmatpush1.msra.mxu0 0.0
    %1657 = vmatprep.subr.mxu0 0.0
    %1658 = vmatpush1.msra.mxu0 0.0
    %1659 = vmatprep.subr.mxu0 0.0
    %1660 = vmatpush1.msra.mxu0 0.0
    %1661 = vmatprep.subr.mxu0 0.0
    %1662 = vmatpush1.msra.mxu0 0.0
    %1663 = vmatprep.subr.mxu0 0.0
    %1664 = vmatpush1.msra.mxu0 0.0
    %1665 = vmatprep.subr.mxu0 0.0
    %1666 = vmatpush1.msra.mxu0 0.0
    %1667 = vmatprep.subr.mxu0 0.0
    %1668 = vmatpush1.msra.mxu0 0.0
    %1669 = vmatprep.subr.mxu0 0.0
    %1670 = vmatpush1.msra.mxu0 0.0
    %1671 = vmatprep.subr.mxu0 0.0
    %1672 = vmatpush1.msra.mxu0 0.0
    %1673 = vmatprep.subr.mxu0 0.0
    %1674 = vmatpush1.msra.mxu0 0.0
    %1675 = vmatprep.subr.mxu0 0.0
    %1676 = vmatpush1.msra.mxu0 0.0
    %1677 = vmatprep.subr.mxu0 0.0
    %1678 = vmatpush1.msra.mxu0 0.0
    %1679 = vmatprep.subr.mxu0 0.0
    %1680 = vmatpush1.msra.mxu0 0.0
    %1681 = vmatprep.subr.mxu0 0.0
    %1682 = vmatpush1.msra.mxu0 0.0
    %1683 = vmatprep.subr.mxu0 0.0
    %1684 = vmatpush1.msra.mxu0 0.0
    %1685 = vmatprep.subr.mxu0 %v1572
    %1686 = vmatpush1.msra.mxu0 %v1571
    %1687 = vmatprep.subr.mxu0 0.0
    %1688 = vmatpush2.msra.mxu0 0.0
    %1689 = vmatprep.subr.mxu0 0.0
    %1690 = vmatpush2.msra.mxu0 0.0
    %1691 = vmatprep.subr.mxu0 0.0
    %1692 = vmatpush2.msra.mxu0 0.0
    %1693 = vmatprep.subr.mxu0 0.0
    %1694 = vmatpush2.msra.mxu0 0.0
    %1695 = vmatprep.subr.mxu0 0.0
    %1696 = vmatpush2.msra.mxu0 0.0
    %1697 = vmatprep.subr.mxu0 0.0
    %1698 = vmatpush2.msra.mxu0 0.0
    %1699 = vmatprep.subr.mxu0 0.0
    %1700 = vmatpush2.msra.mxu0 0.0
    %1701 = vmatprep.subr.mxu0 0.0
    %1702 = vmatpush2.msra.mxu0 0.0
    %1703 = vmatprep.subr.mxu0 0.0
    %1704 = vmatpush2.msra.mxu0 0.0
    %1705 = vmatprep.subr.mxu0 0.0
    %1706 = vmatpush2.msra.mxu0 0.0
    %1707 = vmatprep.subr.mxu0 0.0
    %1708 = vmatpush2.msra.mxu0 0.0
    %1709 = vmatprep.subr.mxu0 0.0
    %1710 = vmatpush2.msra.mxu0 0.0
    %1711 = vmatprep.subr.mxu0 0.0
    %1712 = vmatpush2.msra.mxu0 0.0
    %1713 = vmatprep.subr.mxu0 0.0
    %1714 = vmatpush2.msra.mxu0 0.0
    %1715 = vmatprep.subr.mxu0 0.0
    %1716 = vmatpush2.msra.mxu0 0.0
    %1717 = vmatprep.subr.mxu0 0.0
    %1718 = vmatpush2.msra.mxu0 0.0
    %1719 = vmatprep.mubr.f32.mxu0 0.0
    %1720 = vmatmul.mubr.f32.gmra.mxu0 %v1582
    %v1721 = vpop.f32.mrf.mxu0
    %v1722 = vadd.f32 0.0, %v1721
    %v1723 = vpop.f32.mrf.mxu0
    %v1724 = vadd.f32 0.0, %v1723
    %1725 = vdwg.mxu0
    %1726 = vmatprep.subr.mxu0 0.0
    %1727 = vmatpush1.msra.mxu0 0.0
    %1728 = vmatprep.subr.mxu0 0.0
    %1729 = vmatpush1.msra.mxu0 0.0
    %1730 = vmatprep.subr.mxu0 0.0
    %1731 = vmatpush1.msra.mxu0 0.0
    %1732 = vmatprep.subr.mxu0 0.0
    %1733 = vmatpush1.msra.mxu0 0.0
    %1734 = vmatprep.subr.mxu0 0.0
    %1735 = vmatpush1.msra.mxu0 0.0
    %1736 = vmatprep.subr.mxu0 0.0
    %1737 = vmatpush1.msra.mxu0 0.0
    %1738 = vmatprep.subr.mxu0 0.0
    %1739 = vmatpush1.msra.mxu0 0.0
    %1740 = vmatprep.subr.mxu0 0.0
    %1741 = vmatpush1.msra.mxu0 0.0
    %1742 = vmatprep.subr.mxu0 0.0
    %1743 = vmatpush1.msra.mxu0 0.0
    %1744 = vmatprep.subr.mxu0 0.0
    %1745 = vmatpush1.msra.mxu0 0.0
    %1746 = vmatprep.subr.mxu0 0.0
    %1747 = vmatpush1.msra.mxu0 0.0
    %1748 = vmatprep.subr.mxu0 0.0
    %1749 = vmatpush1.msra.mxu0 0.0
    %1750 = vmatprep.subr.mxu0 0.0
    %1751 = vmatpush1.msra.mxu0 0.0
    %1752 = vmatprep.subr.mxu0 0.0
    %1753 = vmatpush1.msra.mxu0 0.0
    %1754 = vmatprep.subr.mxu0 0.0
    %1755 = vmatpush1.msra.mxu0 0.0
    %1756 = vmatprep.subr.mxu0 %v1574
    %1757 = vmatpush1.msra.mxu0 %v1573
    %1758 = vmatprep.subr.mxu0 0.0
    %1759 = vmatpush2.msra.mxu0 0.0
    %1760 = vmatprep.subr.mxu0 0.0
    %1761 = vmatpush2.msra.mxu0 0.0
    %1762 = vmatprep.subr.mxu0 0.0
    %1763 = vmatpush2.msra.mxu0 0.0
    %1764 = vmatprep.subr.mxu0 0.0
    %1765 = vmatpush2.msra.mxu0 0.0
    %1766 = vmatprep.subr.mxu0 0.0
    %1767 = vmatpush2.msra.mxu0 0.0
    %1768 = vmatprep.subr.mxu0 0.0
    %1769 = vmatpush2.msra.mxu0 0.0
    %1770 = vmatprep.subr.mxu0 0.0
    %1771 = vmatpush2.msra.mxu0 0.0
    %1772 = vmatprep.subr.mxu0 0.0
    %1773 = vmatpush2.msra.mxu0 0.0
    %1774 = vmatprep.subr.mxu0 0.0
    %1775 = vmatpush2.msra.mxu0 0.0
    %1776 = vmatprep.subr.mxu0 0.0
    %1777 = vmatpush2.msra.mxu0 0.0
    %1778 = vmatprep.subr.mxu0 0.0
    %1779 = vmatpush2.msra.mxu0 0.0
    %1780 = vmatprep.subr.mxu0 0.0
    %1781 = vmatpush2.msra.mxu0 0.0
    %1782 = vmatprep.subr.mxu0 0.0
    %1783 = vmatpush2.msra.mxu0 0.0
    %1784 = vmatprep.subr.mxu0 0.0
    %1785 = vmatpush2.msra.mxu0 0.0
    %1786 = vmatprep.subr.mxu0 0.0
    %1787 = vmatpush2.msra.mxu0 0.0
    %1788 = vmatprep.subr.mxu0 0.0
    %1789 = vmatpush2.msra.mxu0 0.0
    %1790 = vmatprep.mubr.f32.mxu0 0.0
    %1791 = vmatmul.mubr.f32.gmra.mxu0 %v1582
    %v1792 = vpop.f32.mrf.mxu0
    %v1793 = vadd.f32 0.0, %v1792
    %v1794 = vpop.f32.mrf.mxu0
    %v1795 = vadd.f32 0.0, %v1794
    %1796 = vdwg.mxu0
    %v1797 = vadd.f32 %v1546, %v1651
    %v1798 = vadd.f32 %v1547, %v1653
    %v1799 = vadd.f32 %v1548, %v1722
    %v1800 = vadd.f32 %v1549, %v1724
    %v1801 = vadd.f32 %v1550, %v1793
    %v1802 = vadd.f32 %v1551, %v1795
    %s1803 = scalar_lea.vmem %s2, 56
    %v1804 = vld [vmem:[%s1803] sm:$0xff]
    %1805 = vrot.lane.b32.xlu0 %v1287, 110
    %v1806 = vpop.permute.xlu0 %1805
    %1807 = vrot.lane.b32.xlu0 %v1288, 110
    %v1808 = vpop.permute.xlu0 %1807
    %1809 = vrot.lane.b32.xlu0 %v1289, 110
    %v1810 = vpop.permute.xlu0 %1809
    %1811 = vrot.lane.b32.xlu0 %v1290, 110
    %v1812 = vpop.permute.xlu0 %1811
    %1813 = vrot.lane.b32.xlu0 %v1291, 110
    %v1814 = vpop.permute.xlu0 %1813
    %1815 = vrot.lane.b32.xlu0 %v1292, 110
    %v1816 = vpop.permute.xlu0 %1815
    %1817 = vrot.lane.b32.xlu0 %v1293, 110
    %v1818 = vpop.permute.xlu0 %1817
    %vm1819 = vcmask 900096
    %v1820 = vsel %vm1819, %v1806, %v1808
    %v1821 = vsel %vm1819, %v1808, %v1810
    %v1822 = vsel %vm1819, %v1810, %v1812
    %v1823 = vsel %vm1819, %v1812, %v1814
    %v1824 = vsel %vm1819, %v1814, %v1816
    %v1825 = vsel %vm1819, %v1816, %v1818
    %v1833 = vsel %vm101, %v1804, 0
    %1835 = vmatprep.subr.mxu0 0.0
    %1836 = vmatpush1.msra.mxu0 0.0
    %1837 = vmatprep.subr.mxu0 0.0
    %1838 = vmatpush1.msra.mxu0 0.0
    %1839 = vmatprep.subr.mxu0 0.0
    %1840 = vmatpush1.msra.mxu0 0.0
    %1841 = vmatprep.subr.mxu0 0.0
    %1842 = vmatpush1.msra.mxu0 0.0
    %1843 = vmatprep.subr.mxu0 0.0
    %1844 = vmatpush1.msra.mxu0 0.0
    %1845 = vmatprep.subr.mxu0 0.0
    %1846 = vmatpush1.msra.mxu0 0.0
    %1847 = vmatprep.subr.mxu0 0.0
    %1848 = vmatpush1.msra.mxu0 0.0
    %1849 = vmatprep.subr.mxu0 0.0
    %1850 = vmatpush1.msra.mxu0 0.0
    %1851 = vmatprep.subr.mxu0 0.0
    %1852 = vmatpush1.msra.mxu0 0.0
    %1853 = vmatprep.subr.mxu0 0.0
    %1854 = vmatpush1.msra.mxu0 0.0
    %1855 = vmatprep.subr.mxu0 0.0
    %1856 = vmatpush1.msra.mxu0 0.0
    %1857 = vmatprep.subr.mxu0 0.0
    %1858 = vmatpush1.msra.mxu0 0.0
    %1859 = vmatprep.subr.mxu0 0.0
    %1860 = vmatpush1.msra.mxu0 0.0
    %1861 = vmatprep.subr.mxu0 0.0
    %1862 = vmatpush1.msra.mxu0 0.0
    %1863 = vmatprep.subr.mxu0 0.0
    %1864 = vmatpush1.msra.mxu0 0.0
    %1865 = vmatprep.subr.mxu0 %v1821
    %1866 = vmatpush1.msra.mxu0 %v1820
    %1867 = vmatprep.subr.mxu0 0.0
    %1868 = vmatpush2.msra.mxu0 0.0
    %1869 = vmatprep.subr.mxu0 0.0
    %1870 = vmatpush2.msra.mxu0 0.0
    %1871 = vmatprep.subr.mxu0 0.0
    %1872 = vmatpush2.msra.mxu0 0.0
    %1873 = vmatprep.subr.mxu0 0.0
    %1874 = vmatpush2.msra.mxu0 0.0
    %1875 = vmatprep.subr.mxu0 0.0
    %1876 = vmatpush2.msra.mxu0 0.0
    %1877 = vmatprep.subr.mxu0 0.0
    %1878 = vmatpush2.msra.mxu0 0.0
    %1879 = vmatprep.subr.mxu0 0.0
    %1880 = vmatpush2.msra.mxu0 0.0
    %1881 = vmatprep.subr.mxu0 0.0
    %1882 = vmatpush2.msra.mxu0 0.0
    %1883 = vmatprep.subr.mxu0 0.0
    %1884 = vmatpush2.msra.mxu0 0.0
    %1885 = vmatprep.subr.mxu0 0.0
    %1886 = vmatpush2.msra.mxu0 0.0
    %1887 = vmatprep.subr.mxu0 0.0
    %1888 = vmatpush2.msra.mxu0 0.0
    %1889 = vmatprep.subr.mxu0 0.0
    %1890 = vmatpush2.msra.mxu0 0.0
    %1891 = vmatprep.subr.mxu0 0.0
    %1892 = vmatpush2.msra.mxu0 0.0
    %1893 = vmatprep.subr.mxu0 0.0
    %1894 = vmatpush2.msra.mxu0 0.0
    %1895 = vmatprep.subr.mxu0 0.0
    %1896 = vmatpush2.msra.mxu0 0.0
    %1897 = vmatprep.subr.mxu0 0.0
    %1898 = vmatpush2.msra.mxu0 0.0
    %1899 = vmatprep.mubr.f32.mxu0 0.0
    %1900 = vmatmul.mubr.f32.gmra.mxu0 %v1833
    %v1901 = vpop.f32.mrf.mxu0
    %v1902 = vadd.f32 0.0, %v1901
    %v1903 = vpop.f32.mrf.mxu0
    %v1904 = vadd.f32 0.0, %v1903
    %1905 = vdwg.mxu0
    %1906 = vmatprep.subr.mxu0 0.0
    %1907 = vmatpush1.msra.mxu0 0.0
    %1908 = vmatprep.subr.mxu0 0.0
    %1909 = vmatpush1.msra.mxu0 0.0
    %1910 = vmatprep.subr.mxu0 0.0
    %1911 = vmatpush1.msra.mxu0 0.0
    %1912 = vmatprep.subr.mxu0 0.0
    %1913 = vmatpush1.msra.mxu0 0.0
    %1914 = vmatprep.subr.mxu0 0.0
    %1915 = vmatpush1.msra.mxu0 0.0
    %1916 = vmatprep.subr.mxu0 0.0
    %1917 = vmatpush1.msra.mxu0 0.0
    %1918 = vmatprep.subr.mxu0 0.0
    %1919 = vmatpush1.msra.mxu0 0.0
    %1920 = vmatprep.subr.mxu0 0.0
    %1921 = vmatpush1.msra.mxu0 0.0
    %1922 = vmatprep.subr.mxu0 0.0
    %1923 = vmatpush1.msra.mxu0 0.0
    %1924 = vmatprep.subr.mxu0 0.0
    %1925 = vmatpush1.msra.mxu0 0.0
    %1926 = vmatprep.subr.mxu0 0.0
    %1927 = vmatpush1.msra.mxu0 0.0
    %1928 = vmatprep.subr.mxu0 0.0
    %1929 = vmatpush1.msra.mxu0 0.0
    %1930 = vmatprep.subr.mxu0 0.0
    %1931 = vmatpush1.msra.mxu0 0.0
    %1932 = vmatprep.subr.mxu0 0.0
    %1933 = vmatpush1.msra.mxu0 0.0
    %1934 = vmatprep.subr.mxu0 0.0
    %1935 = vmatpush1.msra.mxu0 0.0
    %1936 = vmatprep.subr.mxu0 %v1823
    %1937 = vmatpush1.msra.mxu0 %v1822
    %1938 = vmatprep.subr.mxu0 0.0
    %1939 = vmatpush2.msra.mxu0 0.0
    %1940 = vmatprep.subr.mxu0 0.0
    %1941 = vmatpush2.msra.mxu0 0.0
    %1942 = vmatprep.subr.mxu0 0.0
    %1943 = vmatpush2.msra.mxu0 0.0
    %1944 = vmatprep.subr.mxu0 0.0
    %1945 = vmatpush2.msra.mxu0 0.0
    %1946 = vmatprep.subr.mxu0 0.0
    %1947 = vmatpush2.msra.mxu0 0.0
    %1948 = vmatprep.subr.mxu0 0.0
    %1949 = vmatpush2.msra.mxu0 0.0
    %1950 = vmatprep.subr.mxu0 0.0
    %1951 = vmatpush2.msra.mxu0 0.0
    %1952 = vmatprep.subr.mxu0 0.0
    %1953 = vmatpush2.msra.mxu0 0.0
    %1954 = vmatprep.subr.mxu0 0.0
    %1955 = vmatpush2.msra.mxu0 0.0
    %1956 = vmatprep.subr.mxu0 0.0
    %1957 = vmatpush2.msra.mxu0 0.0
    %1958 = vmatprep.subr.mxu0 0.0
    %1959 = vmatpush2.msra.mxu0 0.0
    %1960 = vmatprep.subr.mxu0 0.0
    %1961 = vmatpush2.msra.mxu0 0.0
    %1962 = vmatprep.subr.mxu0 0.0
    %1963 = vmatpush2.msra.mxu0 0.0
    %1964 = vmatprep.subr.mxu0 0.0
    %1965 = vmatpush2.msra.mxu0 0.0
    %1966 = vmatprep.subr.mxu0 0.0
    %1967 = vmatpush2.msra.mxu0 0.0
    %1968 = vmatprep.subr.mxu0 0.0
    %1969 = vmatpush2.msra.mxu0 0.0
    %1970 = vmatprep.mubr.f32.mxu0 0.0
    %1971 = vmatmul.mubr.f32.gmra.mxu0 %v1833
    %v1972 = vpop.f32.mrf.mxu0
    %v1973 = vadd.f32 0.0, %v1972
    %v1974 = vpop.f32.mrf.mxu0
    %v1975 = vadd.f32 0.0, %v1974
    %1976 = vdwg.mxu0
    %1977 = vmatprep.subr.mxu0 0.0
    %1978 = vmatpush1.msra.mxu0 0.0
    %1979 = vmatprep.subr.mxu0 0.0
    %1980 = vmatpush1.msra.mxu0 0.0
    %1981 = vmatprep.subr.mxu0 0.0
    %1982 = vmatpush1.msra.mxu0 0.0
    %1983 = vmatprep.subr.mxu0 0.0
    %1984 = vmatpush1.msra.mxu0 0.0
    %1985 = vmatprep.subr.mxu0 0.0
    %1986 = vmatpush1.msra.mxu0 0.0
    %1987 = vmatprep.subr.mxu0 0.0
    %1988 = vmatpush1.msra.mxu0 0.0
    %1989 = vmatprep.subr.mxu0 0.0
    %1990 = vmatpush1.msra.mxu0 0.0
    %1991 = vmatprep.subr.mxu0 0.0
    %1992 = vmatpush1.msra.mxu0 0.0
    %1993 = vmatprep.subr.mxu0 0.0
    %1994 = vmatpush1.msra.mxu0 0.0
    %1995 = vmatprep.subr.mxu0 0.0
    %1996 = vmatpush1.msra.mxu0 0.0
    %1997 = vmatprep.subr.mxu0 0.0
    %1998 = vmatpush1.msra.mxu0 0.0
    %1999 = vmatprep.subr.mxu0 0.0
    %2000 = vmatpush1.msra.mxu0 0.0
    %2001 = vmatprep.subr.mxu0 0.0
    %2002 = vmatpush1.msra.mxu0 0.0
    %2003 = vmatprep.subr.mxu0 0.0
    %2004 = vmatpush1.msra.mxu0 0.0
    %2005 = vmatprep.subr.mxu0 0.0
    %2006 = vmatpush1.msra.mxu0 0.0
    %2007 = vmatprep.subr.mxu0 %v1825
    %2008 = vmatpush1.msra.mxu0 %v1824
    %2009 = vmatprep.subr.mxu0 0.0
    %2010 = vmatpush2.msra.mxu0 0.0
    %2011 = vmatprep.subr.mxu0 0.0
    %2012 = vmatpush2.msra.mxu0 0.0
    %2013 = vmatprep.subr.mxu0 0.0
    %2014 = vmatpush2.msra.mxu0 0.0
    %2015 = vmatprep.subr.mxu0 0.0
    %2016 = vmatpush2.msra.mxu0 0.0
    %2017 = vmatprep.subr.mxu0 0.0
    %2018 = vmatpush2.msra.mxu0 0.0
    %2019 = vmatprep.subr.mxu0 0.0
    %2020 = vmatpush2.msra.mxu0 0.0
    %2021 = vmatprep.subr.mxu0 0.0
    %2022 = vmatpush2.msra.mxu0 0.0
    %2023 = vmatprep.subr.mxu0 0.0
    %2024 = vmatpush2.msra.mxu0 0.0
    %2025 = vmatprep.subr.mxu0 0.0
    %2026 = vmatpush2.msra.mxu0 0.0
    %2027 = vmatprep.subr.mxu0 0.0
    %2028 = vmatpush2.msra.mxu0 0.0
    %2029 = vmatprep.subr.mxu0 0.0
    %2030 = vmatpush2.msra.mxu0 0.0
    %2031 = vmatprep.subr.mxu0 0.0
    %2032 = vmatpush2.msra.mxu0 0.0
    %2033 = vmatprep.subr.mxu0 0.0
    %2034 = vmatpush2.msra.mxu0 0.0
    %2035 = vmatprep.subr.mxu0 0.0
    %2036 = vmatpush2.msra.mxu0 0.0
    %2037 = vmatprep.subr.mxu0 0.0
    %2038 = vmatpush2.msra.mxu0 0.0
    %2039 = vmatprep.subr.mxu0 0.0
    %2040 = vmatpush2.msra.mxu0 0.0
    %2041 = vmatprep.mubr.f32.mxu0 0.0
    %2042 = vmatmul.mubr.f32.gmra.mxu0 %v1833
    %v2043 = vpop.f32.mrf.mxu0
    %v2044 = vadd.f32 0.0, %v2043
    %v2045 = vpop.f32.mrf.mxu0
    %v2046 = vadd.f32 0.0, %v2045
    %2047 = vdwg.mxu0
    %v2048 = vadd.f32 %v1797, %v1902
    %v2049 = vadd.f32 %v1798, %v1904
    %v2050 = vadd.f32 %v1799, %v1973
    %v2051 = vadd.f32 %v1800, %v1975
    %v2052 = vadd.f32 %v1801, %v2044
    %v2053 = vadd.f32 %v1802, %v2046
    %s2054 = scalar_lea.vmem %s2, 64
    %v2055 = vld [vmem:[%s2054] sm:$0xff]
    %2056 = vrot.lane.b32.xlu0 %v1287, 109
    %v2057 = vpop.permute.xlu0 %2056
    %2058 = vrot.lane.b32.xlu0 %v1288, 109
    %v2059 = vpop.permute.xlu0 %2058
    %2060 = vrot.lane.b32.xlu0 %v1289, 109
    %v2061 = vpop.permute.xlu0 %2060
    %2062 = vrot.lane.b32.xlu0 %v1290, 109
    %v2063 = vpop.permute.xlu0 %2062
    %2064 = vrot.lane.b32.xlu0 %v1291, 109
    %v2065 = vpop.permute.xlu0 %2064
    %2066 = vrot.lane.b32.xlu0 %v1292, 109
    %v2067 = vpop.permute.xlu0 %2066
    %2068 = vrot.lane.b32.xlu0 %v1293, 109
    %v2069 = vpop.permute.xlu0 %2068
    %vm2070 = vcmask 891904
    %v2071 = vsel %vm2070, %v2057, %v2059
    %v2072 = vsel %vm2070, %v2059, %v2061
    %v2073 = vsel %vm2070, %v2061, %v2063
    %v2074 = vsel %vm2070, %v2063, %v2065
    %v2075 = vsel %vm2070, %v2065, %v2067
    %v2076 = vsel %vm2070, %v2067, %v2069
    %v2084 = vsel %vm101, %v2055, 0
    %2086 = vmatprep.subr.mxu0 0.0
    %2087 = vmatpush1.msra.mxu0 0.0
    %2088 = vmatprep.subr.mxu0 0.0
    %2089 = vmatpush1.msra.mxu0 0.0
    %2090 = vmatprep.subr.mxu0 0.0
    %2091 = vmatpush1.msra.mxu0 0.0
    %2092 = vmatprep.subr.mxu0 0.0
    %2093 = vmatpush1.msra.mxu0 0.0
    %2094 = vmatprep.subr.mxu0 0.0
    %2095 = vmatpush1.msra.mxu0 0.0
    %2096 = vmatprep.subr.mxu0 0.0
    %2097 = vmatpush1.msra.mxu0 0.0
    %2098 = vmatprep.subr.mxu0 0.0
    %2099 = vmatpush1.msra.mxu0 0.0
    %2100 = vmatprep.subr.mxu0 0.0
    %2101 = vmatpush1.msra.mxu0 0.0
    %2102 = vmatprep.subr.mxu0 0.0
    %2103 = vmatpush1.msra.mxu0 0.0
    %2104 = vmatprep.subr.mxu0 0.0
    %2105 = vmatpush1.msra.mxu0 0.0
    %2106 = vmatprep.subr.mxu0 0.0
    %2107 = vmatpush1.msra.mxu0 0.0
    %2108 = vmatprep.subr.mxu0 0.0
    %2109 = vmatpush1.msra.mxu0 0.0
    %2110 = vmatprep.subr.mxu0 0.0
    %2111 = vmatpush1.msra.mxu0 0.0
    %2112 = vmatprep.subr.mxu0 0.0
    %2113 = vmatpush1.msra.mxu0 0.0
    %2114 = vmatprep.subr.mxu0 0.0
    %2115 = vmatpush1.msra.mxu0 0.0
    %2116 = vmatprep.subr.mxu0 %v2072
    %2117 = vmatpush1.msra.mxu0 %v2071
    %2118 = vmatprep.subr.mxu0 0.0
    %2119 = vmatpush2.msra.mxu0 0.0
    %2120 = vmatprep.subr.mxu0 0.0
    %2121 = vmatpush2.msra.mxu0 0.0
    %2122 = vmatprep.subr.mxu0 0.0
    %2123 = vmatpush2.msra.mxu0 0.0
    %2124 = vmatprep.subr.mxu0 0.0
    %2125 = vmatpush2.msra.mxu0 0.0
    %2126 = vmatprep.subr.mxu0 0.0
    %2127 = vmatpush2.msra.mxu0 0.0
    %2128 = vmatprep.subr.mxu0 0.0
    %2129 = vmatpush2.msra.mxu0 0.0
    %2130 = vmatprep.subr.mxu0 0.0
    %2131 = vmatpush2.msra.mxu0 0.0
    %2132 = vmatprep.subr.mxu0 0.0
    %2133 = vmatpush2.msra.mxu0 0.0
    %2134 = vmatprep.subr.mxu0 0.0
    %2135 = vmatpush2.msra.mxu0 0.0
    %2136 = vmatprep.subr.mxu0 0.0
    %2137 = vmatpush2.msra.mxu0 0.0
    %2138 = vmatprep.subr.mxu0 0.0
    %2139 = vmatpush2.msra.mxu0 0.0
    %2140 = vmatprep.subr.mxu0 0.0
    %2141 = vmatpush2.msra.mxu0 0.0
    %2142 = vmatprep.subr.mxu0 0.0
    %2143 = vmatpush2.msra.mxu0 0.0
    %2144 = vmatprep.subr.mxu0 0.0
    %2145 = vmatpush2.msra.mxu0 0.0
    %2146 = vmatprep.subr.mxu0 0.0
    %2147 = vmatpush2.msra.mxu0 0.0
    %2148 = vmatprep.subr.mxu0 0.0
    %2149 = vmatpush2.msra.mxu0 0.0
    %2150 = vmatprep.mubr.f32.mxu0 0.0
    %2151 = vmatmul.mubr.f32.gmra.mxu0 %v2084
    %v2152 = vpop.f32.mrf.mxu0
    %v2153 = vadd.f32 0.0, %v2152
    %v2154 = vpop.f32.mrf.mxu0
    %v2155 = vadd.f32 0.0, %v2154
    %2156 = vdwg.mxu0
    %2157 = vmatprep.subr.mxu0 0.0
    %2158 = vmatpush1.msra.mxu0 0.0
    %2159 = vmatprep.subr.mxu0 0.0
    %2160 = vmatpush1.msra.mxu0 0.0
    %2161 = vmatprep.subr.mxu0 0.0
    %2162 = vmatpush1.msra.mxu0 0.0
    %2163 = vmatprep.subr.mxu0 0.0
    %2164 = vmatpush1.msra.mxu0 0.0
    %2165 = vmatprep.subr.mxu0 0.0
    %2166 = vmatpush1.msra.mxu0 0.0
    %2167 = vmatprep.subr.mxu0 0.0
    %2168 = vmatpush1.msra.mxu0 0.0
    %2169 = vmatprep.subr.mxu0 0.0
    %2170 = vmatpush1.msra.mxu0 0.0
    %2171 = vmatprep.subr.mxu0 0.0
    %2172 = vmatpush1.msra.mxu0 0.0
    %2173 = vmatprep.subr.mxu0 0.0
    %2174 = vmatpush1.msra.mxu0 0.0
    %2175 = vmatprep.subr.mxu0 0.0
    %2176 = vmatpush1.msra.mxu0 0.0
    %2177 = vmatprep.subr.mxu0 0.0
    %2178 = vmatpush1.msra.mxu0 0.0
    %2179 = vmatprep.subr.mxu0 0.0
    %2180 = vmatpush1.msra.mxu0 0.0
    %2181 = vmatprep.subr.mxu0 0.0
    %2182 = vmatpush1.msra.mxu0 0.0
    %2183 = vmatprep.subr.mxu0 0.0
    %2184 = vmatpush1.msra.mxu0 0.0
    %2185 = vmatprep.subr.mxu0 0.0
    %2186 = vmatpush1.msra.mxu0 0.0
    %2187 = vmatprep.subr.mxu0 %v2074
    %2188 = vmatpush1.msra.mxu0 %v2073
    %2189 = vmatprep.subr.mxu0 0.0
    %2190 = vmatpush2.msra.mxu0 0.0
    %2191 = vmatprep.subr.mxu0 0.0
    %2192 = vmatpush2.msra.mxu0 0.0
    %2193 = vmatprep.subr.mxu0 0.0
    %2194 = vmatpush2.msra.mxu0 0.0
    %2195 = vmatprep.subr.mxu0 0.0
    %2196 = vmatpush2.msra.mxu0 0.0
    %2197 = vmatprep.subr.mxu0 0.0
    %2198 = vmatpush2.msra.mxu0 0.0
    %2199 = vmatprep.subr.mxu0 0.0
    %2200 = vmatpush2.msra.mxu0 0.0
    %2201 = vmatprep.subr.mxu0 0.0
    %2202 = vmatpush2.msra.mxu0 0.0
    %2203 = vmatprep.subr.mxu0 0.0
    %2204 = vmatpush2.msra.mxu0 0.0
    %2205 = vmatprep.subr.mxu0 0.0
    %2206 = vmatpush2.msra.mxu0 0.0
    %2207 = vmatprep.subr.mxu0 0.0
    %2208 = vmatpush2.msra.mxu0 0.0
    %2209 = vmatprep.subr.mxu0 0.0
    %2210 = vmatpush2.msra.mxu0 0.0
    %2211 = vmatprep.subr.mxu0 0.0
    %2212 = vmatpush2.msra.mxu0 0.0
    %2213 = vmatprep.subr.mxu0 0.0
    %2214 = vmatpush2.msra.mxu0 0.0
    %2215 = vmatprep.subr.mxu0 0.0
    %2216 = vmatpush2.msra.mxu0 0.0
    %2217 = vmatprep.subr.mxu0 0.0
    %2218 = vmatpush2.msra.mxu0 0.0
    %2219 = vmatprep.subr.mxu0 0.0
    %2220 = vmatpush2.msra.mxu0 0.0
    %2221 = vmatprep.mubr.f32.mxu0 0.0
    %2222 = vmatmul.mubr.f32.gmra.mxu0 %v2084
    %v2223 = vpop.f32.mrf.mxu0
    %v2224 = vadd.f32 0.0, %v2223
    %v2225 = vpop.f32.mrf.mxu0
    %v2226 = vadd.f32 0.0, %v2225
    %2227 = vdwg.mxu0
    %2228 = vmatprep.subr.mxu0 0.0
    %2229 = vmatpush1.msra.mxu0 0.0
    %2230 = vmatprep.subr.mxu0 0.0
    %2231 = vmatpush1.msra.mxu0 0.0
    %2232 = vmatprep.subr.mxu0 0.0
    %2233 = vmatpush1.msra.mxu0 0.0
    %2234 = vmatprep.subr.mxu0 0.0
    %2235 = vmatpush1.msra.mxu0 0.0
    %2236 = vmatprep.subr.mxu0 0.0
    %2237 = vmatpush1.msra.mxu0 0.0
    %2238 = vmatprep.subr.mxu0 0.0
    %2239 = vmatpush1.msra.mxu0 0.0
    %2240 = vmatprep.subr.mxu0 0.0
    %2241 = vmatpush1.msra.mxu0 0.0
    %2242 = vmatprep.subr.mxu0 0.0
    %2243 = vmatpush1.msra.mxu0 0.0
    %2244 = vmatprep.subr.mxu0 0.0
    %2245 = vmatpush1.msra.mxu0 0.0
    %2246 = vmatprep.subr.mxu0 0.0
    %2247 = vmatpush1.msra.mxu0 0.0
    %2248 = vmatprep.subr.mxu0 0.0
    %2249 = vmatpush1.msra.mxu0 0.0
    %2250 = vmatprep.subr.mxu0 0.0
    %2251 = vmatpush1.msra.mxu0 0.0
    %2252 = vmatprep.subr.mxu0 0.0
    %2253 = vmatpush1.msra.mxu0 0.0
    %2254 = vmatprep.subr.mxu0 0.0
    %2255 = vmatpush1.msra.mxu0 0.0
    %2256 = vmatprep.subr.mxu0 0.0
    %2257 = vmatpush1.msra.mxu0 0.0
    %2258 = vmatprep.subr.mxu0 %v2076
    %2259 = vmatpush1.msra.mxu0 %v2075
    %2260 = vmatprep.subr.mxu0 0.0
    %2261 = vmatpush2.msra.mxu0 0.0
    %2262 = vmatprep.subr.mxu0 0.0
    %2263 = vmatpush2.msra.mxu0 0.0
    %2264 = vmatprep.subr.mxu0 0.0
    %2265 = vmatpush2.msra.mxu0 0.0
    %2266 = vmatprep.subr.mxu0 0.0
    %2267 = vmatpush2.msra.mxu0 0.0
    %2268 = vmatprep.subr.mxu0 0.0
    %2269 = vmatpush2.msra.mxu0 0.0
    %2270 = vmatprep.subr.mxu0 0.0
    %2271 = vmatpush2.msra.mxu0 0.0
    %2272 = vmatprep.subr.mxu0 0.0
    %2273 = vmatpush2.msra.mxu0 0.0
    %2274 = vmatprep.subr.mxu0 0.0
    %2275 = vmatpush2.msra.mxu0 0.0
    %2276 = vmatprep.subr.mxu0 0.0
    %2277 = vmatpush2.msra.mxu0 0.0
    %2278 = vmatprep.subr.mxu0 0.0
    %2279 = vmatpush2.msra.mxu0 0.0
    %2280 = vmatprep.subr.mxu0 0.0
    %2281 = vmatpush2.msra.mxu0 0.0
    %2282 = vmatprep.subr.mxu0 0.0
    %2283 = vmatpush2.msra.mxu0 0.0
    %2284 = vmatprep.subr.mxu0 0.0
    %2285 = vmatpush2.msra.mxu0 0.0
    %2286 = vmatprep.subr.mxu0 0.0
    %2287 = vmatpush2.msra.mxu0 0.0
    %2288 = vmatprep.subr.mxu0 0.0
    %2289 = vmatpush2.msra.mxu0 0.0
    %2290 = vmatprep.subr.mxu0 0.0
    %2291 = vmatpush2.msra.mxu0 0.0
    %2292 = vmatprep.mubr.f32.mxu0 0.0
    %2293 = vmatmul.mubr.f32.gmra.mxu0 %v2084
    %v2294 = vpop.f32.mrf.mxu0
    %v2295 = vadd.f32 0.0, %v2294
    %v2296 = vpop.f32.mrf.mxu0
    %v2297 = vadd.f32 0.0, %v2296
    %2298 = vdwg.mxu0
    %v2299 = vadd.f32 %v2048, %v2153
    %v2300 = vadd.f32 %v2049, %v2155
    %v2301 = vadd.f32 %v2050, %v2224
    %v2302 = vadd.f32 %v2051, %v2226
    %v2303 = vadd.f32 %v2052, %v2295
    %v2304 = vadd.f32 %v2053, %v2297
    %v2306 = vlaneseq
    %v2307 = vshrl.u32 %v2306, 7
    %v2308 = vsub.s32 0, %v2307
    %v2309 = vrot.slane %v42, %v2308
    %v2310 = vlaneseq
    %v2311 = vshrl.u32 %v2310, 7
    %v2312 = vsub.s32 1, %v2311
    %v2313 = vrot.slane %v42, %v2312
    %v2314 = vlaneseq
    %v2315 = vshrl.u32 %v2314, 7
    %v2316 = vsub.s32 2, %v2315
    %v2317 = vrot.slane %v42, %v2316
    %v2318 = vlaneseq
    %v2319 = vshrl.u32 %v2318, 7
    %v2320 = vsub.s32 3, %v2319
    %v2321 = vrot.slane %v42, %v2320
    %v2322 = vlaneseq
    %v2323 = vshrl.u32 %v2322, 7
    %v2324 = vsub.s32 4, %v2323
    %v2325 = vrot.slane %v42, %v2324
    %v2326 = vlaneseq
    %v2327 = vshrl.u32 %v2326, 7
    %v2328 = vsub.s32 5, %v2327
    %v2329 = vrot.slane %v42, %v2328
    %v2336 = vmul.f32 %v2299, %v2309
    %v2337 = vmul.f32 %v2300, %v2313
    %v2338 = vmul.f32 %v2301, %v2317
    %v2339 = vmul.f32 %v2302, %v2321
    %v2340 = vmul.f32 %v2303, %v2325
    %v2341 = vmul.f32 %v2304, %v2329
    %v2342 = vadd.f32 %v2336, %v2337
    %v2343 = vadd.f32 %v2342, %v2338
    %v2344 = vadd.f32 %v2343, %v2339
    %v2345 = vadd.f32 %v2344, %v2340
    %v2346 = vadd.f32 %v2345, %v2341
    %2347 = vadd.xlane.f32.xlu0 %v2346
    %v2348 = vpop.xlane.xlu0 %2347
    %v2349 = vmul.f32 %v2336, %v2336
    %v2350 = vmul.f32 %v2337, %v2337
    %v2351 = vmul.f32 %v2338, %v2338
    %v2352 = vmul.f32 %v2339, %v2339
    %v2353 = vmul.f32 %v2340, %v2340
    %v2354 = vmul.f32 %v2341, %v2341
    %v2355 = vadd.f32 %v2349, %v2350
    %v2356 = vadd.f32 %v2355, %v2351
    %v2357 = vadd.f32 %v2356, %v2352
    %v2358 = vadd.f32 %v2357, %v2353
    %v2359 = vadd.f32 %v2358, %v2354
    %2360 = vadd.xlane.f32.xlu0 %v2359
    %v2361 = vpop.xlane.xlu0 %2360
    %v2362 = vmul.f32 %v2348, 0.001953125
    %v2363 = vmul.f32 %v2361, 0.001953125
    %v2364 = vmul.f32 %v2362, %v2362
    %v2365 = vsub.f32 %v2363, %v2364
    %v2366 = vld [vmem:[%s3] sm:$0xff]
    %v2367 = vadd.f32 %v2365, 1e-05
    %v2368 = vrsqrt.pop %v2367
    %v2369 = vmul.f32 %v2366, %v2368
    %v2370 = vld [vmem:[%s4] sm:$0xff]
    %v2371 = vmul.f32 %v2362, %v2369
    %v2372 = vsub.f32 %v2370, %v2371
    %2374 = vset.pattern.permute.xlu0 0
    %2375 = vperm.xlu0 %2374, %v2369
    %v2376 = vpop.permute.xlu0 %2375
    %v2378 = vmul.f32 %v2299, %v2376
    %v2379 = vmul.f32 %v2300, %v2376
    %v2380 = vmul.f32 %v2301, %v2376
    %v2381 = vmul.f32 %v2302, %v2376
    %v2382 = vmul.f32 %v2303, %v2376
    %v2383 = vmul.f32 %v2304, %v2376
    %2385 = vset.pattern.permute.xlu0 0
    %2386 = vperm.xlu0 %2385, %v2372
    %v2387 = vpop.permute.xlu0 %2386
    %v2389 = vadd.f32 %v2378, %v2387
    %v2390 = vadd.f32 %v2379, %v2387
    %v2391 = vadd.f32 %v2380, %v2387
    %v2392 = vadd.f32 %v2381, %v2387
    %v2393 = vadd.f32 %v2382, %v2387
    %v2394 = vadd.f32 %v2383, %v2387
    %2395 = vst [vmem:[#allocation3] sm:$0xff] %v2389
    %2396 = vst [vmem:[#allocation3 + $0x8] sm:$0xff] %v2390
    %2397 = vst [vmem:[#allocation3 + $0x10] sm:$0xff] %v2391
    %2398 = vst [vmem:[#allocation3 + $0x18] sm:$0xff] %v2392
    %2399 = vst [vmem:[#allocation3 + $0x20] sm:$0xff] %v2393
    %2400 = vst [vmem:[#allocation3 + $0x28] sm:$0xff] %v2394
    %v2401 = vld [vmem:[#allocation3] ss:$8 sm:$0xf]
    %v2402 = vld [vmem:[#allocation3] ss:$8 sm:$0x30]
    %v2403 = vor.u32 %v2401, %v2402
    %v2404 = vmul.f32 %v2403, 0.5
    %v2405 = vadd.f32 %v2404, 0.0
    %vm2406 = vcmp.ge.f32.partialorder %v2405, 1.0
    %v2407 = vsel %vm2406, 1, 0
    %v2408 = vcvt.s32.f32 %v2407
    %v2409 = vsub.f32 1.0, %v2408
    %v2410 = vmul.f32 %v2405, %v2409
    %v2411 = vmul.f32 %v2408, %v42
    %v2412 = vld [vmem:[%s0] ss:$8 sm:$0xf]
    %v2413 = vld [vmem:[%s0] ss:$8 sm:$0x30]
    %v2414 = vor.u32 %v2412, %v2413
    %v2415 = vadd.f32 %v2411, %v2414
    %v2416 = vlaneseq
    %vm2417 = vcmp.ge.s32.totalorder %v2416, 0
    %vm2418 = vcmp.lt.s32.totalorder %v2416, 768
    %vm2419 = vmand %vm2417, %vm2418
    %s2420 = scalar_lea.vmem [#allocation2], 8
    %2421 = vst.msk [vmem:[%s2420] ss:$8 sm:$0xf] %vm2419, %v2415
    %2422 = vst.msk [vmem:[%s2420] ss:$8 sm:$0x30] %vm2419, %v2415
    %s2423 = scalar_lea.vmem [#allocation3], 1
    %v2424 = vld [vmem:[%s2423] ss:$8 sm:$0xf]
    %v2425 = vld [vmem:[%s2423] ss:$8 sm:$0x30]
    %v2426 = vor.u32 %v2424, %v2425
    %v2427 = vsub.f32 %v2426, %v2410
    %v2428 = vmul.f32 %v2427, 0.5
    %v2429 = vadd.f32 %v2410, %v2428
    %vm2430 = vcmp.ge.f32.partialorder %v2429, 1.0
    %v2431 = vsel %vm2430, 1, 0
    %v2432 = vcvt.s32.f32 %v2431
    %v2433 = vsub.f32 1.0, %v2432
    %v2434 = vmul.f32 %v2429, %v2433
    %v2435 = vmul.f32 %v2432, %v42
    %s2436 = scalar_lea.vmem %s0, 1
    %v2437 = vld [vmem:[%s2436] ss:$8 sm:$0xf]
    %v2438 = vld [vmem:[%s2436] ss:$8 sm:$0x30]
    %v2439 = vor.u32 %v2437, %v2438
    %v2440 = vadd.f32 %v2435, %v2439
    %s2441 = scalar_lea.vmem [#allocation2], 9
    %2442 = vst.msk [vmem:[%s2441] ss:$8 sm:$0xf] %vm2419, %v2440
    %2443 = vst.msk [vmem:[%s2441] ss:$8 sm:$0x30] %vm2419, %v2440
    %s2444 = scalar_lea.vmem [#allocation3], 2
    %v2445 = vld [vmem:[%s2444] ss:$8 sm:$0xf]
    %v2446 = vld [vmem:[%s2444] ss:$8 sm:$0x30]
    %v2447 = vor.u32 %v2445, %v2446
    %v2448 = vsub.f32 %v2447, %v2434
    %v2449 = vmul.f32 %v2448, 0.5
    %v2450 = vadd.f32 %v2434, %v2449
    %vm2451 = vcmp.ge.f32.partialorder %v2450, 1.0
    %v2452 = vsel %vm2451, 1, 0
    %v2453 = vcvt.s32.f32 %v2452
    %v2454 = vsub.f32 1.0, %v2453
    %v2455 = vmul.f32 %v2450, %v2454
    %v2456 = vmul.f32 %v2453, %v42
    %s2457 = scalar_lea.vmem %s0, 2
    %v2458 = vld [vmem:[%s2457] ss:$8 sm:$0xf]
    %v2459 = vld [vmem:[%s2457] ss:$8 sm:$0x30]
    %v2460 = vor.u32 %v2458, %v2459
    %v2461 = vadd.f32 %v2456, %v2460
    %s2462 = scalar_lea.vmem [#allocation2], 10
    %2463 = vst.msk [vmem:[%s2462] ss:$8 sm:$0xf] %vm2419, %v2461
    %2464 = vst.msk [vmem:[%s2462] ss:$8 sm:$0x30] %vm2419, %v2461
    %s2465 = scalar_lea.vmem [#allocation3], 3
    %v2466 = vld [vmem:[%s2465] ss:$8 sm:$0xf]
    %v2467 = vld [vmem:[%s2465] ss:$8 sm:$0x30]
    %v2468 = vor.u32 %v2466, %v2467
    %v2469 = vsub.f32 %v2468, %v2455
    %v2470 = vmul.f32 %v2469, 0.5
    %v2471 = vadd.f32 %v2455, %v2470
    %vm2472 = vcmp.ge.f32.partialorder %v2471, 1.0
    %v2473 = vsel %vm2472, 1, 0
    %v2474 = vcvt.s32.f32 %v2473
    %v2475 = vsub.f32 1.0, %v2474
    %v2476 = vmul.f32 %v2471, %v2475
    %v2477 = vmul.f32 %v2474, %v42
    %s2478 = scalar_lea.vmem %s0, 3
    %v2479 = vld [vmem:[%s2478] ss:$8 sm:$0xf]
    %v2480 = vld [vmem:[%s2478] ss:$8 sm:$0x30]
    %v2481 = vor.u32 %v2479, %v2480
    %v2482 = vadd.f32 %v2477, %v2481
    %s2483 = scalar_lea.vmem [#allocation2], 11
    %2484 = vst.msk [vmem:[%s2483] ss:$8 sm:$0xf] %vm2419, %v2482
    %2485 = vst.msk [vmem:[%s2483] ss:$8 sm:$0x30] %vm2419, %v2482
    %s2486 = scalar_lea.vmem [#allocation3], 4
    %v2487 = vld [vmem:[%s2486] ss:$8 sm:$0xf]
    %v2488 = vld [vmem:[%s2486] ss:$8 sm:$0x30]
    %v2489 = vor.u32 %v2487, %v2488
    %v2490 = vsub.f32 %v2489, %v2476
    %v2491 = vmul.f32 %v2490, 0.5
    %v2492 = vadd.f32 %v2476, %v2491
    %vm2493 = vcmp.ge.f32.partialorder %v2492, 1.0
    %v2494 = vsel %vm2493, 1, 0
    %v2495 = vcvt.s32.f32 %v2494
    %v2496 = vsub.f32 1.0, %v2495
    %v2497 = vmul.f32 %v2492, %v2496
    %v2498 = vmul.f32 %v2495, %v42
    %s2499 = scalar_lea.vmem %s0, 4
    %v2500 = vld [vmem:[%s2499] ss:$8 sm:$0xf]
    %v2501 = vld [vmem:[%s2499] ss:$8 sm:$0x30]
    %v2502 = vor.u32 %v2500, %v2501
    %v2503 = vadd.f32 %v2498, %v2502
    %s2504 = scalar_lea.vmem [#allocation2], 12
    %2505 = vst.msk [vmem:[%s2504] ss:$8 sm:$0xf] %vm2419, %v2503
    %2506 = vst.msk [vmem:[%s2504] ss:$8 sm:$0x30] %vm2419, %v2503
    %s2507 = scalar_lea.vmem [#allocation3], 5
    %v2508 = vld [vmem:[%s2507] ss:$8 sm:$0xf]
    %v2509 = vld [vmem:[%s2507] ss:$8 sm:$0x30]
    %v2510 = vor.u32 %v2508, %v2509
    %v2511 = vsub.f32 %v2510, %v2497
    %v2512 = vmul.f32 %v2511, 0.5
    %v2513 = vadd.f32 %v2497, %v2512
    %vm2514 = vcmp.ge.f32.partialorder %v2513, 1.0
    %v2515 = vsel %vm2514, 1, 0
    %v2516 = vcvt.s32.f32 %v2515
    %v2517 = vsub.f32 1.0, %v2516
    %v2518 = vmul.f32 %v2513, %v2517
    %v2519 = vmul.f32 %v2516, %v42
    %s2520 = scalar_lea.vmem %s0, 5
    %v2521 = vld [vmem:[%s2520] ss:$8 sm:$0xf]
    %v2522 = vld [vmem:[%s2520] ss:$8 sm:$0x30]
    %v2523 = vor.u32 %v2521, %v2522
    %v2524 = vadd.f32 %v2519, %v2523
    %s2525 = scalar_lea.vmem [#allocation2], 13
    %2526 = vst.msk [vmem:[%s2525] ss:$8 sm:$0xf] %vm2419, %v2524
    %2527 = vst.msk [vmem:[%s2525] ss:$8 sm:$0x30] %vm2419, %v2524
    %s2528 = scalar_lea.vmem [#allocation3], 6
    %v2529 = vld [vmem:[%s2528] ss:$8 sm:$0xf]
    %v2530 = vld [vmem:[%s2528] ss:$8 sm:$0x30]
    %v2531 = vor.u32 %v2529, %v2530
    %v2532 = vsub.f32 %v2531, %v2518
    %v2533 = vmul.f32 %v2532, 0.5
    %v2534 = vadd.f32 %v2518, %v2533
    %vm2535 = vcmp.ge.f32.partialorder %v2534, 1.0
    %v2536 = vsel %vm2535, 1, 0
    %v2537 = vcvt.s32.f32 %v2536
    %v2538 = vsub.f32 1.0, %v2537
    %v2539 = vmul.f32 %v2534, %v2538
    %v2540 = vmul.f32 %v2537, %v42
    %s2541 = scalar_lea.vmem %s0, 6
    %v2542 = vld [vmem:[%s2541] ss:$8 sm:$0xf]
    %v2543 = vld [vmem:[%s2541] ss:$8 sm:$0x30]
    %v2544 = vor.u32 %v2542, %v2543
    %v2545 = vadd.f32 %v2540, %v2544
    %s2546 = scalar_lea.vmem [#allocation2], 14
    %2547 = vst.msk [vmem:[%s2546] ss:$8 sm:$0xf] %vm2419, %v2545
    %2548 = vst.msk [vmem:[%s2546] ss:$8 sm:$0x30] %vm2419, %v2545
    %s2549 = scalar_lea.vmem [#allocation3], 7
    %v2550 = vld [vmem:[%s2549] ss:$8 sm:$0xf]
    %v2551 = vld [vmem:[%s2549] ss:$8 sm:$0x30]
    %v2552 = vor.u32 %v2550, %v2551
    %v2553 = vsub.f32 %v2552, %v2539
    %v2554 = vmul.f32 %v2553, 0.5
    %v2555 = vadd.f32 %v2539, %v2554
    %vm2556 = vcmp.ge.f32.partialorder %v2555, 1.0
    %v2557 = vsel %vm2556, 1, 0
    %v2558 = vcvt.s32.f32 %v2557
    %v2559 = vmul.f32 %v2558, %v42
    %s2560 = scalar_lea.vmem %s0, 7
    %v2561 = vld [vmem:[%s2560] ss:$8 sm:$0xf]
    %v2562 = vld [vmem:[%s2560] ss:$8 sm:$0x30]
    %v2563 = vor.u32 %v2561, %v2562
    %v2564 = vadd.f32 %v2559, %v2563
    %s2565 = scalar_lea.vmem [#allocation2], 15
    %2566 = vst.msk [vmem:[%s2565] ss:$8 sm:$0xf] %vm2419, %v2564
    %2567 = vst.msk [vmem:[%s2565] ss:$8 sm:$0x30] %vm2419, %v2564
    %v2568 = vld [vmem:[#allocation2] sm:$0xff]
    %v2569 = vld [vmem:[#allocation2 + $0x8] sm:$0xff]
    %v2570 = vld [vmem:[#allocation2 + $0x10] sm:$0xff]
    %v2571 = vld [vmem:[#allocation2 + $0x18] sm:$0xff]
    %v2572 = vld [vmem:[#allocation2 + $0x20] sm:$0xff]
    %v2573 = vld [vmem:[#allocation2 + $0x28] sm:$0xff]
    %v2574 = vld [vmem:[#allocation2 + $0x30] sm:$0xff]
    %v2575 = vld [vmem:[%s5] sm:$0xff]
    %s2576 = scalar_lea.vmem %s5, 8
    %v2577 = vld [vmem:[%s2576] sm:$0xff]
    %2585 = vrot.lane.b32.xlu0 %v2568, 18
    %v2586 = vpop.permute.xlu0 %2585
    %2587 = vrot.lane.b32.xlu0 %v2569, 18
    %v2588 = vpop.permute.xlu0 %2587
    %2589 = vrot.lane.b32.xlu0 %v2570, 18
    %v2590 = vpop.permute.xlu0 %2589
    %2591 = vrot.lane.b32.xlu0 %v2571, 18
    %v2592 = vpop.permute.xlu0 %2591
    %2593 = vrot.lane.b32.xlu0 %v2572, 18
    %v2594 = vpop.permute.xlu0 %2593
    %2595 = vrot.lane.b32.xlu0 %v2573, 18
    %v2596 = vpop.permute.xlu0 %2595
    %2597 = vrot.lane.b32.xlu0 %v2574, 18
    %v2598 = vpop.permute.xlu0 %2597
    %v2599 = vsel %vm88, %v2586, %v2588
    %v2600 = vsel %vm88, %v2588, %v2590
    %v2601 = vsel %vm88, %v2590, %v2592
    %v2602 = vsel %vm88, %v2592, %v2594
    %v2603 = vsel %vm88, %v2594, %v2596
    %v2604 = vsel %vm88, %v2596, %v2598
    %v2612 = vsel %vm101, %v2577, 0
    %2614 = vmatprep.subr.mxu0 0.0
    %2615 = vmatpush1.msra.mxu0 0.0
    %2616 = vmatprep.subr.mxu0 0.0
    %2617 = vmatpush1.msra.mxu0 0.0
    %2618 = vmatprep.subr.mxu0 0.0
    %2619 = vmatpush1.msra.mxu0 0.0
    %2620 = vmatprep.subr.mxu0 0.0
    %2621 = vmatpush1.msra.mxu0 0.0
    %2622 = vmatprep.subr.mxu0 0.0
    %2623 = vmatpush1.msra.mxu0 0.0
    %2624 = vmatprep.subr.mxu0 0.0
    %2625 = vmatpush1.msra.mxu0 0.0
    %2626 = vmatprep.subr.mxu0 0.0
    %2627 = vmatpush1.msra.mxu0 0.0
    %2628 = vmatprep.subr.mxu0 0.0
    %2629 = vmatpush1.msra.mxu0 0.0
    %2630 = vmatprep.subr.mxu0 0.0
    %2631 = vmatpush1.msra.mxu0 0.0
    %2632 = vmatprep.subr.mxu0 0.0
    %2633 = vmatpush1.msra.mxu0 0.0
    %2634 = vmatprep.subr.mxu0 0.0
    %2635 = vmatpush1.msra.mxu0 0.0
    %2636 = vmatprep.subr.mxu0 0.0
    %2637 = vmatpush1.msra.mxu0 0.0
    %2638 = vmatprep.subr.mxu0 0.0
    %2639 = vmatpush1.msra.mxu0 0.0
    %2640 = vmatprep.subr.mxu0 0.0
    %2641 = vmatpush1.msra.mxu0 0.0
    %2642 = vmatprep.subr.mxu0 0.0
    %2643 = vmatpush1.msra.mxu0 0.0
    %2644 = vmatprep.subr.mxu0 %v2600
    %2645 = vmatpush1.msra.mxu0 %v2599
    %2646 = vmatprep.subr.mxu0 0.0
    %2647 = vmatpush2.msra.mxu0 0.0
    %2648 = vmatprep.subr.mxu0 0.0
    %2649 = vmatpush2.msra.mxu0 0.0
    %2650 = vmatprep.subr.mxu0 0.0
    %2651 = vmatpush2.msra.mxu0 0.0
    %2652 = vmatprep.subr.mxu0 0.0
    %2653 = vmatpush2.msra.mxu0 0.0
    %2654 = vmatprep.subr.mxu0 0.0
    %2655 = vmatpush2.msra.mxu0 0.0
    %2656 = vmatprep.subr.mxu0 0.0
    %2657 = vmatpush2.msra.mxu0 0.0
    %2658 = vmatprep.subr.mxu0 0.0
    %2659 = vmatpush2.msra.mxu0 0.0
    %2660 = vmatprep.subr.mxu0 0.0
    %2661 = vmatpush2.msra.mxu0 0.0
    %2662 = vmatprep.subr.mxu0 0.0
    %2663 = vmatpush2.msra.mxu0 0.0
    %2664 = vmatprep.subr.mxu0 0.0
    %2665 = vmatpush2.msra.mxu0 0.0
    %2666 = vmatprep.subr.mxu0 0.0
    %2667 = vmatpush2.msra.mxu0 0.0
    %2668 = vmatprep.subr.mxu0 0.0
    %2669 = vmatpush2.msra.mxu0 0.0
    %2670 = vmatprep.subr.mxu0 0.0
    %2671 = vmatpush2.msra.mxu0 0.0
    %2672 = vmatprep.subr.mxu0 0.0
    %2673 = vmatpush2.msra.mxu0 0.0
    %2674 = vmatprep.subr.mxu0 0.0
    %2675 = vmatpush2.msra.mxu0 0.0
    %2676 = vmatprep.subr.mxu0 0.0
    %2677 = vmatpush2.msra.mxu0 0.0
    %2678 = vmatprep.mubr.f32.mxu0 0.0
    %2679 = vmatmul.mubr.f32.gmra.mxu0 %v2612
    %v2680 = vpop.f32.mrf.mxu0
    %v2681 = vadd.f32 0.0, %v2680
    %v2682 = vpop.f32.mrf.mxu0
    %v2683 = vadd.f32 0.0, %v2682
    %2684 = vdwg.mxu0
    %2685 = vmatprep.subr.mxu0 0.0
    %2686 = vmatpush1.msra.mxu0 0.0
    %2687 = vmatprep.subr.mxu0 0.0
    %2688 = vmatpush1.msra.mxu0 0.0
    %2689 = vmatprep.subr.mxu0 0.0
    %2690 = vmatpush1.msra.mxu0 0.0
    %2691 = vmatprep.subr.mxu0 0.0
    %2692 = vmatpush1.msra.mxu0 0.0
    %2693 = vmatprep.subr.mxu0 0.0
    %2694 = vmatpush1.msra.mxu0 0.0
    %2695 = vmatprep.subr.mxu0 0.0
    %2696 = vmatpush1.msra.mxu0 0.0
    %2697 = vmatprep.subr.mxu0 0.0
    %2698 = vmatpush1.msra.mxu0 0.0
    %2699 = vmatprep.subr.mxu0 0.0
    %2700 = vmatpush1.msra.mxu0 0.0
    %2701 = vmatprep.subr.mxu0 0.0
    %2702 = vmatpush1.msra.mxu0 0.0
    %2703 = vmatprep.subr.mxu0 0.0
    %2704 = vmatpush1.msra.mxu0 0.0
    %2705 = vmatprep.subr.mxu0 0.0
    %2706 = vmatpush1.msra.mxu0 0.0
    %2707 = vmatprep.subr.mxu0 0.0
    %2708 = vmatpush1.msra.mxu0 0.0
    %2709 = vmatprep.subr.mxu0 0.0
    %2710 = vmatpush1.msra.mxu0 0.0
    %2711 = vmatprep.subr.mxu0 0.0
    %2712 = vmatpush1.msra.mxu0 0.0
    %2713 = vmatprep.subr.mxu0 0.0
    %2714 = vmatpush1.msra.mxu0 0.0
    %2715 = vmatprep.subr.mxu0 %v2602
    %2716 = vmatpush1.msra.mxu0 %v2601
    %2717 = vmatprep.subr.mxu0 0.0
    %2718 = vmatpush2.msra.mxu0 0.0
    %2719 = vmatprep.subr.mxu0 0.0
    %2720 = vmatpush2.msra.mxu0 0.0
    %2721 = vmatprep.subr.mxu0 0.0
    %2722 = vmatpush2.msra.mxu0 0.0
    %2723 = vmatprep.subr.mxu0 0.0
    %2724 = vmatpush2.msra.mxu0 0.0
    %2725 = vmatprep.subr.mxu0 0.0
    %2726 = vmatpush2.msra.mxu0 0.0
    %2727 = vmatprep.subr.mxu0 0.0
    %2728 = vmatpush2.msra.mxu0 0.0
    %2729 = vmatprep.subr.mxu0 0.0
    %2730 = vmatpush2.msra.mxu0 0.0
    %2731 = vmatprep.subr.mxu0 0.0
    %2732 = vmatpush2.msra.mxu0 0.0
    %2733 = vmatprep.subr.mxu0 0.0
    %2734 = vmatpush2.msra.mxu0 0.0
    %2735 = vmatprep.subr.mxu0 0.0
    %2736 = vmatpush2.msra.mxu0 0.0
    %2737 = vmatprep.subr.mxu0 0.0
    %2738 = vmatpush2.msra.mxu0 0.0
    %2739 = vmatprep.subr.mxu0 0.0
    %2740 = vmatpush2.msra.mxu0 0.0
    %2741 = vmatprep.subr.mxu0 0.0
    %2742 = vmatpush2.msra.mxu0 0.0
    %2743 = vmatprep.subr.mxu0 0.0
    %2744 = vmatpush2.msra.mxu0 0.0
    %2745 = vmatprep.subr.mxu0 0.0
    %2746 = vmatpush2.msra.mxu0 0.0
    %2747 = vmatprep.subr.mxu0 0.0
    %2748 = vmatpush2.msra.mxu0 0.0
    %2749 = vmatprep.mubr.f32.mxu0 0.0
    %2750 = vmatmul.mubr.f32.gmra.mxu0 %v2612
    %v2751 = vpop.f32.mrf.mxu0
    %v2752 = vadd.f32 0.0, %v2751
    %v2753 = vpop.f32.mrf.mxu0
    %v2754 = vadd.f32 0.0, %v2753
    %2755 = vdwg.mxu0
    %2756 = vmatprep.subr.mxu0 0.0
    %2757 = vmatpush1.msra.mxu0 0.0
    %2758 = vmatprep.subr.mxu0 0.0
    %2759 = vmatpush1.msra.mxu0 0.0
    %2760 = vmatprep.subr.mxu0 0.0
    %2761 = vmatpush1.msra.mxu0 0.0
    %2762 = vmatprep.subr.mxu0 0.0
    %2763 = vmatpush1.msra.mxu0 0.0
    %2764 = vmatprep.subr.mxu0 0.0
    %2765 = vmatpush1.msra.mxu0 0.0
    %2766 = vmatprep.subr.mxu0 0.0
    %2767 = vmatpush1.msra.mxu0 0.0
    %2768 = vmatprep.subr.mxu0 0.0
    %2769 = vmatpush1.msra.mxu0 0.0
    %2770 = vmatprep.subr.mxu0 0.0
    %2771 = vmatpush1.msra.mxu0 0.0
    %2772 = vmatprep.subr.mxu0 0.0
    %2773 = vmatpush1.msra.mxu0 0.0
    %2774 = vmatprep.subr.mxu0 0.0
    %2775 = vmatpush1.msra.mxu0 0.0
    %2776 = vmatprep.subr.mxu0 0.0
    %2777 = vmatpush1.msra.mxu0 0.0
    %2778 = vmatprep.subr.mxu0 0.0
    %2779 = vmatpush1.msra.mxu0 0.0
    %2780 = vmatprep.subr.mxu0 0.0
    %2781 = vmatpush1.msra.mxu0 0.0
    %2782 = vmatprep.subr.mxu0 0.0
    %2783 = vmatpush1.msra.mxu0 0.0
    %2784 = vmatprep.subr.mxu0 0.0
    %2785 = vmatpush1.msra.mxu0 0.0
    %2786 = vmatprep.subr.mxu0 %v2604
    %2787 = vmatpush1.msra.mxu0 %v2603
    %2788 = vmatprep.subr.mxu0 0.0
    %2789 = vmatpush2.msra.mxu0 0.0
    %2790 = vmatprep.subr.mxu0 0.0
    %2791 = vmatpush2.msra.mxu0 0.0
    %2792 = vmatprep.subr.mxu0 0.0
    %2793 = vmatpush2.msra.mxu0 0.0
    %2794 = vmatprep.subr.mxu0 0.0
    %2795 = vmatpush2.msra.mxu0 0.0
    %2796 = vmatprep.subr.mxu0 0.0
    %2797 = vmatpush2.msra.mxu0 0.0
    %2798 = vmatprep.subr.mxu0 0.0
    %2799 = vmatpush2.msra.mxu0 0.0
    %2800 = vmatprep.subr.mxu0 0.0
    %2801 = vmatpush2.msra.mxu0 0.0
    %2802 = vmatprep.subr.mxu0 0.0
    %2803 = vmatpush2.msra.mxu0 0.0
    %2804 = vmatprep.subr.mxu0 0.0
    %2805 = vmatpush2.msra.mxu0 0.0
    %2806 = vmatprep.subr.mxu0 0.0
    %2807 = vmatpush2.msra.mxu0 0.0
    %2808 = vmatprep.subr.mxu0 0.0
    %2809 = vmatpush2.msra.mxu0 0.0
    %2810 = vmatprep.subr.mxu0 0.0
    %2811 = vmatpush2.msra.mxu0 0.0
    %2812 = vmatprep.subr.mxu0 0.0
    %2813 = vmatpush2.msra.mxu0 0.0
    %2814 = vmatprep.subr.mxu0 0.0
    %2815 = vmatpush2.msra.mxu0 0.0
    %2816 = vmatprep.subr.mxu0 0.0
    %2817 = vmatpush2.msra.mxu0 0.0
    %2818 = vmatprep.subr.mxu0 0.0
    %2819 = vmatpush2.msra.mxu0 0.0
    %2820 = vmatprep.mubr.f32.mxu0 0.0
    %2821 = vmatmul.mubr.f32.gmra.mxu0 %v2612
    %v2822 = vpop.f32.mrf.mxu0
    %v2823 = vadd.f32 0.0, %v2822
    %v2824 = vpop.f32.mrf.mxu0
    %v2825 = vadd.f32 0.0, %v2824
    %2826 = vdwg.mxu0
    %2827 = vrot.lane.b32.xlu0 %v2568, 19
    %v2828 = vpop.permute.xlu0 %2827
    %2829 = vrot.lane.b32.xlu0 %v2569, 19
    %v2830 = vpop.permute.xlu0 %2829
    %2831 = vrot.lane.b32.xlu0 %v2570, 19
    %v2832 = vpop.permute.xlu0 %2831
    %2833 = vrot.lane.b32.xlu0 %v2571, 19
    %v2834 = vpop.permute.xlu0 %2833
    %2835 = vrot.lane.b32.xlu0 %v2572, 19
    %v2836 = vpop.permute.xlu0 %2835
    %2837 = vrot.lane.b32.xlu0 %v2573, 19
    %v2838 = vpop.permute.xlu0 %2837
    %2839 = vrot.lane.b32.xlu0 %v2574, 19
    %v2840 = vpop.permute.xlu0 %2839
    %v2841 = vsel %vm332, %v2828, %v2830
    %v2842 = vsel %vm332, %v2830, %v2832
    %v2843 = vsel %vm332, %v2832, %v2834
    %v2844 = vsel %vm332, %v2834, %v2836
    %v2845 = vsel %vm332, %v2836, %v2838
    %v2846 = vsel %vm332, %v2838, %v2840
    %v2854 = vsel %vm101, %v2575, 0
    %2856 = vmatprep.subr.mxu0 0.0
    %2857 = vmatpush1.msra.mxu0 0.0
    %2858 = vmatprep.subr.mxu0 0.0
    %2859 = vmatpush1.msra.mxu0 0.0
    %2860 = vmatprep.subr.mxu0 0.0
    %2861 = vmatpush1.msra.mxu0 0.0
    %2862 = vmatprep.subr.mxu0 0.0
    %2863 = vmatpush1.msra.mxu0 0.0
    %2864 = vmatprep.subr.mxu0 0.0
    %2865 = vmatpush1.msra.mxu0 0.0
    %2866 = vmatprep.subr.mxu0 0.0
    %2867 = vmatpush1.msra.mxu0 0.0
    %2868 = vmatprep.subr.mxu0 0.0
    %2869 = vmatpush1.msra.mxu0 0.0
    %2870 = vmatprep.subr.mxu0 0.0
    %2871 = vmatpush1.msra.mxu0 0.0
    %2872 = vmatprep.subr.mxu0 0.0
    %2873 = vmatpush1.msra.mxu0 0.0
    %2874 = vmatprep.subr.mxu0 0.0
    %2875 = vmatpush1.msra.mxu0 0.0
    %2876 = vmatprep.subr.mxu0 0.0
    %2877 = vmatpush1.msra.mxu0 0.0
    %2878 = vmatprep.subr.mxu0 0.0
    %2879 = vmatpush1.msra.mxu0 0.0
    %2880 = vmatprep.subr.mxu0 0.0
    %2881 = vmatpush1.msra.mxu0 0.0
    %2882 = vmatprep.subr.mxu0 0.0
    %2883 = vmatpush1.msra.mxu0 0.0
    %2884 = vmatprep.subr.mxu0 0.0
    %2885 = vmatpush1.msra.mxu0 0.0
    %2886 = vmatprep.subr.mxu0 %v2842
    %2887 = vmatpush1.msra.mxu0 %v2841
    %2888 = vmatprep.subr.mxu0 0.0
    %2889 = vmatpush2.msra.mxu0 0.0
    %2890 = vmatprep.subr.mxu0 0.0
    %2891 = vmatpush2.msra.mxu0 0.0
    %2892 = vmatprep.subr.mxu0 0.0
    %2893 = vmatpush2.msra.mxu0 0.0
    %2894 = vmatprep.subr.mxu0 0.0
    %2895 = vmatpush2.msra.mxu0 0.0
    %2896 = vmatprep.subr.mxu0 0.0
    %2897 = vmatpush2.msra.mxu0 0.0
    %2898 = vmatprep.subr.mxu0 0.0
    %2899 = vmatpush2.msra.mxu0 0.0
    %2900 = vmatprep.subr.mxu0 0.0
    %2901 = vmatpush2.msra.mxu0 0.0
    %2902 = vmatprep.subr.mxu0 0.0
    %2903 = vmatpush2.msra.mxu0 0.0
    %2904 = vmatprep.subr.mxu0 0.0
    %2905 = vmatpush2.msra.mxu0 0.0
    %2906 = vmatprep.subr.mxu0 0.0
    %2907 = vmatpush2.msra.mxu0 0.0
    %2908 = vmatprep.subr.mxu0 0.0
    %2909 = vmatpush2.msra.mxu0 0.0
    %2910 = vmatprep.subr.mxu0 0.0
    %2911 = vmatpush2.msra.mxu0 0.0
    %2912 = vmatprep.subr.mxu0 0.0
    %2913 = vmatpush2.msra.mxu0 0.0
    %2914 = vmatprep.subr.mxu0 0.0
    %2915 = vmatpush2.msra.mxu0 0.0
    %2916 = vmatprep.subr.mxu0 0.0
    %2917 = vmatpush2.msra.mxu0 0.0
    %2918 = vmatprep.subr.mxu0 0.0
    %2919 = vmatpush2.msra.mxu0 0.0
    %2920 = vmatprep.mubr.f32.mxu0 0.0
    %2921 = vmatmul.mubr.f32.gmra.mxu0 %v2854
    %v2922 = vpop.f32.mrf.mxu0
    %v2923 = vadd.f32 %v2681, %v2922
    %v2924 = vpop.f32.mrf.mxu0
    %v2925 = vadd.f32 %v2683, %v2924
    %2926 = vdwg.mxu0
    %2927 = vmatprep.subr.mxu0 0.0
    %2928 = vmatpush1.msra.mxu0 0.0
    %2929 = vmatprep.subr.mxu0 0.0
    %2930 = vmatpush1.msra.mxu0 0.0
    %2931 = vmatprep.subr.mxu0 0.0
    %2932 = vmatpush1.msra.mxu0 0.0
    %2933 = vmatprep.subr.mxu0 0.0
    %2934 = vmatpush1.msra.mxu0 0.0
    %2935 = vmatprep.subr.mxu0 0.0
    %2936 = vmatpush1.msra.mxu0 0.0
    %2937 = vmatprep.subr.mxu0 0.0
    %2938 = vmatpush1.msra.mxu0 0.0
    %2939 = vmatprep.subr.mxu0 0.0
    %2940 = vmatpush1.msra.mxu0 0.0
    %2941 = vmatprep.subr.mxu0 0.0
    %2942 = vmatpush1.msra.mxu0 0.0
    %2943 = vmatprep.subr.mxu0 0.0
    %2944 = vmatpush1.msra.mxu0 0.0
    %2945 = vmatprep.subr.mxu0 0.0
    %2946 = vmatpush1.msra.mxu0 0.0
    %2947 = vmatprep.subr.mxu0 0.0
    %2948 = vmatpush1.msra.mxu0 0.0
    %2949 = vmatprep.subr.mxu0 0.0
    %2950 = vmatpush1.msra.mxu0 0.0
    %2951 = vmatprep.subr.mxu0 0.0
    %2952 = vmatpush1.msra.mxu0 0.0
    %2953 = vmatprep.subr.mxu0 0.0
    %2954 = vmatpush1.msra.mxu0 0.0
    %2955 = vmatprep.subr.mxu0 0.0
    %2956 = vmatpush1.msra.mxu0 0.0
    %2957 = vmatprep.subr.mxu0 %v2844
    %2958 = vmatpush1.msra.mxu0 %v2843
    %2959 = vmatprep.subr.mxu0 0.0
    %2960 = vmatpush2.msra.mxu0 0.0
    %2961 = vmatprep.subr.mxu0 0.0
    %2962 = vmatpush2.msra.mxu0 0.0
    %2963 = vmatprep.subr.mxu0 0.0
    %2964 = vmatpush2.msra.mxu0 0.0
    %2965 = vmatprep.subr.mxu0 0.0
    %2966 = vmatpush2.msra.mxu0 0.0
    %2967 = vmatprep.subr.mxu0 0.0
    %2968 = vmatpush2.msra.mxu0 0.0
    %2969 = vmatprep.subr.mxu0 0.0
    %2970 = vmatpush2.msra.mxu0 0.0
    %2971 = vmatprep.subr.mxu0 0.0
    %2972 = vmatpush2.msra.mxu0 0.0
    %2973 = vmatprep.subr.mxu0 0.0
    %2974 = vmatpush2.msra.mxu0 0.0
    %2975 = vmatprep.subr.mxu0 0.0
    %2976 = vmatpush2.msra.mxu0 0.0
    %2977 = vmatprep.subr.mxu0 0.0
    %2978 = vmatpush2.msra.mxu0 0.0
    %2979 = vmatprep.subr.mxu0 0.0
    %2980 = vmatpush2.msra.mxu0 0.0
    %2981 = vmatprep.subr.mxu0 0.0
    %2982 = vmatpush2.msra.mxu0 0.0
    %2983 = vmatprep.subr.mxu0 0.0
    %2984 = vmatpush2.msra.mxu0 0.0
    %2985 = vmatprep.subr.mxu0 0.0
    %2986 = vmatpush2.msra.mxu0 0.0
    %2987 = vmatprep.subr.mxu0 0.0
    %2988 = vmatpush2.msra.mxu0 0.0
    %2989 = vmatprep.subr.mxu0 0.0
    %2990 = vmatpush2.msra.mxu0 0.0
    %2991 = vmatprep.mubr.f32.mxu0 0.0
    %2992 = vmatmul.mubr.f32.gmra.mxu0 %v2854
    %v2993 = vpop.f32.mrf.mxu0
    %v2994 = vadd.f32 %v2752, %v2993
    %v2995 = vpop.f32.mrf.mxu0
    %v2996 = vadd.f32 %v2754, %v2995
    %2997 = vdwg.mxu0
    %2998 = vmatprep.subr.mxu0 0.0
    %2999 = vmatpush1.msra.mxu0 0.0
    %3000 = vmatprep.subr.mxu0 0.0
    %3001 = vmatpush1.msra.mxu0 0.0
    %3002 = vmatprep.subr.mxu0 0.0
    %3003 = vmatpush1.msra.mxu0 0.0
    %3004 = vmatprep.subr.mxu0 0.0
    %3005 = vmatpush1.msra.mxu0 0.0
    %3006 = vmatprep.subr.mxu0 0.0
    %3007 = vmatpush1.msra.mxu0 0.0
    %3008 = vmatprep.subr.mxu0 0.0
    %3009 = vmatpush1.msra.mxu0 0.0
    %3010 = vmatprep.subr.mxu0 0.0
    %3011 = vmatpush1.msra.mxu0 0.0
    %3012 = vmatprep.subr.mxu0 0.0
    %3013 = vmatpush1.msra.mxu0 0.0
    %3014 = vmatprep.subr.mxu0 0.0
    %3015 = vmatpush1.msra.mxu0 0.0
    %3016 = vmatprep.subr.mxu0 0.0
    %3017 = vmatpush1.msra.mxu0 0.0
    %3018 = vmatprep.subr.mxu0 0.0
    %3019 = vmatpush1.msra.mxu0 0.0
    %3020 = vmatprep.subr.mxu0 0.0
    %3021 = vmatpush1.msra.mxu0 0.0
    %3022 = vmatprep.subr.mxu0 0.0
    %3023 = vmatpush1.msra.mxu0 0.0
    %3024 = vmatprep.subr.mxu0 0.0
    %3025 = vmatpush1.msra.mxu0 0.0
    %3026 = vmatprep.subr.mxu0 0.0
    %3027 = vmatpush1.msra.mxu0 0.0
    %3028 = vmatprep.subr.mxu0 %v2846
    %3029 = vmatpush1.msra.mxu0 %v2845
    %3030 = vmatprep.subr.mxu0 0.0
    %3031 = vmatpush2.msra.mxu0 0.0
    %3032 = vmatprep.subr.mxu0 0.0
    %3033 = vmatpush2.msra.mxu0 0.0
    %3034 = vmatprep.subr.mxu0 0.0
    %3035 = vmatpush2.msra.mxu0 0.0
    %3036 = vmatprep.subr.mxu0 0.0
    %3037 = vmatpush2.msra.mxu0 0.0
    %3038 = vmatprep.subr.mxu0 0.0
    %3039 = vmatpush2.msra.mxu0 0.0
    %3040 = vmatprep.subr.mxu0 0.0
    %3041 = vmatpush2.msra.mxu0 0.0
    %3042 = vmatprep.subr.mxu0 0.0
    %3043 = vmatpush2.msra.mxu0 0.0
    %3044 = vmatprep.subr.mxu0 0.0
    %3045 = vmatpush2.msra.mxu0 0.0
    %3046 = vmatprep.subr.mxu0 0.0
    %3047 = vmatpush2.msra.mxu0 0.0
    %3048 = vmatprep.subr.mxu0 0.0
    %3049 = vmatpush2.msra.mxu0 0.0
    %3050 = vmatprep.subr.mxu0 0.0
    %3051 = vmatpush2.msra.mxu0 0.0
    %3052 = vmatprep.subr.mxu0 0.0
    %3053 = vmatpush2.msra.mxu0 0.0
    %3054 = vmatprep.subr.mxu0 0.0
    %3055 = vmatpush2.msra.mxu0 0.0
    %3056 = vmatprep.subr.mxu0 0.0
    %3057 = vmatpush2.msra.mxu0 0.0
    %3058 = vmatprep.subr.mxu0 0.0
    %3059 = vmatpush2.msra.mxu0 0.0
    %3060 = vmatprep.subr.mxu0 0.0
    %3061 = vmatpush2.msra.mxu0 0.0
    %3062 = vmatprep.mubr.f32.mxu0 0.0
    %3063 = vmatmul.mubr.f32.gmra.mxu0 %v2854
    %v3064 = vpop.f32.mrf.mxu0
    %v3065 = vadd.f32 %v2823, %v3064
    %v3066 = vpop.f32.mrf.mxu0
    %v3067 = vadd.f32 %v2825, %v3066
    %3068 = vdwg.mxu0
    %s3069 = scalar_lea.vmem %s5, 16
    %v3070 = vld [vmem:[%s3069] sm:$0xff]
    %3071 = vrot.lane.b32.xlu0 %v2568, 17
    %v3072 = vpop.permute.xlu0 %3071
    %3073 = vrot.lane.b32.xlu0 %v2569, 17
    %v3074 = vpop.permute.xlu0 %3073
    %3075 = vrot.lane.b32.xlu0 %v2570, 17
    %v3076 = vpop.permute.xlu0 %3075
    %3077 = vrot.lane.b32.xlu0 %v2571, 17
    %v3078 = vpop.permute.xlu0 %3077
    %3079 = vrot.lane.b32.xlu0 %v2572, 17
    %v3080 = vpop.permute.xlu0 %3079
    %3081 = vrot.lane.b32.xlu0 %v2573, 17
    %v3082 = vpop.permute.xlu0 %3081
    %3083 = vrot.lane.b32.xlu0 %v2574, 17
    %v3084 = vpop.permute.xlu0 %3083
    %v3085 = vsel %vm577, %v3072, %v3074
    %v3086 = vsel %vm577, %v3074, %v3076
    %v3087 = vsel %vm577, %v3076, %v3078
    %v3088 = vsel %vm577, %v3078, %v3080
    %v3089 = vsel %vm577, %v3080, %v3082
    %v3090 = vsel %vm577, %v3082, %v3084
    %v3098 = vsel %vm101, %v3070, 0
    %3100 = vmatprep.subr.mxu0 0.0
    %3101 = vmatpush1.msra.mxu0 0.0
    %3102 = vmatprep.subr.mxu0 0.0
    %3103 = vmatpush1.msra.mxu0 0.0
    %3104 = vmatprep.subr.mxu0 0.0
    %3105 = vmatpush1.msra.mxu0 0.0
    %3106 = vmatprep.subr.mxu0 0.0
    %3107 = vmatpush1.msra.mxu0 0.0
    %3108 = vmatprep.subr.mxu0 0.0
    %3109 = vmatpush1.msra.mxu0 0.0
    %3110 = vmatprep.subr.mxu0 0.0
    %3111 = vmatpush1.msra.mxu0 0.0
    %3112 = vmatprep.subr.mxu0 0.0
    %3113 = vmatpush1.msra.mxu0 0.0
    %3114 = vmatprep.subr.mxu0 0.0
    %3115 = vmatpush1.msra.mxu0 0.0
    %3116 = vmatprep.subr.mxu0 0.0
    %3117 = vmatpush1.msra.mxu0 0.0
    %3118 = vmatprep.subr.mxu0 0.0
    %3119 = vmatpush1.msra.mxu0 0.0
    %3120 = vmatprep.subr.mxu0 0.0
    %3121 = vmatpush1.msra.mxu0 0.0
    %3122 = vmatprep.subr.mxu0 0.0
    %3123 = vmatpush1.msra.mxu0 0.0
    %3124 = vmatprep.subr.mxu0 0.0
    %3125 = vmatpush1.msra.mxu0 0.0
    %3126 = vmatprep.subr.mxu0 0.0
    %3127 = vmatpush1.msra.mxu0 0.0
    %3128 = vmatprep.subr.mxu0 0.0
    %3129 = vmatpush1.msra.mxu0 0.0
    %3130 = vmatprep.subr.mxu0 %v3086
    %3131 = vmatpush1.msra.mxu0 %v3085
    %3132 = vmatprep.subr.mxu0 0.0
    %3133 = vmatpush2.msra.mxu0 0.0
    %3134 = vmatprep.subr.mxu0 0.0
    %3135 = vmatpush2.msra.mxu0 0.0
    %3136 = vmatprep.subr.mxu0 0.0
    %3137 = vmatpush2.msra.mxu0 0.0
    %3138 = vmatprep.subr.mxu0 0.0
    %3139 = vmatpush2.msra.mxu0 0.0
    %3140 = vmatprep.subr.mxu0 0.0
    %3141 = vmatpush2.msra.mxu0 0.0
    %3142 = vmatprep.subr.mxu0 0.0
    %3143 = vmatpush2.msra.mxu0 0.0
    %3144 = vmatprep.subr.mxu0 0.0
    %3145 = vmatpush2.msra.mxu0 0.0
    %3146 = vmatprep.subr.mxu0 0.0
    %3147 = vmatpush2.msra.mxu0 0.0
    %3148 = vmatprep.subr.mxu0 0.0
    %3149 = vmatpush2.msra.mxu0 0.0
    %3150 = vmatprep.subr.mxu0 0.0
    %3151 = vmatpush2.msra.mxu0 0.0
    %3152 = vmatprep.subr.mxu0 0.0
    %3153 = vmatpush2.msra.mxu0 0.0
    %3154 = vmatprep.subr.mxu0 0.0
    %3155 = vmatpush2.msra.mxu0 0.0
    %3156 = vmatprep.subr.mxu0 0.0
    %3157 = vmatpush2.msra.mxu0 0.0
    %3158 = vmatprep.subr.mxu0 0.0
    %3159 = vmatpush2.msra.mxu0 0.0
    %3160 = vmatprep.subr.mxu0 0.0
    %3161 = vmatpush2.msra.mxu0 0.0
    %3162 = vmatprep.subr.mxu0 0.0
    %3163 = vmatpush2.msra.mxu0 0.0
    %3164 = vmatprep.mubr.f32.mxu0 0.0
    %3165 = vmatmul.mubr.f32.gmra.mxu0 %v3098
    %v3166 = vpop.f32.mrf.mxu0
    %v3167 = vadd.f32 0.0, %v3166
    %v3168 = vpop.f32.mrf.mxu0
    %v3169 = vadd.f32 0.0, %v3168
    %3170 = vdwg.mxu0
    %3171 = vmatprep.subr.mxu0 0.0
    %3172 = vmatpush1.msra.mxu0 0.0
    %3173 = vmatprep.subr.mxu0 0.0
    %3174 = vmatpush1.msra.mxu0 0.0
    %3175 = vmatprep.subr.mxu0 0.0
    %3176 = vmatpush1.msra.mxu0 0.0
    %3177 = vmatprep.subr.mxu0 0.0
    %3178 = vmatpush1.msra.mxu0 0.0
    %3179 = vmatprep.subr.mxu0 0.0
    %3180 = vmatpush1.msra.mxu0 0.0
    %3181 = vmatprep.subr.mxu0 0.0
    %3182 = vmatpush1.msra.mxu0 0.0
    %3183 = vmatprep.subr.mxu0 0.0
    %3184 = vmatpush1.msra.mxu0 0.0
    %3185 = vmatprep.subr.mxu0 0.0
    %3186 = vmatpush1.msra.mxu0 0.0
    %3187 = vmatprep.subr.mxu0 0.0
    %3188 = vmatpush1.msra.mxu0 0.0
    %3189 = vmatprep.subr.mxu0 0.0
    %3190 = vmatpush1.msra.mxu0 0.0
    %3191 = vmatprep.subr.mxu0 0.0
    %3192 = vmatpush1.msra.mxu0 0.0
    %3193 = vmatprep.subr.mxu0 0.0
    %3194 = vmatpush1.msra.mxu0 0.0
    %3195 = vmatprep.subr.mxu0 0.0
    %3196 = vmatpush1.msra.mxu0 0.0
    %3197 = vmatprep.subr.mxu0 0.0
    %3198 = vmatpush1.msra.mxu0 0.0
    %3199 = vmatprep.subr.mxu0 0.0
    %3200 = vmatpush1.msra.mxu0 0.0
    %3201 = vmatprep.subr.mxu0 %v3088
    %3202 = vmatpush1.msra.mxu0 %v3087
    %3203 = vmatprep.subr.mxu0 0.0
    %3204 = vmatpush2.msra.mxu0 0.0
    %3205 = vmatprep.subr.mxu0 0.0
    %3206 = vmatpush2.msra.mxu0 0.0
    %3207 = vmatprep.subr.mxu0 0.0
    %3208 = vmatpush2.msra.mxu0 0.0
    %3209 = vmatprep.subr.mxu0 0.0
    %3210 = vmatpush2.msra.mxu0 0.0
    %3211 = vmatprep.subr.mxu0 0.0
    %3212 = vmatpush2.msra.mxu0 0.0
    %3213 = vmatprep.subr.mxu0 0.0
    %3214 = vmatpush2.msra.mxu0 0.0
    %3215 = vmatprep.subr.mxu0 0.0
    %3216 = vmatpush2.msra.mxu0 0.0
    %3217 = vmatprep.subr.mxu0 0.0
    %3218 = vmatpush2.msra.mxu0 0.0
    %3219 = vmatprep.subr.mxu0 0.0
    %3220 = vmatpush2.msra.mxu0 0.0
    %3221 = vmatprep.subr.mxu0 0.0
    %3222 = vmatpush2.msra.mxu0 0.0
    %3223 = vmatprep.subr.mxu0 0.0
    %3224 = vmatpush2.msra.mxu0 0.0
    %3225 = vmatprep.subr.mxu0 0.0
    %3226 = vmatpush2.msra.mxu0 0.0
    %3227 = vmatprep.subr.mxu0 0.0
    %3228 = vmatpush2.msra.mxu0 0.0
    %3229 = vmatprep.subr.mxu0 0.0
    %3230 = vmatpush2.msra.mxu0 0.0
    %3231 = vmatprep.subr.mxu0 0.0
    %3232 = vmatpush2.msra.mxu0 0.0
    %3233 = vmatprep.subr.mxu0 0.0
    %3234 = vmatpush2.msra.mxu0 0.0
    %3235 = vmatprep.mubr.f32.mxu0 0.0
    %3236 = vmatmul.mubr.f32.gmra.mxu0 %v3098
    %v3237 = vpop.f32.mrf.mxu0
    %v3238 = vadd.f32 0.0, %v3237
    %v3239 = vpop.f32.mrf.mxu0
    %v3240 = vadd.f32 0.0, %v3239
    %3241 = vdwg.mxu0
    %3242 = vmatprep.subr.mxu0 0.0
    %3243 = vmatpush1.msra.mxu0 0.0
    %3244 = vmatprep.subr.mxu0 0.0
    %3245 = vmatpush1.msra.mxu0 0.0
    %3246 = vmatprep.subr.mxu0 0.0
    %3247 = vmatpush1.msra.mxu0 0.0
    %3248 = vmatprep.subr.mxu0 0.0
    %3249 = vmatpush1.msra.mxu0 0.0
    %3250 = vmatprep.subr.mxu0 0.0
    %3251 = vmatpush1.msra.mxu0 0.0
    %3252 = vmatprep.subr.mxu0 0.0
    %3253 = vmatpush1.msra.mxu0 0.0
    %3254 = vmatprep.subr.mxu0 0.0
    %3255 = vmatpush1.msra.mxu0 0.0
    %3256 = vmatprep.subr.mxu0 0.0
    %3257 = vmatpush1.msra.mxu0 0.0
    %3258 = vmatprep.subr.mxu0 0.0
    %3259 = vmatpush1.msra.mxu0 0.0
    %3260 = vmatprep.subr.mxu0 0.0
    %3261 = vmatpush1.msra.mxu0 0.0
    %3262 = vmatprep.subr.mxu0 0.0
    %3263 = vmatpush1.msra.mxu0 0.0
    %3264 = vmatprep.subr.mxu0 0.0
    %3265 = vmatpush1.msra.mxu0 0.0
    %3266 = vmatprep.subr.mxu0 0.0
    %3267 = vmatpush1.msra.mxu0 0.0
    %3268 = vmatprep.subr.mxu0 0.0
    %3269 = vmatpush1.msra.mxu0 0.0
    %3270 = vmatprep.subr.mxu0 0.0
    %3271 = vmatpush1.msra.mxu0 0.0
    %3272 = vmatprep.subr.mxu0 %v3090
    %3273 = vmatpush1.msra.mxu0 %v3089
    %3274 = vmatprep.subr.mxu0 0.0
    %3275 = vmatpush2.msra.mxu0 0.0
    %3276 = vmatprep.subr.mxu0 0.0
    %3277 = vmatpush2.msra.mxu0 0.0
    %3278 = vmatprep.subr.mxu0 0.0
    %3279 = vmatpush2.msra.mxu0 0.0
    %3280 = vmatprep.subr.mxu0 0.0
    %3281 = vmatpush2.msra.mxu0 0.0
    %3282 = vmatprep.subr.mxu0 0.0
    %3283 = vmatpush2.msra.mxu0 0.0
    %3284 = vmatprep.subr.mxu0 0.0
    %3285 = vmatpush2.msra.mxu0 0.0
    %3286 = vmatprep.subr.mxu0 0.0
    %3287 = vmatpush2.msra.mxu0 0.0
    %3288 = vmatprep.subr.mxu0 0.0
    %3289 = vmatpush2.msra.mxu0 0.0
    %3290 = vmatprep.subr.mxu0 0.0
    %3291 = vmatpush2.msra.mxu0 0.0
    %3292 = vmatprep.subr.mxu0 0.0
    %3293 = vmatpush2.msra.mxu0 0.0
    %3294 = vmatprep.subr.mxu0 0.0
    %3295 = vmatpush2.msra.mxu0 0.0
    %3296 = vmatprep.subr.mxu0 0.0
    %3297 = vmatpush2.msra.mxu0 0.0
    %3298 = vmatprep.subr.mxu0 0.0
    %3299 = vmatpush2.msra.mxu0 0.0
    %3300 = vmatprep.subr.mxu0 0.0
    %3301 = vmatpush2.msra.mxu0 0.0
    %3302 = vmatprep.subr.mxu0 0.0
    %3303 = vmatpush2.msra.mxu0 0.0
    %3304 = vmatprep.subr.mxu0 0.0
    %3305 = vmatpush2.msra.mxu0 0.0
    %3306 = vmatprep.mubr.f32.mxu0 0.0
    %3307 = vmatmul.mubr.f32.gmra.mxu0 %v3098
    %v3308 = vpop.f32.mrf.mxu0
    %v3309 = vadd.f32 0.0, %v3308
    %v3310 = vpop.f32.mrf.mxu0
    %v3311 = vadd.f32 0.0, %v3310
    %3312 = vdwg.mxu0
    %v3313 = vadd.f32 %v2923, %v3167
    %v3314 = vadd.f32 %v2925, %v3169
    %v3315 = vadd.f32 %v2994, %v3238
    %v3316 = vadd.f32 %v2996, %v3240
    %v3317 = vadd.f32 %v3065, %v3309
    %v3318 = vadd.f32 %v3067, %v3311
    %s3319 = scalar_lea.vmem %s5, 24
    %v3320 = vld [vmem:[%s3319] sm:$0xff]
    %3321 = vrot.lane.b32.xlu0 %v2568, 1
    %v3322 = vpop.permute.xlu0 %3321
    %3323 = vrot.lane.b32.xlu0 %v2569, 1
    %v3324 = vpop.permute.xlu0 %3323
    %3325 = vrot.lane.b32.xlu0 %v2570, 1
    %v3326 = vpop.permute.xlu0 %3325
    %3327 = vrot.lane.b32.xlu0 %v2571, 1
    %v3328 = vpop.permute.xlu0 %3327
    %3329 = vrot.lane.b32.xlu0 %v2572, 1
    %v3330 = vpop.permute.xlu0 %3329
    %3331 = vrot.lane.b32.xlu0 %v2573, 1
    %v3332 = vpop.permute.xlu0 %3331
    %3333 = vrot.lane.b32.xlu0 %v2574, 1
    %v3334 = vpop.permute.xlu0 %3333
    %v3335 = vsel %vm828, %v3322, %v3324
    %v3336 = vsel %vm828, %v3324, %v3326
    %v3337 = vsel %vm828, %v3326, %v3328
    %v3338 = vsel %vm828, %v3328, %v3330
    %v3339 = vsel %vm828, %v3330, %v3332
    %v3340 = vsel %vm828, %v3332, %v3334
    %v3348 = vsel %vm101, %v3320, 0
    %3350 = vmatprep.subr.mxu0 0.0
    %3351 = vmatpush1.msra.mxu0 0.0
    %3352 = vmatprep.subr.mxu0 0.0
    %3353 = vmatpush1.msra.mxu0 0.0
    %3354 = vmatprep.subr.mxu0 0.0
    %3355 = vmatpush1.msra.mxu0 0.0
    %3356 = vmatprep.subr.mxu0 0.0
    %3357 = vmatpush1.msra.mxu0 0.0
    %3358 = vmatprep.subr.mxu0 0.0
    %3359 = vmatpush1.msra.mxu0 0.0
    %3360 = vmatprep.subr.mxu0 0.0
    %3361 = vmatpush1.msra.mxu0 0.0
    %3362 = vmatprep.subr.mxu0 0.0
    %3363 = vmatpush1.msra.mxu0 0.0
    %3364 = vmatprep.subr.mxu0 0.0
    %3365 = vmatpush1.msra.mxu0 0.0
    %3366 = vmatprep.subr.mxu0 0.0
    %3367 = vmatpush1.msra.mxu0 0.0
    %3368 = vmatprep.subr.mxu0 0.0
    %3369 = vmatpush1.msra.mxu0 0.0
    %3370 = vmatprep.subr.mxu0 0.0
    %3371 = vmatpush1.msra.mxu0 0.0
    %3372 = vmatprep.subr.mxu0 0.0
    %3373 = vmatpush1.msra.mxu0 0.0
    %3374 = vmatprep.subr.mxu0 0.0
    %3375 = vmatpush1.msra.mxu0 0.0
    %3376 = vmatprep.subr.mxu0 0.0
    %3377 = vmatpush1.msra.mxu0 0.0
    %3378 = vmatprep.subr.mxu0 0.0
    %3379 = vmatpush1.msra.mxu0 0.0
    %3380 = vmatprep.subr.mxu0 %v3336
    %3381 = vmatpush1.msra.mxu0 %v3335
    %3382 = vmatprep.subr.mxu0 0.0
    %3383 = vmatpush2.msra.mxu0 0.0
    %3384 = vmatprep.subr.mxu0 0.0
    %3385 = vmatpush2.msra.mxu0 0.0
    %3386 = vmatprep.subr.mxu0 0.0
    %3387 = vmatpush2.msra.mxu0 0.0
    %3388 = vmatprep.subr.mxu0 0.0
    %3389 = vmatpush2.msra.mxu0 0.0
    %3390 = vmatprep.subr.mxu0 0.0
    %3391 = vmatpush2.msra.mxu0 0.0
    %3392 = vmatprep.subr.mxu0 0.0
    %3393 = vmatpush2.msra.mxu0 0.0
    %3394 = vmatprep.subr.mxu0 0.0
    %3395 = vmatpush2.msra.mxu0 0.0
    %3396 = vmatprep.subr.mxu0 0.0
    %3397 = vmatpush2.msra.mxu0 0.0
    %3398 = vmatprep.subr.mxu0 0.0
    %3399 = vmatpush2.msra.mxu0 0.0
    %3400 = vmatprep.subr.mxu0 0.0
    %3401 = vmatpush2.msra.mxu0 0.0
    %3402 = vmatprep.subr.mxu0 0.0
    %3403 = vmatpush2.msra.mxu0 0.0
    %3404 = vmatprep.subr.mxu0 0.0
    %3405 = vmatpush2.msra.mxu0 0.0
    %3406 = vmatprep.subr.mxu0 0.0
    %3407 = vmatpush2.msra.mxu0 0.0
    %3408 = vmatprep.subr.mxu0 0.0
    %3409 = vmatpush2.msra.mxu0 0.0
    %3410 = vmatprep.subr.mxu0 0.0
    %3411 = vmatpush2.msra.mxu0 0.0
    %3412 = vmatprep.subr.mxu0 0.0
    %3413 = vmatpush2.msra.mxu0 0.0
    %3414 = vmatprep.mubr.f32.mxu0 0.0
    %3415 = vmatmul.mubr.f32.gmra.mxu0 %v3348
    %v3416 = vpop.f32.mrf.mxu0
    %v3417 = vadd.f32 0.0, %v3416
    %v3418 = vpop.f32.mrf.mxu0
    %v3419 = vadd.f32 0.0, %v3418
    %3420 = vdwg.mxu0
    %3421 = vmatprep.subr.mxu0 0.0
    %3422 = vmatpush1.msra.mxu0 0.0
    %3423 = vmatprep.subr.mxu0 0.0
    %3424 = vmatpush1.msra.mxu0 0.0
    %3425 = vmatprep.subr.mxu0 0.0
    %3426 = vmatpush1.msra.mxu0 0.0
    %3427 = vmatprep.subr.mxu0 0.0
    %3428 = vmatpush1.msra.mxu0 0.0
    %3429 = vmatprep.subr.mxu0 0.0
    %3430 = vmatpush1.msra.mxu0 0.0
    %3431 = vmatprep.subr.mxu0 0.0
    %3432 = vmatpush1.msra.mxu0 0.0
    %3433 = vmatprep.subr.mxu0 0.0
    %3434 = vmatpush1.msra.mxu0 0.0
    %3435 = vmatprep.subr.mxu0 0.0
    %3436 = vmatpush1.msra.mxu0 0.0
    %3437 = vmatprep.subr.mxu0 0.0
    %3438 = vmatpush1.msra.mxu0 0.0
    %3439 = vmatprep.subr.mxu0 0.0
    %3440 = vmatpush1.msra.mxu0 0.0
    %3441 = vmatprep.subr.mxu0 0.0
    %3442 = vmatpush1.msra.mxu0 0.0
    %3443 = vmatprep.subr.mxu0 0.0
    %3444 = vmatpush1.msra.mxu0 0.0
    %3445 = vmatprep.subr.mxu0 0.0
    %3446 = vmatpush1.msra.mxu0 0.0
    %3447 = vmatprep.subr.mxu0 0.0
    %3448 = vmatpush1.msra.mxu0 0.0
    %3449 = vmatprep.subr.mxu0 0.0
    %3450 = vmatpush1.msra.mxu0 0.0
    %3451 = vmatprep.subr.mxu0 %v3338
    %3452 = vmatpush1.msra.mxu0 %v3337
    %3453 = vmatprep.subr.mxu0 0.0
    %3454 = vmatpush2.msra.mxu0 0.0
    %3455 = vmatprep.subr.mxu0 0.0
    %3456 = vmatpush2.msra.mxu0 0.0
    %3457 = vmatprep.subr.mxu0 0.0
    %3458 = vmatpush2.msra.mxu0 0.0
    %3459 = vmatprep.subr.mxu0 0.0
    %3460 = vmatpush2.msra.mxu0 0.0
    %3461 = vmatprep.subr.mxu0 0.0
    %3462 = vmatpush2.msra.mxu0 0.0
    %3463 = vmatprep.subr.mxu0 0.0
    %3464 = vmatpush2.msra.mxu0 0.0
    %3465 = vmatprep.subr.mxu0 0.0
    %3466 = vmatpush2.msra.mxu0 0.0
    %3467 = vmatprep.subr.mxu0 0.0
    %3468 = vmatpush2.msra.mxu0 0.0
    %3469 = vmatprep.subr.mxu0 0.0
    %3470 = vmatpush2.msra.mxu0 0.0
    %3471 = vmatprep.subr.mxu0 0.0
    %3472 = vmatpush2.msra.mxu0 0.0
    %3473 = vmatprep.subr.mxu0 0.0
    %3474 = vmatpush2.msra.mxu0 0.0
    %3475 = vmatprep.subr.mxu0 0.0
    %3476 = vmatpush2.msra.mxu0 0.0
    %3477 = vmatprep.subr.mxu0 0.0
    %3478 = vmatpush2.msra.mxu0 0.0
    %3479 = vmatprep.subr.mxu0 0.0
    %3480 = vmatpush2.msra.mxu0 0.0
    %3481 = vmatprep.subr.mxu0 0.0
    %3482 = vmatpush2.msra.mxu0 0.0
    %3483 = vmatprep.subr.mxu0 0.0
    %3484 = vmatpush2.msra.mxu0 0.0
    %3485 = vmatprep.mubr.f32.mxu0 0.0
    %3486 = vmatmul.mubr.f32.gmra.mxu0 %v3348
    %v3487 = vpop.f32.mrf.mxu0
    %v3488 = vadd.f32 0.0, %v3487
    %v3489 = vpop.f32.mrf.mxu0
    %v3490 = vadd.f32 0.0, %v3489
    %3491 = vdwg.mxu0
    %3492 = vmatprep.subr.mxu0 0.0
    %3493 = vmatpush1.msra.mxu0 0.0
    %3494 = vmatprep.subr.mxu0 0.0
    %3495 = vmatpush1.msra.mxu0 0.0
    %3496 = vmatprep.subr.mxu0 0.0
    %3497 = vmatpush1.msra.mxu0 0.0
    %3498 = vmatprep.subr.mxu0 0.0
    %3499 = vmatpush1.msra.mxu0 0.0
    %3500 = vmatprep.subr.mxu0 0.0
    %3501 = vmatpush1.msra.mxu0 0.0
    %3502 = vmatprep.subr.mxu0 0.0
    %3503 = vmatpush1.msra.mxu0 0.0
    %3504 = vmatprep.subr.mxu0 0.0
    %3505 = vmatpush1.msra.mxu0 0.0
    %3506 = vmatprep.subr.mxu0 0.0
    %3507 = vmatpush1.msra.mxu0 0.0
    %3508 = vmatprep.subr.mxu0 0.0
    %3509 = vmatpush1.msra.mxu0 0.0
    %3510 = vmatprep.subr.mxu0 0.0
    %3511 = vmatpush1.msra.mxu0 0.0
    %3512 = vmatprep.subr.mxu0 0.0
    %3513 = vmatpush1.msra.mxu0 0.0
    %3514 = vmatprep.subr.mxu0 0.0
    %3515 = vmatpush1.msra.mxu0 0.0
    %3516 = vmatprep.subr.mxu0 0.0
    %3517 = vmatpush1.msra.mxu0 0.0
    %3518 = vmatprep.subr.mxu0 0.0
    %3519 = vmatpush1.msra.mxu0 0.0
    %3520 = vmatprep.subr.mxu0 0.0
    %3521 = vmatpush1.msra.mxu0 0.0
    %3522 = vmatprep.subr.mxu0 %v3340
    %3523 = vmatpush1.msra.mxu0 %v3339
    %3524 = vmatprep.subr.mxu0 0.0
    %3525 = vmatpush2.msra.mxu0 0.0
    %3526 = vmatprep.subr.mxu0 0.0
    %3527 = vmatpush2.msra.mxu0 0.0
    %3528 = vmatprep.subr.mxu0 0.0
    %3529 = vmatpush2.msra.mxu0 0.0
    %3530 = vmatprep.subr.mxu0 0.0
    %3531 = vmatpush2.msra.mxu0 0.0
    %3532 = vmatprep.subr.mxu0 0.0
    %3533 = vmatpush2.msra.mxu0 0.0
    %3534 = vmatprep.subr.mxu0 0.0
    %3535 = vmatpush2.msra.mxu0 0.0
    %3536 = vmatprep.subr.mxu0 0.0
    %3537 = vmatpush2.msra.mxu0 0.0
    %3538 = vmatprep.subr.mxu0 0.0
    %3539 = vmatpush2.msra.mxu0 0.0
    %3540 = vmatprep.subr.mxu0 0.0
    %3541 = vmatpush2.msra.mxu0 0.0
    %3542 = vmatprep.subr.mxu0 0.0
    %3543 = vmatpush2.msra.mxu0 0.0
    %3544 = vmatprep.subr.mxu0 0.0
    %3545 = vmatpush2.msra.mxu0 0.0
    %3546 = vmatprep.subr.mxu0 0.0
    %3547 = vmatpush2.msra.mxu0 0.0
    %3548 = vmatprep.subr.mxu0 0.0
    %3549 = vmatpush2.msra.mxu0 0.0
    %3550 = vmatprep.subr.mxu0 0.0
    %3551 = vmatpush2.msra.mxu0 0.0
    %3552 = vmatprep.subr.mxu0 0.0
    %3553 = vmatpush2.msra.mxu0 0.0
    %3554 = vmatprep.subr.mxu0 0.0
    %3555 = vmatpush2.msra.mxu0 0.0
    %3556 = vmatprep.mubr.f32.mxu0 0.0
    %3557 = vmatmul.mubr.f32.gmra.mxu0 %v3348
    %v3558 = vpop.f32.mrf.mxu0
    %v3559 = vadd.f32 0.0, %v3558
    %v3560 = vpop.f32.mrf.mxu0
    %v3561 = vadd.f32 0.0, %v3560
    %3562 = vdwg.mxu0
    %v3563 = vadd.f32 %v3313, %v3417
    %v3564 = vadd.f32 %v3314, %v3419
    %v3565 = vadd.f32 %v3315, %v3488
    %v3566 = vadd.f32 %v3316, %v3490
    %v3567 = vadd.f32 %v3317, %v3559
    %v3568 = vadd.f32 %v3318, %v3561
    %s3569 = scalar_lea.vmem %s5, 32
    %v3570 = vld [vmem:[%s3569] sm:$0xff]
    %v3572 = vsel %vm101, %v3570, 0
    %3574 = vmatprep.subr.mxu0 0.0
    %3575 = vmatpush1.msra.mxu0 0.0
    %3576 = vmatprep.subr.mxu0 0.0
    %3577 = vmatpush1.msra.mxu0 0.0
    %3578 = vmatprep.subr.mxu0 0.0
    %3579 = vmatpush1.msra.mxu0 0.0
    %3580 = vmatprep.subr.mxu0 0.0
    %3581 = vmatpush1.msra.mxu0 0.0
    %3582 = vmatprep.subr.mxu0 0.0
    %3583 = vmatpush1.msra.mxu0 0.0
    %3584 = vmatprep.subr.mxu0 0.0
    %3585 = vmatpush1.msra.mxu0 0.0
    %3586 = vmatprep.subr.mxu0 0.0
    %3587 = vmatpush1.msra.mxu0 0.0
    %3588 = vmatprep.subr.mxu0 0.0
    %3589 = vmatpush1.msra.mxu0 0.0
    %3590 = vmatprep.subr.mxu0 0.0
    %3591 = vmatpush1.msra.mxu0 0.0
    %3592 = vmatprep.subr.mxu0 0.0
    %3593 = vmatpush1.msra.mxu0 0.0
    %3594 = vmatprep.subr.mxu0 0.0
    %3595 = vmatpush1.msra.mxu0 0.0
    %3596 = vmatprep.subr.mxu0 0.0
    %3597 = vmatpush1.msra.mxu0 0.0
    %3598 = vmatprep.subr.mxu0 0.0
    %3599 = vmatpush1.msra.mxu0 0.0
    %3600 = vmatprep.subr.mxu0 0.0
    %3601 = vmatpush1.msra.mxu0 0.0
    %3602 = vmatprep.subr.mxu0 0.0
    %3603 = vmatpush1.msra.mxu0 0.0
    %3604 = vmatprep.subr.mxu0 %v2570
    %3605 = vmatpush1.msra.mxu0 %v2569
    %3606 = vmatprep.subr.mxu0 0.0
    %3607 = vmatpush2.msra.mxu0 0.0
    %3608 = vmatprep.subr.mxu0 0.0
    %3609 = vmatpush2.msra.mxu0 0.0
    %3610 = vmatprep.subr.mxu0 0.0
    %3611 = vmatpush2.msra.mxu0 0.0
    %3612 = vmatprep.subr.mxu0 0.0
    %3613 = vmatpush2.msra.mxu0 0.0
    %3614 = vmatprep.subr.mxu0 0.0
    %3615 = vmatpush2.msra.mxu0 0.0
    %3616 = vmatprep.subr.mxu0 0.0
    %3617 = vmatpush2.msra.mxu0 0.0
    %3618 = vmatprep.subr.mxu0 0.0
    %3619 = vmatpush2.msra.mxu0 0.0
    %3620 = vmatprep.subr.mxu0 0.0
    %3621 = vmatpush2.msra.mxu0 0.0
    %3622 = vmatprep.subr.mxu0 0.0
    %3623 = vmatpush2.msra.mxu0 0.0
    %3624 = vmatprep.subr.mxu0 0.0
    %3625 = vmatpush2.msra.mxu0 0.0
    %3626 = vmatprep.subr.mxu0 0.0
    %3627 = vmatpush2.msra.mxu0 0.0
    %3628 = vmatprep.subr.mxu0 0.0
    %3629 = vmatpush2.msra.mxu0 0.0
    %3630 = vmatprep.subr.mxu0 0.0
    %3631 = vmatpush2.msra.mxu0 0.0
    %3632 = vmatprep.subr.mxu0 0.0
    %3633 = vmatpush2.msra.mxu0 0.0
    %3634 = vmatprep.subr.mxu0 0.0
    %3635 = vmatpush2.msra.mxu0 0.0
    %3636 = vmatprep.subr.mxu0 0.0
    %3637 = vmatpush2.msra.mxu0 0.0
    %3638 = vmatprep.mubr.f32.mxu0 0.0
    %3639 = vmatmul.mubr.f32.gmra.mxu0 %v3572
    %v3640 = vpop.f32.mrf.mxu0
    %v3641 = vadd.f32 0.0, %v3640
    %v3642 = vpop.f32.mrf.mxu0
    %v3643 = vadd.f32 0.0, %v3642
    %3644 = vdwg.mxu0
    %3645 = vmatprep.subr.mxu0 0.0
    %3646 = vmatpush1.msra.mxu0 0.0
    %3647 = vmatprep.subr.mxu0 0.0
    %3648 = vmatpush1.msra.mxu0 0.0
    %3649 = vmatprep.subr.mxu0 0.0
    %3650 = vmatpush1.msra.mxu0 0.0
    %3651 = vmatprep.subr.mxu0 0.0
    %3652 = vmatpush1.msra.mxu0 0.0
    %3653 = vmatprep.subr.mxu0 0.0
    %3654 = vmatpush1.msra.mxu0 0.0
    %3655 = vmatprep.subr.mxu0 0.0
    %3656 = vmatpush1.msra.mxu0 0.0
    %3657 = vmatprep.subr.mxu0 0.0
    %3658 = vmatpush1.msra.mxu0 0.0
    %3659 = vmatprep.subr.mxu0 0.0
    %3660 = vmatpush1.msra.mxu0 0.0
    %3661 = vmatprep.subr.mxu0 0.0
    %3662 = vmatpush1.msra.mxu0 0.0
    %3663 = vmatprep.subr.mxu0 0.0
    %3664 = vmatpush1.msra.mxu0 0.0
    %3665 = vmatprep.subr.mxu0 0.0
    %3666 = vmatpush1.msra.mxu0 0.0
    %3667 = vmatprep.subr.mxu0 0.0
    %3668 = vmatpush1.msra.mxu0 0.0
    %3669 = vmatprep.subr.mxu0 0.0
    %3670 = vmatpush1.msra.mxu0 0.0
    %3671 = vmatprep.subr.mxu0 0.0
    %3672 = vmatpush1.msra.mxu0 0.0
    %3673 = vmatprep.subr.mxu0 0.0
    %3674 = vmatpush1.msra.mxu0 0.0
    %3675 = vmatprep.subr.mxu0 %v2572
    %3676 = vmatpush1.msra.mxu0 %v2571
    %3677 = vmatprep.subr.mxu0 0.0
    %3678 = vmatpush2.msra.mxu0 0.0
    %3679 = vmatprep.subr.mxu0 0.0
    %3680 = vmatpush2.msra.mxu0 0.0
    %3681 = vmatprep.subr.mxu0 0.0
    %3682 = vmatpush2.msra.mxu0 0.0
    %3683 = vmatprep.subr.mxu0 0.0
    %3684 = vmatpush2.msra.mxu0 0.0
    %3685 = vmatprep.subr.mxu0 0.0
    %3686 = vmatpush2.msra.mxu0 0.0
    %3687 = vmatprep.subr.mxu0 0.0
    %3688 = vmatpush2.msra.mxu0 0.0
    %3689 = vmatprep.subr.mxu0 0.0
    %3690 = vmatpush2.msra.mxu0 0.0
    %3691 = vmatprep.subr.mxu0 0.0
    %3692 = vmatpush2.msra.mxu0 0.0
    %3693 = vmatprep.subr.mxu0 0.0
    %3694 = vmatpush2.msra.mxu0 0.0
    %3695 = vmatprep.subr.mxu0 0.0
    %3696 = vmatpush2.msra.mxu0 0.0
    %3697 = vmatprep.subr.mxu0 0.0
    %3698 = vmatpush2.msra.mxu0 0.0
    %3699 = vmatprep.subr.mxu0 0.0
    %3700 = vmatpush2.msra.mxu0 0.0
    %3701 = vmatprep.subr.mxu0 0.0
    %3702 = vmatpush2.msra.mxu0 0.0
    %3703 = vmatprep.subr.mxu0 0.0
    %3704 = vmatpush2.msra.mxu0 0.0
    %3705 = vmatprep.subr.mxu0 0.0
    %3706 = vmatpush2.msra.mxu0 0.0
    %3707 = vmatprep.subr.mxu0 0.0
    %3708 = vmatpush2.msra.mxu0 0.0
    %3709 = vmatprep.mubr.f32.mxu0 0.0
    %3710 = vmatmul.mubr.f32.gmra.mxu0 %v3572
    %v3711 = vpop.f32.mrf.mxu0
    %v3712 = vadd.f32 0.0, %v3711
    %v3713 = vpop.f32.mrf.mxu0
    %v3714 = vadd.f32 0.0, %v3713
    %3715 = vdwg.mxu0
    %3716 = vmatprep.subr.mxu0 0.0
    %3717 = vmatpush1.msra.mxu0 0.0
    %3718 = vmatprep.subr.mxu0 0.0
    %3719 = vmatpush1.msra.mxu0 0.0
    %3720 = vmatprep.subr.mxu0 0.0
    %3721 = vmatpush1.msra.mxu0 0.0
    %3722 = vmatprep.subr.mxu0 0.0
    %3723 = vmatpush1.msra.mxu0 0.0
    %3724 = vmatprep.subr.mxu0 0.0
    %3725 = vmatpush1.msra.mxu0 0.0
    %3726 = vmatprep.subr.mxu0 0.0
    %3727 = vmatpush1.msra.mxu0 0.0
    %3728 = vmatprep.subr.mxu0 0.0
    %3729 = vmatpush1.msra.mxu0 0.0
    %3730 = vmatprep.subr.mxu0 0.0
    %3731 = vmatpush1.msra.mxu0 0.0
    %3732 = vmatprep.subr.mxu0 0.0
    %3733 = vmatpush1.msra.mxu0 0.0
    %3734 = vmatprep.subr.mxu0 0.0
    %3735 = vmatpush1.msra.mxu0 0.0
    %3736 = vmatprep.subr.mxu0 0.0
    %3737 = vmatpush1.msra.mxu0 0.0
    %3738 = vmatprep.subr.mxu0 0.0
    %3739 = vmatpush1.msra.mxu0 0.0
    %3740 = vmatprep.subr.mxu0 0.0
    %3741 = vmatpush1.msra.mxu0 0.0
    %3742 = vmatprep.subr.mxu0 0.0
    %3743 = vmatpush1.msra.mxu0 0.0
    %3744 = vmatprep.subr.mxu0 0.0
    %3745 = vmatpush1.msra.mxu0 0.0
    %3746 = vmatprep.subr.mxu0 %v2574
    %3747 = vmatpush1.msra.mxu0 %v2573
    %3748 = vmatprep.subr.mxu0 0.0
    %3749 = vmatpush2.msra.mxu0 0.0
    %3750 = vmatprep.subr.mxu0 0.0
    %3751 = vmatpush2.msra.mxu0 0.0
    %3752 = vmatprep.subr.mxu0 0.0
    %3753 = vmatpush2.msra.mxu0 0.0
    %3754 = vmatprep.subr.mxu0 0.0
    %3755 = vmatpush2.msra.mxu0 0.0
    %3756 = vmatprep.subr.mxu0 0.0
    %3757 = vmatpush2.msra.mxu0 0.0
    %3758 = vmatprep.subr.mxu0 0.0
    %3759 = vmatpush2.msra.mxu0 0.0
    %3760 = vmatprep.subr.mxu0 0.0
    %3761 = vmatpush2.msra.mxu0 0.0
    %3762 = vmatprep.subr.mxu0 0.0
    %3763 = vmatpush2.msra.mxu0 0.0
    %3764 = vmatprep.subr.mxu0 0.0
    %3765 = vmatpush2.msra.mxu0 0.0
    %3766 = vmatprep.subr.mxu0 0.0
    %3767 = vmatpush2.msra.mxu0 0.0
    %3768 = vmatprep.subr.mxu0 0.0
    %3769 = vmatpush2.msra.mxu0 0.0
    %3770 = vmatprep.subr.mxu0 0.0
    %3771 = vmatpush2.msra.mxu0 0.0
    %3772 = vmatprep.subr.mxu0 0.0
    %3773 = vmatpush2.msra.mxu0 0.0
    %3774 = vmatprep.subr.mxu0 0.0
    %3775 = vmatpush2.msra.mxu0 0.0
    %3776 = vmatprep.subr.mxu0 0.0
    %3777 = vmatpush2.msra.mxu0 0.0
    %3778 = vmatprep.subr.mxu0 0.0
    %3779 = vmatpush2.msra.mxu0 0.0
    %3780 = vmatprep.mubr.f32.mxu0 0.0
    %3781 = vmatmul.mubr.f32.gmra.mxu0 %v3572
    %v3782 = vpop.f32.mrf.mxu0
    %v3783 = vadd.f32 0.0, %v3782
    %v3784 = vpop.f32.mrf.mxu0
    %v3785 = vadd.f32 0.0, %v3784
    %3786 = vdwg.mxu0
    %v3787 = vadd.f32 %v3563, %v3641
    %v3788 = vadd.f32 %v3564, %v3643
    %v3789 = vadd.f32 %v3565, %v3712
    %v3790 = vadd.f32 %v3566, %v3714
    %v3791 = vadd.f32 %v3567, %v3783
    %v3792 = vadd.f32 %v3568, %v3785
    %v3793 = vld [vmem:[#allocation2 + $0x8] sm:$0xff]
    %v3794 = vld [vmem:[#allocation2 + $0x10] sm:$0xff]
    %v3795 = vld [vmem:[#allocation2 + $0x18] sm:$0xff]
    %v3796 = vld [vmem:[#allocation2 + $0x20] sm:$0xff]
    %v3797 = vld [vmem:[#allocation2 + $0x28] sm:$0xff]
    %v3798 = vld [vmem:[#allocation2 + $0x30] sm:$0xff]
    %v3799 = vld [vmem:[#allocation2 + $0x38] sm:$0xff]
    %s3800 = scalar_lea.vmem %s5, 40
    %v3801 = vld [vmem:[%s3800] sm:$0xff]
    %3809 = vrot.lane.b32.xlu0 %v3793, 127
    %v3810 = vpop.permute.xlu0 %3809
    %3811 = vrot.lane.b32.xlu0 %v3794, 127
    %v3812 = vpop.permute.xlu0 %3811
    %3813 = vrot.lane.b32.xlu0 %v3795, 127
    %v3814 = vpop.permute.xlu0 %3813
    %3815 = vrot.lane.b32.xlu0 %v3796, 127
    %v3816 = vpop.permute.xlu0 %3815
    %3817 = vrot.lane.b32.xlu0 %v3797, 127
    %v3818 = vpop.permute.xlu0 %3817
    %3819 = vrot.lane.b32.xlu0 %v3798, 127
    %v3820 = vpop.permute.xlu0 %3819
    %3821 = vrot.lane.b32.xlu0 %v3799, 127
    %v3822 = vpop.permute.xlu0 %3821
    %v3823 = vsel %vm1317, %v3810, %v3812
    %v3824 = vsel %vm1317, %v3812, %v3814
    %v3825 = vsel %vm1317, %v3814, %v3816
    %v3826 = vsel %vm1317, %v3816, %v3818
    %v3827 = vsel %vm1317, %v3818, %v3820
    %v3828 = vsel %vm1317, %v3820, %v3822
    %v3836 = vsel %vm101, %v3801, 0
    %3838 = vmatprep.subr.mxu0 0.0
    %3839 = vmatpush1.msra.mxu0 0.0
    %3840 = vmatprep.subr.mxu0 0.0
    %3841 = vmatpush1.msra.mxu0 0.0
    %3842 = vmatprep.subr.mxu0 0.0
    %3843 = vmatpush1.msra.mxu0 0.0
    %3844 = vmatprep.subr.mxu0 0.0
    %3845 = vmatpush1.msra.mxu0 0.0
    %3846 = vmatprep.subr.mxu0 0.0
    %3847 = vmatpush1.msra.mxu0 0.0
    %3848 = vmatprep.subr.mxu0 0.0
    %3849 = vmatpush1.msra.mxu0 0.0
    %3850 = vmatprep.subr.mxu0 0.0
    %3851 = vmatpush1.msra.mxu0 0.0
    %3852 = vmatprep.subr.mxu0 0.0
    %3853 = vmatpush1.msra.mxu0 0.0
    %3854 = vmatprep.subr.mxu0 0.0
    %3855 = vmatpush1.msra.mxu0 0.0
    %3856 = vmatprep.subr.mxu0 0.0
    %3857 = vmatpush1.msra.mxu0 0.0
    %3858 = vmatprep.subr.mxu0 0.0
    %3859 = vmatpush1.msra.mxu0 0.0
    %3860 = vmatprep.subr.mxu0 0.0
    %3861 = vmatpush1.msra.mxu0 0.0
    %3862 = vmatprep.subr.mxu0 0.0
    %3863 = vmatpush1.msra.mxu0 0.0
    %3864 = vmatprep.subr.mxu0 0.0
    %3865 = vmatpush1.msra.mxu0 0.0
    %3866 = vmatprep.subr.mxu0 0.0
    %3867 = vmatpush1.msra.mxu0 0.0
    %3868 = vmatprep.subr.mxu0 %v3824
    %3869 = vmatpush1.msra.mxu0 %v3823
    %3870 = vmatprep.subr.mxu0 0.0
    %3871 = vmatpush2.msra.mxu0 0.0
    %3872 = vmatprep.subr.mxu0 0.0
    %3873 = vmatpush2.msra.mxu0 0.0
    %3874 = vmatprep.subr.mxu0 0.0
    %3875 = vmatpush2.msra.mxu0 0.0
    %3876 = vmatprep.subr.mxu0 0.0
    %3877 = vmatpush2.msra.mxu0 0.0
    %3878 = vmatprep.subr.mxu0 0.0
    %3879 = vmatpush2.msra.mxu0 0.0
    %3880 = vmatprep.subr.mxu0 0.0
    %3881 = vmatpush2.msra.mxu0 0.0
    %3882 = vmatprep.subr.mxu0 0.0
    %3883 = vmatpush2.msra.mxu0 0.0
    %3884 = vmatprep.subr.mxu0 0.0
    %3885 = vmatpush2.msra.mxu0 0.0
    %3886 = vmatprep.subr.mxu0 0.0
    %3887 = vmatpush2.msra.mxu0 0.0
    %3888 = vmatprep.subr.mxu0 0.0
    %3889 = vmatpush2.msra.mxu0 0.0
    %3890 = vmatprep.subr.mxu0 0.0
    %3891 = vmatpush2.msra.mxu0 0.0
    %3892 = vmatprep.subr.mxu0 0.0
    %3893 = vmatpush2.msra.mxu0 0.0
    %3894 = vmatprep.subr.mxu0 0.0
    %3895 = vmatpush2.msra.mxu0 0.0
    %3896 = vmatprep.subr.mxu0 0.0
    %3897 = vmatpush2.msra.mxu0 0.0
    %3898 = vmatprep.subr.mxu0 0.0
    %3899 = vmatpush2.msra.mxu0 0.0
    %3900 = vmatprep.subr.mxu0 0.0
    %3901 = vmatpush2.msra.mxu0 0.0
    %3902 = vmatprep.mubr.f32.mxu0 0.0
    %3903 = vmatmul.mubr.f32.gmra.mxu0 %v3836
    %v3904 = vpop.f32.mrf.mxu0
    %v3905 = vadd.f32 0.0, %v3904
    %v3906 = vpop.f32.mrf.mxu0
    %v3907 = vadd.f32 0.0, %v3906
    %3908 = vdwg.mxu0
    %3909 = vmatprep.subr.mxu0 0.0
    %3910 = vmatpush1.msra.mxu0 0.0
    %3911 = vmatprep.subr.mxu0 0.0
    %3912 = vmatpush1.msra.mxu0 0.0
    %3913 = vmatprep.subr.mxu0 0.0
    %3914 = vmatpush1.msra.mxu0 0.0
    %3915 = vmatprep.subr.mxu0 0.0
    %3916 = vmatpush1.msra.mxu0 0.0
    %3917 = vmatprep.subr.mxu0 0.0
    %3918 = vmatpush1.msra.mxu0 0.0
    %3919 = vmatprep.subr.mxu0 0.0
    %3920 = vmatpush1.msra.mxu0 0.0
    %3921 = vmatprep.subr.mxu0 0.0
    %3922 = vmatpush1.msra.mxu0 0.0
    %3923 = vmatprep.subr.mxu0 0.0
    %3924 = vmatpush1.msra.mxu0 0.0
    %3925 = vmatprep.subr.mxu0 0.0
    %3926 = vmatpush1.msra.mxu0 0.0
    %3927 = vmatprep.subr.mxu0 0.0
    %3928 = vmatpush1.msra.mxu0 0.0
    %3929 = vmatprep.subr.mxu0 0.0
    %3930 = vmatpush1.msra.mxu0 0.0
    %3931 = vmatprep.subr.mxu0 0.0
    %3932 = vmatpush1.msra.mxu0 0.0
    %3933 = vmatprep.subr.mxu0 0.0
    %3934 = vmatpush1.msra.mxu0 0.0
    %3935 = vmatprep.subr.mxu0 0.0
    %3936 = vmatpush1.msra.mxu0 0.0
    %3937 = vmatprep.subr.mxu0 0.0
    %3938 = vmatpush1.msra.mxu0 0.0
    %3939 = vmatprep.subr.mxu0 %v3826
    %3940 = vmatpush1.msra.mxu0 %v3825
    %3941 = vmatprep.subr.mxu0 0.0
    %3942 = vmatpush2.msra.mxu0 0.0
    %3943 = vmatprep.subr.mxu0 0.0
    %3944 = vmatpush2.msra.mxu0 0.0
    %3945 = vmatprep.subr.mxu0 0.0
    %3946 = vmatpush2.msra.mxu0 0.0
    %3947 = vmatprep.subr.mxu0 0.0
    %3948 = vmatpush2.msra.mxu0 0.0
    %3949 = vmatprep.subr.mxu0 0.0
    %3950 = vmatpush2.msra.mxu0 0.0
    %3951 = vmatprep.subr.mxu0 0.0
    %3952 = vmatpush2.msra.mxu0 0.0
    %3953 = vmatprep.subr.mxu0 0.0
    %3954 = vmatpush2.msra.mxu0 0.0
    %3955 = vmatprep.subr.mxu0 0.0
    %3956 = vmatpush2.msra.mxu0 0.0
    %3957 = vmatprep.subr.mxu0 0.0
    %3958 = vmatpush2.msra.mxu0 0.0
    %3959 = vmatprep.subr.mxu0 0.0
    %3960 = vmatpush2.msra.mxu0 0.0
    %3961 = vmatprep.subr.mxu0 0.0
    %3962 = vmatpush2.msra.mxu0 0.0
    %3963 = vmatprep.subr.mxu0 0.0
    %3964 = vmatpush2.msra.mxu0 0.0
    %3965 = vmatprep.subr.mxu0 0.0
    %3966 = vmatpush2.msra.mxu0 0.0
    %3967 = vmatprep.subr.mxu0 0.0
    %3968 = vmatpush2.msra.mxu0 0.0
    %3969 = vmatprep.subr.mxu0 0.0
    %3970 = vmatpush2.msra.mxu0 0.0
    %3971 = vmatprep.subr.mxu0 0.0
    %3972 = vmatpush2.msra.mxu0 0.0
    %3973 = vmatprep.mubr.f32.mxu0 0.0
    %3974 = vmatmul.mubr.f32.gmra.mxu0 %v3836
    %v3975 = vpop.f32.mrf.mxu0
    %v3976 = vadd.f32 0.0, %v3975
    %v3977 = vpop.f32.mrf.mxu0
    %v3978 = vadd.f32 0.0, %v3977
    %3979 = vdwg.mxu0
    %3980 = vmatprep.subr.mxu0 0.0
    %3981 = vmatpush1.msra.mxu0 0.0
    %3982 = vmatprep.subr.mxu0 0.0
    %3983 = vmatpush1.msra.mxu0 0.0
    %3984 = vmatprep.subr.mxu0 0.0
    %3985 = vmatpush1.msra.mxu0 0.0
    %3986 = vmatprep.subr.mxu0 0.0
    %3987 = vmatpush1.msra.mxu0 0.0
    %3988 = vmatprep.subr.mxu0 0.0
    %3989 = vmatpush1.msra.mxu0 0.0
    %3990 = vmatprep.subr.mxu0 0.0
    %3991 = vmatpush1.msra.mxu0 0.0
    %3992 = vmatprep.subr.mxu0 0.0
    %3993 = vmatpush1.msra.mxu0 0.0
    %3994 = vmatprep.subr.mxu0 0.0
    %3995 = vmatpush1.msra.mxu0 0.0
    %3996 = vmatprep.subr.mxu0 0.0
    %3997 = vmatpush1.msra.mxu0 0.0
    %3998 = vmatprep.subr.mxu0 0.0
    %3999 = vmatpush1.msra.mxu0 0.0
    %4000 = vmatprep.subr.mxu0 0.0
    %4001 = vmatpush1.msra.mxu0 0.0
    %4002 = vmatprep.subr.mxu0 0.0
    %4003 = vmatpush1.msra.mxu0 0.0
    %4004 = vmatprep.subr.mxu0 0.0
    %4005 = vmatpush1.msra.mxu0 0.0
    %4006 = vmatprep.subr.mxu0 0.0
    %4007 = vmatpush1.msra.mxu0 0.0
    %4008 = vmatprep.subr.mxu0 0.0
    %4009 = vmatpush1.msra.mxu0 0.0
    %4010 = vmatprep.subr.mxu0 %v3828
    %4011 = vmatpush1.msra.mxu0 %v3827
    %4012 = vmatprep.subr.mxu0 0.0
    %4013 = vmatpush2.msra.mxu0 0.0
    %4014 = vmatprep.subr.mxu0 0.0
    %4015 = vmatpush2.msra.mxu0 0.0
    %4016 = vmatprep.subr.mxu0 0.0
    %4017 = vmatpush2.msra.mxu0 0.0
    %4018 = vmatprep.subr.mxu0 0.0
    %4019 = vmatpush2.msra.mxu0 0.0
    %4020 = vmatprep.subr.mxu0 0.0
    %4021 = vmatpush2.msra.mxu0 0.0
    %4022 = vmatprep.subr.mxu0 0.0
    %4023 = vmatpush2.msra.mxu0 0.0
    %4024 = vmatprep.subr.mxu0 0.0
    %4025 = vmatpush2.msra.mxu0 0.0
    %4026 = vmatprep.subr.mxu0 0.0
    %4027 = vmatpush2.msra.mxu0 0.0
    %4028 = vmatprep.subr.mxu0 0.0
    %4029 = vmatpush2.msra.mxu0 0.0
    %4030 = vmatprep.subr.mxu0 0.0
    %4031 = vmatpush2.msra.mxu0 0.0
    %4032 = vmatprep.subr.mxu0 0.0
    %4033 = vmatpush2.msra.mxu0 0.0
    %4034 = vmatprep.subr.mxu0 0.0
    %4035 = vmatpush2.msra.mxu0 0.0
    %4036 = vmatprep.subr.mxu0 0.0
    %4037 = vmatpush2.msra.mxu0 0.0
    %4038 = vmatprep.subr.mxu0 0.0
    %4039 = vmatpush2.msra.mxu0 0.0
    %4040 = vmatprep.subr.mxu0 0.0
    %4041 = vmatpush2.msra.mxu0 0.0
    %4042 = vmatprep.subr.mxu0 0.0
    %4043 = vmatpush2.msra.mxu0 0.0
    %4044 = vmatprep.mubr.f32.mxu0 0.0
    %4045 = vmatmul.mubr.f32.gmra.mxu0 %v3836
    %v4046 = vpop.f32.mrf.mxu0
    %v4047 = vadd.f32 0.0, %v4046
    %v4048 = vpop.f32.mrf.mxu0
    %v4049 = vadd.f32 0.0, %v4048
    %4050 = vdwg.mxu0
    %v4051 = vadd.f32 %v3787, %v3905
    %v4052 = vadd.f32 %v3788, %v3907
    %v4053 = vadd.f32 %v3789, %v3976
    %v4054 = vadd.f32 %v3790, %v3978
    %v4055 = vadd.f32 %v3791, %v4047
    %v4056 = vadd.f32 %v3792, %v4049
    %s4057 = scalar_lea.vmem %s5, 48
    %v4058 = vld [vmem:[%s4057] sm:$0xff]
    %4059 = vrot.lane.b32.xlu0 %v3793, 111
    %v4060 = vpop.permute.xlu0 %4059
    %4061 = vrot.lane.b32.xlu0 %v3794, 111
    %v4062 = vpop.permute.xlu0 %4061
    %4063 = vrot.lane.b32.xlu0 %v3795, 111
    %v4064 = vpop.permute.xlu0 %4063
    %4065 = vrot.lane.b32.xlu0 %v3796, 111
    %v4066 = vpop.permute.xlu0 %4065
    %4067 = vrot.lane.b32.xlu0 %v3797, 111
    %v4068 = vpop.permute.xlu0 %4067
    %4069 = vrot.lane.b32.xlu0 %v3798, 111
    %v4070 = vpop.permute.xlu0 %4069
    %4071 = vrot.lane.b32.xlu0 %v3799, 111
    %v4072 = vpop.permute.xlu0 %4071
    %v4073 = vsel %vm1568, %v4060, %v4062
    %v4074 = vsel %vm1568, %v4062, %v4064
    %v4075 = vsel %vm1568, %v4064, %v4066
    %v4076 = vsel %vm1568, %v4066, %v4068
    %v4077 = vsel %vm1568, %v4068, %v4070
    %v4078 = vsel %vm1568, %v4070, %v4072
    %v4086 = vsel %vm101, %v4058, 0
    %4088 = vmatprep.subr.mxu0 0.0
    %4089 = vmatpush1.msra.mxu0 0.0
    %4090 = vmatprep.subr.mxu0 0.0
    %4091 = vmatpush1.msra.mxu0 0.0
    %4092 = vmatprep.subr.mxu0 0.0
    %4093 = vmatpush1.msra.mxu0 0.0
    %4094 = vmatprep.subr.mxu0 0.0
    %4095 = vmatpush1.msra.mxu0 0.0
    %4096 = vmatprep.subr.mxu0 0.0
    %4097 = vmatpush1.msra.mxu0 0.0
    %4098 = vmatprep.subr.mxu0 0.0
    %4099 = vmatpush1.msra.mxu0 0.0
    %4100 = vmatprep.subr.mxu0 0.0
    %4101 = vmatpush1.msra.mxu0 0.0
    %4102 = vmatprep.subr.mxu0 0.0
    %4103 = vmatpush1.msra.mxu0 0.0
    %4104 = vmatprep.subr.mxu0 0.0
    %4105 = vmatpush1.msra.mxu0 0.0
    %4106 = vmatprep.subr.mxu0 0.0
    %4107 = vmatpush1.msra.mxu0 0.0
    %4108 = vmatprep.subr.mxu0 0.0
    %4109 = vmatpush1.msra.mxu0 0.0
    %4110 = vmatprep.subr.mxu0 0.0
    %4111 = vmatpush1.msra.mxu0 0.0
    %4112 = vmatprep.subr.mxu0 0.0
    %4113 = vmatpush1.msra.mxu0 0.0
    %4114 = vmatprep.subr.mxu0 0.0
    %4115 = vmatpush1.msra.mxu0 0.0
    %4116 = vmatprep.subr.mxu0 0.0
    %4117 = vmatpush1.msra.mxu0 0.0
    %4118 = vmatprep.subr.mxu0 %v4074
    %4119 = vmatpush1.msra.mxu0 %v4073
    %4120 = vmatprep.subr.mxu0 0.0
    %4121 = vmatpush2.msra.mxu0 0.0
    %4122 = vmatprep.subr.mxu0 0.0
    %4123 = vmatpush2.msra.mxu0 0.0
    %4124 = vmatprep.subr.mxu0 0.0
    %4125 = vmatpush2.msra.mxu0 0.0
    %4126 = vmatprep.subr.mxu0 0.0
    %4127 = vmatpush2.msra.mxu0 0.0
    %4128 = vmatprep.subr.mxu0 0.0
    %4129 = vmatpush2.msra.mxu0 0.0
    %4130 = vmatprep.subr.mxu0 0.0
    %4131 = vmatpush2.msra.mxu0 0.0
    %4132 = vmatprep.subr.mxu0 0.0
    %4133 = vmatpush2.msra.mxu0 0.0
    %4134 = vmatprep.subr.mxu0 0.0
    %4135 = vmatpush2.msra.mxu0 0.0
    %4136 = vmatprep.subr.mxu0 0.0
    %4137 = vmatpush2.msra.mxu0 0.0
    %4138 = vmatprep.subr.mxu0 0.0
    %4139 = vmatpush2.msra.mxu0 0.0
    %4140 = vmatprep.subr.mxu0 0.0
    %4141 = vmatpush2.msra.mxu0 0.0
    %4142 = vmatprep.subr.mxu0 0.0
    %4143 = vmatpush2.msra.mxu0 0.0
    %4144 = vmatprep.subr.mxu0 0.0
    %4145 = vmatpush2.msra.mxu0 0.0
    %4146 = vmatprep.subr.mxu0 0.0
    %4147 = vmatpush2.msra.mxu0 0.0
    %4148 = vmatprep.subr.mxu0 0.0
    %4149 = vmatpush2.msra.mxu0 0.0
    %4150 = vmatprep.subr.mxu0 0.0
    %4151 = vmatpush2.msra.mxu0 0.0
    %4152 = vmatprep.mubr.f32.mxu0 0.0
    %4153 = vmatmul.mubr.f32.gmra.mxu0 %v4086
    %v4154 = vpop.f32.mrf.mxu0
    %v4155 = vadd.f32 0.0, %v4154
    %v4156 = vpop.f32.mrf.mxu0
    %v4157 = vadd.f32 0.0, %v4156
    %4158 = vdwg.mxu0
    %4159 = vmatprep.subr.mxu0 0.0
    %4160 = vmatpush1.msra.mxu0 0.0
    %4161 = vmatprep.subr.mxu0 0.0
    %4162 = vmatpush1.msra.mxu0 0.0
    %4163 = vmatprep.subr.mxu0 0.0
    %4164 = vmatpush1.msra.mxu0 0.0
    %4165 = vmatprep.subr.mxu0 0.0
    %4166 = vmatpush1.msra.mxu0 0.0
    %4167 = vmatprep.subr.mxu0 0.0
    %4168 = vmatpush1.msra.mxu0 0.0
    %4169 = vmatprep.subr.mxu0 0.0
    %4170 = vmatpush1.msra.mxu0 0.0
    %4171 = vmatprep.subr.mxu0 0.0
    %4172 = vmatpush1.msra.mxu0 0.0
    %4173 = vmatprep.subr.mxu0 0.0
    %4174 = vmatpush1.msra.mxu0 0.0
    %4175 = vmatprep.subr.mxu0 0.0
    %4176 = vmatpush1.msra.mxu0 0.0
    %4177 = vmatprep.subr.mxu0 0.0
    %4178 = vmatpush1.msra.mxu0 0.0
    %4179 = vmatprep.subr.mxu0 0.0
    %4180 = vmatpush1.msra.mxu0 0.0
    %4181 = vmatprep.subr.mxu0 0.0
    %4182 = vmatpush1.msra.mxu0 0.0
    %4183 = vmatprep.subr.mxu0 0.0
    %4184 = vmatpush1.msra.mxu0 0.0
    %4185 = vmatprep.subr.mxu0 0.0
    %4186 = vmatpush1.msra.mxu0 0.0
    %4187 = vmatprep.subr.mxu0 0.0
    %4188 = vmatpush1.msra.mxu0 0.0
    %4189 = vmatprep.subr.mxu0 %v4076
    %4190 = vmatpush1.msra.mxu0 %v4075
    %4191 = vmatprep.subr.mxu0 0.0
    %4192 = vmatpush2.msra.mxu0 0.0
    %4193 = vmatprep.subr.mxu0 0.0
    %4194 = vmatpush2.msra.mxu0 0.0
    %4195 = vmatprep.subr.mxu0 0.0
    %4196 = vmatpush2.msra.mxu0 0.0
    %4197 = vmatprep.subr.mxu0 0.0
    %4198 = vmatpush2.msra.mxu0 0.0
    %4199 = vmatprep.subr.mxu0 0.0
    %4200 = vmatpush2.msra.mxu0 0.0
    %4201 = vmatprep.subr.mxu0 0.0
    %4202 = vmatpush2.msra.mxu0 0.0
    %4203 = vmatprep.subr.mxu0 0.0
    %4204 = vmatpush2.msra.mxu0 0.0
    %4205 = vmatprep.subr.mxu0 0.0
    %4206 = vmatpush2.msra.mxu0 0.0
    %4207 = vmatprep.subr.mxu0 0.0
    %4208 = vmatpush2.msra.mxu0 0.0
    %4209 = vmatprep.subr.mxu0 0.0
    %4210 = vmatpush2.msra.mxu0 0.0
    %4211 = vmatprep.subr.mxu0 0.0
    %4212 = vmatpush2.msra.mxu0 0.0
    %4213 = vmatprep.subr.mxu0 0.0
    %4214 = vmatpush2.msra.mxu0 0.0
    %4215 = vmatprep.subr.mxu0 0.0
    %4216 = vmatpush2.msra.mxu0 0.0
    %4217 = vmatprep.subr.mxu0 0.0
    %4218 = vmatpush2.msra.mxu0 0.0
    %4219 = vmatprep.subr.mxu0 0.0
    %4220 = vmatpush2.msra.mxu0 0.0
    %4221 = vmatprep.subr.mxu0 0.0
    %4222 = vmatpush2.msra.mxu0 0.0
    %4223 = vmatprep.mubr.f32.mxu0 0.0
    %4224 = vmatmul.mubr.f32.gmra.mxu0 %v4086
    %v4225 = vpop.f32.mrf.mxu0
    %v4226 = vadd.f32 0.0, %v4225
    %v4227 = vpop.f32.mrf.mxu0
    %v4228 = vadd.f32 0.0, %v4227
    %4229 = vdwg.mxu0
    %4230 = vmatprep.subr.mxu0 0.0
    %4231 = vmatpush1.msra.mxu0 0.0
    %4232 = vmatprep.subr.mxu0 0.0
    %4233 = vmatpush1.msra.mxu0 0.0
    %4234 = vmatprep.subr.mxu0 0.0
    %4235 = vmatpush1.msra.mxu0 0.0
    %4236 = vmatprep.subr.mxu0 0.0
    %4237 = vmatpush1.msra.mxu0 0.0
    %4238 = vmatprep.subr.mxu0 0.0
    %4239 = vmatpush1.msra.mxu0 0.0
    %4240 = vmatprep.subr.mxu0 0.0
    %4241 = vmatpush1.msra.mxu0 0.0
    %4242 = vmatprep.subr.mxu0 0.0
    %4243 = vmatpush1.msra.mxu0 0.0
    %4244 = vmatprep.subr.mxu0 0.0
    %4245 = vmatpush1.msra.mxu0 0.0
    %4246 = vmatprep.subr.mxu0 0.0
    %4247 = vmatpush1.msra.mxu0 0.0
    %4248 = vmatprep.subr.mxu0 0.0
    %4249 = vmatpush1.msra.mxu0 0.0
    %4250 = vmatprep.subr.mxu0 0.0
    %4251 = vmatpush1.msra.mxu0 0.0
    %4252 = vmatprep.subr.mxu0 0.0
    %4253 = vmatpush1.msra.mxu0 0.0
    %4254 = vmatprep.subr.mxu0 0.0
    %4255 = vmatpush1.msra.mxu0 0.0
    %4256 = vmatprep.subr.mxu0 0.0
    %4257 = vmatpush1.msra.mxu0 0.0
    %4258 = vmatprep.subr.mxu0 0.0
    %4259 = vmatpush1.msra.mxu0 0.0
    %4260 = vmatprep.subr.mxu0 %v4078
    %4261 = vmatpush1.msra.mxu0 %v4077
    %4262 = vmatprep.subr.mxu0 0.0
    %4263 = vmatpush2.msra.mxu0 0.0
    %4264 = vmatprep.subr.mxu0 0.0
    %4265 = vmatpush2.msra.mxu0 0.0
    %4266 = vmatprep.subr.mxu0 0.0
    %4267 = vmatpush2.msra.mxu0 0.0
    %4268 = vmatprep.subr.mxu0 0.0
    %4269 = vmatpush2.msra.mxu0 0.0
    %4270 = vmatprep.subr.mxu0 0.0
    %4271 = vmatpush2.msra.mxu0 0.0
    %4272 = vmatprep.subr.mxu0 0.0
    %4273 = vmatpush2.msra.mxu0 0.0
    %4274 = vmatprep.subr.mxu0 0.0
    %4275 = vmatpush2.msra.mxu0 0.0
    %4276 = vmatprep.subr.mxu0 0.0
    %4277 = vmatpush2.msra.mxu0 0.0
    %4278 = vmatprep.subr.mxu0 0.0
    %4279 = vmatpush2.msra.mxu0 0.0
    %4280 = vmatprep.subr.mxu0 0.0
    %4281 = vmatpush2.msra.mxu0 0.0
    %4282 = vmatprep.subr.mxu0 0.0
    %4283 = vmatpush2.msra.mxu0 0.0
    %4284 = vmatprep.subr.mxu0 0.0
    %4285 = vmatpush2.msra.mxu0 0.0
    %4286 = vmatprep.subr.mxu0 0.0
    %4287 = vmatpush2.msra.mxu0 0.0
    %4288 = vmatprep.subr.mxu0 0.0
    %4289 = vmatpush2.msra.mxu0 0.0
    %4290 = vmatprep.subr.mxu0 0.0
    %4291 = vmatpush2.msra.mxu0 0.0
    %4292 = vmatprep.subr.mxu0 0.0
    %4293 = vmatpush2.msra.mxu0 0.0
    %4294 = vmatprep.mubr.f32.mxu0 0.0
    %4295 = vmatmul.mubr.f32.gmra.mxu0 %v4086
    %v4296 = vpop.f32.mrf.mxu0
    %v4297 = vadd.f32 0.0, %v4296
    %v4298 = vpop.f32.mrf.mxu0
    %v4299 = vadd.f32 0.0, %v4298
    %4300 = vdwg.mxu0
    %v4301 = vadd.f32 %v4051, %v4155
    %v4302 = vadd.f32 %v4052, %v4157
    %v4303 = vadd.f32 %v4053, %v4226
    %v4304 = vadd.f32 %v4054, %v4228
    %v4305 = vadd.f32 %v4055, %v4297
    %v4306 = vadd.f32 %v4056, %v4299
    %s4307 = scalar_lea.vmem %s5, 56
    %v4308 = vld [vmem:[%s4307] sm:$0xff]
    %4309 = vrot.lane.b32.xlu0 %v3793, 110
    %v4310 = vpop.permute.xlu0 %4309
    %4311 = vrot.lane.b32.xlu0 %v3794, 110
    %v4312 = vpop.permute.xlu0 %4311
    %4313 = vrot.lane.b32.xlu0 %v3795, 110
    %v4314 = vpop.permute.xlu0 %4313
    %4315 = vrot.lane.b32.xlu0 %v3796, 110
    %v4316 = vpop.permute.xlu0 %4315
    %4317 = vrot.lane.b32.xlu0 %v3797, 110
    %v4318 = vpop.permute.xlu0 %4317
    %4319 = vrot.lane.b32.xlu0 %v3798, 110
    %v4320 = vpop.permute.xlu0 %4319
    %4321 = vrot.lane.b32.xlu0 %v3799, 110
    %v4322 = vpop.permute.xlu0 %4321
    %v4323 = vsel %vm1819, %v4310, %v4312
    %v4324 = vsel %vm1819, %v4312, %v4314
    %v4325 = vsel %vm1819, %v4314, %v4316
    %v4326 = vsel %vm1819, %v4316, %v4318
    %v4327 = vsel %vm1819, %v4318, %v4320
    %v4328 = vsel %vm1819, %v4320, %v4322
    %v4336 = vsel %vm101, %v4308, 0
    %4338 = vmatprep.subr.mxu0 0.0
    %4339 = vmatpush1.msra.mxu0 0.0
    %4340 = vmatprep.subr.mxu0 0.0
    %4341 = vmatpush1.msra.mxu0 0.0
    %4342 = vmatprep.subr.mxu0 0.0
    %4343 = vmatpush1.msra.mxu0 0.0
    %4344 = vmatprep.subr.mxu0 0.0
    %4345 = vmatpush1.msra.mxu0 0.0
    %4346 = vmatprep.subr.mxu0 0.0
    %4347 = vmatpush1.msra.mxu0 0.0
    %4348 = vmatprep.subr.mxu0 0.0
    %4349 = vmatpush1.msra.mxu0 0.0
    %4350 = vmatprep.subr.mxu0 0.0
    %4351 = vmatpush1.msra.mxu0 0.0
    %4352 = vmatprep.subr.mxu0 0.0
    %4353 = vmatpush1.msra.mxu0 0.0
    %4354 = vmatprep.subr.mxu0 0.0
    %4355 = vmatpush1.msra.mxu0 0.0
    %4356 = vmatprep.subr.mxu0 0.0
    %4357 = vmatpush1.msra.mxu0 0.0
    %4358 = vmatprep.subr.mxu0 0.0
    %4359 = vmatpush1.msra.mxu0 0.0
    %4360 = vmatprep.subr.mxu0 0.0
    %4361 = vmatpush1.msra.mxu0 0.0
    %4362 = vmatprep.subr.mxu0 0.0
    %4363 = vmatpush1.msra.mxu0 0.0
    %4364 = vmatprep.subr.mxu0 0.0
    %4365 = vmatpush1.msra.mxu0 0.0
    %4366 = vmatprep.subr.mxu0 0.0
    %4367 = vmatpush1.msra.mxu0 0.0
    %4368 = vmatprep.subr.mxu0 %v4324
    %4369 = vmatpush1.msra.mxu0 %v4323
    %4370 = vmatprep.subr.mxu0 0.0
    %4371 = vmatpush2.msra.mxu0 0.0
    %4372 = vmatprep.subr.mxu0 0.0
    %4373 = vmatpush2.msra.mxu0 0.0
    %4374 = vmatprep.subr.mxu0 0.0
    %4375 = vmatpush2.msra.mxu0 0.0
    %4376 = vmatprep.subr.mxu0 0.0
    %4377 = vmatpush2.msra.mxu0 0.0
    %4378 = vmatprep.subr.mxu0 0.0
    %4379 = vmatpush2.msra.mxu0 0.0
    %4380 = vmatprep.subr.mxu0 0.0
    %4381 = vmatpush2.msra.mxu0 0.0
    %4382 = vmatprep.subr.mxu0 0.0
    %4383 = vmatpush2.msra.mxu0 0.0
    %4384 = vmatprep.subr.mxu0 0.0
    %4385 = vmatpush2.msra.mxu0 0.0
    %4386 = vmatprep.subr.mxu0 0.0
    %4387 = vmatpush2.msra.mxu0 0.0
    %4388 = vmatprep.subr.mxu0 0.0
    %4389 = vmatpush2.msra.mxu0 0.0
    %4390 = vmatprep.subr.mxu0 0.0
    %4391 = vmatpush2.msra.mxu0 0.0
    %4392 = vmatprep.subr.mxu0 0.0
    %4393 = vmatpush2.msra.mxu0 0.0
    %4394 = vmatprep.subr.mxu0 0.0
    %4395 = vmatpush2.msra.mxu0 0.0
    %4396 = vmatprep.subr.mxu0 0.0
    %4397 = vmatpush2.msra.mxu0 0.0
    %4398 = vmatprep.subr.mxu0 0.0
    %4399 = vmatpush2.msra.mxu0 0.0
    %4400 = vmatprep.subr.mxu0 0.0
    %4401 = vmatpush2.msra.mxu0 0.0
    %4402 = vmatprep.mubr.f32.mxu0 0.0
    %4403 = vmatmul.mubr.f32.gmra.mxu0 %v4336
    %v4404 = vpop.f32.mrf.mxu0
    %v4405 = vadd.f32 0.0, %v4404
    %v4406 = vpop.f32.mrf.mxu0
    %v4407 = vadd.f32 0.0, %v4406
    %4408 = vdwg.mxu0
    %4409 = vmatprep.subr.mxu0 0.0
    %4410 = vmatpush1.msra.mxu0 0.0
    %4411 = vmatprep.subr.mxu0 0.0
    %4412 = vmatpush1.msra.mxu0 0.0
    %4413 = vmatprep.subr.mxu0 0.0
    %4414 = vmatpush1.msra.mxu0 0.0
    %4415 = vmatprep.subr.mxu0 0.0
    %4416 = vmatpush1.msra.mxu0 0.0
    %4417 = vmatprep.subr.mxu0 0.0
    %4418 = vmatpush1.msra.mxu0 0.0
    %4419 = vmatprep.subr.mxu0 0.0
    %4420 = vmatpush1.msra.mxu0 0.0
    %4421 = vmatprep.subr.mxu0 0.0
    %4422 = vmatpush1.msra.mxu0 0.0
    %4423 = vmatprep.subr.mxu0 0.0
    %4424 = vmatpush1.msra.mxu0 0.0
    %4425 = vmatprep.subr.mxu0 0.0
    %4426 = vmatpush1.msra.mxu0 0.0
    %4427 = vmatprep.subr.mxu0 0.0
    %4428 = vmatpush1.msra.mxu0 0.0
    %4429 = vmatprep.subr.mxu0 0.0
    %4430 = vmatpush1.msra.mxu0 0.0
    %4431 = vmatprep.subr.mxu0 0.0
    %4432 = vmatpush1.msra.mxu0 0.0
    %4433 = vmatprep.subr.mxu0 0.0
    %4434 = vmatpush1.msra.mxu0 0.0
    %4435 = vmatprep.subr.mxu0 0.0
    %4436 = vmatpush1.msra.mxu0 0.0
    %4437 = vmatprep.subr.mxu0 0.0
    %4438 = vmatpush1.msra.mxu0 0.0
    %4439 = vmatprep.subr.mxu0 %v4326
    %4440 = vmatpush1.msra.mxu0 %v4325
    %4441 = vmatprep.subr.mxu0 0.0
    %4442 = vmatpush2.msra.mxu0 0.0
    %4443 = vmatprep.subr.mxu0 0.0
    %4444 = vmatpush2.msra.mxu0 0.0
    %4445 = vmatprep.subr.mxu0 0.0
    %4446 = vmatpush2.msra.mxu0 0.0
    %4447 = vmatprep.subr.mxu0 0.0
    %4448 = vmatpush2.msra.mxu0 0.0
    %4449 = vmatprep.subr.mxu0 0.0
    %4450 = vmatpush2.msra.mxu0 0.0
    %4451 = vmatprep.subr.mxu0 0.0
    %4452 = vmatpush2.msra.mxu0 0.0
    %4453 = vmatprep.subr.mxu0 0.0
    %4454 = vmatpush2.msra.mxu0 0.0
    %4455 = vmatprep.subr.mxu0 0.0
    %4456 = vmatpush2.msra.mxu0 0.0
    %4457 = vmatprep.subr.mxu0 0.0
    %4458 = vmatpush2.msra.mxu0 0.0
    %4459 = vmatprep.subr.mxu0 0.0
    %4460 = vmatpush2.msra.mxu0 0.0
    %4461 = vmatprep.subr.mxu0 0.0
    %4462 = vmatpush2.msra.mxu0 0.0
    %4463 = vmatprep.subr.mxu0 0.0
    %4464 = vmatpush2.msra.mxu0 0.0
    %4465 = vmatprep.subr.mxu0 0.0
    %4466 = vmatpush2.msra.mxu0 0.0
    %4467 = vmatprep.subr.mxu0 0.0
    %4468 = vmatpush2.msra.mxu0 0.0
    %4469 = vmatprep.subr.mxu0 0.0
    %4470 = vmatpush2.msra.mxu0 0.0
    %4471 = vmatprep.subr.mxu0 0.0
    %4472 = vmatpush2.msra.mxu0 0.0
    %4473 = vmatprep.mubr.f32.mxu0 0.0
    %4474 = vmatmul.mubr.f32.gmra.mxu0 %v4336
    %v4475 = vpop.f32.mrf.mxu0
    %v4476 = vadd.f32 0.0, %v4475
    %v4477 = vpop.f32.mrf.mxu0
    %v4478 = vadd.f32 0.0, %v4477
    %4479 = vdwg.mxu0
    %4480 = vmatprep.subr.mxu0 0.0
    %4481 = vmatpush1.msra.mxu0 0.0
    %4482 = vmatprep.subr.mxu0 0.0
    %4483 = vmatpush1.msra.mxu0 0.0
    %4484 = vmatprep.subr.mxu0 0.0
    %4485 = vmatpush1.msra.mxu0 0.0
    %4486 = vmatprep.subr.mxu0 0.0
    %4487 = vmatpush1.msra.mxu0 0.0
    %4488 = vmatprep.subr.mxu0 0.0
    %4489 = vmatpush1.msra.mxu0 0.0
    %4490 = vmatprep.subr.mxu0 0.0
    %4491 = vmatpush1.msra.mxu0 0.0
    %4492 = vmatprep.subr.mxu0 0.0
    %4493 = vmatpush1.msra.mxu0 0.0
    %4494 = vmatprep.subr.mxu0 0.0
    %4495 = vmatpush1.msra.mxu0 0.0
    %4496 = vmatprep.subr.mxu0 0.0
    %4497 = vmatpush1.msra.mxu0 0.0
    %4498 = vmatprep.subr.mxu0 0.0
    %4499 = vmatpush1.msra.mxu0 0.0
    %4500 = vmatprep.subr.mxu0 0.0
    %4501 = vmatpush1.msra.mxu0 0.0
    %4502 = vmatprep.subr.mxu0 0.0
    %4503 = vmatpush1.msra.mxu0 0.0
    %4504 = vmatprep.subr.mxu0 0.0
    %4505 = vmatpush1.msra.mxu0 0.0
    %4506 = vmatprep.subr.mxu0 0.0
    %4507 = vmatpush1.msra.mxu0 0.0
    %4508 = vmatprep.subr.mxu0 0.0
    %4509 = vmatpush1.msra.mxu0 0.0
    %4510 = vmatprep.subr.mxu0 %v4328
    %4511 = vmatpush1.msra.mxu0 %v4327
    %4512 = vmatprep.subr.mxu0 0.0
    %4513 = vmatpush2.msra.mxu0 0.0
    %4514 = vmatprep.subr.mxu0 0.0
    %4515 = vmatpush2.msra.mxu0 0.0
    %4516 = vmatprep.subr.mxu0 0.0
    %4517 = vmatpush2.msra.mxu0 0.0
    %4518 = vmatprep.subr.mxu0 0.0
    %4519 = vmatpush2.msra.mxu0 0.0
    %4520 = vmatprep.subr.mxu0 0.0
    %4521 = vmatpush2.msra.mxu0 0.0
    %4522 = vmatprep.subr.mxu0 0.0
    %4523 = vmatpush2.msra.mxu0 0.0
    %4524 = vmatprep.subr.mxu0 0.0
    %4525 = vmatpush2.msra.mxu0 0.0
    %4526 = vmatprep.subr.mxu0 0.0
    %4527 = vmatpush2.msra.mxu0 0.0
    %4528 = vmatprep.subr.mxu0 0.0
    %4529 = vmatpush2.msra.mxu0 0.0
    %4530 = vmatprep.subr.mxu0 0.0
    %4531 = vmatpush2.msra.mxu0 0.0
    %4532 = vmatprep.subr.mxu0 0.0
    %4533 = vmatpush2.msra.mxu0 0.0
    %4534 = vmatprep.subr.mxu0 0.0
    %4535 = vmatpush2.msra.mxu0 0.0
    %4536 = vmatprep.subr.mxu0 0.0
    %4537 = vmatpush2.msra.mxu0 0.0
    %4538 = vmatprep.subr.mxu0 0.0
    %4539 = vmatpush2.msra.mxu0 0.0
    %4540 = vmatprep.subr.mxu0 0.0
    %4541 = vmatpush2.msra.mxu0 0.0
    %4542 = vmatprep.subr.mxu0 0.0
    %4543 = vmatpush2.msra.mxu0 0.0
    %4544 = vmatprep.mubr.f32.mxu0 0.0
    %4545 = vmatmul.mubr.f32.gmra.mxu0 %v4336
    %v4546 = vpop.f32.mrf.mxu0
    %v4547 = vadd.f32 0.0, %v4546
    %v4548 = vpop.f32.mrf.mxu0
    %v4549 = vadd.f32 0.0, %v4548
    %4550 = vdwg.mxu0
    %v4551 = vadd.f32 %v4301, %v4405
    %v4552 = vadd.f32 %v4302, %v4407
    %v4553 = vadd.f32 %v4303, %v4476
    %v4554 = vadd.f32 %v4304, %v4478
    %v4555 = vadd.f32 %v4305, %v4547
    %v4556 = vadd.f32 %v4306, %v4549
    %s4557 = scalar_lea.vmem %s5, 64
    %v4558 = vld [vmem:[%s4557] sm:$0xff]
    %4559 = vrot.lane.b32.xlu0 %v3793, 109
    %v4560 = vpop.permute.xlu0 %4559
    %4561 = vrot.lane.b32.xlu0 %v3794, 109
    %v4562 = vpop.permute.xlu0 %4561
    %4563 = vrot.lane.b32.xlu0 %v3795, 109
    %v4564 = vpop.permute.xlu0 %4563
    %4565 = vrot.lane.b32.xlu0 %v3796, 109
    %v4566 = vpop.permute.xlu0 %4565
    %4567 = vrot.lane.b32.xlu0 %v3797, 109
    %v4568 = vpop.permute.xlu0 %4567
    %4569 = vrot.lane.b32.xlu0 %v3798, 109
    %v4570 = vpop.permute.xlu0 %4569
    %4571 = vrot.lane.b32.xlu0 %v3799, 109
    %v4572 = vpop.permute.xlu0 %4571
    %v4573 = vsel %vm2070, %v4560, %v4562
    %v4574 = vsel %vm2070, %v4562, %v4564
    %v4575 = vsel %vm2070, %v4564, %v4566
    %v4576 = vsel %vm2070, %v4566, %v4568
    %v4577 = vsel %vm2070, %v4568, %v4570
    %v4578 = vsel %vm2070, %v4570, %v4572
    %v4586 = vsel %vm101, %v4558, 0
    %4588 = vmatprep.subr.mxu0 0.0
    %4589 = vmatpush1.msra.mxu0 0.0
    %4590 = vmatprep.subr.mxu0 0.0
    %4591 = vmatpush1.msra.mxu0 0.0
    %4592 = vmatprep.subr.mxu0 0.0
    %4593 = vmatpush1.msra.mxu0 0.0
    %4594 = vmatprep.subr.mxu0 0.0
    %4595 = vmatpush1.msra.mxu0 0.0
    %4596 = vmatprep.subr.mxu0 0.0
    %4597 = vmatpush1.msra.mxu0 0.0
    %4598 = vmatprep.subr.mxu0 0.0
    %4599 = vmatpush1.msra.mxu0 0.0
    %4600 = vmatprep.subr.mxu0 0.0
    %4601 = vmatpush1.msra.mxu0 0.0
    %4602 = vmatprep.subr.mxu0 0.0
    %4603 = vmatpush1.msra.mxu0 0.0
    %4604 = vmatprep.subr.mxu0 0.0
    %4605 = vmatpush1.msra.mxu0 0.0
    %4606 = vmatprep.subr.mxu0 0.0
    %4607 = vmatpush1.msra.mxu0 0.0
    %4608 = vmatprep.subr.mxu0 0.0
    %4609 = vmatpush1.msra.mxu0 0.0
    %4610 = vmatprep.subr.mxu0 0.0
    %4611 = vmatpush1.msra.mxu0 0.0
    %4612 = vmatprep.subr.mxu0 0.0
    %4613 = vmatpush1.msra.mxu0 0.0
    %4614 = vmatprep.subr.mxu0 0.0
    %4615 = vmatpush1.msra.mxu0 0.0
    %4616 = vmatprep.subr.mxu0 0.0
    %4617 = vmatpush1.msra.mxu0 0.0
    %4618 = vmatprep.subr.mxu0 %v4574
    %4619 = vmatpush1.msra.mxu0 %v4573
    %4620 = vmatprep.subr.mxu0 0.0
    %4621 = vmatpush2.msra.mxu0 0.0
    %4622 = vmatprep.subr.mxu0 0.0
    %4623 = vmatpush2.msra.mxu0 0.0
    %4624 = vmatprep.subr.mxu0 0.0
    %4625 = vmatpush2.msra.mxu0 0.0
    %4626 = vmatprep.subr.mxu0 0.0
    %4627 = vmatpush2.msra.mxu0 0.0
    %4628 = vmatprep.subr.mxu0 0.0
    %4629 = vmatpush2.msra.mxu0 0.0
    %4630 = vmatprep.subr.mxu0 0.0
    %4631 = vmatpush2.msra.mxu0 0.0
    %4632 = vmatprep.subr.mxu0 0.0
    %4633 = vmatpush2.msra.mxu0 0.0
    %4634 = vmatprep.subr.mxu0 0.0
    %4635 = vmatpush2.msra.mxu0 0.0
    %4636 = vmatprep.subr.mxu0 0.0
    %4637 = vmatpush2.msra.mxu0 0.0
    %4638 = vmatprep.subr.mxu0 0.0
    %4639 = vmatpush2.msra.mxu0 0.0
    %4640 = vmatprep.subr.mxu0 0.0
    %4641 = vmatpush2.msra.mxu0 0.0
    %4642 = vmatprep.subr.mxu0 0.0
    %4643 = vmatpush2.msra.mxu0 0.0
    %4644 = vmatprep.subr.mxu0 0.0
    %4645 = vmatpush2.msra.mxu0 0.0
    %4646 = vmatprep.subr.mxu0 0.0
    %4647 = vmatpush2.msra.mxu0 0.0
    %4648 = vmatprep.subr.mxu0 0.0
    %4649 = vmatpush2.msra.mxu0 0.0
    %4650 = vmatprep.subr.mxu0 0.0
    %4651 = vmatpush2.msra.mxu0 0.0
    %4652 = vmatprep.mubr.f32.mxu0 0.0
    %4653 = vmatmul.mubr.f32.gmra.mxu0 %v4586
    %v4654 = vpop.f32.mrf.mxu0
    %v4655 = vadd.f32 0.0, %v4654
    %v4656 = vpop.f32.mrf.mxu0
    %v4657 = vadd.f32 0.0, %v4656
    %4658 = vdwg.mxu0
    %4659 = vmatprep.subr.mxu0 0.0
    %4660 = vmatpush1.msra.mxu0 0.0
    %4661 = vmatprep.subr.mxu0 0.0
    %4662 = vmatpush1.msra.mxu0 0.0
    %4663 = vmatprep.subr.mxu0 0.0
    %4664 = vmatpush1.msra.mxu0 0.0
    %4665 = vmatprep.subr.mxu0 0.0
    %4666 = vmatpush1.msra.mxu0 0.0
    %4667 = vmatprep.subr.mxu0 0.0
    %4668 = vmatpush1.msra.mxu0 0.0
    %4669 = vmatprep.subr.mxu0 0.0
    %4670 = vmatpush1.msra.mxu0 0.0
    %4671 = vmatprep.subr.mxu0 0.0
    %4672 = vmatpush1.msra.mxu0 0.0
    %4673 = vmatprep.subr.mxu0 0.0
    %4674 = vmatpush1.msra.mxu0 0.0
    %4675 = vmatprep.subr.mxu0 0.0
    %4676 = vmatpush1.msra.mxu0 0.0
    %4677 = vmatprep.subr.mxu0 0.0
    %4678 = vmatpush1.msra.mxu0 0.0
    %4679 = vmatprep.subr.mxu0 0.0
    %4680 = vmatpush1.msra.mxu0 0.0
    %4681 = vmatprep.subr.mxu0 0.0
    %4682 = vmatpush1.msra.mxu0 0.0
    %4683 = vmatprep.subr.mxu0 0.0
    %4684 = vmatpush1.msra.mxu0 0.0
    %4685 = vmatprep.subr.mxu0 0.0
    %4686 = vmatpush1.msra.mxu0 0.0
    %4687 = vmatprep.subr.mxu0 0.0
    %4688 = vmatpush1.msra.mxu0 0.0
    %4689 = vmatprep.subr.mxu0 %v4576
    %4690 = vmatpush1.msra.mxu0 %v4575
    %4691 = vmatprep.subr.mxu0 0.0
    %4692 = vmatpush2.msra.mxu0 0.0
    %4693 = vmatprep.subr.mxu0 0.0
    %4694 = vmatpush2.msra.mxu0 0.0
    %4695 = vmatprep.subr.mxu0 0.0
    %4696 = vmatpush2.msra.mxu0 0.0
    %4697 = vmatprep.subr.mxu0 0.0
    %4698 = vmatpush2.msra.mxu0 0.0
    %4699 = vmatprep.subr.mxu0 0.0
    %4700 = vmatpush2.msra.mxu0 0.0
    %4701 = vmatprep.subr.mxu0 0.0
    %4702 = vmatpush2.msra.mxu0 0.0
    %4703 = vmatprep.subr.mxu0 0.0
    %4704 = vmatpush2.msra.mxu0 0.0
    %4705 = vmatprep.subr.mxu0 0.0
    %4706 = vmatpush2.msra.mxu0 0.0
    %4707 = vmatprep.subr.mxu0 0.0
    %4708 = vmatpush2.msra.mxu0 0.0
    %4709 = vmatprep.subr.mxu0 0.0
    %4710 = vmatpush2.msra.mxu0 0.0
    %4711 = vmatprep.subr.mxu0 0.0
    %4712 = vmatpush2.msra.mxu0 0.0
    %4713 = vmatprep.subr.mxu0 0.0
    %4714 = vmatpush2.msra.mxu0 0.0
    %4715 = vmatprep.subr.mxu0 0.0
    %4716 = vmatpush2.msra.mxu0 0.0
    %4717 = vmatprep.subr.mxu0 0.0
    %4718 = vmatpush2.msra.mxu0 0.0
    %4719 = vmatprep.subr.mxu0 0.0
    %4720 = vmatpush2.msra.mxu0 0.0
    %4721 = vmatprep.subr.mxu0 0.0
    %4722 = vmatpush2.msra.mxu0 0.0
    %4723 = vmatprep.mubr.f32.mxu0 0.0
    %4724 = vmatmul.mubr.f32.gmra.mxu0 %v4586
    %v4725 = vpop.f32.mrf.mxu0
    %v4726 = vadd.f32 0.0, %v4725
    %v4727 = vpop.f32.mrf.mxu0
    %v4728 = vadd.f32 0.0, %v4727
    %4729 = vdwg.mxu0
    %4730 = vmatprep.subr.mxu0 0.0
    %4731 = vmatpush1.msra.mxu0 0.0
    %4732 = vmatprep.subr.mxu0 0.0
    %4733 = vmatpush1.msra.mxu0 0.0
    %4734 = vmatprep.subr.mxu0 0.0
    %4735 = vmatpush1.msra.mxu0 0.0
    %4736 = vmatprep.subr.mxu0 0.0
    %4737 = vmatpush1.msra.mxu0 0.0
    %4738 = vmatprep.subr.mxu0 0.0
    %4739 = vmatpush1.msra.mxu0 0.0
    %4740 = vmatprep.subr.mxu0 0.0
    %4741 = vmatpush1.msra.mxu0 0.0
    %4742 = vmatprep.subr.mxu0 0.0
    %4743 = vmatpush1.msra.mxu0 0.0
    %4744 = vmatprep.subr.mxu0 0.0
    %4745 = vmatpush1.msra.mxu0 0.0
    %4746 = vmatprep.subr.mxu0 0.0
    %4747 = vmatpush1.msra.mxu0 0.0
    %4748 = vmatprep.subr.mxu0 0.0
    %4749 = vmatpush1.msra.mxu0 0.0
    %4750 = vmatprep.subr.mxu0 0.0
    %4751 = vmatpush1.msra.mxu0 0.0
    %4752 = vmatprep.subr.mxu0 0.0
    %4753 = vmatpush1.msra.mxu0 0.0
    %4754 = vmatprep.subr.mxu0 0.0
    %4755 = vmatpush1.msra.mxu0 0.0
    %4756 = vmatprep.subr.mxu0 0.0
    %4757 = vmatpush1.msra.mxu0 0.0
    %4758 = vmatprep.subr.mxu0 0.0
    %4759 = vmatpush1.msra.mxu0 0.0
    %4760 = vmatprep.subr.mxu0 %v4578
    %4761 = vmatpush1.msra.mxu0 %v4577
    %4762 = vmatprep.subr.mxu0 0.0
    %4763 = vmatpush2.msra.mxu0 0.0
    %4764 = vmatprep.subr.mxu0 0.0
    %4765 = vmatpush2.msra.mxu0 0.0
    %4766 = vmatprep.subr.mxu0 0.0
    %4767 = vmatpush2.msra.mxu0 0.0
    %4768 = vmatprep.subr.mxu0 0.0
    %4769 = vmatpush2.msra.mxu0 0.0
    %4770 = vmatprep.subr.mxu0 0.0
    %4771 = vmatpush2.msra.mxu0 0.0
    %4772 = vmatprep.subr.mxu0 0.0
    %4773 = vmatpush2.msra.mxu0 0.0
    %4774 = vmatprep.subr.mxu0 0.0
    %4775 = vmatpush2.msra.mxu0 0.0
    %4776 = vmatprep.subr.mxu0 0.0
    %4777 = vmatpush2.msra.mxu0 0.0
    %4778 = vmatprep.subr.mxu0 0.0
    %4779 = vmatpush2.msra.mxu0 0.0
    %4780 = vmatprep.subr.mxu0 0.0
    %4781 = vmatpush2.msra.mxu0 0.0
    %4782 = vmatprep.subr.mxu0 0.0
    %4783 = vmatpush2.msra.mxu0 0.0
    %4784 = vmatprep.subr.mxu0 0.0
    %4785 = vmatpush2.msra.mxu0 0.0
    %4786 = vmatprep.subr.mxu0 0.0
    %4787 = vmatpush2.msra.mxu0 0.0
    %4788 = vmatprep.subr.mxu0 0.0
    %4789 = vmatpush2.msra.mxu0 0.0
    %4790 = vmatprep.subr.mxu0 0.0
    %4791 = vmatpush2.msra.mxu0 0.0
    %4792 = vmatprep.subr.mxu0 0.0
    %4793 = vmatpush2.msra.mxu0 0.0
    %4794 = vmatprep.mubr.f32.mxu0 0.0
    %4795 = vmatmul.mubr.f32.gmra.mxu0 %v4586
    %v4796 = vpop.f32.mrf.mxu0
    %v4797 = vadd.f32 0.0, %v4796
    %v4798 = vpop.f32.mrf.mxu0
    %v4799 = vadd.f32 0.0, %v4798
    %4800 = vdwg.mxu0
    %v4801 = vadd.f32 %v4551, %v4655
    %v4802 = vadd.f32 %v4552, %v4657
    %v4803 = vadd.f32 %v4553, %v4726
    %v4804 = vadd.f32 %v4554, %v4728
    %v4805 = vadd.f32 %v4555, %v4797
    %v4806 = vadd.f32 %v4556, %v4799
    %v4807 = vmul.f32 %v4801, %v2309
    %v4808 = vmul.f32 %v4802, %v2313
    %v4809 = vmul.f32 %v4803, %v2317
    %v4810 = vmul.f32 %v4804, %v2321
    %v4811 = vmul.f32 %v4805, %v2325
    %v4812 = vmul.f32 %v4806, %v2329
    %v4813 = vadd.f32 %v4807, %v4808
    %v4814 = vadd.f32 %v4813, %v4809
    %v4815 = vadd.f32 %v4814, %v4810
    %v4816 = vadd.f32 %v4815, %v4811
    %v4817 = vadd.f32 %v4816, %v4812
    %4818 = vadd.xlane.f32.xlu0 %v4817
    %v4819 = vpop.xlane.xlu0 %4818
    %v4820 = vmul.f32 %v4807, %v4807
    %v4821 = vmul.f32 %v4808, %v4808
    %v4822 = vmul.f32 %v4809, %v4809
    %v4823 = vmul.f32 %v4810, %v4810
    %v4824 = vmul.f32 %v4811, %v4811
    %v4825 = vmul.f32 %v4812, %v4812
    %v4826 = vadd.f32 %v4820, %v4821
    %v4827 = vadd.f32 %v4826, %v4822
    %v4828 = vadd.f32 %v4827, %v4823
    %v4829 = vadd.f32 %v4828, %v4824
    %v4830 = vadd.f32 %v4829, %v4825
    %4831 = vadd.xlane.f32.xlu0 %v4830
    %v4832 = vpop.xlane.xlu0 %4831
    %v4833 = vmul.f32 %v4819, 0.001953125
    %v4834 = vmul.f32 %v4832, 0.001953125
    %v4835 = vmul.f32 %v4833, %v4833
    %v4836 = vsub.f32 %v4834, %v4835
    %v4837 = vld [vmem:[%s6] sm:$0xff]
    %v4838 = vadd.f32 %v4836, 1e-05
    %v4839 = vrsqrt.pop %v4838
    %v4840 = vmul.f32 %v4837, %v4839
    %v4841 = vld [vmem:[%s7] sm:$0xff]
    %v4842 = vmul.f32 %v4833, %v4840
    %v4843 = vsub.f32 %v4841, %v4842
    %4845 = vset.pattern.permute.xlu0 0
    %4846 = vperm.xlu0 %4845, %v4840
    %v4847 = vpop.permute.xlu0 %4846
    %v4849 = vmul.f32 %v4801, %v4847
    %v4850 = vmul.f32 %v4802, %v4847
    %v4851 = vmul.f32 %v4803, %v4847
    %v4852 = vmul.f32 %v4804, %v4847
    %v4853 = vmul.f32 %v4805, %v4847
    %v4854 = vmul.f32 %v4806, %v4847
    %4856 = vset.pattern.permute.xlu0 0
    %4857 = vperm.xlu0 %4856, %v4843
    %v4858 = vpop.permute.xlu0 %4857
    %v4860 = vadd.f32 %v4849, %v4858
    %v4861 = vadd.f32 %v4850, %v4858
    %v4862 = vadd.f32 %v4851, %v4858
    %v4863 = vadd.f32 %v4852, %v4858
    %v4864 = vadd.f32 %v4853, %v4858
    %v4865 = vadd.f32 %v4854, %v4858
    %4866 = vst [vmem:[#allocation3] sm:$0xff] %v4860
    %4867 = vst [vmem:[#allocation3 + $0x8] sm:$0xff] %v4861
    %4868 = vst [vmem:[#allocation3 + $0x10] sm:$0xff] %v4862
    %4869 = vst [vmem:[#allocation3 + $0x18] sm:$0xff] %v4863
    %4870 = vst [vmem:[#allocation3 + $0x20] sm:$0xff] %v4864
    %4871 = vst [vmem:[#allocation3 + $0x28] sm:$0xff] %v4865
    %v4872 = vld [vmem:[#allocation3] ss:$8 sm:$0xf]
    %v4873 = vld [vmem:[#allocation3] ss:$8 sm:$0x30]
    %v4874 = vor.u32 %v4872, %v4873
    %v4875 = vmul.f32 %v4874, 0.5
    %v4876 = vadd.f32 %v4875, 0.0
    %vm4877 = vcmp.ge.f32.partialorder %v4876, 1.0
    %v4878 = vsel %vm4877, 1, 0
    %v4879 = vcvt.s32.f32 %v4878
    %v4880 = vsub.f32 1.0, %v4879
    %v4881 = vmul.f32 %v4876, %v4880
    %v4882 = vadd.f32 %v4874, %v4879
    %4883 = vst.msk [vmem:[#allocation4] ss:$8 sm:$0xf] %vm2419, %v4882
    %4884 = vst.msk [vmem:[#allocation4] ss:$8 sm:$0x30] %vm2419, %v4882
    %v4885 = vmul.f32 %v4881, %v42
    %4886 = vst.msk [vmem:[%s2420] ss:$8 sm:$0xf] %vm2419, %v4885
    %4887 = vst.msk [vmem:[%s2420] ss:$8 sm:$0x30] %vm2419, %v4885
    %v4888 = vld [vmem:[%s2423] ss:$8 sm:$0xf]
    %v4889 = vld [vmem:[%s2423] ss:$8 sm:$0x30]
    %v4890 = vor.u32 %v4888, %v4889
    %v4891 = vsub.f32 %v4890, %v4881
    %v4892 = vmul.f32 %v4891, 0.5
    %v4893 = vadd.f32 %v4881, %v4892
    %vm4894 = vcmp.ge.f32.partialorder %v4893, 1.0
    %v4895 = vsel %vm4894, 1, 0
    %v4896 = vcvt.s32.f32 %v4895
    %v4897 = vsub.f32 1.0, %v4896
    %v4898 = vmul.f32 %v4893, %v4897
    %v4899 = vadd.f32 %v4890, %v4896
    %s4900 = scalar_lea.vmem [#allocation4], 1
    %4901 = vst.msk [vmem:[%s4900] ss:$8 sm:$0xf] %vm2419, %v4899
    %4902 = vst.msk [vmem:[%s4900] ss:$8 sm:$0x30] %vm2419, %v4899
    %v4903 = vmul.f32 %v4898, %v42
    %4904 = vst.msk [vmem:[%s2441] ss:$8 sm:$0xf] %vm2419, %v4903
    %4905 = vst.msk [vmem:[%s2441] ss:$8 sm:$0x30] %vm2419, %v4903
    %v4906 = vld [vmem:[%s2444] ss:$8 sm:$0xf]
    %v4907 = vld [vmem:[%s2444] ss:$8 sm:$0x30]
    %v4908 = vor.u32 %v4906, %v4907
    %v4909 = vsub.f32 %v4908, %v4898
    %v4910 = vmul.f32 %v4909, 0.5
    %v4911 = vadd.f32 %v4898, %v4910
    %vm4912 = vcmp.ge.f32.partialorder %v4911, 1.0
    %v4913 = vsel %vm4912, 1, 0
    %v4914 = vcvt.s32.f32 %v4913
    %v4915 = vsub.f32 1.0, %v4914
    %v4916 = vmul.f32 %v4911, %v4915
    %v4917 = vadd.f32 %v4908, %v4914
    %s4918 = scalar_lea.vmem [#allocation4], 2
    %4919 = vst.msk [vmem:[%s4918] ss:$8 sm:$0xf] %vm2419, %v4917
    %4920 = vst.msk [vmem:[%s4918] ss:$8 sm:$0x30] %vm2419, %v4917
    %v4921 = vmul.f32 %v4916, %v42
    %4922 = vst.msk [vmem:[%s2462] ss:$8 sm:$0xf] %vm2419, %v4921
    %4923 = vst.msk [vmem:[%s2462] ss:$8 sm:$0x30] %vm2419, %v4921
    %v4924 = vld [vmem:[%s2465] ss:$8 sm:$0xf]
    %v4925 = vld [vmem:[%s2465] ss:$8 sm:$0x30]
    %v4926 = vor.u32 %v4924, %v4925
    %v4927 = vsub.f32 %v4926, %v4916
    %v4928 = vmul.f32 %v4927, 0.5
    %v4929 = vadd.f32 %v4916, %v4928
    %vm4930 = vcmp.ge.f32.partialorder %v4929, 1.0
    %v4931 = vsel %vm4930, 1, 0
    %v4932 = vcvt.s32.f32 %v4931
    %v4933 = vsub.f32 1.0, %v4932
    %v4934 = vmul.f32 %v4929, %v4933
    %v4935 = vadd.f32 %v4926, %v4932
    %s4936 = scalar_lea.vmem [#allocation4], 3
    %4937 = vst.msk [vmem:[%s4936] ss:$8 sm:$0xf] %vm2419, %v4935
    %4938 = vst.msk [vmem:[%s4936] ss:$8 sm:$0x30] %vm2419, %v4935
    %v4939 = vmul.f32 %v4934, %v42
    %4940 = vst.msk [vmem:[%s2483] ss:$8 sm:$0xf] %vm2419, %v4939
    %4941 = vst.msk [vmem:[%s2483] ss:$8 sm:$0x30] %vm2419, %v4939
    %v4942 = vld [vmem:[%s2486] ss:$8 sm:$0xf]
    %v4943 = vld [vmem:[%s2486] ss:$8 sm:$0x30]
    %v4944 = vor.u32 %v4942, %v4943
    %v4945 = vsub.f32 %v4944, %v4934
    %v4946 = vmul.f32 %v4945, 0.5
    %v4947 = vadd.f32 %v4934, %v4946
    %vm4948 = vcmp.ge.f32.partialorder %v4947, 1.0
    %v4949 = vsel %vm4948, 1, 0
    %v4950 = vcvt.s32.f32 %v4949
    %v4951 = vsub.f32 1.0, %v4950
    %v4952 = vmul.f32 %v4947, %v4951
    %v4953 = vadd.f32 %v4944, %v4950
    %s4954 = scalar_lea.vmem [#allocation4], 4
    %4955 = vst.msk [vmem:[%s4954] ss:$8 sm:$0xf] %vm2419, %v4953
    %4956 = vst.msk [vmem:[%s4954] ss:$8 sm:$0x30] %vm2419, %v4953
    %v4957 = vmul.f32 %v4952, %v42
    %4958 = vst.msk [vmem:[%s2504] ss:$8 sm:$0xf] %vm2419, %v4957
    %4959 = vst.msk [vmem:[%s2504] ss:$8 sm:$0x30] %vm2419, %v4957
    %v4960 = vld [vmem:[%s2507] ss:$8 sm:$0xf]
    %v4961 = vld [vmem:[%s2507] ss:$8 sm:$0x30]
    %v4962 = vor.u32 %v4960, %v4961
    %v4963 = vsub.f32 %v4962, %v4952
    %v4964 = vmul.f32 %v4963, 0.5
    %v4965 = vadd.f32 %v4952, %v4964
    %vm4966 = vcmp.ge.f32.partialorder %v4965, 1.0
    %v4967 = vsel %vm4966, 1, 0
    %v4968 = vcvt.s32.f32 %v4967
    %v4969 = vsub.f32 1.0, %v4968
    %v4970 = vmul.f32 %v4965, %v4969
    %v4971 = vadd.f32 %v4962, %v4968
    %s4972 = scalar_lea.vmem [#allocation4], 5
    %4973 = vst.msk [vmem:[%s4972] ss:$8 sm:$0xf] %vm2419, %v4971
    %4974 = vst.msk [vmem:[%s4972] ss:$8 sm:$0x30] %vm2419, %v4971
    %v4975 = vmul.f32 %v4970, %v42
    %4976 = vst.msk [vmem:[%s2525] ss:$8 sm:$0xf] %vm2419, %v4975
    %4977 = vst.msk [vmem:[%s2525] ss:$8 sm:$0x30] %vm2419, %v4975
    %v4978 = vld [vmem:[%s2528] ss:$8 sm:$0xf]
    %v4979 = vld [vmem:[%s2528] ss:$8 sm:$0x30]
    %v4980 = vor.u32 %v4978, %v4979
    %v4981 = vsub.f32 %v4980, %v4970
    %v4982 = vmul.f32 %v4981, 0.5
    %v4983 = vadd.f32 %v4970, %v4982
    %vm4984 = vcmp.ge.f32.partialorder %v4983, 1.0
    %v4985 = vsel %vm4984, 1, 0
    %v4986 = vcvt.s32.f32 %v4985
    %v4987 = vsub.f32 1.0, %v4986
    %v4988 = vmul.f32 %v4983, %v4987
    %v4989 = vadd.f32 %v4980, %v4986
    %s4990 = scalar_lea.vmem [#allocation4], 6
    %4991 = vst.msk [vmem:[%s4990] ss:$8 sm:$0xf] %vm2419, %v4989
    %4992 = vst.msk [vmem:[%s4990] ss:$8 sm:$0x30] %vm2419, %v4989
    %v4993 = vmul.f32 %v4988, %v42
    %4994 = vst.msk [vmem:[%s2546] ss:$8 sm:$0xf] %vm2419, %v4993
    %4995 = vst.msk [vmem:[%s2546] ss:$8 sm:$0x30] %vm2419, %v4993
    %v4996 = vld [vmem:[%s2549] ss:$8 sm:$0xf]
    %v4997 = vld [vmem:[%s2549] ss:$8 sm:$0x30]
    %v4998 = vor.u32 %v4996, %v4997
    %v4999 = vsub.f32 %v4998, %v4988
    %v5000 = vmul.f32 %v4999, 0.5
    %v5001 = vadd.f32 %v4988, %v5000
    %vm5002 = vcmp.ge.f32.partialorder %v5001, 1.0
    %v5003 = vsel %vm5002, 1, 0
    %v5004 = vcvt.s32.f32 %v5003
    %v5005 = vsub.f32 1.0, %v5004
    %v5006 = vmul.f32 %v5001, %v5005
    %v5007 = vadd.f32 %v4998, %v5004
    %s5008 = scalar_lea.vmem [#allocation4], 7
    %5009 = vst.msk [vmem:[%s5008] ss:$8 sm:$0xf] %vm2419, %v5007
    %5010 = vst.msk [vmem:[%s5008] ss:$8 sm:$0x30] %vm2419, %v5007
    %v5011 = vmul.f32 %v5006, %v42
    %5012 = vst.msk [vmem:[%s2565] ss:$8 sm:$0xf] %vm2419, %v5011
    %5013 = vst.msk [vmem:[%s2565] ss:$8 sm:$0x30] %vm2419, %v5011
    %v5014 = vld [vmem:[#allocation2] sm:$0xff]
    %v5015 = vld [vmem:[#allocation2 + $0x8] sm:$0xff]
    %v5016 = vld [vmem:[#allocation2 + $0x10] sm:$0xff]
    %v5017 = vld [vmem:[#allocation2 + $0x18] sm:$0xff]
    %v5018 = vld [vmem:[#allocation2 + $0x20] sm:$0xff]
    %v5019 = vld [vmem:[#allocation2 + $0x28] sm:$0xff]
    %v5020 = vld [vmem:[#allocation2 + $0x30] sm:$0xff]
    %v5021 = vld [vmem:[%s8] sm:$0xff]
    %s5022 = scalar_lea.vmem %s8, 8
    %v5023 = vld [vmem:[%s5022] sm:$0xff]
    %5031 = vrot.lane.b32.xlu0 %v5014, 18
    %v5032 = vpop.permute.xlu0 %5031
    %5033 = vrot.lane.b32.xlu0 %v5015, 18
    %v5034 = vpop.permute.xlu0 %5033
    %5035 = vrot.lane.b32.xlu0 %v5016, 18
    %v5036 = vpop.permute.xlu0 %5035
    %5037 = vrot.lane.b32.xlu0 %v5017, 18
    %v5038 = vpop.permute.xlu0 %5037
    %5039 = vrot.lane.b32.xlu0 %v5018, 18
    %v5040 = vpop.permute.xlu0 %5039
    %5041 = vrot.lane.b32.xlu0 %v5019, 18
    %v5042 = vpop.permute.xlu0 %5041
    %5043 = vrot.lane.b32.xlu0 %v5020, 18
    %v5044 = vpop.permute.xlu0 %5043
    %v5045 = vsel %vm88, %v5032, %v5034
    %v5046 = vsel %vm88, %v5034, %v5036
    %v5047 = vsel %vm88, %v5036, %v5038
    %v5048 = vsel %vm88, %v5038, %v5040
    %v5049 = vsel %vm88, %v5040, %v5042
    %v5050 = vsel %vm88, %v5042, %v5044
    %v5058 = vsel %vm101, %v5023, 0
    %5060 = vmatprep.subr.mxu0 0.0
    %5061 = vmatpush1.msra.mxu0 0.0
    %5062 = vmatprep.subr.mxu0 0.0
    %5063 = vmatpush1.msra.mxu0 0.0
    %5064 = vmatprep.subr.mxu0 0.0
    %5065 = vmatpush1.msra.mxu0 0.0
    %5066 = vmatprep.subr.mxu0 0.0
    %5067 = vmatpush1.msra.mxu0 0.0
    %5068 = vmatprep.subr.mxu0 0.0
    %5069 = vmatpush1.msra.mxu0 0.0
    %5070 = vmatprep.subr.mxu0 0.0
    %5071 = vmatpush1.msra.mxu0 0.0
    %5072 = vmatprep.subr.mxu0 0.0
    %5073 = vmatpush1.msra.mxu0 0.0
    %5074 = vmatprep.subr.mxu0 0.0
    %5075 = vmatpush1.msra.mxu0 0.0
    %5076 = vmatprep.subr.mxu0 0.0
    %5077 = vmatpush1.msra.mxu0 0.0
    %5078 = vmatprep.subr.mxu0 0.0
    %5079 = vmatpush1.msra.mxu0 0.0
    %5080 = vmatprep.subr.mxu0 0.0
    %5081 = vmatpush1.msra.mxu0 0.0
    %5082 = vmatprep.subr.mxu0 0.0
    %5083 = vmatpush1.msra.mxu0 0.0
    %5084 = vmatprep.subr.mxu0 0.0
    %5085 = vmatpush1.msra.mxu0 0.0
    %5086 = vmatprep.subr.mxu0 0.0
    %5087 = vmatpush1.msra.mxu0 0.0
    %5088 = vmatprep.subr.mxu0 0.0
    %5089 = vmatpush1.msra.mxu0 0.0
    %5090 = vmatprep.subr.mxu0 %v5046
    %5091 = vmatpush1.msra.mxu0 %v5045
    %5092 = vmatprep.subr.mxu0 0.0
    %5093 = vmatpush2.msra.mxu0 0.0
    %5094 = vmatprep.subr.mxu0 0.0
    %5095 = vmatpush2.msra.mxu0 0.0
    %5096 = vmatprep.subr.mxu0 0.0
    %5097 = vmatpush2.msra.mxu0 0.0
    %5098 = vmatprep.subr.mxu0 0.0
    %5099 = vmatpush2.msra.mxu0 0.0
    %5100 = vmatprep.subr.mxu0 0.0
    %5101 = vmatpush2.msra.mxu0 0.0
    %5102 = vmatprep.subr.mxu0 0.0
    %5103 = vmatpush2.msra.mxu0 0.0
    %5104 = vmatprep.subr.mxu0 0.0
    %5105 = vmatpush2.msra.mxu0 0.0
    %5106 = vmatprep.subr.mxu0 0.0
    %5107 = vmatpush2.msra.mxu0 0.0
    %5108 = vmatprep.subr.mxu0 0.0
    %5109 = vmatpush2.msra.mxu0 0.0
    %5110 = vmatprep.subr.mxu0 0.0
    %5111 = vmatpush2.msra.mxu0 0.0
    %5112 = vmatprep.subr.mxu0 0.0
    %5113 = vmatpush2.msra.mxu0 0.0
    %5114 = vmatprep.subr.mxu0 0.0
    %5115 = vmatpush2.msra.mxu0 0.0
    %5116 = vmatprep.subr.mxu0 0.0
    %5117 = vmatpush2.msra.mxu0 0.0
    %5118 = vmatprep.subr.mxu0 0.0
    %5119 = vmatpush2.msra.mxu0 0.0
    %5120 = vmatprep.subr.mxu0 0.0
    %5121 = vmatpush2.msra.mxu0 0.0
    %5122 = vmatprep.subr.mxu0 0.0
    %5123 = vmatpush2.msra.mxu0 0.0
    %5124 = vmatprep.mubr.f32.mxu0 0.0
    %5125 = vmatmul.mubr.f32.gmra.mxu0 %v5058
    %v5126 = vpop.f32.mrf.mxu0
    %v5127 = vadd.f32 0.0, %v5126
    %v5128 = vpop.f32.mrf.mxu0
    %v5129 = vadd.f32 0.0, %v5128
    %5130 = vdwg.mxu0
    %5131 = vmatprep.subr.mxu0 0.0
    %5132 = vmatpush1.msra.mxu0 0.0
    %5133 = vmatprep.subr.mxu0 0.0
    %5134 = vmatpush1.msra.mxu0 0.0
    %5135 = vmatprep.subr.mxu0 0.0
    %5136 = vmatpush1.msra.mxu0 0.0
    %5137 = vmatprep.subr.mxu0 0.0
    %5138 = vmatpush1.msra.mxu0 0.0
    %5139 = vmatprep.subr.mxu0 0.0
    %5140 = vmatpush1.msra.mxu0 0.0
    %5141 = vmatprep.subr.mxu0 0.0
    %5142 = vmatpush1.msra.mxu0 0.0
    %5143 = vmatprep.subr.mxu0 0.0
    %5144 = vmatpush1.msra.mxu0 0.0
    %5145 = vmatprep.subr.mxu0 0.0
    %5146 = vmatpush1.msra.mxu0 0.0
    %5147 = vmatprep.subr.mxu0 0.0
    %5148 = vmatpush1.msra.mxu0 0.0
    %5149 = vmatprep.subr.mxu0 0.0
    %5150 = vmatpush1.msra.mxu0 0.0
    %5151 = vmatprep.subr.mxu0 0.0
    %5152 = vmatpush1.msra.mxu0 0.0
    %5153 = vmatprep.subr.mxu0 0.0
    %5154 = vmatpush1.msra.mxu0 0.0
    %5155 = vmatprep.subr.mxu0 0.0
    %5156 = vmatpush1.msra.mxu0 0.0
    %5157 = vmatprep.subr.mxu0 0.0
    %5158 = vmatpush1.msra.mxu0 0.0
    %5159 = vmatprep.subr.mxu0 0.0
    %5160 = vmatpush1.msra.mxu0 0.0
    %5161 = vmatprep.subr.mxu0 %v5048
    %5162 = vmatpush1.msra.mxu0 %v5047
    %5163 = vmatprep.subr.mxu0 0.0
    %5164 = vmatpush2.msra.mxu0 0.0
    %5165 = vmatprep.subr.mxu0 0.0
    %5166 = vmatpush2.msra.mxu0 0.0
    %5167 = vmatprep.subr.mxu0 0.0
    %5168 = vmatpush2.msra.mxu0 0.0
    %5169 = vmatprep.subr.mxu0 0.0
    %5170 = vmatpush2.msra.mxu0 0.0
    %5171 = vmatprep.subr.mxu0 0.0
    %5172 = vmatpush2.msra.mxu0 0.0
    %5173 = vmatprep.subr.mxu0 0.0
    %5174 = vmatpush2.msra.mxu0 0.0
    %5175 = vmatprep.subr.mxu0 0.0
    %5176 = vmatpush2.msra.mxu0 0.0
    %5177 = vmatprep.subr.mxu0 0.0
    %5178 = vmatpush2.msra.mxu0 0.0
    %5179 = vmatprep.subr.mxu0 0.0
    %5180 = vmatpush2.msra.mxu0 0.0
    %5181 = vmatprep.subr.mxu0 0.0
    %5182 = vmatpush2.msra.mxu0 0.0
    %5183 = vmatprep.subr.mxu0 0.0
    %5184 = vmatpush2.msra.mxu0 0.0
    %5185 = vmatprep.subr.mxu0 0.0
    %5186 = vmatpush2.msra.mxu0 0.0
    %5187 = vmatprep.subr.mxu0 0.0
    %5188 = vmatpush2.msra.mxu0 0.0
    %5189 = vmatprep.subr.mxu0 0.0
    %5190 = vmatpush2.msra.mxu0 0.0
    %5191 = vmatprep.subr.mxu0 0.0
    %5192 = vmatpush2.msra.mxu0 0.0
    %5193 = vmatprep.subr.mxu0 0.0
    %5194 = vmatpush2.msra.mxu0 0.0
    %5195 = vmatprep.mubr.f32.mxu0 0.0
    %5196 = vmatmul.mubr.f32.gmra.mxu0 %v5058
    %v5197 = vpop.f32.mrf.mxu0
    %v5198 = vadd.f32 0.0, %v5197
    %v5199 = vpop.f32.mrf.mxu0
    %v5200 = vadd.f32 0.0, %v5199
    %5201 = vdwg.mxu0
    %5202 = vmatprep.subr.mxu0 0.0
    %5203 = vmatpush1.msra.mxu0 0.0
    %5204 = vmatprep.subr.mxu0 0.0
    %5205 = vmatpush1.msra.mxu0 0.0
    %5206 = vmatprep.subr.mxu0 0.0
    %5207 = vmatpush1.msra.mxu0 0.0
    %5208 = vmatprep.subr.mxu0 0.0
    %5209 = vmatpush1.msra.mxu0 0.0
    %5210 = vmatprep.subr.mxu0 0.0
    %5211 = vmatpush1.msra.mxu0 0.0
    %5212 = vmatprep.subr.mxu0 0.0
    %5213 = vmatpush1.msra.mxu0 0.0
    %5214 = vmatprep.subr.mxu0 0.0
    %5215 = vmatpush1.msra.mxu0 0.0
    %5216 = vmatprep.subr.mxu0 0.0
    %5217 = vmatpush1.msra.mxu0 0.0
    %5218 = vmatprep.subr.mxu0 0.0
    %5219 = vmatpush1.msra.mxu0 0.0
    %5220 = vmatprep.subr.mxu0 0.0
    %5221 = vmatpush1.msra.mxu0 0.0
    %5222 = vmatprep.subr.mxu0 0.0
    %5223 = vmatpush1.msra.mxu0 0.0
    %5224 = vmatprep.subr.mxu0 0.0
    %5225 = vmatpush1.msra.mxu0 0.0
    %5226 = vmatprep.subr.mxu0 0.0
    %5227 = vmatpush1.msra.mxu0 0.0
    %5228 = vmatprep.subr.mxu0 0.0
    %5229 = vmatpush1.msra.mxu0 0.0
    %5230 = vmatprep.subr.mxu0 0.0
    %5231 = vmatpush1.msra.mxu0 0.0
    %5232 = vmatprep.subr.mxu0 %v5050
    %5233 = vmatpush1.msra.mxu0 %v5049
    %5234 = vmatprep.subr.mxu0 0.0
    %5235 = vmatpush2.msra.mxu0 0.0
    %5236 = vmatprep.subr.mxu0 0.0
    %5237 = vmatpush2.msra.mxu0 0.0
    %5238 = vmatprep.subr.mxu0 0.0
    %5239 = vmatpush2.msra.mxu0 0.0
    %5240 = vmatprep.subr.mxu0 0.0
    %5241 = vmatpush2.msra.mxu0 0.0
    %5242 = vmatprep.subr.mxu0 0.0
    %5243 = vmatpush2.msra.mxu0 0.0
    %5244 = vmatprep.subr.mxu0 0.0
    %5245 = vmatpush2.msra.mxu0 0.0
    %5246 = vmatprep.subr.mxu0 0.0
    %5247 = vmatpush2.msra.mxu0 0.0
    %5248 = vmatprep.subr.mxu0 0.0
    %5249 = vmatpush2.msra.mxu0 0.0
    %5250 = vmatprep.subr.mxu0 0.0
    %5251 = vmatpush2.msra.mxu0 0.0
    %5252 = vmatprep.subr.mxu0 0.0
    %5253 = vmatpush2.msra.mxu0 0.0
    %5254 = vmatprep.subr.mxu0 0.0
    %5255 = vmatpush2.msra.mxu0 0.0
    %5256 = vmatprep.subr.mxu0 0.0
    %5257 = vmatpush2.msra.mxu0 0.0
    %5258 = vmatprep.subr.mxu0 0.0
    %5259 = vmatpush2.msra.mxu0 0.0
    %5260 = vmatprep.subr.mxu0 0.0
    %5261 = vmatpush2.msra.mxu0 0.0
    %5262 = vmatprep.subr.mxu0 0.0
    %5263 = vmatpush2.msra.mxu0 0.0
    %5264 = vmatprep.subr.mxu0 0.0
    %5265 = vmatpush2.msra.mxu0 0.0
    %5266 = vmatprep.mubr.f32.mxu0 0.0
    %5267 = vmatmul.mubr.f32.gmra.mxu0 %v5058
    %v5268 = vpop.f32.mrf.mxu0
    %v5269 = vadd.f32 0.0, %v5268
    %v5270 = vpop.f32.mrf.mxu0
    %v5271 = vadd.f32 0.0, %v5270
    %5272 = vdwg.mxu0
    %5273 = vrot.lane.b32.xlu0 %v5014, 19
    %v5274 = vpop.permute.xlu0 %5273
    %5275 = vrot.lane.b32.xlu0 %v5015, 19
    %v5276 = vpop.permute.xlu0 %5275
    %5277 = vrot.lane.b32.xlu0 %v5016, 19
    %v5278 = vpop.permute.xlu0 %5277
    %5279 = vrot.lane.b32.xlu0 %v5017, 19
    %v5280 = vpop.permute.xlu0 %5279
    %5281 = vrot.lane.b32.xlu0 %v5018, 19
    %v5282 = vpop.permute.xlu0 %5281
    %5283 = vrot.lane.b32.xlu0 %v5019, 19
    %v5284 = vpop.permute.xlu0 %5283
    %5285 = vrot.lane.b32.xlu0 %v5020, 19
    %v5286 = vpop.permute.xlu0 %5285
    %v5287 = vsel %vm332, %v5274, %v5276
    %v5288 = vsel %vm332, %v5276, %v5278
    %v5289 = vsel %vm332, %v5278, %v5280
    %v5290 = vsel %vm332, %v5280, %v5282
    %v5291 = vsel %vm332, %v5282, %v5284
    %v5292 = vsel %vm332, %v5284, %v5286
    %v5300 = vsel %vm101, %v5021, 0
    %5302 = vmatprep.subr.mxu0 0.0
    %5303 = vmatpush1.msra.mxu0 0.0
    %5304 = vmatprep.subr.mxu0 0.0
    %5305 = vmatpush1.msra.mxu0 0.0
    %5306 = vmatprep.subr.mxu0 0.0
    %5307 = vmatpush1.msra.mxu0 0.0
    %5308 = vmatprep.subr.mxu0 0.0
    %5309 = vmatpush1.msra.mxu0 0.0
    %5310 = vmatprep.subr.mxu0 0.0
    %5311 = vmatpush1.msra.mxu0 0.0
    %5312 = vmatprep.subr.mxu0 0.0
    %5313 = vmatpush1.msra.mxu0 0.0
    %5314 = vmatprep.subr.mxu0 0.0
    %5315 = vmatpush1.msra.mxu0 0.0
    %5316 = vmatprep.subr.mxu0 0.0
    %5317 = vmatpush1.msra.mxu0 0.0
    %5318 = vmatprep.subr.mxu0 0.0
    %5319 = vmatpush1.msra.mxu0 0.0
    %5320 = vmatprep.subr.mxu0 0.0
    %5321 = vmatpush1.msra.mxu0 0.0
    %5322 = vmatprep.subr.mxu0 0.0
    %5323 = vmatpush1.msra.mxu0 0.0
    %5324 = vmatprep.subr.mxu0 0.0
    %5325 = vmatpush1.msra.mxu0 0.0
    %5326 = vmatprep.subr.mxu0 0.0
    %5327 = vmatpush1.msra.mxu0 0.0
    %5328 = vmatprep.subr.mxu0 0.0
    %5329 = vmatpush1.msra.mxu0 0.0
    %5330 = vmatprep.subr.mxu0 0.0
    %5331 = vmatpush1.msra.mxu0 0.0
    %5332 = vmatprep.subr.mxu0 %v5288
    %5333 = vmatpush1.msra.mxu0 %v5287
    %5334 = vmatprep.subr.mxu0 0.0
    %5335 = vmatpush2.msra.mxu0 0.0
    %5336 = vmatprep.subr.mxu0 0.0
    %5337 = vmatpush2.msra.mxu0 0.0
    %5338 = vmatprep.subr.mxu0 0.0
    %5339 = vmatpush2.msra.mxu0 0.0
    %5340 = vmatprep.subr.mxu0 0.0
    %5341 = vmatpush2.msra.mxu0 0.0
    %5342 = vmatprep.subr.mxu0 0.0
    %5343 = vmatpush2.msra.mxu0 0.0
    %5344 = vmatprep.subr.mxu0 0.0
    %5345 = vmatpush2.msra.mxu0 0.0
    %5346 = vmatprep.subr.mxu0 0.0
    %5347 = vmatpush2.msra.mxu0 0.0
    %5348 = vmatprep.subr.mxu0 0.0
    %5349 = vmatpush2.msra.mxu0 0.0
    %5350 = vmatprep.subr.mxu0 0.0
    %5351 = vmatpush2.msra.mxu0 0.0
    %5352 = vmatprep.subr.mxu0 0.0
    %5353 = vmatpush2.msra.mxu0 0.0
    %5354 = vmatprep.subr.mxu0 0.0
    %5355 = vmatpush2.msra.mxu0 0.0
    %5356 = vmatprep.subr.mxu0 0.0
    %5357 = vmatpush2.msra.mxu0 0.0
    %5358 = vmatprep.subr.mxu0 0.0
    %5359 = vmatpush2.msra.mxu0 0.0
    %5360 = vmatprep.subr.mxu0 0.0
    %5361 = vmatpush2.msra.mxu0 0.0
    %5362 = vmatprep.subr.mxu0 0.0
    %5363 = vmatpush2.msra.mxu0 0.0
    %5364 = vmatprep.subr.mxu0 0.0
    %5365 = vmatpush2.msra.mxu0 0.0
    %5366 = vmatprep.mubr.f32.mxu0 0.0
    %5367 = vmatmul.mubr.f32.gmra.mxu0 %v5300
    %v5368 = vpop.f32.mrf.mxu0
    %v5369 = vadd.f32 %v5127, %v5368
    %v5370 = vpop.f32.mrf.mxu0
    %v5371 = vadd.f32 %v5129, %v5370
    %5372 = vdwg.mxu0
    %5373 = vmatprep.subr.mxu0 0.0
    %5374 = vmatpush1.msra.mxu0 0.0
    %5375 = vmatprep.subr.mxu0 0.0
    %5376 = vmatpush1.msra.mxu0 0.0
    %5377 = vmatprep.subr.mxu0 0.0
    %5378 = vmatpush1.msra.mxu0 0.0
    %5379 = vmatprep.subr.mxu0 0.0
    %5380 = vmatpush1.msra.mxu0 0.0
    %5381 = vmatprep.subr.mxu0 0.0
    %5382 = vmatpush1.msra.mxu0 0.0
    %5383 = vmatprep.subr.mxu0 0.0
    %5384 = vmatpush1.msra.mxu0 0.0
    %5385 = vmatprep.subr.mxu0 0.0
    %5386 = vmatpush1.msra.mxu0 0.0
    %5387 = vmatprep.subr.mxu0 0.0
    %5388 = vmatpush1.msra.mxu0 0.0
    %5389 = vmatprep.subr.mxu0 0.0
    %5390 = vmatpush1.msra.mxu0 0.0
    %5391 = vmatprep.subr.mxu0 0.0
    %5392 = vmatpush1.msra.mxu0 0.0
    %5393 = vmatprep.subr.mxu0 0.0
    %5394 = vmatpush1.msra.mxu0 0.0
    %5395 = vmatprep.subr.mxu0 0.0
    %5396 = vmatpush1.msra.mxu0 0.0
    %5397 = vmatprep.subr.mxu0 0.0
    %5398 = vmatpush1.msra.mxu0 0.0
    %5399 = vmatprep.subr.mxu0 0.0
    %5400 = vmatpush1.msra.mxu0 0.0
    %5401 = vmatprep.subr.mxu0 0.0
    %5402 = vmatpush1.msra.mxu0 0.0
    %5403 = vmatprep.subr.mxu0 %v5290
    %5404 = vmatpush1.msra.mxu0 %v5289
    %5405 = vmatprep.subr.mxu0 0.0
    %5406 = vmatpush2.msra.mxu0 0.0
    %5407 = vmatprep.subr.mxu0 0.0
    %5408 = vmatpush2.msra.mxu0 0.0
    %5409 = vmatprep.subr.mxu0 0.0
    %5410 = vmatpush2.msra.mxu0 0.0
    %5411 = vmatprep.subr.mxu0 0.0
    %5412 = vmatpush2.msra.mxu0 0.0
    %5413 = vmatprep.subr.mxu0 0.0
    %5414 = vmatpush2.msra.mxu0 0.0
    %5415 = vmatprep.subr.mxu0 0.0
    %5416 = vmatpush2.msra.mxu0 0.0
    %5417 = vmatprep.subr.mxu0 0.0
    %5418 = vmatpush2.msra.mxu0 0.0
    %5419 = vmatprep.subr.mxu0 0.0
    %5420 = vmatpush2.msra.mxu0 0.0
    %5421 = vmatprep.subr.mxu0 0.0
    %5422 = vmatpush2.msra.mxu0 0.0
    %5423 = vmatprep.subr.mxu0 0.0
    %5424 = vmatpush2.msra.mxu0 0.0
    %5425 = vmatprep.subr.mxu0 0.0
    %5426 = vmatpush2.msra.mxu0 0.0
    %5427 = vmatprep.subr.mxu0 0.0
    %5428 = vmatpush2.msra.mxu0 0.0
    %5429 = vmatprep.subr.mxu0 0.0
    %5430 = vmatpush2.msra.mxu0 0.0
    %5431 = vmatprep.subr.mxu0 0.0
    %5432 = vmatpush2.msra.mxu0 0.0
    %5433 = vmatprep.subr.mxu0 0.0
    %5434 = vmatpush2.msra.mxu0 0.0
    %5435 = vmatprep.subr.mxu0 0.0
    %5436 = vmatpush2.msra.mxu0 0.0
    %5437 = vmatprep.mubr.f32.mxu0 0.0
    %5438 = vmatmul.mubr.f32.gmra.mxu0 %v5300
    %v5439 = vpop.f32.mrf.mxu0
    %v5440 = vadd.f32 %v5198, %v5439
    %v5441 = vpop.f32.mrf.mxu0
    %v5442 = vadd.f32 %v5200, %v5441
    %5443 = vdwg.mxu0
    %5444 = vmatprep.subr.mxu0 0.0
    %5445 = vmatpush1.msra.mxu0 0.0
    %5446 = vmatprep.subr.mxu0 0.0
    %5447 = vmatpush1.msra.mxu0 0.0
    %5448 = vmatprep.subr.mxu0 0.0
    %5449 = vmatpush1.msra.mxu0 0.0
    %5450 = vmatprep.subr.mxu0 0.0
    %5451 = vmatpush1.msra.mxu0 0.0
    %5452 = vmatprep.subr.mxu0 0.0
    %5453 = vmatpush1.msra.mxu0 0.0
    %5454 = vmatprep.subr.mxu0 0.0
    %5455 = vmatpush1.msra.mxu0 0.0
    %5456 = vmatprep.subr.mxu0 0.0
    %5457 = vmatpush1.msra.mxu0 0.0
    %5458 = vmatprep.subr.mxu0 0.0
    %5459 = vmatpush1.msra.mxu0 0.0
    %5460 = vmatprep.subr.mxu0 0.0
    %5461 = vmatpush1.msra.mxu0 0.0
    %5462 = vmatprep.subr.mxu0 0.0
    %5463 = vmatpush1.msra.mxu0 0.0
    %5464 = vmatprep.subr.mxu0 0.0
    %5465 = vmatpush1.msra.mxu0 0.0
    %5466 = vmatprep.subr.mxu0 0.0
    %5467 = vmatpush1.msra.mxu0 0.0
    %5468 = vmatprep.subr.mxu0 0.0
    %5469 = vmatpush1.msra.mxu0 0.0
    %5470 = vmatprep.subr.mxu0 0.0
    %5471 = vmatpush1.msra.mxu0 0.0
    %5472 = vmatprep.subr.mxu0 0.0
    %5473 = vmatpush1.msra.mxu0 0.0
    %5474 = vmatprep.subr.mxu0 %v5292
    %5475 = vmatpush1.msra.mxu0 %v5291
    %5476 = vmatprep.subr.mxu0 0.0
    %5477 = vmatpush2.msra.mxu0 0.0
    %5478 = vmatprep.subr.mxu0 0.0
    %5479 = vmatpush2.msra.mxu0 0.0
    %5480 = vmatprep.subr.mxu0 0.0
    %5481 = vmatpush2.msra.mxu0 0.0
    %5482 = vmatprep.subr.mxu0 0.0
    %5483 = vmatpush2.msra.mxu0 0.0
    %5484 = vmatprep.subr.mxu0 0.0
    %5485 = vmatpush2.msra.mxu0 0.0
    %5486 = vmatprep.subr.mxu0 0.0
    %5487 = vmatpush2.msra.mxu0 0.0
    %5488 = vmatprep.subr.mxu0 0.0
    %5489 = vmatpush2.msra.mxu0 0.0
    %5490 = vmatprep.subr.mxu0 0.0
    %5491 = vmatpush2.msra.mxu0 0.0
    %5492 = vmatprep.subr.mxu0 0.0
    %5493 = vmatpush2.msra.mxu0 0.0
    %5494 = vmatprep.subr.mxu0 0.0
    %5495 = vmatpush2.msra.mxu0 0.0
    %5496 = vmatprep.subr.mxu0 0.0
    %5497 = vmatpush2.msra.mxu0 0.0
    %5498 = vmatprep.subr.mxu0 0.0
    %5499 = vmatpush2.msra.mxu0 0.0
    %5500 = vmatprep.subr.mxu0 0.0
    %5501 = vmatpush2.msra.mxu0 0.0
    %5502 = vmatprep.subr.mxu0 0.0
    %5503 = vmatpush2.msra.mxu0 0.0
    %5504 = vmatprep.subr.mxu0 0.0
    %5505 = vmatpush2.msra.mxu0 0.0
    %5506 = vmatprep.subr.mxu0 0.0
    %5507 = vmatpush2.msra.mxu0 0.0
    %5508 = vmatprep.mubr.f32.mxu0 0.0
    %5509 = vmatmul.mubr.f32.gmra.mxu0 %v5300
    %v5510 = vpop.f32.mrf.mxu0
    %v5511 = vadd.f32 %v5269, %v5510
    %v5512 = vpop.f32.mrf.mxu0
    %v5513 = vadd.f32 %v5271, %v5512
    %5514 = vdwg.mxu0
    %s5515 = scalar_lea.vmem %s8, 16
    %v5516 = vld [vmem:[%s5515] sm:$0xff]
    %5517 = vrot.lane.b32.xlu0 %v5014, 17
    %v5518 = vpop.permute.xlu0 %5517
    %5519 = vrot.lane.b32.xlu0 %v5015, 17
    %v5520 = vpop.permute.xlu0 %5519
    %5521 = vrot.lane.b32.xlu0 %v5016, 17
    %v5522 = vpop.permute.xlu0 %5521
    %5523 = vrot.lane.b32.xlu0 %v5017, 17
    %v5524 = vpop.permute.xlu0 %5523
    %5525 = vrot.lane.b32.xlu0 %v5018, 17
    %v5526 = vpop.permute.xlu0 %5525
    %5527 = vrot.lane.b32.xlu0 %v5019, 17
    %v5528 = vpop.permute.xlu0 %5527
    %5529 = vrot.lane.b32.xlu0 %v5020, 17
    %v5530 = vpop.permute.xlu0 %5529
    %v5531 = vsel %vm577, %v5518, %v5520
    %v5532 = vsel %vm577, %v5520, %v5522
    %v5533 = vsel %vm577, %v5522, %v5524
    %v5534 = vsel %vm577, %v5524, %v5526
    %v5535 = vsel %vm577, %v5526, %v5528
    %v5536 = vsel %vm577, %v5528, %v5530
    %v5544 = vsel %vm101, %v5516, 0
    %5546 = vmatprep.subr.mxu0 0.0
    %5547 = vmatpush1.msra.mxu0 0.0
    %5548 = vmatprep.subr.mxu0 0.0
    %5549 = vmatpush1.msra.mxu0 0.0
    %5550 = vmatprep.subr.mxu0 0.0
    %5551 = vmatpush1.msra.mxu0 0.0
    %5552 = vmatprep.subr.mxu0 0.0
    %5553 = vmatpush1.msra.mxu0 0.0
    %5554 = vmatprep.subr.mxu0 0.0
    %5555 = vmatpush1.msra.mxu0 0.0
    %5556 = vmatprep.subr.mxu0 0.0
    %5557 = vmatpush1.msra.mxu0 0.0
    %5558 = vmatprep.subr.mxu0 0.0
    %5559 = vmatpush1.msra.mxu0 0.0
    %5560 = vmatprep.subr.mxu0 0.0
    %5561 = vmatpush1.msra.mxu0 0.0
    %5562 = vmatprep.subr.mxu0 0.0
    %5563 = vmatpush1.msra.mxu0 0.0
    %5564 = vmatprep.subr.mxu0 0.0
    %5565 = vmatpush1.msra.mxu0 0.0
    %5566 = vmatprep.subr.mxu0 0.0
    %5567 = vmatpush1.msra.mxu0 0.0
    %5568 = vmatprep.subr.mxu0 0.0
    %5569 = vmatpush1.msra.mxu0 0.0
    %5570 = vmatprep.subr.mxu0 0.0
    %5571 = vmatpush1.msra.mxu0 0.0
    %5572 = vmatprep.subr.mxu0 0.0
    %5573 = vmatpush1.msra.mxu0 0.0
    %5574 = vmatprep.subr.mxu0 0.0
    %5575 = vmatpush1.msra.mxu0 0.0
    %5576 = vmatprep.subr.mxu0 %v5532
    %5577 = vmatpush1.msra.mxu0 %v5531
    %5578 = vmatprep.subr.mxu0 0.0
    %5579 = vmatpush2.msra.mxu0 0.0
    %5580 = vmatprep.subr.mxu0 0.0
    %5581 = vmatpush2.msra.mxu0 0.0
    %5582 = vmatprep.subr.mxu0 0.0
    %5583 = vmatpush2.msra.mxu0 0.0
    %5584 = vmatprep.subr.mxu0 0.0
    %5585 = vmatpush2.msra.mxu0 0.0
    %5586 = vmatprep.subr.mxu0 0.0
    %5587 = vmatpush2.msra.mxu0 0.0
    %5588 = vmatprep.subr.mxu0 0.0
    %5589 = vmatpush2.msra.mxu0 0.0
    %5590 = vmatprep.subr.mxu0 0.0
    %5591 = vmatpush2.msra.mxu0 0.0
    %5592 = vmatprep.subr.mxu0 0.0
    %5593 = vmatpush2.msra.mxu0 0.0
    %5594 = vmatprep.subr.mxu0 0.0
    %5595 = vmatpush2.msra.mxu0 0.0
    %5596 = vmatprep.subr.mxu0 0.0
    %5597 = vmatpush2.msra.mxu0 0.0
    %5598 = vmatprep.subr.mxu0 0.0
    %5599 = vmatpush2.msra.mxu0 0.0
    %5600 = vmatprep.subr.mxu0 0.0
    %5601 = vmatpush2.msra.mxu0 0.0
    %5602 = vmatprep.subr.mxu0 0.0
    %5603 = vmatpush2.msra.mxu0 0.0
    %5604 = vmatprep.subr.mxu0 0.0
    %5605 = vmatpush2.msra.mxu0 0.0
    %5606 = vmatprep.subr.mxu0 0.0
    %5607 = vmatpush2.msra.mxu0 0.0
    %5608 = vmatprep.subr.mxu0 0.0
    %5609 = vmatpush2.msra.mxu0 0.0
    %5610 = vmatprep.mubr.f32.mxu0 0.0
    %5611 = vmatmul.mubr.f32.gmra.mxu0 %v5544
    %v5612 = vpop.f32.mrf.mxu0
    %v5613 = vadd.f32 0.0, %v5612
    %v5614 = vpop.f32.mrf.mxu0
    %v5615 = vadd.f32 0.0, %v5614
    %5616 = vdwg.mxu0
    %5617 = vmatprep.subr.mxu0 0.0
    %5618 = vmatpush1.msra.mxu0 0.0
    %5619 = vmatprep.subr.mxu0 0.0
    %5620 = vmatpush1.msra.mxu0 0.0
    %5621 = vmatprep.subr.mxu0 0.0
    %5622 = vmatpush1.msra.mxu0 0.0
    %5623 = vmatprep.subr.mxu0 0.0
    %5624 = vmatpush1.msra.mxu0 0.0
    %5625 = vmatprep.subr.mxu0 0.0
    %5626 = vmatpush1.msra.mxu0 0.0
    %5627 = vmatprep.subr.mxu0 0.0
    %5628 = vmatpush1.msra.mxu0 0.0
    %5629 = vmatprep.subr.mxu0 0.0
    %5630 = vmatpush1.msra.mxu0 0.0
    %5631 = vmatprep.subr.mxu0 0.0
    %5632 = vmatpush1.msra.mxu0 0.0
    %5633 = vmatprep.subr.mxu0 0.0
    %5634 = vmatpush1.msra.mxu0 0.0
    %5635 = vmatprep.subr.mxu0 0.0
    %5636 = vmatpush1.msra.mxu0 0.0
    %5637 = vmatprep.subr.mxu0 0.0
    %5638 = vmatpush1.msra.mxu0 0.0
    %5639 = vmatprep.subr.mxu0 0.0
    %5640 = vmatpush1.msra.mxu0 0.0
    %5641 = vmatprep.subr.mxu0 0.0
    %5642 = vmatpush1.msra.mxu0 0.0
    %5643 = vmatprep.subr.mxu0 0.0
    %5644 = vmatpush1.msra.mxu0 0.0
    %5645 = vmatprep.subr.mxu0 0.0
    %5646 = vmatpush1.msra.mxu0 0.0
    %5647 = vmatprep.subr.mxu0 %v5534
    %5648 = vmatpush1.msra.mxu0 %v5533
    %5649 = vmatprep.subr.mxu0 0.0
    %5650 = vmatpush2.msra.mxu0 0.0
    %5651 = vmatprep.subr.mxu0 0.0
    %5652 = vmatpush2.msra.mxu0 0.0
    %5653 = vmatprep.subr.mxu0 0.0
    %5654 = vmatpush2.msra.mxu0 0.0
    %5655 = vmatprep.subr.mxu0 0.0
    %5656 = vmatpush2.msra.mxu0 0.0
    %5657 = vmatprep.subr.mxu0 0.0
    %5658 = vmatpush2.msra.mxu0 0.0
    %5659 = vmatprep.subr.mxu0 0.0
    %5660 = vmatpush2.msra.mxu0 0.0
    %5661 = vmatprep.subr.mxu0 0.0
    %5662 = vmatpush2.msra.mxu0 0.0
    %5663 = vmatprep.subr.mxu0 0.0
    %5664 = vmatpush2.msra.mxu0 0.0
    %5665 = vmatprep.subr.mxu0 0.0
    %5666 = vmatpush2.msra.mxu0 0.0
    %5667 = vmatprep.subr.mxu0 0.0
    %5668 = vmatpush2.msra.mxu0 0.0
    %5669 = vmatprep.subr.mxu0 0.0
    %5670 = vmatpush2.msra.mxu0 0.0
    %5671 = vmatprep.subr.mxu0 0.0
    %5672 = vmatpush2.msra.mxu0 0.0
    %5673 = vmatprep.subr.mxu0 0.0
    %5674 = vmatpush2.msra.mxu0 0.0
    %5675 = vmatprep.subr.mxu0 0.0
    %5676 = vmatpush2.msra.mxu0 0.0
    %5677 = vmatprep.subr.mxu0 0.0
    %5678 = vmatpush2.msra.mxu0 0.0
    %5679 = vmatprep.subr.mxu0 0.0
    %5680 = vmatpush2.msra.mxu0 0.0
    %5681 = vmatprep.mubr.f32.mxu0 0.0
    %5682 = vmatmul.mubr.f32.gmra.mxu0 %v5544
    %v5683 = vpop.f32.mrf.mxu0
    %v5684 = vadd.f32 0.0, %v5683
    %v5685 = vpop.f32.mrf.mxu0
    %v5686 = vadd.f32 0.0, %v5685
    %5687 = vdwg.mxu0
    %5688 = vmatprep.subr.mxu0 0.0
    %5689 = vmatpush1.msra.mxu0 0.0
    %5690 = vmatprep.subr.mxu0 0.0
    %5691 = vmatpush1.msra.mxu0 0.0
    %5692 = vmatprep.subr.mxu0 0.0
    %5693 = vmatpush1.msra.mxu0 0.0
    %5694 = vmatprep.subr.mxu0 0.0
    %5695 = vmatpush1.msra.mxu0 0.0
    %5696 = vmatprep.subr.mxu0 0.0
    %5697 = vmatpush1.msra.mxu0 0.0
    %5698 = vmatprep.subr.mxu0 0.0
    %5699 = vmatpush1.msra.mxu0 0.0
    %5700 = vmatprep.subr.mxu0 0.0
    %5701 = vmatpush1.msra.mxu0 0.0
    %5702 = vmatprep.subr.mxu0 0.0
    %5703 = vmatpush1.msra.mxu0 0.0
    %5704 = vmatprep.subr.mxu0 0.0
    %5705 = vmatpush1.msra.mxu0 0.0
    %5706 = vmatprep.subr.mxu0 0.0
    %5707 = vmatpush1.msra.mxu0 0.0
    %5708 = vmatprep.subr.mxu0 0.0
    %5709 = vmatpush1.msra.mxu0 0.0
    %5710 = vmatprep.subr.mxu0 0.0
    %5711 = vmatpush1.msra.mxu0 0.0
    %5712 = vmatprep.subr.mxu0 0.0
    %5713 = vmatpush1.msra.mxu0 0.0
    %5714 = vmatprep.subr.mxu0 0.0
    %5715 = vmatpush1.msra.mxu0 0.0
    %5716 = vmatprep.subr.mxu0 0.0
    %5717 = vmatpush1.msra.mxu0 0.0
    %5718 = vmatprep.subr.mxu0 %v5536
    %5719 = vmatpush1.msra.mxu0 %v5535
    %5720 = vmatprep.subr.mxu0 0.0
    %5721 = vmatpush2.msra.mxu0 0.0
    %5722 = vmatprep.subr.mxu0 0.0
    %5723 = vmatpush2.msra.mxu0 0.0
    %5724 = vmatprep.subr.mxu0 0.0
    %5725 = vmatpush2.msra.mxu0 0.0
    %5726 = vmatprep.subr.mxu0 0.0
    %5727 = vmatpush2.msra.mxu0 0.0
    %5728 = vmatprep.subr.mxu0 0.0
    %5729 = vmatpush2.msra.mxu0 0.0
    %5730 = vmatprep.subr.mxu0 0.0
    %5731 = vmatpush2.msra.mxu0 0.0
    %5732 = vmatprep.subr.mxu0 0.0
    %5733 = vmatpush2.msra.mxu0 0.0
    %5734 = vmatprep.subr.mxu0 0.0
    %5735 = vmatpush2.msra.mxu0 0.0
    %5736 = vmatprep.subr.mxu0 0.0
    %5737 = vmatpush2.msra.mxu0 0.0
    %5738 = vmatprep.subr.mxu0 0.0
    %5739 = vmatpush2.msra.mxu0 0.0
    %5740 = vmatprep.subr.mxu0 0.0
    %5741 = vmatpush2.msra.mxu0 0.0
    %5742 = vmatprep.subr.mxu0 0.0
    %5743 = vmatpush2.msra.mxu0 0.0
    %5744 = vmatprep.subr.mxu0 0.0
    %5745 = vmatpush2.msra.mxu0 0.0
    %5746 = vmatprep.subr.mxu0 0.0
    %5747 = vmatpush2.msra.mxu0 0.0
    %5748 = vmatprep.subr.mxu0 0.0
    %5749 = vmatpush2.msra.mxu0 0.0
    %5750 = vmatprep.subr.mxu0 0.0
    %5751 = vmatpush2.msra.mxu0 0.0
    %5752 = vmatprep.mubr.f32.mxu0 0.0
    %5753 = vmatmul.mubr.f32.gmra.mxu0 %v5544
    %v5754 = vpop.f32.mrf.mxu0
    %v5755 = vadd.f32 0.0, %v5754
    %v5756 = vpop.f32.mrf.mxu0
    %v5757 = vadd.f32 0.0, %v5756
    %5758 = vdwg.mxu0
    %v5759 = vadd.f32 %v5369, %v5613
    %v5760 = vadd.f32 %v5371, %v5615
    %v5761 = vadd.f32 %v5440, %v5684
    %v5762 = vadd.f32 %v5442, %v5686
    %v5763 = vadd.f32 %v5511, %v5755
    %v5764 = vadd.f32 %v5513, %v5757
    %s5765 = scalar_lea.vmem %s8, 24
    %v5766 = vld [vmem:[%s5765] sm:$0xff]
    %5767 = vrot.lane.b32.xlu0 %v5014, 1
    %v5768 = vpop.permute.xlu0 %5767
    %5769 = vrot.lane.b32.xlu0 %v5015, 1
    %v5770 = vpop.permute.xlu0 %5769
    %5771 = vrot.lane.b32.xlu0 %v5016, 1
    %v5772 = vpop.permute.xlu0 %5771
    %5773 = vrot.lane.b32.xlu0 %v5017, 1
    %v5774 = vpop.permute.xlu0 %5773
    %5775 = vrot.lane.b32.xlu0 %v5018, 1
    %v5776 = vpop.permute.xlu0 %5775
    %5777 = vrot.lane.b32.xlu0 %v5019, 1
    %v5778 = vpop.permute.xlu0 %5777
    %5779 = vrot.lane.b32.xlu0 %v5020, 1
    %v5780 = vpop.permute.xlu0 %5779
    %v5781 = vsel %vm828, %v5768, %v5770
    %v5782 = vsel %vm828, %v5770, %v5772
    %v5783 = vsel %vm828, %v5772, %v5774
    %v5784 = vsel %vm828, %v5774, %v5776
    %v5785 = vsel %vm828, %v5776, %v5778
    %v5786 = vsel %vm828, %v5778, %v5780
    %v5794 = vsel %vm101, %v5766, 0
    %5796 = vmatprep.subr.mxu0 0.0
    %5797 = vmatpush1.msra.mxu0 0.0
    %5798 = vmatprep.subr.mxu0 0.0
    %5799 = vmatpush1.msra.mxu0 0.0
    %5800 = vmatprep.subr.mxu0 0.0
    %5801 = vmatpush1.msra.mxu0 0.0
    %5802 = vmatprep.subr.mxu0 0.0
    %5803 = vmatpush1.msra.mxu0 0.0
    %5804 = vmatprep.subr.mxu0 0.0
    %5805 = vmatpush1.msra.mxu0 0.0
    %5806 = vmatprep.subr.mxu0 0.0
    %5807 = vmatpush1.msra.mxu0 0.0
    %5808 = vmatprep.subr.mxu0 0.0
    %5809 = vmatpush1.msra.mxu0 0.0
    %5810 = vmatprep.subr.mxu0 0.0
    %5811 = vmatpush1.msra.mxu0 0.0
    %5812 = vmatprep.subr.mxu0 0.0
    %5813 = vmatpush1.msra.mxu0 0.0
    %5814 = vmatprep.subr.mxu0 0.0
    %5815 = vmatpush1.msra.mxu0 0.0
    %5816 = vmatprep.subr.mxu0 0.0
    %5817 = vmatpush1.msra.mxu0 0.0
    %5818 = vmatprep.subr.mxu0 0.0
    %5819 = vmatpush1.msra.mxu0 0.0
    %5820 = vmatprep.subr.mxu0 0.0
    %5821 = vmatpush1.msra.mxu0 0.0
    %5822 = vmatprep.subr.mxu0 0.0
    %5823 = vmatpush1.msra.mxu0 0.0
    %5824 = vmatprep.subr.mxu0 0.0
    %5825 = vmatpush1.msra.mxu0 0.0
    %5826 = vmatprep.subr.mxu0 %v5782
    %5827 = vmatpush1.msra.mxu0 %v5781
    %5828 = vmatprep.subr.mxu0 0.0
    %5829 = vmatpush2.msra.mxu0 0.0
    %5830 = vmatprep.subr.mxu0 0.0
    %5831 = vmatpush2.msra.mxu0 0.0
    %5832 = vmatprep.subr.mxu0 0.0
    %5833 = vmatpush2.msra.mxu0 0.0
    %5834 = vmatprep.subr.mxu0 0.0
    %5835 = vmatpush2.msra.mxu0 0.0
    %5836 = vmatprep.subr.mxu0 0.0
    %5837 = vmatpush2.msra.mxu0 0.0
    %5838 = vmatprep.subr.mxu0 0.0
    %5839 = vmatpush2.msra.mxu0 0.0
    %5840 = vmatprep.subr.mxu0 0.0
    %5841 = vmatpush2.msra.mxu0 0.0
    %5842 = vmatprep.subr.mxu0 0.0
    %5843 = vmatpush2.msra.mxu0 0.0
    %5844 = vmatprep.subr.mxu0 0.0
    %5845 = vmatpush2.msra.mxu0 0.0
    %5846 = vmatprep.subr.mxu0 0.0
    %5847 = vmatpush2.msra.mxu0 0.0
    %5848 = vmatprep.subr.mxu0 0.0
    %5849 = vmatpush2.msra.mxu0 0.0
    %5850 = vmatprep.subr.mxu0 0.0
    %5851 = vmatpush2.msra.mxu0 0.0
    %5852 = vmatprep.subr.mxu0 0.0
    %5853 = vmatpush2.msra.mxu0 0.0
    %5854 = vmatprep.subr.mxu0 0.0
    %5855 = vmatpush2.msra.mxu0 0.0
    %5856 = vmatprep.subr.mxu0 0.0
    %5857 = vmatpush2.msra.mxu0 0.0
    %5858 = vmatprep.subr.mxu0 0.0
    %5859 = vmatpush2.msra.mxu0 0.0
    %5860 = vmatprep.mubr.f32.mxu0 0.0
    %5861 = vmatmul.mubr.f32.gmra.mxu0 %v5794
    %v5862 = vpop.f32.mrf.mxu0
    %v5863 = vadd.f32 0.0, %v5862
    %v5864 = vpop.f32.mrf.mxu0
    %v5865 = vadd.f32 0.0, %v5864
    %5866 = vdwg.mxu0
    %5867 = vmatprep.subr.mxu0 0.0
    %5868 = vmatpush1.msra.mxu0 0.0
    %5869 = vmatprep.subr.mxu0 0.0
    %5870 = vmatpush1.msra.mxu0 0.0
    %5871 = vmatprep.subr.mxu0 0.0
    %5872 = vmatpush1.msra.mxu0 0.0
    %5873 = vmatprep.subr.mxu0 0.0
    %5874 = vmatpush1.msra.mxu0 0.0
    %5875 = vmatprep.subr.mxu0 0.0
    %5876 = vmatpush1.msra.mxu0 0.0
    %5877 = vmatprep.subr.mxu0 0.0
    %5878 = vmatpush1.msra.mxu0 0.0
    %5879 = vmatprep.subr.mxu0 0.0
    %5880 = vmatpush1.msra.mxu0 0.0
    %5881 = vmatprep.subr.mxu0 0.0
    %5882 = vmatpush1.msra.mxu0 0.0
    %5883 = vmatprep.subr.mxu0 0.0
    %5884 = vmatpush1.msra.mxu0 0.0
    %5885 = vmatprep.subr.mxu0 0.0
    %5886 = vmatpush1.msra.mxu0 0.0
    %5887 = vmatprep.subr.mxu0 0.0
    %5888 = vmatpush1.msra.mxu0 0.0
    %5889 = vmatprep.subr.mxu0 0.0
    %5890 = vmatpush1.msra.mxu0 0.0
    %5891 = vmatprep.subr.mxu0 0.0
    %5892 = vmatpush1.msra.mxu0 0.0
    %5893 = vmatprep.subr.mxu0 0.0
    %5894 = vmatpush1.msra.mxu0 0.0
    %5895 = vmatprep.subr.mxu0 0.0
    %5896 = vmatpush1.msra.mxu0 0.0
    %5897 = vmatprep.subr.mxu0 %v5784
    %5898 = vmatpush1.msra.mxu0 %v5783
    %5899 = vmatprep.subr.mxu0 0.0
    %5900 = vmatpush2.msra.mxu0 0.0
    %5901 = vmatprep.subr.mxu0 0.0
    %5902 = vmatpush2.msra.mxu0 0.0
    %5903 = vmatprep.subr.mxu0 0.0
    %5904 = vmatpush2.msra.mxu0 0.0
    %5905 = vmatprep.subr.mxu0 0.0
    %5906 = vmatpush2.msra.mxu0 0.0
    %5907 = vmatprep.subr.mxu0 0.0
    %5908 = vmatpush2.msra.mxu0 0.0
    %5909 = vmatprep.subr.mxu0 0.0
    %5910 = vmatpush2.msra.mxu0 0.0
    %5911 = vmatprep.subr.mxu0 0.0
    %5912 = vmatpush2.msra.mxu0 0.0
    %5913 = vmatprep.subr.mxu0 0.0
    %5914 = vmatpush2.msra.mxu0 0.0
    %5915 = vmatprep.subr.mxu0 0.0
    %5916 = vmatpush2.msra.mxu0 0.0
    %5917 = vmatprep.subr.mxu0 0.0
    %5918 = vmatpush2.msra.mxu0 0.0
    %5919 = vmatprep.subr.mxu0 0.0
    %5920 = vmatpush2.msra.mxu0 0.0
    %5921 = vmatprep.subr.mxu0 0.0
    %5922 = vmatpush2.msra.mxu0 0.0
    %5923 = vmatprep.subr.mxu0 0.0
    %5924 = vmatpush2.msra.mxu0 0.0
    %5925 = vmatprep.subr.mxu0 0.0
    %5926 = vmatpush2.msra.mxu0 0.0
    %5927 = vmatprep.subr.mxu0 0.0
    %5928 = vmatpush2.msra.mxu0 0.0
    %5929 = vmatprep.subr.mxu0 0.0
    %5930 = vmatpush2.msra.mxu0 0.0
    %5931 = vmatprep.mubr.f32.mxu0 0.0
    %5932 = vmatmul.mubr.f32.gmra.mxu0 %v5794
    %v5933 = vpop.f32.mrf.mxu0
    %v5934 = vadd.f32 0.0, %v5933
    %v5935 = vpop.f32.mrf.mxu0
    %v5936 = vadd.f32 0.0, %v5935
    %5937 = vdwg.mxu0
    %5938 = vmatprep.subr.mxu0 0.0
    %5939 = vmatpush1.msra.mxu0 0.0
    %5940 = vmatprep.subr.mxu0 0.0
    %5941 = vmatpush1.msra.mxu0 0.0
    %5942 = vmatprep.subr.mxu0 0.0
    %5943 = vmatpush1.msra.mxu0 0.0
    %5944 = vmatprep.subr.mxu0 0.0
    %5945 = vmatpush1.msra.mxu0 0.0
    %5946 = vmatprep.subr.mxu0 0.0
    %5947 = vmatpush1.msra.mxu0 0.0
    %5948 = vmatprep.subr.mxu0 0.0
    %5949 = vmatpush1.msra.mxu0 0.0
    %5950 = vmatprep.subr.mxu0 0.0
    %5951 = vmatpush1.msra.mxu0 0.0
    %5952 = vmatprep.subr.mxu0 0.0
    %5953 = vmatpush1.msra.mxu0 0.0
    %5954 = vmatprep.subr.mxu0 0.0
    %5955 = vmatpush1.msra.mxu0 0.0
    %5956 = vmatprep.subr.mxu0 0.0
    %5957 = vmatpush1.msra.mxu0 0.0
    %5958 = vmatprep.subr.mxu0 0.0
    %5959 = vmatpush1.msra.mxu0 0.0
    %5960 = vmatprep.subr.mxu0 0.0
    %5961 = vmatpush1.msra.mxu0 0.0
    %5962 = vmatprep.subr.mxu0 0.0
    %5963 = vmatpush1.msra.mxu0 0.0
    %5964 = vmatprep.subr.mxu0 0.0
    %5965 = vmatpush1.msra.mxu0 0.0
    %5966 = vmatprep.subr.mxu0 0.0
    %5967 = vmatpush1.msra.mxu0 0.0
    %5968 = vmatprep.subr.mxu0 %v5786
    %5969 = vmatpush1.msra.mxu0 %v5785
    %5970 = vmatprep.subr.mxu0 0.0
    %5971 = vmatpush2.msra.mxu0 0.0
    %5972 = vmatprep.subr.mxu0 0.0
    %5973 = vmatpush2.msra.mxu0 0.0
    %5974 = vmatprep.subr.mxu0 0.0
    %5975 = vmatpush2.msra.mxu0 0.0
    %5976 = vmatprep.subr.mxu0 0.0
    %5977 = vmatpush2.msra.mxu0 0.0
    %5978 = vmatprep.subr.mxu0 0.0
    %5979 = vmatpush2.msra.mxu0 0.0
    %5980 = vmatprep.subr.mxu0 0.0
    %5981 = vmatpush2.msra.mxu0 0.0
    %5982 = vmatprep.subr.mxu0 0.0
    %5983 = vmatpush2.msra.mxu0 0.0
    %5984 = vmatprep.subr.mxu0 0.0
    %5985 = vmatpush2.msra.mxu0 0.0
    %5986 = vmatprep.subr.mxu0 0.0
    %5987 = vmatpush2.msra.mxu0 0.0
    %5988 = vmatprep.subr.mxu0 0.0
    %5989 = vmatpush2.msra.mxu0 0.0
    %5990 = vmatprep.subr.mxu0 0.0
    %5991 = vmatpush2.msra.mxu0 0.0
    %5992 = vmatprep.subr.mxu0 0.0
    %5993 = vmatpush2.msra.mxu0 0.0
    %5994 = vmatprep.subr.mxu0 0.0
    %5995 = vmatpush2.msra.mxu0 0.0
    %5996 = vmatprep.subr.mxu0 0.0
    %5997 = vmatpush2.msra.mxu0 0.0
    %5998 = vmatprep.subr.mxu0 0.0
    %5999 = vmatpush2.msra.mxu0 0.0
    %6000 = vmatprep.subr.mxu0 0.0
    %6001 = vmatpush2.msra.mxu0 0.0
    %6002 = vmatprep.mubr.f32.mxu0 0.0
    %6003 = vmatmul.mubr.f32.gmra.mxu0 %v5794
    %v6004 = vpop.f32.mrf.mxu0
    %v6005 = vadd.f32 0.0, %v6004
    %v6006 = vpop.f32.mrf.mxu0
    %v6007 = vadd.f32 0.0, %v6006
    %6008 = vdwg.mxu0
    %v6009 = vadd.f32 %v5759, %v5863
    %v6010 = vadd.f32 %v5760, %v5865
    %v6011 = vadd.f32 %v5761, %v5934
    %v6012 = vadd.f32 %v5762, %v5936
    %v6013 = vadd.f32 %v5763, %v6005
    %v6014 = vadd.f32 %v5764, %v6007
    %s6015 = scalar_lea.vmem %s8, 32
    %v6016 = vld [vmem:[%s6015] sm:$0xff]
    %v6018 = vsel %vm101, %v6016, 0
    %6020 = vmatprep.subr.mxu0 0.0
    %6021 = vmatpush1.msra.mxu0 0.0
    %6022 = vmatprep.subr.mxu0 0.0
    %6023 = vmatpush1.msra.mxu0 0.0
    %6024 = vmatprep.subr.mxu0 0.0
    %6025 = vmatpush1.msra.mxu0 0.0
    %6026 = vmatprep.subr.mxu0 0.0
    %6027 = vmatpush1.msra.mxu0 0.0
    %6028 = vmatprep.subr.mxu0 0.0
    %6029 = vmatpush1.msra.mxu0 0.0
    %6030 = vmatprep.subr.mxu0 0.0
    %6031 = vmatpush1.msra.mxu0 0.0
    %6032 = vmatprep.subr.mxu0 0.0
    %6033 = vmatpush1.msra.mxu0 0.0
    %6034 = vmatprep.subr.mxu0 0.0
    %6035 = vmatpush1.msra.mxu0 0.0
    %6036 = vmatprep.subr.mxu0 0.0
    %6037 = vmatpush1.msra.mxu0 0.0
    %6038 = vmatprep.subr.mxu0 0.0
    %6039 = vmatpush1.msra.mxu0 0.0
    %6040 = vmatprep.subr.mxu0 0.0
    %6041 = vmatpush1.msra.mxu0 0.0
    %6042 = vmatprep.subr.mxu0 0.0
    %6043 = vmatpush1.msra.mxu0 0.0
    %6044 = vmatprep.subr.mxu0 0.0
    %6045 = vmatpush1.msra.mxu0 0.0
    %6046 = vmatprep.subr.mxu0 0.0
    %6047 = vmatpush1.msra.mxu0 0.0
    %6048 = vmatprep.subr.mxu0 0.0
    %6049 = vmatpush1.msra.mxu0 0.0
    %6050 = vmatprep.subr.mxu0 %v5016
    %6051 = vmatpush1.msra.mxu0 %v5015
    %6052 = vmatprep.subr.mxu0 0.0
    %6053 = vmatpush2.msra.mxu0 0.0
    %6054 = vmatprep.subr.mxu0 0.0
    %6055 = vmatpush2.msra.mxu0 0.0
    %6056 = vmatprep.subr.mxu0 0.0
    %6057 = vmatpush2.msra.mxu0 0.0
    %6058 = vmatprep.subr.mxu0 0.0
    %6059 = vmatpush2.msra.mxu0 0.0
    %6060 = vmatprep.subr.mxu0 0.0
    %6061 = vmatpush2.msra.mxu0 0.0
    %6062 = vmatprep.subr.mxu0 0.0
    %6063 = vmatpush2.msra.mxu0 0.0
    %6064 = vmatprep.subr.mxu0 0.0
    %6065 = vmatpush2.msra.mxu0 0.0
    %6066 = vmatprep.subr.mxu0 0.0
    %6067 = vmatpush2.msra.mxu0 0.0
    %6068 = vmatprep.subr.mxu0 0.0
    %6069 = vmatpush2.msra.mxu0 0.0
    %6070 = vmatprep.subr.mxu0 0.0
    %6071 = vmatpush2.msra.mxu0 0.0
    %6072 = vmatprep.subr.mxu0 0.0
    %6073 = vmatpush2.msra.mxu0 0.0
    %6074 = vmatprep.subr.mxu0 0.0
    %6075 = vmatpush2.msra.mxu0 0.0
    %6076 = vmatprep.subr.mxu0 0.0
    %6077 = vmatpush2.msra.mxu0 0.0
    %6078 = vmatprep.subr.mxu0 0.0
    %6079 = vmatpush2.msra.mxu0 0.0
    %6080 = vmatprep.subr.mxu0 0.0
    %6081 = vmatpush2.msra.mxu0 0.0
    %6082 = vmatprep.subr.mxu0 0.0
    %6083 = vmatpush2.msra.mxu0 0.0
    %6084 = vmatprep.mubr.f32.mxu0 0.0
    %6085 = vmatmul.mubr.f32.gmra.mxu0 %v6018
    %v6086 = vpop.f32.mrf.mxu0
    %v6087 = vadd.f32 0.0, %v6086
    %v6088 = vpop.f32.mrf.mxu0
    %v6089 = vadd.f32 0.0, %v6088
    %6090 = vdwg.mxu0
    %6091 = vmatprep.subr.mxu0 0.0
    %6092 = vmatpush1.msra.mxu0 0.0
    %6093 = vmatprep.subr.mxu0 0.0
    %6094 = vmatpush1.msra.mxu0 0.0
    %6095 = vmatprep.subr.mxu0 0.0
    %6096 = vmatpush1.msra.mxu0 0.0
    %6097 = vmatprep.subr.mxu0 0.0
    %6098 = vmatpush1.msra.mxu0 0.0
    %6099 = vmatprep.subr.mxu0 0.0
    %6100 = vmatpush1.msra.mxu0 0.0
    %6101 = vmatprep.subr.mxu0 0.0
    %6102 = vmatpush1.msra.mxu0 0.0
    %6103 = vmatprep.subr.mxu0 0.0
    %6104 = vmatpush1.msra.mxu0 0.0
    %6105 = vmatprep.subr.mxu0 0.0
    %6106 = vmatpush1.msra.mxu0 0.0
    %6107 = vmatprep.subr.mxu0 0.0
    %6108 = vmatpush1.msra.mxu0 0.0
    %6109 = vmatprep.subr.mxu0 0.0
    %6110 = vmatpush1.msra.mxu0 0.0
    %6111 = vmatprep.subr.mxu0 0.0
    %6112 = vmatpush1.msra.mxu0 0.0
    %6113 = vmatprep.subr.mxu0 0.0
    %6114 = vmatpush1.msra.mxu0 0.0
    %6115 = vmatprep.subr.mxu0 0.0
    %6116 = vmatpush1.msra.mxu0 0.0
    %6117 = vmatprep.subr.mxu0 0.0
    %6118 = vmatpush1.msra.mxu0 0.0
    %6119 = vmatprep.subr.mxu0 0.0
    %6120 = vmatpush1.msra.mxu0 0.0
    %6121 = vmatprep.subr.mxu0 %v5018
    %6122 = vmatpush1.msra.mxu0 %v5017
    %6123 = vmatprep.subr.mxu0 0.0
    %6124 = vmatpush2.msra.mxu0 0.0
    %6125 = vmatprep.subr.mxu0 0.0
    %6126 = vmatpush2.msra.mxu0 0.0
    %6127 = vmatprep.subr.mxu0 0.0
    %6128 = vmatpush2.msra.mxu0 0.0
    %6129 = vmatprep.subr.mxu0 0.0
    %6130 = vmatpush2.msra.mxu0 0.0
    %6131 = vmatprep.subr.mxu0 0.0
    %6132 = vmatpush2.msra.mxu0 0.0
    %6133 = vmatprep.subr.mxu0 0.0
    %6134 = vmatpush2.msra.mxu0 0.0
    %6135 = vmatprep.subr.mxu0 0.0
    %6136 = vmatpush2.msra.mxu0 0.0
    %6137 = vmatprep.subr.mxu0 0.0
    %6138 = vmatpush2.msra.mxu0 0.0
    %6139 = vmatprep.subr.mxu0 0.0
    %6140 = vmatpush2.msra.mxu0 0.0
    %6141 = vmatprep.subr.mxu0 0.0
    %6142 = vmatpush2.msra.mxu0 0.0
    %6143 = vmatprep.subr.mxu0 0.0
    %6144 = vmatpush2.msra.mxu0 0.0
    %6145 = vmatprep.subr.mxu0 0.0
    %6146 = vmatpush2.msra.mxu0 0.0
    %6147 = vmatprep.subr.mxu0 0.0
    %6148 = vmatpush2.msra.mxu0 0.0
    %6149 = vmatprep.subr.mxu0 0.0
    %6150 = vmatpush2.msra.mxu0 0.0
    %6151 = vmatprep.subr.mxu0 0.0
    %6152 = vmatpush2.msra.mxu0 0.0
    %6153 = vmatprep.subr.mxu0 0.0
    %6154 = vmatpush2.msra.mxu0 0.0
    %6155 = vmatprep.mubr.f32.mxu0 0.0
    %6156 = vmatmul.mubr.f32.gmra.mxu0 %v6018
    %v6157 = vpop.f32.mrf.mxu0
    %v6158 = vadd.f32 0.0, %v6157
    %v6159 = vpop.f32.mrf.mxu0
    %v6160 = vadd.f32 0.0, %v6159
    %6161 = vdwg.mxu0
    %6162 = vmatprep.subr.mxu0 0.0
    %6163 = vmatpush1.msra.mxu0 0.0
    %6164 = vmatprep.subr.mxu0 0.0
    %6165 = vmatpush1.msra.mxu0 0.0
    %6166 = vmatprep.subr.mxu0 0.0
    %6167 = vmatpush1.msra.mxu0 0.0
    %6168 = vmatprep.subr.mxu0 0.0
    %6169 = vmatpush1.msra.mxu0 0.0
    %6170 = vmatprep.subr.mxu0 0.0
    %6171 = vmatpush1.msra.mxu0 0.0
    %6172 = vmatprep.subr.mxu0 0.0
    %6173 = vmatpush1.msra.mxu0 0.0
    %6174 = vmatprep.subr.mxu0 0.0
    %6175 = vmatpush1.msra.mxu0 0.0
    %6176 = vmatprep.subr.mxu0 0.0
    %6177 = vmatpush1.msra.mxu0 0.0
    %6178 = vmatprep.subr.mxu0 0.0
    %6179 = vmatpush1.msra.mxu0 0.0
    %6180 = vmatprep.subr.mxu0 0.0
    %6181 = vmatpush1.msra.mxu0 0.0
    %6182 = vmatprep.subr.mxu0 0.0
    %6183 = vmatpush1.msra.mxu0 0.0
    %6184 = vmatprep.subr.mxu0 0.0
    %6185 = vmatpush1.msra.mxu0 0.0
    %6186 = vmatprep.subr.mxu0 0.0
    %6187 = vmatpush1.msra.mxu0 0.0
    %6188 = vmatprep.subr.mxu0 0.0
    %6189 = vmatpush1.msra.mxu0 0.0
    %6190 = vmatprep.subr.mxu0 0.0
    %6191 = vmatpush1.msra.mxu0 0.0
    %6192 = vmatprep.subr.mxu0 %v5020
    %6193 = vmatpush1.msra.mxu0 %v5019
    %6194 = vmatprep.subr.mxu0 0.0
    %6195 = vmatpush2.msra.mxu0 0.0
    %6196 = vmatprep.subr.mxu0 0.0
    %6197 = vmatpush2.msra.mxu0 0.0
    %6198 = vmatprep.subr.mxu0 0.0
    %6199 = vmatpush2.msra.mxu0 0.0
    %6200 = vmatprep.subr.mxu0 0.0
    %6201 = vmatpush2.msra.mxu0 0.0
    %6202 = vmatprep.subr.mxu0 0.0
    %6203 = vmatpush2.msra.mxu0 0.0
    %6204 = vmatprep.subr.mxu0 0.0
    %6205 = vmatpush2.msra.mxu0 0.0
    %6206 = vmatprep.subr.mxu0 0.0
    %6207 = vmatpush2.msra.mxu0 0.0
    %6208 = vmatprep.subr.mxu0 0.0
    %6209 = vmatpush2.msra.mxu0 0.0
    %6210 = vmatprep.subr.mxu0 0.0
    %6211 = vmatpush2.msra.mxu0 0.0
    %6212 = vmatprep.subr.mxu0 0.0
    %6213 = vmatpush2.msra.mxu0 0.0
    %6214 = vmatprep.subr.mxu0 0.0
    %6215 = vmatpush2.msra.mxu0 0.0
    %6216 = vmatprep.subr.mxu0 0.0
    %6217 = vmatpush2.msra.mxu0 0.0
    %6218 = vmatprep.subr.mxu0 0.0
    %6219 = vmatpush2.msra.mxu0 0.0
    %6220 = vmatprep.subr.mxu0 0.0
    %6221 = vmatpush2.msra.mxu0 0.0
    %6222 = vmatprep.subr.mxu0 0.0
    %6223 = vmatpush2.msra.mxu0 0.0
    %6224 = vmatprep.subr.mxu0 0.0
    %6225 = vmatpush2.msra.mxu0 0.0
    %6226 = vmatprep.mubr.f32.mxu0 0.0
    %6227 = vmatmul.mubr.f32.gmra.mxu0 %v6018
    %v6228 = vpop.f32.mrf.mxu0
    %v6229 = vadd.f32 0.0, %v6228
    %v6230 = vpop.f32.mrf.mxu0
    %v6231 = vadd.f32 0.0, %v6230
    %6232 = vdwg.mxu0
    %v6233 = vadd.f32 %v6009, %v6087
    %v6234 = vadd.f32 %v6010, %v6089
    %v6235 = vadd.f32 %v6011, %v6158
    %v6236 = vadd.f32 %v6012, %v6160
    %v6237 = vadd.f32 %v6013, %v6229
    %v6238 = vadd.f32 %v6014, %v6231
    %v6239 = vld [vmem:[#allocation2 + $0x8] sm:$0xff]
    %v6240 = vld [vmem:[#allocation2 + $0x10] sm:$0xff]
    %v6241 = vld [vmem:[#allocation2 + $0x18] sm:$0xff]
    %v6242 = vld [vmem:[#allocation2 + $0x20] sm:$0xff]
    %v6243 = vld [vmem:[#allocation2 + $0x28] sm:$0xff]
    %v6244 = vld [vmem:[#allocation2 + $0x30] sm:$0xff]
    %v6245 = vld [vmem:[#allocation2 + $0x38] sm:$0xff]
    %s6246 = scalar_lea.vmem %s8, 40
    %v6247 = vld [vmem:[%s6246] sm:$0xff]
    %6255 = vrot.lane.b32.xlu0 %v6239, 127
    %v6256 = vpop.permute.xlu0 %6255
    %6257 = vrot.lane.b32.xlu0 %v6240, 127
    %v6258 = vpop.permute.xlu0 %6257
    %6259 = vrot.lane.b32.xlu0 %v6241, 127
    %v6260 = vpop.permute.xlu0 %6259
    %6261 = vrot.lane.b32.xlu0 %v6242, 127
    %v6262 = vpop.permute.xlu0 %6261
    %6263 = vrot.lane.b32.xlu0 %v6243, 127
    %v6264 = vpop.permute.xlu0 %6263
    %6265 = vrot.lane.b32.xlu0 %v6244, 127
    %v6266 = vpop.permute.xlu0 %6265
    %6267 = vrot.lane.b32.xlu0 %v6245, 127
    %v6268 = vpop.permute.xlu0 %6267
    %v6269 = vsel %vm1317, %v6256, %v6258
    %v6270 = vsel %vm1317, %v6258, %v6260
    %v6271 = vsel %vm1317, %v6260, %v6262
    %v6272 = vsel %vm1317, %v6262, %v6264
    %v6273 = vsel %vm1317, %v6264, %v6266
    %v6274 = vsel %vm1317, %v6266, %v6268
    %v6282 = vsel %vm101, %v6247, 0
    %6284 = vmatprep.subr.mxu0 0.0
    %6285 = vmatpush1.msra.mxu0 0.0
    %6286 = vmatprep.subr.mxu0 0.0
    %6287 = vmatpush1.msra.mxu0 0.0
    %6288 = vmatprep.subr.mxu0 0.0
    %6289 = vmatpush1.msra.mxu0 0.0
    %6290 = vmatprep.subr.mxu0 0.0
    %6291 = vmatpush1.msra.mxu0 0.0
    %6292 = vmatprep.subr.mxu0 0.0
    %6293 = vmatpush1.msra.mxu0 0.0
    %6294 = vmatprep.subr.mxu0 0.0
    %6295 = vmatpush1.msra.mxu0 0.0
    %6296 = vmatprep.subr.mxu0 0.0
    %6297 = vmatpush1.msra.mxu0 0.0
    %6298 = vmatprep.subr.mxu0 0.0
    %6299 = vmatpush1.msra.mxu0 0.0
    %6300 = vmatprep.subr.mxu0 0.0
    %6301 = vmatpush1.msra.mxu0 0.0
    %6302 = vmatprep.subr.mxu0 0.0
    %6303 = vmatpush1.msra.mxu0 0.0
    %6304 = vmatprep.subr.mxu0 0.0
    %6305 = vmatpush1.msra.mxu0 0.0
    %6306 = vmatprep.subr.mxu0 0.0
    %6307 = vmatpush1.msra.mxu0 0.0
    %6308 = vmatprep.subr.mxu0 0.0
    %6309 = vmatpush1.msra.mxu0 0.0
    %6310 = vmatprep.subr.mxu0 0.0
    %6311 = vmatpush1.msra.mxu0 0.0
    %6312 = vmatprep.subr.mxu0 0.0
    %6313 = vmatpush1.msra.mxu0 0.0
    %6314 = vmatprep.subr.mxu0 %v6270
    %6315 = vmatpush1.msra.mxu0 %v6269
    %6316 = vmatprep.subr.mxu0 0.0
    %6317 = vmatpush2.msra.mxu0 0.0
    %6318 = vmatprep.subr.mxu0 0.0
    %6319 = vmatpush2.msra.mxu0 0.0
    %6320 = vmatprep.subr.mxu0 0.0
    %6321 = vmatpush2.msra.mxu0 0.0
    %6322 = vmatprep.subr.mxu0 0.0
    %6323 = vmatpush2.msra.mxu0 0.0
    %6324 = vmatprep.subr.mxu0 0.0
    %6325 = vmatpush2.msra.mxu0 0.0
    %6326 = vmatprep.subr.mxu0 0.0
    %6327 = vmatpush2.msra.mxu0 0.0
    %6328 = vmatprep.subr.mxu0 0.0
    %6329 = vmatpush2.msra.mxu0 0.0
    %6330 = vmatprep.subr.mxu0 0.0
    %6331 = vmatpush2.msra.mxu0 0.0
    %6332 = vmatprep.subr.mxu0 0.0
    %6333 = vmatpush2.msra.mxu0 0.0
    %6334 = vmatprep.subr.mxu0 0.0
    %6335 = vmatpush2.msra.mxu0 0.0
    %6336 = vmatprep.subr.mxu0 0.0
    %6337 = vmatpush2.msra.mxu0 0.0
    %6338 = vmatprep.subr.mxu0 0.0
    %6339 = vmatpush2.msra.mxu0 0.0
    %6340 = vmatprep.subr.mxu0 0.0
    %6341 = vmatpush2.msra.mxu0 0.0
    %6342 = vmatprep.subr.mxu0 0.0
    %6343 = vmatpush2.msra.mxu0 0.0
    %6344 = vmatprep.subr.mxu0 0.0
    %6345 = vmatpush2.msra.mxu0 0.0
    %6346 = vmatprep.subr.mxu0 0.0
    %6347 = vmatpush2.msra.mxu0 0.0
    %6348 = vmatprep.mubr.f32.mxu0 0.0
    %6349 = vmatmul.mubr.f32.gmra.mxu0 %v6282
    %v6350 = vpop.f32.mrf.mxu0
    %v6351 = vadd.f32 0.0, %v6350
    %v6352 = vpop.f32.mrf.mxu0
    %v6353 = vadd.f32 0.0, %v6352
    %6354 = vdwg.mxu0
    %6355 = vmatprep.subr.mxu0 0.0
    %6356 = vmatpush1.msra.mxu0 0.0
    %6357 = vmatprep.subr.mxu0 0.0
    %6358 = vmatpush1.msra.mxu0 0.0
    %6359 = vmatprep.subr.mxu0 0.0
    %6360 = vmatpush1.msra.mxu0 0.0
    %6361 = vmatprep.subr.mxu0 0.0
    %6362 = vmatpush1.msra.mxu0 0.0
    %6363 = vmatprep.subr.mxu0 0.0
    %6364 = vmatpush1.msra.mxu0 0.0
    %6365 = vmatprep.subr.mxu0 0.0
    %6366 = vmatpush1.msra.mxu0 0.0
    %6367 = vmatprep.subr.mxu0 0.0
    %6368 = vmatpush1.msra.mxu0 0.0
    %6369 = vmatprep.subr.mxu0 0.0
    %6370 = vmatpush1.msra.mxu0 0.0
    %6371 = vmatprep.subr.mxu0 0.0
    %6372 = vmatpush1.msra.mxu0 0.0
    %6373 = vmatprep.subr.mxu0 0.0
    %6374 = vmatpush1.msra.mxu0 0.0
    %6375 = vmatprep.subr.mxu0 0.0
    %6376 = vmatpush1.msra.mxu0 0.0
    %6377 = vmatprep.subr.mxu0 0.0
    %6378 = vmatpush1.msra.mxu0 0.0
    %6379 = vmatprep.subr.mxu0 0.0
    %6380 = vmatpush1.msra.mxu0 0.0
    %6381 = vmatprep.subr.mxu0 0.0
    %6382 = vmatpush1.msra.mxu0 0.0
    %6383 = vmatprep.subr.mxu0 0.0
    %6384 = vmatpush1.msra.mxu0 0.0
    %6385 = vmatprep.subr.mxu0 %v6272
    %6386 = vmatpush1.msra.mxu0 %v6271
    %6387 = vmatprep.subr.mxu0 0.0
    %6388 = vmatpush2.msra.mxu0 0.0
    %6389 = vmatprep.subr.mxu0 0.0
    %6390 = vmatpush2.msra.mxu0 0.0
    %6391 = vmatprep.subr.mxu0 0.0
    %6392 = vmatpush2.msra.mxu0 0.0
    %6393 = vmatprep.subr.mxu0 0.0
    %6394 = vmatpush2.msra.mxu0 0.0
    %6395 = vmatprep.subr.mxu0 0.0
    %6396 = vmatpush2.msra.mxu0 0.0
    %6397 = vmatprep.subr.mxu0 0.0
    %6398 = vmatpush2.msra.mxu0 0.0
    %6399 = vmatprep.subr.mxu0 0.0
    %6400 = vmatpush2.msra.mxu0 0.0
    %6401 = vmatprep.subr.mxu0 0.0
    %6402 = vmatpush2.msra.mxu0 0.0
    %6403 = vmatprep.subr.mxu0 0.0
    %6404 = vmatpush2.msra.mxu0 0.0
    %6405 = vmatprep.subr.mxu0 0.0
    %6406 = vmatpush2.msra.mxu0 0.0
    %6407 = vmatprep.subr.mxu0 0.0
    %6408 = vmatpush2.msra.mxu0 0.0
    %6409 = vmatprep.subr.mxu0 0.0
    %6410 = vmatpush2.msra.mxu0 0.0
    %6411 = vmatprep.subr.mxu0 0.0
    %6412 = vmatpush2.msra.mxu0 0.0
    %6413 = vmatprep.subr.mxu0 0.0
    %6414 = vmatpush2.msra.mxu0 0.0
    %6415 = vmatprep.subr.mxu0 0.0
    %6416 = vmatpush2.msra.mxu0 0.0
    %6417 = vmatprep.subr.mxu0 0.0
    %6418 = vmatpush2.msra.mxu0 0.0
    %6419 = vmatprep.mubr.f32.mxu0 0.0
    %6420 = vmatmul.mubr.f32.gmra.mxu0 %v6282
    %v6421 = vpop.f32.mrf.mxu0
    %v6422 = vadd.f32 0.0, %v6421
    %v6423 = vpop.f32.mrf.mxu0
    %v6424 = vadd.f32 0.0, %v6423
    %6425 = vdwg.mxu0
    %6426 = vmatprep.subr.mxu0 0.0
    %6427 = vmatpush1.msra.mxu0 0.0
    %6428 = vmatprep.subr.mxu0 0.0
    %6429 = vmatpush1.msra.mxu0 0.0
    %6430 = vmatprep.subr.mxu0 0.0
    %6431 = vmatpush1.msra.mxu0 0.0
    %6432 = vmatprep.subr.mxu0 0.0
    %6433 = vmatpush1.msra.mxu0 0.0
    %6434 = vmatprep.subr.mxu0 0.0
    %6435 = vmatpush1.msra.mxu0 0.0
    %6436 = vmatprep.subr.mxu0 0.0
    %6437 = vmatpush1.msra.mxu0 0.0
    %6438 = vmatprep.subr.mxu0 0.0
    %6439 = vmatpush1.msra.mxu0 0.0
    %6440 = vmatprep.subr.mxu0 0.0
    %6441 = vmatpush1.msra.mxu0 0.0
    %6442 = vmatprep.subr.mxu0 0.0
    %6443 = vmatpush1.msra.mxu0 0.0
    %6444 = vmatprep.subr.mxu0 0.0
    %6445 = vmatpush1.msra.mxu0 0.0
    %6446 = vmatprep.subr.mxu0 0.0
    %6447 = vmatpush1.msra.mxu0 0.0
    %6448 = vmatprep.subr.mxu0 0.0
    %6449 = vmatpush1.msra.mxu0 0.0
    %6450 = vmatprep.subr.mxu0 0.0
    %6451 = vmatpush1.msra.mxu0 0.0
    %6452 = vmatprep.subr.mxu0 0.0
    %6453 = vmatpush1.msra.mxu0 0.0
    %6454 = vmatprep.subr.mxu0 0.0
    %6455 = vmatpush1.msra.mxu0 0.0
    %6456 = vmatprep.subr.mxu0 %v6274
    %6457 = vmatpush1.msra.mxu0 %v6273
    %6458 = vmatprep.subr.mxu0 0.0
    %6459 = vmatpush2.msra.mxu0 0.0
    %6460 = vmatprep.subr.mxu0 0.0
    %6461 = vmatpush2.msra.mxu0 0.0
    %6462 = vmatprep.subr.mxu0 0.0
    %6463 = vmatpush2.msra.mxu0 0.0
    %6464 = vmatprep.subr.mxu0 0.0
    %6465 = vmatpush2.msra.mxu0 0.0
    %6466 = vmatprep.subr.mxu0 0.0
    %6467 = vmatpush2.msra.mxu0 0.0
    %6468 = vmatprep.subr.mxu0 0.0
    %6469 = vmatpush2.msra.mxu0 0.0
    %6470 = vmatprep.subr.mxu0 0.0
    %6471 = vmatpush2.msra.mxu0 0.0
    %6472 = vmatprep.subr.mxu0 0.0
    %6473 = vmatpush2.msra.mxu0 0.0
    %6474 = vmatprep.subr.mxu0 0.0
    %6475 = vmatpush2.msra.mxu0 0.0
    %6476 = vmatprep.subr.mxu0 0.0
    %6477 = vmatpush2.msra.mxu0 0.0
    %6478 = vmatprep.subr.mxu0 0.0
    %6479 = vmatpush2.msra.mxu0 0.0
    %6480 = vmatprep.subr.mxu0 0.0
    %6481 = vmatpush2.msra.mxu0 0.0
    %6482 = vmatprep.subr.mxu0 0.0
    %6483 = vmatpush2.msra.mxu0 0.0
    %6484 = vmatprep.subr.mxu0 0.0
    %6485 = vmatpush2.msra.mxu0 0.0
    %6486 = vmatprep.subr.mxu0 0.0
    %6487 = vmatpush2.msra.mxu0 0.0
    %6488 = vmatprep.subr.mxu0 0.0
    %6489 = vmatpush2.msra.mxu0 0.0
    %6490 = vmatprep.mubr.f32.mxu0 0.0
    %6491 = vmatmul.mubr.f32.gmra.mxu0 %v6282
    %v6492 = vpop.f32.mrf.mxu0
    %v6493 = vadd.f32 0.0, %v6492
    %v6494 = vpop.f32.mrf.mxu0
    %v6495 = vadd.f32 0.0, %v6494
    %6496 = vdwg.mxu0
    %v6497 = vadd.f32 %v6233, %v6351
    %v6498 = vadd.f32 %v6234, %v6353
    %v6499 = vadd.f32 %v6235, %v6422
    %v6500 = vadd.f32 %v6236, %v6424
    %v6501 = vadd.f32 %v6237, %v6493
    %v6502 = vadd.f32 %v6238, %v6495
    %s6503 = scalar_lea.vmem %s8, 48
    %v6504 = vld [vmem:[%s6503] sm:$0xff]
    %6505 = vrot.lane.b32.xlu0 %v6239, 111
    %v6506 = vpop.permute.xlu0 %6505
    %6507 = vrot.lane.b32.xlu0 %v6240, 111
    %v6508 = vpop.permute.xlu0 %6507
    %6509 = vrot.lane.b32.xlu0 %v6241, 111
    %v6510 = vpop.permute.xlu0 %6509
    %6511 = vrot.lane.b32.xlu0 %v6242, 111
    %v6512 = vpop.permute.xlu0 %6511
    %6513 = vrot.lane.b32.xlu0 %v6243, 111
    %v6514 = vpop.permute.xlu0 %6513
    %6515 = vrot.lane.b32.xlu0 %v6244, 111
    %v6516 = vpop.permute.xlu0 %6515
    %6517 = vrot.lane.b32.xlu0 %v6245, 111
    %v6518 = vpop.permute.xlu0 %6517
    %v6519 = vsel %vm1568, %v6506, %v6508
    %v6520 = vsel %vm1568, %v6508, %v6510
    %v6521 = vsel %vm1568, %v6510, %v6512
    %v6522 = vsel %vm1568, %v6512, %v6514
    %v6523 = vsel %vm1568, %v6514, %v6516
    %v6524 = vsel %vm1568, %v6516, %v6518
    %v6532 = vsel %vm101, %v6504, 0
    %6534 = vmatprep.subr.mxu0 0.0
    %6535 = vmatpush1.msra.mxu0 0.0
    %6536 = vmatprep.subr.mxu0 0.0
    %6537 = vmatpush1.msra.mxu0 0.0
    %6538 = vmatprep.subr.mxu0 0.0
    %6539 = vmatpush1.msra.mxu0 0.0
    %6540 = vmatprep.subr.mxu0 0.0
    %6541 = vmatpush1.msra.mxu0 0.0
    %6542 = vmatprep.subr.mxu0 0.0
    %6543 = vmatpush1.msra.mxu0 0.0
    %6544 = vmatprep.subr.mxu0 0.0
    %6545 = vmatpush1.msra.mxu0 0.0
    %6546 = vmatprep.subr.mxu0 0.0
    %6547 = vmatpush1.msra.mxu0 0.0
    %6548 = vmatprep.subr.mxu0 0.0
    %6549 = vmatpush1.msra.mxu0 0.0
    %6550 = vmatprep.subr.mxu0 0.0
    %6551 = vmatpush1.msra.mxu0 0.0
    %6552 = vmatprep.subr.mxu0 0.0
    %6553 = vmatpush1.msra.mxu0 0.0
    %6554 = vmatprep.subr.mxu0 0.0
    %6555 = vmatpush1.msra.mxu0 0.0
    %6556 = vmatprep.subr.mxu0 0.0
    %6557 = vmatpush1.msra.mxu0 0.0
    %6558 = vmatprep.subr.mxu0 0.0
    %6559 = vmatpush1.msra.mxu0 0.0
    %6560 = vmatprep.subr.mxu0 0.0
    %6561 = vmatpush1.msra.mxu0 0.0
    %6562 = vmatprep.subr.mxu0 0.0
    %6563 = vmatpush1.msra.mxu0 0.0
    %6564 = vmatprep.subr.mxu0 %v6520
    %6565 = vmatpush1.msra.mxu0 %v6519
    %6566 = vmatprep.subr.mxu0 0.0
    %6567 = vmatpush2.msra.mxu0 0.0
    %6568 = vmatprep.subr.mxu0 0.0
    %6569 = vmatpush2.msra.mxu0 0.0
    %6570 = vmatprep.subr.mxu0 0.0
    %6571 = vmatpush2.msra.mxu0 0.0
    %6572 = vmatprep.subr.mxu0 0.0
    %6573 = vmatpush2.msra.mxu0 0.0
    %6574 = vmatprep.subr.mxu0 0.0
    %6575 = vmatpush2.msra.mxu0 0.0
    %6576 = vmatprep.subr.mxu0 0.0
    %6577 = vmatpush2.msra.mxu0 0.0
    %6578 = vmatprep.subr.mxu0 0.0
    %6579 = vmatpush2.msra.mxu0 0.0
    %6580 = vmatprep.subr.mxu0 0.0
    %6581 = vmatpush2.msra.mxu0 0.0
    %6582 = vmatprep.subr.mxu0 0.0
    %6583 = vmatpush2.msra.mxu0 0.0
    %6584 = vmatprep.subr.mxu0 0.0
    %6585 = vmatpush2.msra.mxu0 0.0
    %6586 = vmatprep.subr.mxu0 0.0
    %6587 = vmatpush2.msra.mxu0 0.0
    %6588 = vmatprep.subr.mxu0 0.0
    %6589 = vmatpush2.msra.mxu0 0.0
    %6590 = vmatprep.subr.mxu0 0.0
    %6591 = vmatpush2.msra.mxu0 0.0
    %6592 = vmatprep.subr.mxu0 0.0
    %6593 = vmatpush2.msra.mxu0 0.0
    %6594 = vmatprep.subr.mxu0 0.0
    %6595 = vmatpush2.msra.mxu0 0.0
    %6596 = vmatprep.subr.mxu0 0.0
    %6597 = vmatpush2.msra.mxu0 0.0
    %6598 = vmatprep.mubr.f32.mxu0 0.0
    %6599 = vmatmul.mubr.f32.gmra.mxu0 %v6532
    %v6600 = vpop.f32.mrf.mxu0
    %v6601 = vadd.f32 0.0, %v6600
    %v6602 = vpop.f32.mrf.mxu0
    %v6603 = vadd.f32 0.0, %v6602
    %6604 = vdwg.mxu0
    %6605 = vmatprep.subr.mxu0 0.0
    %6606 = vmatpush1.msra.mxu0 0.0
    %6607 = vmatprep.subr.mxu0 0.0
    %6608 = vmatpush1.msra.mxu0 0.0
    %6609 = vmatprep.subr.mxu0 0.0
    %6610 = vmatpush1.msra.mxu0 0.0
    %6611 = vmatprep.subr.mxu0 0.0
    %6612 = vmatpush1.msra.mxu0 0.0
    %6613 = vmatprep.subr.mxu0 0.0
    %6614 = vmatpush1.msra.mxu0 0.0
    %6615 = vmatprep.subr.mxu0 0.0
    %6616 = vmatpush1.msra.mxu0 0.0
    %6617 = vmatprep.subr.mxu0 0.0
    %6618 = vmatpush1.msra.mxu0 0.0
    %6619 = vmatprep.subr.mxu0 0.0
    %6620 = vmatpush1.msra.mxu0 0.0
    %6621 = vmatprep.subr.mxu0 0.0
    %6622 = vmatpush1.msra.mxu0 0.0
    %6623 = vmatprep.subr.mxu0 0.0
    %6624 = vmatpush1.msra.mxu0 0.0
    %6625 = vmatprep.subr.mxu0 0.0
    %6626 = vmatpush1.msra.mxu0 0.0
    %6627 = vmatprep.subr.mxu0 0.0
    %6628 = vmatpush1.msra.mxu0 0.0
    %6629 = vmatprep.subr.mxu0 0.0
    %6630 = vmatpush1.msra.mxu0 0.0
    %6631 = vmatprep.subr.mxu0 0.0
    %6632 = vmatpush1.msra.mxu0 0.0
    %6633 = vmatprep.subr.mxu0 0.0
    %6634 = vmatpush1.msra.mxu0 0.0
    %6635 = vmatprep.subr.mxu0 %v6522
    %6636 = vmatpush1.msra.mxu0 %v6521
    %6637 = vmatprep.subr.mxu0 0.0
    %6638 = vmatpush2.msra.mxu0 0.0
    %6639 = vmatprep.subr.mxu0 0.0
    %6640 = vmatpush2.msra.mxu0 0.0
    %6641 = vmatprep.subr.mxu0 0.0
    %6642 = vmatpush2.msra.mxu0 0.0
    %6643 = vmatprep.subr.mxu0 0.0
    %6644 = vmatpush2.msra.mxu0 0.0
    %6645 = vmatprep.subr.mxu0 0.0
    %6646 = vmatpush2.msra.mxu0 0.0
    %6647 = vmatprep.subr.mxu0 0.0
    %6648 = vmatpush2.msra.mxu0 0.0
    %6649 = vmatprep.subr.mxu0 0.0
    %6650 = vmatpush2.msra.mxu0 0.0
    %6651 = vmatprep.subr.mxu0 0.0
    %6652 = vmatpush2.msra.mxu0 0.0
    %6653 = vmatprep.subr.mxu0 0.0
    %6654 = vmatpush2.msra.mxu0 0.0
    %6655 = vmatprep.subr.mxu0 0.0
    %6656 = vmatpush2.msra.mxu0 0.0
    %6657 = vmatprep.subr.mxu0 0.0
    %6658 = vmatpush2.msra.mxu0 0.0
    %6659 = vmatprep.subr.mxu0 0.0
    %6660 = vmatpush2.msra.mxu0 0.0
    %6661 = vmatprep.subr.mxu0 0.0
    %6662 = vmatpush2.msra.mxu0 0.0
    %6663 = vmatprep.subr.mxu0 0.0
    %6664 = vmatpush2.msra.mxu0 0.0
    %6665 = vmatprep.subr.mxu0 0.0
    %6666 = vmatpush2.msra.mxu0 0.0
    %6667 = vmatprep.subr.mxu0 0.0
    %6668 = vmatpush2.msra.mxu0 0.0
    %6669 = vmatprep.mubr.f32.mxu0 0.0
    %6670 = vmatmul.mubr.f32.gmra.mxu0 %v6532
    %v6671 = vpop.f32.mrf.mxu0
    %v6672 = vadd.f32 0.0, %v6671
    %v6673 = vpop.f32.mrf.mxu0
    %v6674 = vadd.f32 0.0, %v6673
    %6675 = vdwg.mxu0
    %6676 = vmatprep.subr.mxu0 0.0
    %6677 = vmatpush1.msra.mxu0 0.0
    %6678 = vmatprep.subr.mxu0 0.0
    %6679 = vmatpush1.msra.mxu0 0.0
    %6680 = vmatprep.subr.mxu0 0.0
    %6681 = vmatpush1.msra.mxu0 0.0
    %6682 = vmatprep.subr.mxu0 0.0
    %6683 = vmatpush1.msra.mxu0 0.0
    %6684 = vmatprep.subr.mxu0 0.0
    %6685 = vmatpush1.msra.mxu0 0.0
    %6686 = vmatprep.subr.mxu0 0.0
    %6687 = vmatpush1.msra.mxu0 0.0
    %6688 = vmatprep.subr.mxu0 0.0
    %6689 = vmatpush1.msra.mxu0 0.0
    %6690 = vmatprep.subr.mxu0 0.0
    %6691 = vmatpush1.msra.mxu0 0.0
    %6692 = vmatprep.subr.mxu0 0.0
    %6693 = vmatpush1.msra.mxu0 0.0
    %6694 = vmatprep.subr.mxu0 0.0
    %6695 = vmatpush1.msra.mxu0 0.0
    %6696 = vmatprep.subr.mxu0 0.0
    %6697 = vmatpush1.msra.mxu0 0.0
    %6698 = vmatprep.subr.mxu0 0.0
    %6699 = vmatpush1.msra.mxu0 0.0
    %6700 = vmatprep.subr.mxu0 0.0
    %6701 = vmatpush1.msra.mxu0 0.0
    %6702 = vmatprep.subr.mxu0 0.0
    %6703 = vmatpush1.msra.mxu0 0.0
    %6704 = vmatprep.subr.mxu0 0.0
    %6705 = vmatpush1.msra.mxu0 0.0
    %6706 = vmatprep.subr.mxu0 %v6524
    %6707 = vmatpush1.msra.mxu0 %v6523
    %6708 = vmatprep.subr.mxu0 0.0
    %6709 = vmatpush2.msra.mxu0 0.0
    %6710 = vmatprep.subr.mxu0 0.0
    %6711 = vmatpush2.msra.mxu0 0.0
    %6712 = vmatprep.subr.mxu0 0.0
    %6713 = vmatpush2.msra.mxu0 0.0
    %6714 = vmatprep.subr.mxu0 0.0
    %6715 = vmatpush2.msra.mxu0 0.0
    %6716 = vmatprep.subr.mxu0 0.0
    %6717 = vmatpush2.msra.mxu0 0.0
    %6718 = vmatprep.subr.mxu0 0.0
    %6719 = vmatpush2.msra.mxu0 0.0
    %6720 = vmatprep.subr.mxu0 0.0
    %6721 = vmatpush2.msra.mxu0 0.0
    %6722 = vmatprep.subr.mxu0 0.0
    %6723 = vmatpush2.msra.mxu0 0.0
    %6724 = vmatprep.subr.mxu0 0.0
    %6725 = vmatpush2.msra.mxu0 0.0
    %6726 = vmatprep.subr.mxu0 0.0
    %6727 = vmatpush2.msra.mxu0 0.0
    %6728 = vmatprep.subr.mxu0 0.0
    %6729 = vmatpush2.msra.mxu0 0.0
    %6730 = vmatprep.subr.mxu0 0.0
    %6731 = vmatpush2.msra.mxu0 0.0
    %6732 = vmatprep.subr.mxu0 0.0
    %6733 = vmatpush2.msra.mxu0 0.0
    %6734 = vmatprep.subr.mxu0 0.0
    %6735 = vmatpush2.msra.mxu0 0.0
    %6736 = vmatprep.subr.mxu0 0.0
    %6737 = vmatpush2.msra.mxu0 0.0
    %6738 = vmatprep.subr.mxu0 0.0
    %6739 = vmatpush2.msra.mxu0 0.0
    %6740 = vmatprep.mubr.f32.mxu0 0.0
    %6741 = vmatmul.mubr.f32.gmra.mxu0 %v6532
    %v6742 = vpop.f32.mrf.mxu0
    %v6743 = vadd.f32 0.0, %v6742
    %v6744 = vpop.f32.mrf.mxu0
    %v6745 = vadd.f32 0.0, %v6744
    %6746 = vdwg.mxu0
    %v6747 = vadd.f32 %v6497, %v6601
    %v6748 = vadd.f32 %v6498, %v6603
    %v6749 = vadd.f32 %v6499, %v6672
    %v6750 = vadd.f32 %v6500, %v6674
    %v6751 = vadd.f32 %v6501, %v6743
    %v6752 = vadd.f32 %v6502, %v6745
    %s6753 = scalar_lea.vmem %s8, 56
    %v6754 = vld [vmem:[%s6753] sm:$0xff]
    %6755 = vrot.lane.b32.xlu0 %v6239, 110
    %v6756 = vpop.permute.xlu0 %6755
    %6757 = vrot.lane.b32.xlu0 %v6240, 110
    %v6758 = vpop.permute.xlu0 %6757
    %6759 = vrot.lane.b32.xlu0 %v6241, 110
    %v6760 = vpop.permute.xlu0 %6759
    %6761 = vrot.lane.b32.xlu0 %v6242, 110
    %v6762 = vpop.permute.xlu0 %6761
    %6763 = vrot.lane.b32.xlu0 %v6243, 110
    %v6764 = vpop.permute.xlu0 %6763
    %6765 = vrot.lane.b32.xlu0 %v6244, 110
    %v6766 = vpop.permute.xlu0 %6765
    %6767 = vrot.lane.b32.xlu0 %v6245, 110
    %v6768 = vpop.permute.xlu0 %6767
    %v6769 = vsel %vm1819, %v6756, %v6758
    %v6770 = vsel %vm1819, %v6758, %v6760
    %v6771 = vsel %vm1819, %v6760, %v6762
    %v6772 = vsel %vm1819, %v6762, %v6764
    %v6773 = vsel %vm1819, %v6764, %v6766
    %v6774 = vsel %vm1819, %v6766, %v6768
    %v6782 = vsel %vm101, %v6754, 0
    %6784 = vmatprep.subr.mxu0 0.0
    %6785 = vmatpush1.msra.mxu0 0.0
    %6786 = vmatprep.subr.mxu0 0.0
    %6787 = vmatpush1.msra.mxu0 0.0
    %6788 = vmatprep.subr.mxu0 0.0
    %6789 = vmatpush1.msra.mxu0 0.0
    %6790 = vmatprep.subr.mxu0 0.0
    %6791 = vmatpush1.msra.mxu0 0.0
    %6792 = vmatprep.subr.mxu0 0.0
    %6793 = vmatpush1.msra.mxu0 0.0
    %6794 = vmatprep.subr.mxu0 0.0
    %6795 = vmatpush1.msra.mxu0 0.0
    %6796 = vmatprep.subr.mxu0 0.0
    %6797 = vmatpush1.msra.mxu0 0.0
    %6798 = vmatprep.subr.mxu0 0.0
    %6799 = vmatpush1.msra.mxu0 0.0
    %6800 = vmatprep.subr.mxu0 0.0
    %6801 = vmatpush1.msra.mxu0 0.0
    %6802 = vmatprep.subr.mxu0 0.0
    %6803 = vmatpush1.msra.mxu0 0.0
    %6804 = vmatprep.subr.mxu0 0.0
    %6805 = vmatpush1.msra.mxu0 0.0
    %6806 = vmatprep.subr.mxu0 0.0
    %6807 = vmatpush1.msra.mxu0 0.0
    %6808 = vmatprep.subr.mxu0 0.0
    %6809 = vmatpush1.msra.mxu0 0.0
    %6810 = vmatprep.subr.mxu0 0.0
    %6811 = vmatpush1.msra.mxu0 0.0
    %6812 = vmatprep.subr.mxu0 0.0
    %6813 = vmatpush1.msra.mxu0 0.0
    %6814 = vmatprep.subr.mxu0 %v6770
    %6815 = vmatpush1.msra.mxu0 %v6769
    %6816 = vmatprep.subr.mxu0 0.0
    %6817 = vmatpush2.msra.mxu0 0.0
    %6818 = vmatprep.subr.mxu0 0.0
    %6819 = vmatpush2.msra.mxu0 0.0
    %6820 = vmatprep.subr.mxu0 0.0
    %6821 = vmatpush2.msra.mxu0 0.0
    %6822 = vmatprep.subr.mxu0 0.0
    %6823 = vmatpush2.msra.mxu0 0.0
    %6824 = vmatprep.subr.mxu0 0.0
    %6825 = vmatpush2.msra.mxu0 0.0
    %6826 = vmatprep.subr.mxu0 0.0
    %6827 = vmatpush2.msra.mxu0 0.0
    %6828 = vmatprep.subr.mxu0 0.0
    %6829 = vmatpush2.msra.mxu0 0.0
    %6830 = vmatprep.subr.mxu0 0.0
    %6831 = vmatpush2.msra.mxu0 0.0
    %6832 = vmatprep.subr.mxu0 0.0
    %6833 = vmatpush2.msra.mxu0 0.0
    %6834 = vmatprep.subr.mxu0 0.0
    %6835 = vmatpush2.msra.mxu0 0.0
    %6836 = vmatprep.subr.mxu0 0.0
    %6837 = vmatpush2.msra.mxu0 0.0
    %6838 = vmatprep.subr.mxu0 0.0
    %6839 = vmatpush2.msra.mxu0 0.0
    %6840 = vmatprep.subr.mxu0 0.0
    %6841 = vmatpush2.msra.mxu0 0.0
    %6842 = vmatprep.subr.mxu0 0.0
    %6843 = vmatpush2.msra.mxu0 0.0
    %6844 = vmatprep.subr.mxu0 0.0
    %6845 = vmatpush2.msra.mxu0 0.0
    %6846 = vmatprep.subr.mxu0 0.0
    %6847 = vmatpush2.msra.mxu0 0.0
    %6848 = vmatprep.mubr.f32.mxu0 0.0
    %6849 = vmatmul.mubr.f32.gmra.mxu0 %v6782
    %v6850 = vpop.f32.mrf.mxu0
    %v6851 = vadd.f32 0.0, %v6850
    %v6852 = vpop.f32.mrf.mxu0
    %v6853 = vadd.f32 0.0, %v6852
    %6854 = vdwg.mxu0
    %6855 = vmatprep.subr.mxu0 0.0
    %6856 = vmatpush1.msra.mxu0 0.0
    %6857 = vmatprep.subr.mxu0 0.0
    %6858 = vmatpush1.msra.mxu0 0.0
    %6859 = vmatprep.subr.mxu0 0.0
    %6860 = vmatpush1.msra.mxu0 0.0
    %6861 = vmatprep.subr.mxu0 0.0
    %6862 = vmatpush1.msra.mxu0 0.0
    %6863 = vmatprep.subr.mxu0 0.0
    %6864 = vmatpush1.msra.mxu0 0.0
    %6865 = vmatprep.subr.mxu0 0.0
    %6866 = vmatpush1.msra.mxu0 0.0
    %6867 = vmatprep.subr.mxu0 0.0
    %6868 = vmatpush1.msra.mxu0 0.0
    %6869 = vmatprep.subr.mxu0 0.0
    %6870 = vmatpush1.msra.mxu0 0.0
    %6871 = vmatprep.subr.mxu0 0.0
    %6872 = vmatpush1.msra.mxu0 0.0
    %6873 = vmatprep.subr.mxu0 0.0
    %6874 = vmatpush1.msra.mxu0 0.0
    %6875 = vmatprep.subr.mxu0 0.0
    %6876 = vmatpush1.msra.mxu0 0.0
    %6877 = vmatprep.subr.mxu0 0.0
    %6878 = vmatpush1.msra.mxu0 0.0
    %6879 = vmatprep.subr.mxu0 0.0
    %6880 = vmatpush1.msra.mxu0 0.0
    %6881 = vmatprep.subr.mxu0 0.0
    %6882 = vmatpush1.msra.mxu0 0.0
    %6883 = vmatprep.subr.mxu0 0.0
    %6884 = vmatpush1.msra.mxu0 0.0
    %6885 = vmatprep.subr.mxu0 %v6772
    %6886 = vmatpush1.msra.mxu0 %v6771
    %6887 = vmatprep.subr.mxu0 0.0
    %6888 = vmatpush2.msra.mxu0 0.0
    %6889 = vmatprep.subr.mxu0 0.0
    %6890 = vmatpush2.msra.mxu0 0.0
    %6891 = vmatprep.subr.mxu0 0.0
    %6892 = vmatpush2.msra.mxu0 0.0
    %6893 = vmatprep.subr.mxu0 0.0
    %6894 = vmatpush2.msra.mxu0 0.0
    %6895 = vmatprep.subr.mxu0 0.0
    %6896 = vmatpush2.msra.mxu0 0.0
    %6897 = vmatprep.subr.mxu0 0.0
    %6898 = vmatpush2.msra.mxu0 0.0
    %6899 = vmatprep.subr.mxu0 0.0
    %6900 = vmatpush2.msra.mxu0 0.0
    %6901 = vmatprep.subr.mxu0 0.0
    %6902 = vmatpush2.msra.mxu0 0.0
    %6903 = vmatprep.subr.mxu0 0.0
    %6904 = vmatpush2.msra.mxu0 0.0
    %6905 = vmatprep.subr.mxu0 0.0
    %6906 = vmatpush2.msra.mxu0 0.0
    %6907 = vmatprep.subr.mxu0 0.0
    %6908 = vmatpush2.msra.mxu0 0.0
    %6909 = vmatprep.subr.mxu0 0.0
    %6910 = vmatpush2.msra.mxu0 0.0
    %6911 = vmatprep.subr.mxu0 0.0
    %6912 = vmatpush2.msra.mxu0 0.0
    %6913 = vmatprep.subr.mxu0 0.0
    %6914 = vmatpush2.msra.mxu0 0.0
    %6915 = vmatprep.subr.mxu0 0.0
    %6916 = vmatpush2.msra.mxu0 0.0
    %6917 = vmatprep.subr.mxu0 0.0
    %6918 = vmatpush2.msra.mxu0 0.0
    %6919 = vmatprep.mubr.f32.mxu0 0.0
    %6920 = vmatmul.mubr.f32.gmra.mxu0 %v6782
    %v6921 = vpop.f32.mrf.mxu0
    %v6922 = vadd.f32 0.0, %v6921
    %v6923 = vpop.f32.mrf.mxu0
    %v6924 = vadd.f32 0.0, %v6923
    %6925 = vdwg.mxu0
    %6926 = vmatprep.subr.mxu0 0.0
    %6927 = vmatpush1.msra.mxu0 0.0
    %6928 = vmatprep.subr.mxu0 0.0
    %6929 = vmatpush1.msra.mxu0 0.0
    %6930 = vmatprep.subr.mxu0 0.0
    %6931 = vmatpush1.msra.mxu0 0.0
    %6932 = vmatprep.subr.mxu0 0.0
    %6933 = vmatpush1.msra.mxu0 0.0
    %6934 = vmatprep.subr.mxu0 0.0
    %6935 = vmatpush1.msra.mxu0 0.0
    %6936 = vmatprep.subr.mxu0 0.0
    %6937 = vmatpush1.msra.mxu0 0.0
    %6938 = vmatprep.subr.mxu0 0.0
    %6939 = vmatpush1.msra.mxu0 0.0
    %6940 = vmatprep.subr.mxu0 0.0
    %6941 = vmatpush1.msra.mxu0 0.0
    %6942 = vmatprep.subr.mxu0 0.0
    %6943 = vmatpush1.msra.mxu0 0.0
    %6944 = vmatprep.subr.mxu0 0.0
    %6945 = vmatpush1.msra.mxu0 0.0
    %6946 = vmatprep.subr.mxu0 0.0
    %6947 = vmatpush1.msra.mxu0 0.0
    %6948 = vmatprep.subr.mxu0 0.0
    %6949 = vmatpush1.msra.mxu0 0.0
    %6950 = vmatprep.subr.mxu0 0.0
    %6951 = vmatpush1.msra.mxu0 0.0
    %6952 = vmatprep.subr.mxu0 0.0
    %6953 = vmatpush1.msra.mxu0 0.0
    %6954 = vmatprep.subr.mxu0 0.0
    %6955 = vmatpush1.msra.mxu0 0.0
    %6956 = vmatprep.subr.mxu0 %v6774
    %6957 = vmatpush1.msra.mxu0 %v6773
    %6958 = vmatprep.subr.mxu0 0.0
    %6959 = vmatpush2.msra.mxu0 0.0
    %6960 = vmatprep.subr.mxu0 0.0
    %6961 = vmatpush2.msra.mxu0 0.0
    %6962 = vmatprep.subr.mxu0 0.0
    %6963 = vmatpush2.msra.mxu0 0.0
    %6964 = vmatprep.subr.mxu0 0.0
    %6965 = vmatpush2.msra.mxu0 0.0
    %6966 = vmatprep.subr.mxu0 0.0
    %6967 = vmatpush2.msra.mxu0 0.0
    %6968 = vmatprep.subr.mxu0 0.0
    %6969 = vmatpush2.msra.mxu0 0.0
    %6970 = vmatprep.subr.mxu0 0.0
    %6971 = vmatpush2.msra.mxu0 0.0
    %6972 = vmatprep.subr.mxu0 0.0
    %6973 = vmatpush2.msra.mxu0 0.0
    %6974 = vmatprep.subr.mxu0 0.0
    %6975 = vmatpush2.msra.mxu0 0.0
    %6976 = vmatprep.subr.mxu0 0.0
    %6977 = vmatpush2.msra.mxu0 0.0
    %6978 = vmatprep.subr.mxu0 0.0
    %6979 = vmatpush2.msra.mxu0 0.0
    %6980 = vmatprep.subr.mxu0 0.0
    %6981 = vmatpush2.msra.mxu0 0.0
    %6982 = vmatprep.subr.mxu0 0.0
    %6983 = vmatpush2.msra.mxu0 0.0
    %6984 = vmatprep.subr.mxu0 0.0
    %6985 = vmatpush2.msra.mxu0 0.0
    %6986 = vmatprep.subr.mxu0 0.0
    %6987 = vmatpush2.msra.mxu0 0.0
    %6988 = vmatprep.subr.mxu0 0.0
    %6989 = vmatpush2.msra.mxu0 0.0
    %6990 = vmatprep.mubr.f32.mxu0 0.0
    %6991 = vmatmul.mubr.f32.gmra.mxu0 %v6782
    %v6992 = vpop.f32.mrf.mxu0
    %v6993 = vadd.f32 0.0, %v6992
    %v6994 = vpop.f32.mrf.mxu0
    %v6995 = vadd.f32 0.0, %v6994
    %6996 = vdwg.mxu0
    %v6997 = vadd.f32 %v6747, %v6851
    %v6998 = vadd.f32 %v6748, %v6853
    %v6999 = vadd.f32 %v6749, %v6922
    %v7000 = vadd.f32 %v6750, %v6924
    %v7001 = vadd.f32 %v6751, %v6993
    %v7002 = vadd.f32 %v6752, %v6995
    %s7003 = scalar_lea.vmem %s8, 64
    %v7004 = vld [vmem:[%s7003] sm:$0xff]
    %7005 = vrot.lane.b32.xlu0 %v6239, 109
    %v7006 = vpop.permute.xlu0 %7005
    %7007 = vrot.lane.b32.xlu0 %v6240, 109
    %v7008 = vpop.permute.xlu0 %7007
    %7009 = vrot.lane.b32.xlu0 %v6241, 109
    %v7010 = vpop.permute.xlu0 %7009
    %7011 = vrot.lane.b32.xlu0 %v6242, 109
    %v7012 = vpop.permute.xlu0 %7011
    %7013 = vrot.lane.b32.xlu0 %v6243, 109
    %v7014 = vpop.permute.xlu0 %7013
    %7015 = vrot.lane.b32.xlu0 %v6244, 109
    %v7016 = vpop.permute.xlu0 %7015
    %7017 = vrot.lane.b32.xlu0 %v6245, 109
    %v7018 = vpop.permute.xlu0 %7017
    %v7019 = vsel %vm2070, %v7006, %v7008
    %v7020 = vsel %vm2070, %v7008, %v7010
    %v7021 = vsel %vm2070, %v7010, %v7012
    %v7022 = vsel %vm2070, %v7012, %v7014
    %v7023 = vsel %vm2070, %v7014, %v7016
    %v7024 = vsel %vm2070, %v7016, %v7018
    %v7032 = vsel %vm101, %v7004, 0
    %7034 = vmatprep.subr.mxu0 0.0
    %7035 = vmatpush1.msra.mxu0 0.0
    %7036 = vmatprep.subr.mxu0 0.0
    %7037 = vmatpush1.msra.mxu0 0.0
    %7038 = vmatprep.subr.mxu0 0.0
    %7039 = vmatpush1.msra.mxu0 0.0
    %7040 = vmatprep.subr.mxu0 0.0
    %7041 = vmatpush1.msra.mxu0 0.0
    %7042 = vmatprep.subr.mxu0 0.0
    %7043 = vmatpush1.msra.mxu0 0.0
    %7044 = vmatprep.subr.mxu0 0.0
    %7045 = vmatpush1.msra.mxu0 0.0
    %7046 = vmatprep.subr.mxu0 0.0
    %7047 = vmatpush1.msra.mxu0 0.0
    %7048 = vmatprep.subr.mxu0 0.0
    %7049 = vmatpush1.msra.mxu0 0.0
    %7050 = vmatprep.subr.mxu0 0.0
    %7051 = vmatpush1.msra.mxu0 0.0
    %7052 = vmatprep.subr.mxu0 0.0
    %7053 = vmatpush1.msra.mxu0 0.0
    %7054 = vmatprep.subr.mxu0 0.0
    %7055 = vmatpush1.msra.mxu0 0.0
    %7056 = vmatprep.subr.mxu0 0.0
    %7057 = vmatpush1.msra.mxu0 0.0
    %7058 = vmatprep.subr.mxu0 0.0
    %7059 = vmatpush1.msra.mxu0 0.0
    %7060 = vmatprep.subr.mxu0 0.0
    %7061 = vmatpush1.msra.mxu0 0.0
    %7062 = vmatprep.subr.mxu0 0.0
    %7063 = vmatpush1.msra.mxu0 0.0
    %7064 = vmatprep.subr.mxu0 %v7020
    %7065 = vmatpush1.msra.mxu0 %v7019
    %7066 = vmatprep.subr.mxu0 0.0
    %7067 = vmatpush2.msra.mxu0 0.0
    %7068 = vmatprep.subr.mxu0 0.0
    %7069 = vmatpush2.msra.mxu0 0.0
    %7070 = vmatprep.subr.mxu0 0.0
    %7071 = vmatpush2.msra.mxu0 0.0
    %7072 = vmatprep.subr.mxu0 0.0
    %7073 = vmatpush2.msra.mxu0 0.0
    %7074 = vmatprep.subr.mxu0 0.0
    %7075 = vmatpush2.msra.mxu0 0.0
    %7076 = vmatprep.subr.mxu0 0.0
    %7077 = vmatpush2.msra.mxu0 0.0
    %7078 = vmatprep.subr.mxu0 0.0
    %7079 = vmatpush2.msra.mxu0 0.0
    %7080 = vmatprep.subr.mxu0 0.0
    %7081 = vmatpush2.msra.mxu0 0.0
    %7082 = vmatprep.subr.mxu0 0.0
    %7083 = vmatpush2.msra.mxu0 0.0
    %7084 = vmatprep.subr.mxu0 0.0
    %7085 = vmatpush2.msra.mxu0 0.0
    %7086 = vmatprep.subr.mxu0 0.0
    %7087 = vmatpush2.msra.mxu0 0.0
    %7088 = vmatprep.subr.mxu0 0.0
    %7089 = vmatpush2.msra.mxu0 0.0
    %7090 = vmatprep.subr.mxu0 0.0
    %7091 = vmatpush2.msra.mxu0 0.0
    %7092 = vmatprep.subr.mxu0 0.0
    %7093 = vmatpush2.msra.mxu0 0.0
    %7094 = vmatprep.subr.mxu0 0.0
    %7095 = vmatpush2.msra.mxu0 0.0
    %7096 = vmatprep.subr.mxu0 0.0
    %7097 = vmatpush2.msra.mxu0 0.0
    %7098 = vmatprep.mubr.f32.mxu0 0.0
    %7099 = vmatmul.mubr.f32.gmra.mxu0 %v7032
    %v7100 = vpop.f32.mrf.mxu0
    %v7101 = vadd.f32 0.0, %v7100
    %v7102 = vpop.f32.mrf.mxu0
    %v7103 = vadd.f32 0.0, %v7102
    %7104 = vdwg.mxu0
    %7105 = vmatprep.subr.mxu0 0.0
    %7106 = vmatpush1.msra.mxu0 0.0
    %7107 = vmatprep.subr.mxu0 0.0
    %7108 = vmatpush1.msra.mxu0 0.0
    %7109 = vmatprep.subr.mxu0 0.0
    %7110 = vmatpush1.msra.mxu0 0.0
    %7111 = vmatprep.subr.mxu0 0.0
    %7112 = vmatpush1.msra.mxu0 0.0
    %7113 = vmatprep.subr.mxu0 0.0
    %7114 = vmatpush1.msra.mxu0 0.0
    %7115 = vmatprep.subr.mxu0 0.0
    %7116 = vmatpush1.msra.mxu0 0.0
    %7117 = vmatprep.subr.mxu0 0.0
    %7118 = vmatpush1.msra.mxu0 0.0
    %7119 = vmatprep.subr.mxu0 0.0
    %7120 = vmatpush1.msra.mxu0 0.0
    %7121 = vmatprep.subr.mxu0 0.0
    %7122 = vmatpush1.msra.mxu0 0.0
    %7123 = vmatprep.subr.mxu0 0.0
    %7124 = vmatpush1.msra.mxu0 0.0
    %7125 = vmatprep.subr.mxu0 0.0
    %7126 = vmatpush1.msra.mxu0 0.0
    %7127 = vmatprep.subr.mxu0 0.0
    %7128 = vmatpush1.msra.mxu0 0.0
    %7129 = vmatprep.subr.mxu0 0.0
    %7130 = vmatpush1.msra.mxu0 0.0
    %7131 = vmatprep.subr.mxu0 0.0
    %7132 = vmatpush1.msra.mxu0 0.0
    %7133 = vmatprep.subr.mxu0 0.0
    %7134 = vmatpush1.msra.mxu0 0.0
    %7135 = vmatprep.subr.mxu0 %v7022
    %7136 = vmatpush1.msra.mxu0 %v7021
    %7137 = vmatprep.subr.mxu0 0.0
    %7138 = vmatpush2.msra.mxu0 0.0
    %7139 = vmatprep.subr.mxu0 0.0
    %7140 = vmatpush2.msra.mxu0 0.0
    %7141 = vmatprep.subr.mxu0 0.0
    %7142 = vmatpush2.msra.mxu0 0.0
    %7143 = vmatprep.subr.mxu0 0.0
    %7144 = vmatpush2.msra.mxu0 0.0
    %7145 = vmatprep.subr.mxu0 0.0
    %7146 = vmatpush2.msra.mxu0 0.0
    %7147 = vmatprep.subr.mxu0 0.0
    %7148 = vmatpush2.msra.mxu0 0.0
    %7149 = vmatprep.subr.mxu0 0.0
    %7150 = vmatpush2.msra.mxu0 0.0
    %7151 = vmatprep.subr.mxu0 0.0
    %7152 = vmatpush2.msra.mxu0 0.0
    %7153 = vmatprep.subr.mxu0 0.0
    %7154 = vmatpush2.msra.mxu0 0.0
    %7155 = vmatprep.subr.mxu0 0.0
    %7156 = vmatpush2.msra.mxu0 0.0
    %7157 = vmatprep.subr.mxu0 0.0
    %7158 = vmatpush2.msra.mxu0 0.0
    %7159 = vmatprep.subr.mxu0 0.0
    %7160 = vmatpush2.msra.mxu0 0.0
    %7161 = vmatprep.subr.mxu0 0.0
    %7162 = vmatpush2.msra.mxu0 0.0
    %7163 = vmatprep.subr.mxu0 0.0
    %7164 = vmatpush2.msra.mxu0 0.0
    %7165 = vmatprep.subr.mxu0 0.0
    %7166 = vmatpush2.msra.mxu0 0.0
    %7167 = vmatprep.subr.mxu0 0.0
    %7168 = vmatpush2.msra.mxu0 0.0
    %7169 = vmatprep.mubr.f32.mxu0 0.0
    %7170 = vmatmul.mubr.f32.gmra.mxu0 %v7032
    %v7171 = vpop.f32.mrf.mxu0
    %v7172 = vadd.f32 0.0, %v7171
    %v7173 = vpop.f32.mrf.mxu0
    %v7174 = vadd.f32 0.0, %v7173
    %7175 = vdwg.mxu0
    %7176 = vmatprep.subr.mxu0 0.0
    %7177 = vmatpush1.msra.mxu0 0.0
    %7178 = vmatprep.subr.mxu0 0.0
    %7179 = vmatpush1.msra.mxu0 0.0
    %7180 = vmatprep.subr.mxu0 0.0
    %7181 = vmatpush1.msra.mxu0 0.0
    %7182 = vmatprep.subr.mxu0 0.0
    %7183 = vmatpush1.msra.mxu0 0.0
    %7184 = vmatprep.subr.mxu0 0.0
    %7185 = vmatpush1.msra.mxu0 0.0
    %7186 = vmatprep.subr.mxu0 0.0
    %7187 = vmatpush1.msra.mxu0 0.0
    %7188 = vmatprep.subr.mxu0 0.0
    %7189 = vmatpush1.msra.mxu0 0.0
    %7190 = vmatprep.subr.mxu0 0.0
    %7191 = vmatpush1.msra.mxu0 0.0
    %7192 = vmatprep.subr.mxu0 0.0
    %7193 = vmatpush1.msra.mxu0 0.0
    %7194 = vmatprep.subr.mxu0 0.0
    %7195 = vmatpush1.msra.mxu0 0.0
    %7196 = vmatprep.subr.mxu0 0.0
    %7197 = vmatpush1.msra.mxu0 0.0
    %7198 = vmatprep.subr.mxu0 0.0
    %7199 = vmatpush1.msra.mxu0 0.0
    %7200 = vmatprep.subr.mxu0 0.0
    %7201 = vmatpush1.msra.mxu0 0.0
    %7202 = vmatprep.subr.mxu0 0.0
    %7203 = vmatpush1.msra.mxu0 0.0
    %7204 = vmatprep.subr.mxu0 0.0
    %7205 = vmatpush1.msra.mxu0 0.0
    %7206 = vmatprep.subr.mxu0 %v7024
    %7207 = vmatpush1.msra.mxu0 %v7023
    %7208 = vmatprep.subr.mxu0 0.0
    %7209 = vmatpush2.msra.mxu0 0.0
    %7210 = vmatprep.subr.mxu0 0.0
    %7211 = vmatpush2.msra.mxu0 0.0
    %7212 = vmatprep.subr.mxu0 0.0
    %7213 = vmatpush2.msra.mxu0 0.0
    %7214 = vmatprep.subr.mxu0 0.0
    %7215 = vmatpush2.msra.mxu0 0.0
    %7216 = vmatprep.subr.mxu0 0.0
    %7217 = vmatpush2.msra.mxu0 0.0
    %7218 = vmatprep.subr.mxu0 0.0
    %7219 = vmatpush2.msra.mxu0 0.0
    %7220 = vmatprep.subr.mxu0 0.0
    %7221 = vmatpush2.msra.mxu0 0.0
    %7222 = vmatprep.subr.mxu0 0.0
    %7223 = vmatpush2.msra.mxu0 0.0
    %7224 = vmatprep.subr.mxu0 0.0
    %7225 = vmatpush2.msra.mxu0 0.0
    %7226 = vmatprep.subr.mxu0 0.0
    %7227 = vmatpush2.msra.mxu0 0.0
    %7228 = vmatprep.subr.mxu0 0.0
    %7229 = vmatpush2.msra.mxu0 0.0
    %7230 = vmatprep.subr.mxu0 0.0
    %7231 = vmatpush2.msra.mxu0 0.0
    %7232 = vmatprep.subr.mxu0 0.0
    %7233 = vmatpush2.msra.mxu0 0.0
    %7234 = vmatprep.subr.mxu0 0.0
    %7235 = vmatpush2.msra.mxu0 0.0
    %7236 = vmatprep.subr.mxu0 0.0
    %7237 = vmatpush2.msra.mxu0 0.0
    %7238 = vmatprep.subr.mxu0 0.0
    %7239 = vmatpush2.msra.mxu0 0.0
    %7240 = vmatprep.mubr.f32.mxu0 0.0
    %7241 = vmatmul.mubr.f32.gmra.mxu0 %v7032
    %v7242 = vpop.f32.mrf.mxu0
    %v7243 = vadd.f32 0.0, %v7242
    %v7244 = vpop.f32.mrf.mxu0
    %v7245 = vadd.f32 0.0, %v7244
    %7246 = vdwg.mxu0
    %v7247 = vadd.f32 %v6997, %v7101
    %v7248 = vadd.f32 %v6998, %v7103
    %v7249 = vadd.f32 %v6999, %v7172
    %v7250 = vadd.f32 %v7000, %v7174
    %v7251 = vadd.f32 %v7001, %v7243
    %v7252 = vadd.f32 %v7002, %v7245
    %v7253 = vmul.f32 %v7247, %v2309
    %v7254 = vmul.f32 %v7248, %v2313
    %v7255 = vmul.f32 %v7249, %v2317
    %v7256 = vmul.f32 %v7250, %v2321
    %v7257 = vmul.f32 %v7251, %v2325
    %v7258 = vmul.f32 %v7252, %v2329
    %v7259 = vadd.f32 %v7253, %v7254
    %v7260 = vadd.f32 %v7259, %v7255
    %v7261 = vadd.f32 %v7260, %v7256
    %v7262 = vadd.f32 %v7261, %v7257
    %v7263 = vadd.f32 %v7262, %v7258
    %7264 = vadd.xlane.f32.xlu0 %v7263
    %v7265 = vpop.xlane.xlu0 %7264
    %v7266 = vmul.f32 %v7253, %v7253
    %v7267 = vmul.f32 %v7254, %v7254
    %v7268 = vmul.f32 %v7255, %v7255
    %v7269 = vmul.f32 %v7256, %v7256
    %v7270 = vmul.f32 %v7257, %v7257
    %v7271 = vmul.f32 %v7258, %v7258
    %v7272 = vadd.f32 %v7266, %v7267
    %v7273 = vadd.f32 %v7272, %v7268
    %v7274 = vadd.f32 %v7273, %v7269
    %v7275 = vadd.f32 %v7274, %v7270
    %v7276 = vadd.f32 %v7275, %v7271
    %7277 = vadd.xlane.f32.xlu0 %v7276
    %v7278 = vpop.xlane.xlu0 %7277
    %v7279 = vmul.f32 %v7265, 0.001953125
    %v7280 = vmul.f32 %v7278, 0.001953125
    %v7281 = vmul.f32 %v7279, %v7279
    %v7282 = vsub.f32 %v7280, %v7281
    %v7283 = vld [vmem:[%s9] sm:$0xff]
    %v7284 = vadd.f32 %v7282, 1e-05
    %v7285 = vrsqrt.pop %v7284
    %v7286 = vmul.f32 %v7283, %v7285
    %v7287 = vld [vmem:[%s10] sm:$0xff]
    %v7288 = vmul.f32 %v7279, %v7286
    %v7289 = vsub.f32 %v7287, %v7288
    %7291 = vset.pattern.permute.xlu0 0
    %7292 = vperm.xlu0 %7291, %v7286
    %v7293 = vpop.permute.xlu0 %7292
    %v7295 = vmul.f32 %v7247, %v7293
    %v7296 = vmul.f32 %v7248, %v7293
    %v7297 = vmul.f32 %v7249, %v7293
    %v7298 = vmul.f32 %v7250, %v7293
    %v7299 = vmul.f32 %v7251, %v7293
    %v7300 = vmul.f32 %v7252, %v7293
    %7302 = vset.pattern.permute.xlu0 0
    %7303 = vperm.xlu0 %7302, %v7289
    %v7304 = vpop.permute.xlu0 %7303
    %v7306 = vadd.f32 %v7295, %v7304
    %v7307 = vadd.f32 %v7296, %v7304
    %v7308 = vadd.f32 %v7297, %v7304
    %v7309 = vadd.f32 %v7298, %v7304
    %v7310 = vadd.f32 %v7299, %v7304
    %v7311 = vadd.f32 %v7300, %v7304
    %7312 = vst [vmem:[#allocation3] sm:$0xff] %v7306
    %7313 = vst [vmem:[#allocation3 + $0x8] sm:$0xff] %v7307
    %7314 = vst [vmem:[#allocation3 + $0x10] sm:$0xff] %v7308
    %7315 = vst [vmem:[#allocation3 + $0x18] sm:$0xff] %v7309
    %7316 = vst [vmem:[#allocation3 + $0x20] sm:$0xff] %v7310
    %7317 = vst [vmem:[#allocation3 + $0x28] sm:$0xff] %v7311
    %v7318 = vld [vmem:[#allocation3] ss:$8 sm:$0xf]
    %v7319 = vld [vmem:[#allocation3] ss:$8 sm:$0x30]
    %v7320 = vor.u32 %v7318, %v7319
    %v7321 = vmul.f32 %v7320, 0.5
    %v7322 = vadd.f32 %v7321, 0.0
    %vm7323 = vcmp.ge.f32.partialorder %v7322, 1.0
    %v7324 = vsel %vm7323, 1, 0
    %v7325 = vcvt.s32.f32 %v7324
    %v7326 = vsub.f32 1.0, %v7325
    %v7327 = vmul.f32 %v7322, %v7326
    %v7328 = vld [vmem:[%s2420] ss:$8 sm:$0xf]
    %v7329 = vld [vmem:[%s2420] ss:$8 sm:$0x30]
    %v7330 = vor.u32 %v7328, %v7329
    %v7331 = vadd.f32 %v7330, %v7325
    %7332 = vst.msk [vmem:[#allocation6] ss:$8 sm:$0xf] %vm2419, %v7331
    %7333 = vst.msk [vmem:[#allocation6] ss:$8 sm:$0x30] %vm2419, %v7331
    %v7334 = vld [vmem:[%s2423] ss:$8 sm:$0xf]
    %v7335 = vld [vmem:[%s2423] ss:$8 sm:$0x30]
    %v7336 = vor.u32 %v7334, %v7335
    %v7337 = vsub.f32 %v7336, %v7327
    %v7338 = vmul.f32 %v7337, 0.5
    %v7339 = vadd.f32 %v7327, %v7338
    %vm7340 = vcmp.ge.f32.partialorder %v7339, 1.0
    %v7341 = vsel %vm7340, 1, 0
    %v7342 = vcvt.s32.f32 %v7341
    %v7343 = vsub.f32 1.0, %v7342
    %v7344 = vmul.f32 %v7339, %v7343
    %v7345 = vld [vmem:[%s2441] ss:$8 sm:$0xf]
    %v7346 = vld [vmem:[%s2441] ss:$8 sm:$0x30]
    %v7347 = vor.u32 %v7345, %v7346
    %v7348 = vadd.f32 %v7347, %v7342
    %s7349 = scalar_lea.vmem [#allocation6], 1
    %7350 = vst.msk [vmem:[%s7349] ss:$8 sm:$0xf] %vm2419, %v7348
    %7351 = vst.msk [vmem:[%s7349] ss:$8 sm:$0x30] %vm2419, %v7348
    %v7352 = vld [vmem:[%s2444] ss:$8 sm:$0xf]
    %v7353 = vld [vmem:[%s2444] ss:$8 sm:$0x30]
    %v7354 = vor.u32 %v7352, %v7353
    %v7355 = vsub.f32 %v7354, %v7344
    %v7356 = vmul.f32 %v7355, 0.5
    %v7357 = vadd.f32 %v7344, %v7356
    %vm7358 = vcmp.ge.f32.partialorder %v7357, 1.0
    %v7359 = vsel %vm7358, 1, 0
    %v7360 = vcvt.s32.f32 %v7359
    %v7361 = vsub.f32 1.0, %v7360
    %v7362 = vmul.f32 %v7357, %v7361
    %v7363 = vld [vmem:[%s2462] ss:$8 sm:$0xf]
    %v7364 = vld [vmem:[%s2462] ss:$8 sm:$0x30]
    %v7365 = vor.u32 %v7363, %v7364
    %v7366 = vadd.f32 %v7365, %v7360
    %s7367 = scalar_lea.vmem [#allocation6], 2
    %7368 = vst.msk [vmem:[%s7367] ss:$8 sm:$0xf] %vm2419, %v7366
    %7369 = vst.msk [vmem:[%s7367] ss:$8 sm:$0x30] %vm2419, %v7366
    %v7370 = vld [vmem:[%s2465] ss:$8 sm:$0xf]
    %v7371 = vld [vmem:[%s2465] ss:$8 sm:$0x30]
    %v7372 = vor.u32 %v7370, %v7371
    %v7373 = vsub.f32 %v7372, %v7362
    %v7374 = vmul.f32 %v7373, 0.5
    %v7375 = vadd.f32 %v7362, %v7374
    %vm7376 = vcmp.ge.f32.partialorder %v7375, 1.0
    %v7377 = vsel %vm7376, 1, 0
    %v7378 = vcvt.s32.f32 %v7377
    %v7379 = vsub.f32 1.0, %v7378
    %v7380 = vmul.f32 %v7375, %v7379
    %v7381 = vld [vmem:[%s2483] ss:$8 sm:$0xf]
    %v7382 = vld [vmem:[%s2483] ss:$8 sm:$0x30]
    %v7383 = vor.u32 %v7381, %v7382
    %v7384 = vadd.f32 %v7383, %v7378
    %s7385 = scalar_lea.vmem [#allocation6], 3
    %7386 = vst.msk [vmem:[%s7385] ss:$8 sm:$0xf] %vm2419, %v7384
    %7387 = vst.msk [vmem:[%s7385] ss:$8 sm:$0x30] %vm2419, %v7384
    %v7388 = vld [vmem:[%s2486] ss:$8 sm:$0xf]
    %v7389 = vld [vmem:[%s2486] ss:$8 sm:$0x30]
    %v7390 = vor.u32 %v7388, %v7389
    %v7391 = vsub.f32 %v7390, %v7380
    %v7392 = vmul.f32 %v7391, 0.5
    %v7393 = vadd.f32 %v7380, %v7392
    %vm7394 = vcmp.ge.f32.partialorder %v7393, 1.0
    %v7395 = vsel %vm7394, 1, 0
    %v7396 = vcvt.s32.f32 %v7395
    %v7397 = vsub.f32 1.0, %v7396
    %v7398 = vmul.f32 %v7393, %v7397
    %v7399 = vld [vmem:[%s2504] ss:$8 sm:$0xf]
    %v7400 = vld [vmem:[%s2504] ss:$8 sm:$0x30]
    %v7401 = vor.u32 %v7399, %v7400
    %v7402 = vadd.f32 %v7401, %v7396
    %s7403 = scalar_lea.vmem [#allocation6], 4
    %7404 = vst.msk [vmem:[%s7403] ss:$8 sm:$0xf] %vm2419, %v7402
    %7405 = vst.msk [vmem:[%s7403] ss:$8 sm:$0x30] %vm2419, %v7402
    %v7406 = vld [vmem:[%s2507] ss:$8 sm:$0xf]
    %v7407 = vld [vmem:[%s2507] ss:$8 sm:$0x30]
    %v7408 = vor.u32 %v7406, %v7407
    %v7409 = vsub.f32 %v7408, %v7398
    %v7410 = vmul.f32 %v7409, 0.5
    %v7411 = vadd.f32 %v7398, %v7410
    %vm7412 = vcmp.ge.f32.partialorder %v7411, 1.0
    %v7413 = vsel %vm7412, 1, 0
    %v7414 = vcvt.s32.f32 %v7413
    %v7415 = vsub.f32 1.0, %v7414
    %v7416 = vmul.f32 %v7411, %v7415
    %v7417 = vld [vmem:[%s2525] ss:$8 sm:$0xf]
    %v7418 = vld [vmem:[%s2525] ss:$8 sm:$0x30]
    %v7419 = vor.u32 %v7417, %v7418
    %v7420 = vadd.f32 %v7419, %v7414
    %s7421 = scalar_lea.vmem [#allocation6], 5
    %7422 = vst.msk [vmem:[%s7421] ss:$8 sm:$0xf] %vm2419, %v7420
    %7423 = vst.msk [vmem:[%s7421] ss:$8 sm:$0x30] %vm2419, %v7420
    %v7424 = vld [vmem:[%s2528] ss:$8 sm:$0xf]
    %v7425 = vld [vmem:[%s2528] ss:$8 sm:$0x30]
    %v7426 = vor.u32 %v7424, %v7425
    %v7427 = vsub.f32 %v7426, %v7416
    %v7428 = vmul.f32 %v7427, 0.5
    %v7429 = vadd.f32 %v7416, %v7428
    %vm7430 = vcmp.ge.f32.partialorder %v7429, 1.0
    %v7431 = vsel %vm7430, 1, 0
    %v7432 = vcvt.s32.f32 %v7431
    %v7433 = vsub.f32 1.0, %v7432
    %v7434 = vmul.f32 %v7429, %v7433
    %v7435 = vld [vmem:[%s2546] ss:$8 sm:$0xf]
    %v7436 = vld [vmem:[%s2546] ss:$8 sm:$0x30]
    %v7437 = vor.u32 %v7435, %v7436
    %v7438 = vadd.f32 %v7437, %v7432
    %s7439 = scalar_lea.vmem [#allocation6], 6
    %7440 = vst.msk [vmem:[%s7439] ss:$8 sm:$0xf] %vm2419, %v7438
    %7441 = vst.msk [vmem:[%s7439] ss:$8 sm:$0x30] %vm2419, %v7438
    %v7442 = vld [vmem:[%s2549] ss:$8 sm:$0xf]
    %v7443 = vld [vmem:[%s2549] ss:$8 sm:$0x30]
    %v7444 = vor.u32 %v7442, %v7443
    %v7445 = vsub.f32 %v7444, %v7434
    %v7446 = vmul.f32 %v7445, 0.5
    %v7447 = vadd.f32 %v7434, %v7446
    %vm7448 = vcmp.ge.f32.partialorder %v7447, 1.0
    %v7449 = vsel %vm7448, 1, 0
    %v7450 = vcvt.s32.f32 %v7449
    %v7451 = vld [vmem:[%s2565] ss:$8 sm:$0xf]
    %v7452 = vld [vmem:[%s2565] ss:$8 sm:$0x30]
    %v7453 = vor.u32 %v7451, %v7452
    %v7454 = vadd.f32 %v7453, %v7450
    %s7455 = scalar_lea.vmem [#allocation6], 7
    %7456 = vst.msk [vmem:[%s7455] ss:$8 sm:$0xf] %vm2419, %v7454
    %7457 = vst.msk [vmem:[%s7455] ss:$8 sm:$0x30] %vm2419, %v7454
    // Predicated region
    $region46: #{tpu_custom_call.1} parent=1 // pred_check
      _
    $region47: #{tpu_custom_call.1} parent=1 // pred_check_branch
      %7459 = sbr.rel (0) target = $region49
    $region48: #{tpu_custom_call.1} parent=1 // pred_region
      %s7461 = ssub.s32 768, 768
      %7462 = vsyncadd [#allocation5], %s7461
      %s7464 = sshll.u32 [#allocation4], 4
      %s7465 = int_to_ptr.vmem [resolvable:$true] %s7464
      %7467 = dma.vmem_to_hbm [thread:$0]  %s7465, 768, %s11, [#allocation5]
    $region49: #{tpu_custom_call.1} parent=1 // pred_fallthru
      _
    // Predicated region
    $region50: #{tpu_custom_call.1} parent=1 // pred_check
      _
    $region51: #{tpu_custom_call.1} parent=1 // pred_check_branch
      %7469 = sbr.rel (0) target = $region53
    $region52: #{tpu_custom_call.1} parent=1 // pred_region
      %s7471 = ssub.s32 768, 768
      %7472 = vsyncadd [#allocation7], %s7471
      %s7474 = sshll.u32 [#allocation6], 4
      %s7475 = int_to_ptr.vmem [resolvable:$true] %s7474
      %7477 = dma.vmem_to_hbm [thread:$0]  %s7475, 768, %s12, [#allocation7]
    $region53: #{tpu_custom_call.1} parent=1 // pred_fallthru
      _
    // Predicated region
    $region54: #{tpu_custom_call.1} parent=1 // pred_check
      _
    $region55: #{tpu_custom_call.1} parent=1 // pred_check_branch
      %7479 = sbr.rel (0) target = $region57
    $region56: #{tpu_custom_call.1} parent=1 // pred_region
      %7480 = dma.done [#allocation5], 768
    $region57: #{tpu_custom_call.1} parent=1 // pred_fallthru
      _
    // Predicated region
    $region58: #{tpu_custom_call.1} parent=1 // pred_check
      _
    $region59: #{tpu_custom_call.1} parent=1 // pred_check_branch
      %7482 = sbr.rel (0) target = $region61
    $region60: #{tpu_custom_call.1} parent=1 // pred_region
      %7483 = dma.done [#allocation7], 768
    $region61: #{tpu_custom_call.1} parent=1 // pred_fallthru
      _
    %7484 = vsyncpa [#allocation5], 1
    %7485 = vsyncpa [#allocation7], 1

</llo_original>
